<compile_context>
chip_gen: v7x
topology: tpu7x:2x2x1
jax: 0.10.0
libtpu: 0.0.40
codegen_flags: <defaults>
</compile_context>

<pallas_src>
import jax
import jax.numpy as jnp
from jax.experimental import pallas as pl
from jax.experimental.pallas import tpu as pltpu

KSIZE = 4
STRIDE = 2
BN_EPS = 1e-5
LRELU_SLOPE = 0.2
LANE = 128
SUBLANE = 8


def _rup(x, m):
    return ((x + m - 1) // m) * m


def _pad_to(a, axis, target):
    if a.shape[axis] == target:
        return a
    pads = [(0, 0)] * a.ndim
    pads[axis] = (0, target - a.shape[axis])
    return jnp.pad(a, pads)


def _bn_lrelu(y, gamma, beta):
    # BatchNorm2d (training mode: batch stats, biased variance) + LeakyReLU,
    # all in f32.  Padded channels have y == 0 and gamma/beta/bias == 0, so
    # their output stays exactly 0.
    mean = jnp.mean(y, axis=0, keepdims=True)
    var = jnp.mean(jnp.square(y - mean), axis=0, keepdims=True)
    z = gamma * (y - mean) * jax.lax.rsqrt(var + BN_EPS) + beta
    return jnp.where(z >= 0, z, LRELU_SLOPE * z)


def _l0_patches_parity(x_nhwc):
    """im2col for block 0, rows grouped by the parity of the output coord.

    Patch columns are ordered (kh, kw, cin).  Grouping rows by the parity
    (ph, pw) of the layer-0 output coordinate makes every block-1 tap gather a
    unit-stride row slice.  Returns (patches, (OH, OW), offsets, dims).
    """
    N, H, W, C = x_nhwc.shape
    OH = (H - KSIZE) // STRIDE + 1
    OW = (W - KSIZE) // STRIDE + 1
    cols = [
        x_nhwc[:, kh:kh + STRIDE * OH:STRIDE, kw:kw + STRIDE * OW:STRIDE, :]
        for kh in range(KSIZE) for kw in range(KSIZE)
    ]
    p = jnp.stack(cols, axis=3).reshape(N, OH, OW, KSIZE * KSIZE * C)
    blocks, offs, dims = [], {}, {}
    off = 0
    for ph in range(STRIDE):
        for pw in range(STRIDE):
            blk = p[:, ph::STRIDE, pw::STRIDE, :]          # (N, n_i, n_j, K)
            n_i, n_j = blk.shape[1], blk.shape[2]
            blocks.append(blk.reshape(N * n_i * n_j, -1))  # rows = (n, i, j)
            offs[(ph, pw)] = off
            dims[(ph, pw)] = (n_i, n_j)
            off += N * n_i * n_j
    return jnp.concatenate(blocks, axis=0), (OH, OW), offs, dims


def init_encoder_params(key, image_channels=1, hidden_dim=16):
    chans = [
        (image_channels, hidden_dim),
        (hidden_dim, hidden_dim * 2),
        (hidden_dim * 2, hidden_dim * 4),
    ]
    params = []
    for i, (cin, cout) in enumerate(chans):
        key, k_w, k_b, k_g, k_beta = jax.random.split(key, 5)
        layer = {
            "w": 0.05 * jax.random.normal(k_w, (cout, cin, KSIZE, KSIZE), jnp.float32),
            "b": 0.05 * jax.random.normal(k_b, (cout,), jnp.float32),
        }
        if i < 2:  # blocks 0 and 1 carry BatchNorm affine params
            layer["gamma"] = 1.0 + 0.1 * jax.random.normal(k_g, (cout,), jnp.float32)
            layer["beta"] = 0.1 * jax.random.normal(k_beta, (cout,), jnp.float32)
        params.append(layer)
    return params


@jax.jit
def encoder_forward(params, image):
    """image: (N, C, H, W) float32 NCHW (same as PyTorch).  Returns (N, -1)."""
    N, c_in = image.shape[0], image.shape[1]
    c0 = params[0]["w"].shape[0]
    c1 = params[1]["w"].shape[0]
    c2 = params[2]["w"].shape[0]
    c0p, c1p, c2p = _rup(c0, LANE), _rup(c1, LANE), _rup(c2, LANE)

    # ---- host-side glue (all inside this single jit) ----------------------
    x_nhwc = jnp.transpose(image, (0, 2, 3, 1))
    p0, (oh0, ow0), l0_off, l0_dim = _l0_patches_parity(x_nhwc)
    p0 = p0.astype(jnp.bfloat16)

    oh1 = (oh0 - KSIZE) // STRIDE + 1
    ow1 = (ow0 - KSIZE) // STRIDE + 1
    oh2 = (oh1 - KSIZE) // STRIDE + 1
    ow2 = (ow1 - KSIZE) // STRIDE + 1
    r0, r2 = N * oh0 * ow0, N * oh2 * ow2
    r1 = N * oh1 * ow1                        # real block-1 rows (BN divisor)
    GROUP = _rup(ow1, SUBLANE)                # 8-row aligned gather groups
    r1p = N * oh1 * GROUP                     # block-1 rows incl. row padding
    k0 = KSIZE * KSIZE * c_in
    ntap = KSIZE * KSIZE
    K1 = ntap * c0p                           # fused contraction, block 1
    K2 = ntap * c1p                           # fused contraction, block 2

    # Weights in (kh, kw, cin, cout) layout; cout zero-padded to the 128-lane
    # width, cin left UN-padded (zero-extended in-kernel) -> 8x-32x less
    # weight DMA than host-padding cin to 128.
    w0 = jnp.transpose(params[0]["w"], (2, 3, 1, 0)).reshape(k0, c0)
    w0 = _pad_to(w0, 1, c0p).astype(jnp.bfloat16)                    # (k0, c0p)
    w1 = jnp.transpose(params[1]["w"], (2, 3, 1, 0)).reshape(ntap, c0, c1)
    w1 = _pad_to(w1, 2, c1p).astype(jnp.bfloat16)                    # (16, c0, c1p)
    w2 = jnp.transpose(params[2]["w"], (2, 3, 1, 0)).reshape(ntap, c1, c2)
    w2 = _pad_to(w2, 2, c2p).astype(jnp.bfloat16)                    # (16, c1, c2p)

    # Per-layer (bias, gamma, beta) packed into one small operand each.
    # NOTE: padded channels MUST stay exactly 0 so padded activation lanes
    # remain exactly 0 through BN/LeakyReLU.
    v0 = jnp.stack([_pad_to(params[0]["b"], 0, c0p),
                    _pad_to(params[0]["gamma"], 0, c0p),
                    _pad_to(params[0]["beta"], 0, c0p)]).astype(jnp.float32)
    v1 = jnp.stack([_pad_to(params[1]["b"], 0, c1p),
                    _pad_to(params[1]["gamma"], 0, c1p),
                    _pad_to(params[1]["beta"], 0, c1p)]).astype(jnp.float32)
    b2 = _pad_to(params[2]["b"], 0, c2p).reshape(1, c2p).astype(jnp.float32)

    # ---- fused kernel ------------------------------------------------------
    def kernel(p0_ref, w0_ref, v0_ref, w1_ref, v1_ref, w2_ref, b2_ref, o_ref,
               a0_ref, x1_ref, w1b_ref, a1_ref, x2_ref, w2b_ref):
        # Zero-extend the un-padded cin axis of w1/w2 into lane-aligned,
        # K-concatenated VMEM weights (rows [t*128, t*128+cin) are real,
        # the rest are zero so the padded LHS lanes contribute nothing).
        w1b_ref[...] = jnp.zeros_like(w1b_ref)
        w2b_ref[...] = jnp.zeros_like(w2b_ref)
        for t in range(ntap):
            w1b_ref[t * c0p:t * c0p + c0, :] = w1_ref[t]
            w2b_ref[t * c1p:t * c1p + c1, :] = w2_ref[t]

        # ---- block 0: conv (im2col matmul, bf16 MXU) + BN + LeakyReLU -----
        b0, g0, be0 = v0_ref[0:1, :], v0_ref[1:2, :], v0_ref[2:3, :]
        y0 = jnp.dot(p0_ref[...], w0_ref[...],
                     preferred_element_type=jnp.float32) + b0
        a0_ref[...] = _bn_lrelu(y0, g0, be0)

        # ---- block 1: fused-K im2col gather + ONE matmul + masked BN ------
        # x1 rows come in GROUP(=8)-row groups per (n, oh1); rows [ow1, GROUP)
        # of each group are padding and are zeroed here once.
        x1_ref[...] = jnp.zeros_like(x1_ref)
        for kh in range(KSIZE):
            for kw in range(KSIZE):
                t = kh * KSIZE + kw
                ph, pw = kh % STRIDE, kw % STRIDE
                n_i, n_j = l0_dim[(ph, pw)]
                base = l0_off[(ph, pw)] + (kh // STRIDE) * n_j + (kw // STRIDE)
                for n in range(N):
                    for i1 in range(oh1):
                        src = base + (n * n_i + i1) * n_j
                        dst = (n * oh1 + i1) * GROUP
                        x1_ref[dst:dst + ow1, t * c0p:(t + 1) * c0p] = (
                            a0_ref[src:src + ow1, :])

        b1, g1, be1 = v1_ref[0:1, :], v1_ref[1:2, :], v1_ref[2:3, :]
        y1 = jnp.dot(x1_ref[...].astype(jnp.bfloat16), w1b_ref[...],
                     preferred_element_type=jnp.float32) + b1
        # BatchNorm statistics over the r1 REAL rows only (row padding masked)
        rid = jax.lax.broadcasted_iota(jnp.int32, (r1p, 1), 0)
        rmask = ((rid % GROUP) < ow1).astype(jnp.float32)
        mean1 = jnp.sum(y1 * rmask, axis=0, keepdims=True) / r1
        cent1 = (y1 - mean1) * rmask
        var1 = jnp.sum(cent1 * cent1, axis=0, keepdims=True) / r1
        z1 = g1 * (y1 - mean1) * jax.lax.rsqrt(var1 + BN_EPS) + be1
        a1_ref[...] = jnp.where(z1 >= 0, z1, LRELU_SLOPE * z1)

        # ---- block 2: fused-K gather + ONE matmul (no BN / activation) ----
        for kh in range(KSIZE):
            for kw in range(KSIZE):
                t = kh * KSIZE + kw
                for n in range(N):
                    for i2 in range(oh2):
                        ri = (n * oh1 + STRIDE * i2 + kh) * GROUP + kw
                        ro = (n * oh2 + i2) * ow2
                        if ow2 == 1:
                            x2_ref[ro:ro + 1, t * c1p:(t + 1) * c1p] = (
                                a1_ref[ri:ri + 1, :])
                        else:
                            # one strided copy per (tap, n, i2) instead of
                            # ow2 single-row copies
                            x2_ref[ro:ro + ow2, t * c1p:(t + 1) * c1p] = (
                                a1_ref[pl.ds(ri, ow2, stride=STRIDE), :])

        o_ref[...] = jnp.dot(x2_ref[...].astype(jnp.bfloat16), w2b_ref[...],
                             preferred_element_type=jnp.float32) + b2_ref[...]

    def _spec(shape):
        nd = len(shape)
        return pl.BlockSpec(shape, lambda i, _nd=nd: (0,) * _nd)

    # TODO(synk): for larger batches / images (esp. v7x's 64 MiB VMEM) add a
    # row-tile grid axis with two-phase BN (per-channel sum/sumsq accumulators
    # finalized under pl.when) and a "parallel" axis to use both TensorCores;
    # at this size the whole problem fits in ~2.4 MB of VMEM on one core.
    out = pl.pallas_call(
        kernel,
        out_shape=jax.ShapeDtypeStruct((r2, c2p), jnp.float32),
        grid=(1,),
        in_specs=[
            _spec((r0, k0)),            # p0  (block-0 im2col rows, bf16)
            _spec((k0, c0p)),           # w0
            _spec((3, c0p)),            # bias/gamma/beta, block 0
            _spec((ntap, c0, c1p)),     # w1  (cin un-padded)
            _spec((3, c1p)),            # bias/gamma/beta, block 1
            _spec((ntap, c1, c2p)),     # w2  (cin un-padded)
            _spec((1, c2p)),            # bias, block 2
        ],
        out_specs=_spec((r2, c2p)),
        scratch_shapes=[
            pltpu.VMEM((r0, c0p), jnp.float32),   # a0: block-0 activations
            pltpu.VMEM((r1p, K1), jnp.float32),   # x1: fused-K im2col, block 1
            pltpu.VMEM((K1, c1p), jnp.bfloat16),  # w1 zero-extended along K
            pltpu.VMEM((r1p, c1p), jnp.float32),  # a1: block-1 activations
            pltpu.VMEM((r2, K2), jnp.float32),    # x2: fused-K im2col, block 2
            pltpu.VMEM((K2, c2p), jnp.bfloat16),  # w2 zero-extended along K
        ],
        compiler_params=pltpu.CompilerParams(
            dimension_semantics=("arbitrary",),
            vmem_limit_bytes=32 * 1024 * 1024),
    )(p0, w0, v0, w1, v1, w2, b2)

    # Crop channel padding; .view(N, -1) in NCHW order.
    out = out[:, :c2].reshape(N, oh2, ow2, c2).transpose(0, 3, 1, 2).reshape(N, -1)
    return out


def _reference_forward(params, image):
    """Pure-JAX/XLA reference matching the PyTorch module (training-mode BN)."""
    x = image
    for layer in params:
        x = jax.lax.conv_general_dilated(
            x, layer["w"], window_strides=(STRIDE, STRIDE), padding="VALID",
            dimension_numbers=("NCHW", "OIHW", "NCHW"))
        x = x + layer["b"].reshape(1, -1, 1, 1)
        if "gamma" in layer:
            mean = jnp.mean(x, axis=(0, 2, 3), keepdims=True)
            var = jnp.mean(jnp.square(x - mean), axis=(0, 2, 3), keepdims=True)
            x = (layer["gamma"].reshape(1, -1, 1, 1) * (x - mean)
                 * jax.lax.rsqrt(var + BN_EPS) + layer["beta"].reshape(1, -1, 1, 1))
            x = jnp.where(x >= 0, x, LRELU_SLOPE * x)
    return x.reshape(x.shape[0], -1)


if __name__ == "__main__":
    key = jax.random.PRNGKey(0)
    pkey, xkey = jax.random.split(key)

    image_channels, hidden_dim = 1, 16
    params = init_encoder_params(pkey, image_channels, hidden_dim)

    # 28x28 input: spatial 28 -> 13 -> 5 -> 1, output (N, 64)
    image = jax.random.normal(xkey, (2, image_channels, 28, 28), jnp.float32)

    out = jax.block_until_ready(encoder_forward(params, image))
    assert out.shape == (2, hidden_dim * 4), out.shape

    ref = jax.block_until_ready(_reference_forward(params, image))
    abs_err = float(jnp.max(jnp.abs(out - ref)))
    scale = float(jnp.max(jnp.abs(ref)))
    # relative tolerance (bf16 MXU operands, f32 accumulation/BN)
    assert abs_err <= 0.05 * max(scale, 1.0), (abs_err, scale)

    print("KERNEL_OK")
</pallas_src>

<mosaic_0001>
module attributes {stable_mosaic.version = 11 : i64} {
  func.func @kernel(%arg0: i32, %arg1: memref<338x16xbf16, #tpu.memory_space<vmem>>, %arg2: memref<16x128xbf16, #tpu.memory_space<vmem>>, %arg3: memref<3x128xf32, #tpu.memory_space<vmem>>, %arg4: memref<16x16x128xbf16, #tpu.memory_space<vmem>>, %arg5: memref<3x128xf32, #tpu.memory_space<vmem>>, %arg6: memref<16x32x128xbf16, #tpu.memory_space<vmem>>, %arg7: memref<1x128xf32, #tpu.memory_space<vmem>>, %arg8: memref<2x128xf32, #tpu.memory_space<vmem>>, %arg9: memref<338x128xf32, #tpu.memory_space<vmem>>, %arg10: memref<80x2048xf32, #tpu.memory_space<vmem>>, %arg11: memref<2048x128xbf16, #tpu.memory_space<vmem>>, %arg12: memref<80x128xf32, #tpu.memory_space<vmem>>, %arg13: memref<2x2048xf32, #tpu.memory_space<vmem>>, %arg14: memref<2048x128xbf16, #tpu.memory_space<vmem>>) attributes {dimension_semantics = [#tpu.dimension_semantics<arbitrary>], iteration_bounds = array<i64: 1>, scalar_prefetch = 0 : i64, scratch_operands = 6 : i64, tpu.core_type = #tpu.core_type<tc>, window_params = [{pipeline_mode = #tpu.pipeline_mode<synchronous>, transform_indices = @transform_0, window_bounds = array<i64: 338, 16>}, {pipeline_mode = #tpu.pipeline_mode<synchronous>, transform_indices = @transform_1, window_bounds = array<i64: 16, 128>}, {pipeline_mode = #tpu.pipeline_mode<synchronous>, transform_indices = @transform_2, window_bounds = array<i64: 3, 128>}, {pipeline_mode = #tpu.pipeline_mode<synchronous>, transform_indices = @transform_3, window_bounds = array<i64: 16, 16, 128>}, {pipeline_mode = #tpu.pipeline_mode<synchronous>, transform_indices = @transform_4, window_bounds = array<i64: 3, 128>}, {pipeline_mode = #tpu.pipeline_mode<synchronous>, transform_indices = @transform_5, window_bounds = array<i64: 16, 32, 128>}, {pipeline_mode = #tpu.pipeline_mode<synchronous>, transform_indices = @transform_6, window_bounds = array<i64: 1, 128>}, {pipeline_mode = #tpu.pipeline_mode<synchronous>, transform_indices = @transform_7, window_bounds = array<i64: 2, 128>}]} {
    %cst = arith.constant 0.000000e+00 : bf16
    %0 = vector.broadcast %cst : bf16 to vector<2048x128xbf16>
    %c0 = arith.constant 0 : index
    %c0_0 = arith.constant 0 : index
    %1 = vector.load %arg11[%c0, %c0_0] : memref<2048x128xbf16, #tpu.memory_space<vmem>>, vector<2048x128xbf16>
    tpu.vector_store %arg11[%c0, %c0_0], %0 {strides = array<i32>} : memref<2048x128xbf16, #tpu.memory_space<vmem>>, vector<2048x128xbf16>,
    %cst_1 = arith.constant 0.000000e+00 : bf16
    %2 = vector.broadcast %cst_1 : bf16 to vector<2048x128xbf16>
    %c0_2 = arith.constant 0 : index
    %c0_3 = arith.constant 0 : index
    %3 = vector.load %arg14[%c0_2, %c0_3] : memref<2048x128xbf16, #tpu.memory_space<vmem>>, vector<2048x128xbf16>
    tpu.vector_store %arg14[%c0_2, %c0_3], %2 {strides = array<i32>} : memref<2048x128xbf16, #tpu.memory_space<vmem>>, vector<2048x128xbf16>,
    %c0_4 = arith.constant 0 : index
    %c0_5 = arith.constant 0 : index
    %c0_6 = arith.constant 0 : index
    %4 = vector.load %arg4[%c0_4, %c0_5, %c0_6] : memref<16x16x128xbf16, #tpu.memory_space<vmem>>, vector<1x16x128xbf16>
    %5 = vector.shape_cast %4 : vector<1x16x128xbf16> to vector<16x128xbf16>
    %c0_7 = arith.constant 0 : index
    %c0_8 = arith.constant 0 : index
    %6 = vector.load %arg11[%c0_7, %c0_8] : memref<2048x128xbf16, #tpu.memory_space<vmem>>, vector<16x128xbf16>
    tpu.vector_store %arg11[%c0_7, %c0_8], %5 {strides = array<i32>} : memref<2048x128xbf16, #tpu.memory_space<vmem>>, vector<16x128xbf16>,
    %c0_9 = arith.constant 0 : index
    %c0_10 = arith.constant 0 : index
    %c0_11 = arith.constant 0 : index
    %7 = vector.load %arg6[%c0_9, %c0_10, %c0_11] : memref<16x32x128xbf16, #tpu.memory_space<vmem>>, vector<1x32x128xbf16>
    %8 = vector.shape_cast %7 : vector<1x32x128xbf16> to vector<32x128xbf16>
    %c0_12 = arith.constant 0 : index
    %c0_13 = arith.constant 0 : index
    %9 = vector.load %arg14[%c0_12, %c0_13] : memref<2048x128xbf16, #tpu.memory_space<vmem>>, vector<32x128xbf16>
    tpu.vector_store %arg14[%c0_12, %c0_13], %8 {strides = array<i32>} : memref<2048x128xbf16, #tpu.memory_space<vmem>>, vector<32x128xbf16>,
    %c1 = arith.constant 1 : index
    %c0_14 = arith.constant 0 : index
    %c0_15 = arith.constant 0 : index
    %10 = vector.load %arg4[%c1, %c0_14, %c0_15] : memref<16x16x128xbf16, #tpu.memory_space<vmem>>, vector<1x16x128xbf16>
    %11 = vector.shape_cast %10 : vector<1x16x128xbf16> to vector<16x128xbf16>
    %c128 = arith.constant 128 : index
    %c0_16 = arith.constant 0 : index
    %12 = vector.load %arg11[%c128, %c0_16] : memref<2048x128xbf16, #tpu.memory_space<vmem>>, vector<16x128xbf16>
    tpu.vector_store %arg11[%c128, %c0_16], %11 {strides = array<i32>} : memref<2048x128xbf16, #tpu.memory_space<vmem>>, vector<16x128xbf16>,
    %c1_17 = arith.constant 1 : index
    %c0_18 = arith.constant 0 : index
    %c0_19 = arith.constant 0 : index
    %13 = vector.load %arg6[%c1_17, %c0_18, %c0_19] : memref<16x32x128xbf16, #tpu.memory_space<vmem>>, vector<1x32x128xbf16>
    %14 = vector.shape_cast %13 : vector<1x32x128xbf16> to vector<32x128xbf16>
    %c128_20 = arith.constant 128 : index
    %c0_21 = arith.constant 0 : index
    %15 = vector.load %arg14[%c128_20, %c0_21] : memref<2048x128xbf16, #tpu.memory_space<vmem>>, vector<32x128xbf16>
    tpu.vector_store %arg14[%c128_20, %c0_21], %14 {strides = array<i32>} : memref<2048x128xbf16, #tpu.memory_space<vmem>>, vector<32x128xbf16>,
    %c2 = arith.constant 2 : index
    %c0_22 = arith.constant 0 : index
    %c0_23 = arith.constant 0 : index
    %16 = vector.load %arg4[%c2, %c0_22, %c0_23] : memref<16x16x128xbf16, #tpu.memory_space<vmem>>, vector<1x16x128xbf16>
    %17 = vector.shape_cast %16 : vector<1x16x128xbf16> to vector<16x128xbf16>
    %c256 = arith.constant 256 : index
    %c0_24 = arith.constant 0 : index
    %18 = vector.load %arg11[%c256, %c0_24] : memref<2048x128xbf16, #tpu.memory_space<vmem>>, vector<16x128xbf16>
    tpu.vector_store %arg11[%c256, %c0_24], %17 {strides = array<i32>} : memref<2048x128xbf16, #tpu.memory_space<vmem>>, vector<16x128xbf16>,
    %c2_25 = arith.constant 2 : index
    %c0_26 = arith.constant 0 : index
    %c0_27 = arith.constant 0 : index
    %19 = vector.load %arg6[%c2_25, %c0_26, %c0_27] : memref<16x32x128xbf16, #tpu.memory_space<vmem>>, vector<1x32x128xbf16>
    %20 = vector.shape_cast %19 : vector<1x32x128xbf16> to vector<32x128xbf16>
    %c256_28 = arith.constant 256 : index
    %c0_29 = arith.constant 0 : index
    %21 = vector.load %arg14[%c256_28, %c0_29] : memref<2048x128xbf16, #tpu.memory_space<vmem>>, vector<32x128xbf16>
    tpu.vector_store %arg14[%c256_28, %c0_29], %20 {strides = array<i32>} : memref<2048x128xbf16, #tpu.memory_space<vmem>>, vector<32x128xbf16>,
    %c3 = arith.constant 3 : index
    %c0_30 = arith.constant 0 : index
    %c0_31 = arith.constant 0 : index
    %22 = vector.load %arg4[%c3, %c0_30, %c0_31] : memref<16x16x128xbf16, #tpu.memory_space<vmem>>, vector<1x16x128xbf16>
    %23 = vector.shape_cast %22 : vector<1x16x128xbf16> to vector<16x128xbf16>
    %c384 = arith.constant 384 : index
    %c0_32 = arith.constant 0 : index
    %24 = vector.load %arg11[%c384, %c0_32] : memref<2048x128xbf16, #tpu.memory_space<vmem>>, vector<16x128xbf16>
    tpu.vector_store %arg11[%c384, %c0_32], %23 {strides = array<i32>} : memref<2048x128xbf16, #tpu.memory_space<vmem>>, vector<16x128xbf16>,
    %c3_33 = arith.constant 3 : index
    %c0_34 = arith.constant 0 : index
    %c0_35 = arith.constant 0 : index
    %25 = vector.load %arg6[%c3_33, %c0_34, %c0_35] : memref<16x32x128xbf16, #tpu.memory_space<vmem>>, vector<1x32x128xbf16>
    %26 = vector.shape_cast %25 : vector<1x32x128xbf16> to vector<32x128xbf16>
    %c384_36 = arith.constant 384 : index
    %c0_37 = arith.constant 0 : index
    %27 = vector.load %arg14[%c384_36, %c0_37] : memref<2048x128xbf16, #tpu.memory_space<vmem>>, vector<32x128xbf16>
    tpu.vector_store %arg14[%c384_36, %c0_37], %26 {strides = array<i32>} : memref<2048x128xbf16, #tpu.memory_space<vmem>>, vector<32x128xbf16>,
    %c4 = arith.constant 4 : index
    %c0_38 = arith.constant 0 : index
    %c0_39 = arith.constant 0 : index
    %28 = vector.load %arg4[%c4, %c0_38, %c0_39] : memref<16x16x128xbf16, #tpu.memory_space<vmem>>, vector<1x16x128xbf16>
    %29 = vector.shape_cast %28 : vector<1x16x128xbf16> to vector<16x128xbf16>
    %c512 = arith.constant 512 : index
    %c0_40 = arith.constant 0 : index
    %30 = vector.load %arg11[%c512, %c0_40] : memref<2048x128xbf16, #tpu.memory_space<vmem>>, vector<16x128xbf16>
    tpu.vector_store %arg11[%c512, %c0_40], %29 {strides = array<i32>} : memref<2048x128xbf16, #tpu.memory_space<vmem>>, vector<16x128xbf16>,
    %c4_41 = arith.constant 4 : index
    %c0_42 = arith.constant 0 : index
    %c0_43 = arith.constant 0 : index
    %31 = vector.load %arg6[%c4_41, %c0_42, %c0_43] : memref<16x32x128xbf16, #tpu.memory_space<vmem>>, vector<1x32x128xbf16>
    %32 = vector.shape_cast %31 : vector<1x32x128xbf16> to vector<32x128xbf16>
    %c512_44 = arith.constant 512 : index
    %c0_45 = arith.constant 0 : index
    %33 = vector.load %arg14[%c512_44, %c0_45] : memref<2048x128xbf16, #tpu.memory_space<vmem>>, vector<32x128xbf16>
    tpu.vector_store %arg14[%c512_44, %c0_45], %32 {strides = array<i32>} : memref<2048x128xbf16, #tpu.memory_space<vmem>>, vector<32x128xbf16>,
    %c5 = arith.constant 5 : index
    %c0_46 = arith.constant 0 : index
    %c0_47 = arith.constant 0 : index
    %34 = vector.load %arg4[%c5, %c0_46, %c0_47] : memref<16x16x128xbf16, #tpu.memory_space<vmem>>, vector<1x16x128xbf16>
    %35 = vector.shape_cast %34 : vector<1x16x128xbf16> to vector<16x128xbf16>
    %c640 = arith.constant 640 : index
    %c0_48 = arith.constant 0 : index
    %36 = vector.load %arg11[%c640, %c0_48] : memref<2048x128xbf16, #tpu.memory_space<vmem>>, vector<16x128xbf16>
    tpu.vector_store %arg11[%c640, %c0_48], %35 {strides = array<i32>} : memref<2048x128xbf16, #tpu.memory_space<vmem>>, vector<16x128xbf16>,
    %c5_49 = arith.constant 5 : index
    %c0_50 = arith.constant 0 : index
    %c0_51 = arith.constant 0 : index
    %37 = vector.load %arg6[%c5_49, %c0_50, %c0_51] : memref<16x32x128xbf16, #tpu.memory_space<vmem>>, vector<1x32x128xbf16>
    %38 = vector.shape_cast %37 : vector<1x32x128xbf16> to vector<32x128xbf16>
    %c640_52 = arith.constant 640 : index
    %c0_53 = arith.constant 0 : index
    %39 = vector.load %arg14[%c640_52, %c0_53] : memref<2048x128xbf16, #tpu.memory_space<vmem>>, vector<32x128xbf16>
    tpu.vector_store %arg14[%c640_52, %c0_53], %38 {strides = array<i32>} : memref<2048x128xbf16, #tpu.memory_space<vmem>>, vector<32x128xbf16>,
    %c6 = arith.constant 6 : index
    %c0_54 = arith.constant 0 : index
    %c0_55 = arith.constant 0 : index
    %40 = vector.load %arg4[%c6, %c0_54, %c0_55] : memref<16x16x128xbf16, #tpu.memory_space<vmem>>, vector<1x16x128xbf16>
    %41 = vector.shape_cast %40 : vector<1x16x128xbf16> to vector<16x128xbf16>
    %c768 = arith.constant 768 : index
    %c0_56 = arith.constant 0 : index
    %42 = vector.load %arg11[%c768, %c0_56] : memref<2048x128xbf16, #tpu.memory_space<vmem>>, vector<16x128xbf16>
    tpu.vector_store %arg11[%c768, %c0_56], %41 {strides = array<i32>} : memref<2048x128xbf16, #tpu.memory_space<vmem>>, vector<16x128xbf16>,
    %c6_57 = arith.constant 6 : index
    %c0_58 = arith.constant 0 : index
    %c0_59 = arith.constant 0 : index
    %43 = vector.load %arg6[%c6_57, %c0_58, %c0_59] : memref<16x32x128xbf16, #tpu.memory_space<vmem>>, vector<1x32x128xbf16>
    %44 = vector.shape_cast %43 : vector<1x32x128xbf16> to vector<32x128xbf16>
    %c768_60 = arith.constant 768 : index
    %c0_61 = arith.constant 0 : index
    %45 = vector.load %arg14[%c768_60, %c0_61] : memref<2048x128xbf16, #tpu.memory_space<vmem>>, vector<32x128xbf16>
    tpu.vector_store %arg14[%c768_60, %c0_61], %44 {strides = array<i32>} : memref<2048x128xbf16, #tpu.memory_space<vmem>>, vector<32x128xbf16>,
    %c7 = arith.constant 7 : index
    %c0_62 = arith.constant 0 : index
    %c0_63 = arith.constant 0 : index
    %46 = vector.load %arg4[%c7, %c0_62, %c0_63] : memref<16x16x128xbf16, #tpu.memory_space<vmem>>, vector<1x16x128xbf16>
    %47 = vector.shape_cast %46 : vector<1x16x128xbf16> to vector<16x128xbf16>
    %c896 = arith.constant 896 : index
    %c0_64 = arith.constant 0 : index
    %48 = vector.load %arg11[%c896, %c0_64] : memref<2048x128xbf16, #tpu.memory_space<vmem>>, vector<16x128xbf16>
    tpu.vector_store %arg11[%c896, %c0_64], %47 {strides = array<i32>} : memref<2048x128xbf16, #tpu.memory_space<vmem>>, vector<16x128xbf16>,
    %c7_65 = arith.constant 7 : index
    %c0_66 = arith.constant 0 : index
    %c0_67 = arith.constant 0 : index
    %49 = vector.load %arg6[%c7_65, %c0_66, %c0_67] : memref<16x32x128xbf16, #tpu.memory_space<vmem>>, vector<1x32x128xbf16>
    %50 = vector.shape_cast %49 : vector<1x32x128xbf16> to vector<32x128xbf16>
    %c896_68 = arith.constant 896 : index
    %c0_69 = arith.constant 0 : index
    %51 = vector.load %arg14[%c896_68, %c0_69] : memref<2048x128xbf16, #tpu.memory_space<vmem>>, vector<32x128xbf16>
    tpu.vector_store %arg14[%c896_68, %c0_69], %50 {strides = array<i32>} : memref<2048x128xbf16, #tpu.memory_space<vmem>>, vector<32x128xbf16>,
    %c8 = arith.constant 8 : index
    %c0_70 = arith.constant 0 : index
    %c0_71 = arith.constant 0 : index
    %52 = vector.load %arg4[%c8, %c0_70, %c0_71] : memref<16x16x128xbf16, #tpu.memory_space<vmem>>, vector<1x16x128xbf16>
    %53 = vector.shape_cast %52 : vector<1x16x128xbf16> to vector<16x128xbf16>
    %c1024 = arith.constant 1024 : index
    %c0_72 = arith.constant 0 : index
    %54 = vector.load %arg11[%c1024, %c0_72] : memref<2048x128xbf16, #tpu.memory_space<vmem>>, vector<16x128xbf16>
    tpu.vector_store %arg11[%c1024, %c0_72], %53 {strides = array<i32>} : memref<2048x128xbf16, #tpu.memory_space<vmem>>, vector<16x128xbf16>,
    %c8_73 = arith.constant 8 : index
    %c0_74 = arith.constant 0 : index
    %c0_75 = arith.constant 0 : index
    %55 = vector.load %arg6[%c8_73, %c0_74, %c0_75] : memref<16x32x128xbf16, #tpu.memory_space<vmem>>, vector<1x32x128xbf16>
    %56 = vector.shape_cast %55 : vector<1x32x128xbf16> to vector<32x128xbf16>
    %c1024_76 = arith.constant 1024 : index
    %c0_77 = arith.constant 0 : index
    %57 = vector.load %arg14[%c1024_76, %c0_77] : memref<2048x128xbf16, #tpu.memory_space<vmem>>, vector<32x128xbf16>
    tpu.vector_store %arg14[%c1024_76, %c0_77], %56 {strides = array<i32>} : memref<2048x128xbf16, #tpu.memory_space<vmem>>, vector<32x128xbf16>,
    %c9 = arith.constant 9 : index
    %c0_78 = arith.constant 0 : index
    %c0_79 = arith.constant 0 : index
    %58 = vector.load %arg4[%c9, %c0_78, %c0_79] : memref<16x16x128xbf16, #tpu.memory_space<vmem>>, vector<1x16x128xbf16>
    %59 = vector.shape_cast %58 : vector<1x16x128xbf16> to vector<16x128xbf16>
    %c1152 = arith.constant 1152 : index
    %c0_80 = arith.constant 0 : index
    %60 = vector.load %arg11[%c1152, %c0_80] : memref<2048x128xbf16, #tpu.memory_space<vmem>>, vector<16x128xbf16>
    tpu.vector_store %arg11[%c1152, %c0_80], %59 {strides = array<i32>} : memref<2048x128xbf16, #tpu.memory_space<vmem>>, vector<16x128xbf16>,
    %c9_81 = arith.constant 9 : index
    %c0_82 = arith.constant 0 : index
    %c0_83 = arith.constant 0 : index
    %61 = vector.load %arg6[%c9_81, %c0_82, %c0_83] : memref<16x32x128xbf16, #tpu.memory_space<vmem>>, vector<1x32x128xbf16>
    %62 = vector.shape_cast %61 : vector<1x32x128xbf16> to vector<32x128xbf16>
    %c1152_84 = arith.constant 1152 : index
    %c0_85 = arith.constant 0 : index
    %63 = vector.load %arg14[%c1152_84, %c0_85] : memref<2048x128xbf16, #tpu.memory_space<vmem>>, vector<32x128xbf16>
    tpu.vector_store %arg14[%c1152_84, %c0_85], %62 {strides = array<i32>} : memref<2048x128xbf16, #tpu.memory_space<vmem>>, vector<32x128xbf16>,
    %c10 = arith.constant 10 : index
    %c0_86 = arith.constant 0 : index
    %c0_87 = arith.constant 0 : index
    %64 = vector.load %arg4[%c10, %c0_86, %c0_87] : memref<16x16x128xbf16, #tpu.memory_space<vmem>>, vector<1x16x128xbf16>
    %65 = vector.shape_cast %64 : vector<1x16x128xbf16> to vector<16x128xbf16>
    %c1280 = arith.constant 1280 : index
    %c0_88 = arith.constant 0 : index
    %66 = vector.load %arg11[%c1280, %c0_88] : memref<2048x128xbf16, #tpu.memory_space<vmem>>, vector<16x128xbf16>
    tpu.vector_store %arg11[%c1280, %c0_88], %65 {strides = array<i32>} : memref<2048x128xbf16, #tpu.memory_space<vmem>>, vector<16x128xbf16>,
    %c10_89 = arith.constant 10 : index
    %c0_90 = arith.constant 0 : index
    %c0_91 = arith.constant 0 : index
    %67 = vector.load %arg6[%c10_89, %c0_90, %c0_91] : memref<16x32x128xbf16, #tpu.memory_space<vmem>>, vector<1x32x128xbf16>
    %68 = vector.shape_cast %67 : vector<1x32x128xbf16> to vector<32x128xbf16>
    %c1280_92 = arith.constant 1280 : index
    %c0_93 = arith.constant 0 : index
    %69 = vector.load %arg14[%c1280_92, %c0_93] : memref<2048x128xbf16, #tpu.memory_space<vmem>>, vector<32x128xbf16>
    tpu.vector_store %arg14[%c1280_92, %c0_93], %68 {strides = array<i32>} : memref<2048x128xbf16, #tpu.memory_space<vmem>>, vector<32x128xbf16>,
    %c11 = arith.constant 11 : index
    %c0_94 = arith.constant 0 : index
    %c0_95 = arith.constant 0 : index
    %70 = vector.load %arg4[%c11, %c0_94, %c0_95] : memref<16x16x128xbf16, #tpu.memory_space<vmem>>, vector<1x16x128xbf16>
    %71 = vector.shape_cast %70 : vector<1x16x128xbf16> to vector<16x128xbf16>
    %c1408 = arith.constant 1408 : index
    %c0_96 = arith.constant 0 : index
    %72 = vector.load %arg11[%c1408, %c0_96] : memref<2048x128xbf16, #tpu.memory_space<vmem>>, vector<16x128xbf16>
    tpu.vector_store %arg11[%c1408, %c0_96], %71 {strides = array<i32>} : memref<2048x128xbf16, #tpu.memory_space<vmem>>, vector<16x128xbf16>,
    %c11_97 = arith.constant 11 : index
    %c0_98 = arith.constant 0 : index
    %c0_99 = arith.constant 0 : index
    %73 = vector.load %arg6[%c11_97, %c0_98, %c0_99] : memref<16x32x128xbf16, #tpu.memory_space<vmem>>, vector<1x32x128xbf16>
    %74 = vector.shape_cast %73 : vector<1x32x128xbf16> to vector<32x128xbf16>
    %c1408_100 = arith.constant 1408 : index
    %c0_101 = arith.constant 0 : index
    %75 = vector.load %arg14[%c1408_100, %c0_101] : memref<2048x128xbf16, #tpu.memory_space<vmem>>, vector<32x128xbf16>
    tpu.vector_store %arg14[%c1408_100, %c0_101], %74 {strides = array<i32>} : memref<2048x128xbf16, #tpu.memory_space<vmem>>, vector<32x128xbf16>,
    %c12 = arith.constant 12 : index
    %c0_102 = arith.constant 0 : index
    %c0_103 = arith.constant 0 : index
    %76 = vector.load %arg4[%c12, %c0_102, %c0_103] : memref<16x16x128xbf16, #tpu.memory_space<vmem>>, vector<1x16x128xbf16>
    %77 = vector.shape_cast %76 : vector<1x16x128xbf16> to vector<16x128xbf16>
    %c1536 = arith.constant 1536 : index
    %c0_104 = arith.constant 0 : index
    %78 = vector.load %arg11[%c1536, %c0_104] : memref<2048x128xbf16, #tpu.memory_space<vmem>>, vector<16x128xbf16>
    tpu.vector_store %arg11[%c1536, %c0_104], %77 {strides = array<i32>} : memref<2048x128xbf16, #tpu.memory_space<vmem>>, vector<16x128xbf16>,
    %c12_105 = arith.constant 12 : index
    %c0_106 = arith.constant 0 : index
    %c0_107 = arith.constant 0 : index
    %79 = vector.load %arg6[%c12_105, %c0_106, %c0_107] : memref<16x32x128xbf16, #tpu.memory_space<vmem>>, vector<1x32x128xbf16>
    %80 = vector.shape_cast %79 : vector<1x32x128xbf16> to vector<32x128xbf16>
    %c1536_108 = arith.constant 1536 : index
    %c0_109 = arith.constant 0 : index
    %81 = vector.load %arg14[%c1536_108, %c0_109] : memref<2048x128xbf16, #tpu.memory_space<vmem>>, vector<32x128xbf16>
    tpu.vector_store %arg14[%c1536_108, %c0_109], %80 {strides = array<i32>} : memref<2048x128xbf16, #tpu.memory_space<vmem>>, vector<32x128xbf16>,
    %c13 = arith.constant 13 : index
    %c0_110 = arith.constant 0 : index
    %c0_111 = arith.constant 0 : index
    %82 = vector.load %arg4[%c13, %c0_110, %c0_111] : memref<16x16x128xbf16, #tpu.memory_space<vmem>>, vector<1x16x128xbf16>
    %83 = vector.shape_cast %82 : vector<1x16x128xbf16> to vector<16x128xbf16>
    %c1664 = arith.constant 1664 : index
    %c0_112 = arith.constant 0 : index
    %84 = vector.load %arg11[%c1664, %c0_112] : memref<2048x128xbf16, #tpu.memory_space<vmem>>, vector<16x128xbf16>
    tpu.vector_store %arg11[%c1664, %c0_112], %83 {strides = array<i32>} : memref<2048x128xbf16, #tpu.memory_space<vmem>>, vector<16x128xbf16>,
    %c13_113 = arith.constant 13 : index
    %c0_114 = arith.constant 0 : index
    %c0_115 = arith.constant 0 : index
    %85 = vector.load %arg6[%c13_113, %c0_114, %c0_115] : memref<16x32x128xbf16, #tpu.memory_space<vmem>>, vector<1x32x128xbf16>
    %86 = vector.shape_cast %85 : vector<1x32x128xbf16> to vector<32x128xbf16>
    %c1664_116 = arith.constant 1664 : index
    %c0_117 = arith.constant 0 : index
    %87 = vector.load %arg14[%c1664_116, %c0_117] : memref<2048x128xbf16, #tpu.memory_space<vmem>>, vector<32x128xbf16>
    tpu.vector_store %arg14[%c1664_116, %c0_117], %86 {strides = array<i32>} : memref<2048x128xbf16, #tpu.memory_space<vmem>>, vector<32x128xbf16>,
    %c14 = arith.constant 14 : index
    %c0_118 = arith.constant 0 : index
    %c0_119 = arith.constant 0 : index
    %88 = vector.load %arg4[%c14, %c0_118, %c0_119] : memref<16x16x128xbf16, #tpu.memory_space<vmem>>, vector<1x16x128xbf16>
    %89 = vector.shape_cast %88 : vector<1x16x128xbf16> to vector<16x128xbf16>
    %c1792 = arith.constant 1792 : index
    %c0_120 = arith.constant 0 : index
    %90 = vector.load %arg11[%c1792, %c0_120] : memref<2048x128xbf16, #tpu.memory_space<vmem>>, vector<16x128xbf16>
    tpu.vector_store %arg11[%c1792, %c0_120], %89 {strides = array<i32>} : memref<2048x128xbf16, #tpu.memory_space<vmem>>, vector<16x128xbf16>,
    %c14_121 = arith.constant 14 : index
    %c0_122 = arith.constant 0 : index
    %c0_123 = arith.constant 0 : index
    %91 = vector.load %arg6[%c14_121, %c0_122, %c0_123] : memref<16x32x128xbf16, #tpu.memory_space<vmem>>, vector<1x32x128xbf16>
    %92 = vector.shape_cast %91 : vector<1x32x128xbf16> to vector<32x128xbf16>
    %c1792_124 = arith.constant 1792 : index
    %c0_125 = arith.constant 0 : index
    %93 = vector.load %arg14[%c1792_124, %c0_125] : memref<2048x128xbf16, #tpu.memory_space<vmem>>, vector<32x128xbf16>
    tpu.vector_store %arg14[%c1792_124, %c0_125], %92 {strides = array<i32>} : memref<2048x128xbf16, #tpu.memory_space<vmem>>, vector<32x128xbf16>,
    %c15 = arith.constant 15 : index
    %c0_126 = arith.constant 0 : index
    %c0_127 = arith.constant 0 : index
    %94 = vector.load %arg4[%c15, %c0_126, %c0_127] : memref<16x16x128xbf16, #tpu.memory_space<vmem>>, vector<1x16x128xbf16>
    %95 = vector.shape_cast %94 : vector<1x16x128xbf16> to vector<16x128xbf16>
    %c1920 = arith.constant 1920 : index
    %c0_128 = arith.constant 0 : index
    %96 = vector.load %arg11[%c1920, %c0_128] : memref<2048x128xbf16, #tpu.memory_space<vmem>>, vector<16x128xbf16>
    tpu.vector_store %arg11[%c1920, %c0_128], %95 {strides = array<i32>} : memref<2048x128xbf16, #tpu.memory_space<vmem>>, vector<16x128xbf16>,
    %c15_129 = arith.constant 15 : index
    %c0_130 = arith.constant 0 : index
    %c0_131 = arith.constant 0 : index
    %97 = vector.load %arg6[%c15_129, %c0_130, %c0_131] : memref<16x32x128xbf16, #tpu.memory_space<vmem>>, vector<1x32x128xbf16>
    %98 = vector.shape_cast %97 : vector<1x32x128xbf16> to vector<32x128xbf16>
    %c1920_132 = arith.constant 1920 : index
    %c0_133 = arith.constant 0 : index
    %99 = vector.load %arg14[%c1920_132, %c0_133] : memref<2048x128xbf16, #tpu.memory_space<vmem>>, vector<32x128xbf16>
    tpu.vector_store %arg14[%c1920_132, %c0_133], %98 {strides = array<i32>} : memref<2048x128xbf16, #tpu.memory_space<vmem>>, vector<32x128xbf16>,
    %c0_134 = arith.constant 0 : index
    %c0_135 = arith.constant 0 : index
    %100 = vector.load %arg3[%c0_134, %c0_135] : memref<3x128xf32, #tpu.memory_space<vmem>>, vector<1x128xf32>
    %c1_136 = arith.constant 1 : index
    %c0_137 = arith.constant 0 : index
    %101 = vector.load %arg3[%c1_136, %c0_137] : memref<3x128xf32, #tpu.memory_space<vmem>>, vector<1x128xf32>
    %c2_138 = arith.constant 2 : index
    %c0_139 = arith.constant 0 : index
    %102 = vector.load %arg3[%c2_138, %c0_139] : memref<3x128xf32, #tpu.memory_space<vmem>>, vector<1x128xf32>
    %c0_140 = arith.constant 0 : index
    %c0_141 = arith.constant 0 : index
    %103 = vector.load %arg1[%c0_140, %c0_141] : memref<338x16xbf16, #tpu.memory_space<vmem>>, vector<338x16xbf16>
    %c0_142 = arith.constant 0 : index
    %c0_143 = arith.constant 0 : index
    %104 = vector.load %arg2[%c0_142, %c0_143] : memref<16x128xbf16, #tpu.memory_space<vmem>>, vector<16x128xbf16>
    %cst_144 = arith.constant dense<0.000000e+00> : vector<338x128xf32>
    %105 = tpu.matmul %103, %104, %cst_144 {dimension_numbers = #tpu.dot_dimension_numbers<[1], [0], [0], [1], [0, 0, 1, 1], [], []>} : vector<338x16xbf16>, vector<16x128xbf16>, vector<338x128xf32> -> vector<338x128xf32>
    %106 = vector.broadcast %100 : vector<1x128xf32> to vector<338x128xf32>
    %107 = arith.addf %105, %106 : vector<338x128xf32>
    %cst_145 = arith.constant dense<0.000000e+00> : vector<128xf32>
    %108 = vector.multi_reduction <add>, %107, %cst_145 [0] : vector<338x128xf32> to vector<128xf32>
    %109 = vector.shape_cast %108 : vector<128xf32> to vector<1x128xf32>
    %cst_146 = arith.constant 3.380000e+02 : f32
    %110 = vector.broadcast %cst_146 : f32 to vector<1x128xf32>
    %111 = arith.divf %109, %110 : vector<1x128xf32>
    %112 = vector.broadcast %111 : vector<1x128xf32> to vector<338x128xf32>
    %113 = arith.subf %107, %112 : vector<338x128xf32>
    %114 = arith.mulf %113, %113 : vector<338x128xf32>
    %cst_147 = arith.constant dense<0.000000e+00> : vector<128xf32>
    %115 = vector.multi_reduction <add>, %114, %cst_147 [0] : vector<338x128xf32> to vector<128xf32>
    %116 = vector.shape_cast %115 : vector<128xf32> to vector<1x128xf32>
    %cst_148 = arith.constant 3.380000e+02 : f32
    %117 = vector.broadcast %cst_148 : f32 to vector<1x128xf32>
    %118 = arith.divf %116, %117 : vector<1x128xf32>
    %119 = vector.broadcast %111 : vector<1x128xf32> to vector<338x128xf32>
    %120 = arith.subf %107, %119 : vector<338x128xf32>
    %121 = vector.broadcast %101 : vector<1x128xf32> to vector<338x128xf32>
    %122 = arith.mulf %121, %120 : vector<338x128xf32>
    %cst_149 = arith.constant 9.99999974E-6 : f32
    %123 = vector.broadcast %cst_149 : f32 to vector<1x128xf32>
    %124 = arith.addf %118, %123 : vector<1x128xf32>
    %125 = math.rsqrt %124 : vector<1x128xf32>
    %126 = vector.broadcast %125 : vector<1x128xf32> to vector<338x128xf32>
    %127 = arith.mulf %122, %126 : vector<338x128xf32>
    %128 = vector.broadcast %102 : vector<1x128xf32> to vector<338x128xf32>
    %129 = arith.addf %127, %128 : vector<338x128xf32>
    %cst_150 = arith.constant 0.000000e+00 : f32
    %130 = vector.broadcast %cst_150 : f32 to vector<338x128xf32>
    %131 = arith.cmpf oge, %129, %130 : vector<338x128xf32>
    %cst_151 = arith.constant 2.000000e-01 : f32
    %132 = vector.broadcast %cst_151 : f32 to vector<338x128xf32>
    %133 = arith.mulf %132, %129 : vector<338x128xf32>
    %134 = arith.select %131, %129, %133 : vector<338x128xi1>, vector<338x128xf32>
    %c0_152 = arith.constant 0 : index
    %c0_153 = arith.constant 0 : index
    %135 = vector.load %arg9[%c0_152, %c0_153] : memref<338x128xf32, #tpu.memory_space<vmem>>, vector<338x128xf32>
    tpu.vector_store %arg9[%c0_152, %c0_153], %134 {strides = array<i32>} : memref<338x128xf32, #tpu.memory_space<vmem>>, vector<338x128xf32>,
    %cst_154 = arith.constant 0.000000e+00 : f32
    %136 = vector.broadcast %cst_154 : f32 to vector<80x2048xf32>
    %c0_155 = arith.constant 0 : index
    %c0_156 = arith.constant 0 : index
    %137 = vector.load %arg10[%c0_155, %c0_156] : memref<80x2048xf32, #tpu.memory_space<vmem>>, vector<80x2048xf32>
    tpu.vector_store %arg10[%c0_155, %c0_156], %136 {strides = array<i32>} : memref<80x2048xf32, #tpu.memory_space<vmem>>, vector<80x2048xf32>,
    %c0_157 = arith.constant 0 : index
    %c0_158 = arith.constant 0 : index
    %138 = vector.load %arg9[%c0_157, %c0_158] : memref<338x128xf32, #tpu.memory_space<vmem>>, vector<5x128xf32>
    %c0_159 = arith.constant 0 : index
    %c0_160 = arith.constant 0 : index
    %139 = vector.load %arg10[%c0_159, %c0_160] : memref<80x2048xf32, #tpu.memory_space<vmem>>, vector<5x128xf32>
    tpu.vector_store %arg10[%c0_159, %c0_160], %138 {strides = array<i32>} : memref<80x2048xf32, #tpu.memory_space<vmem>>, vector<5x128xf32>,
    %c7_161 = arith.constant 7 : index
    %c0_162 = arith.constant 0 : index
    %140 = vector.load %arg9[%c7_161, %c0_162] : memref<338x128xf32, #tpu.memory_space<vmem>>, vector<5x128xf32>
    %c8_163 = arith.constant 8 : index
    %c0_164 = arith.constant 0 : index
    %141 = vector.load %arg10[%c8_163, %c0_164] : memref<80x2048xf32, #tpu.memory_space<vmem>>, vector<5x128xf32>
    tpu.vector_store %arg10[%c8_163, %c0_164], %140 {strides = array<i32>} : memref<80x2048xf32, #tpu.memory_space<vmem>>, vector<5x128xf32>,
    %c14_165 = arith.constant 14 : index
    %c0_166 = arith.constant 0 : index
    %142 = vector.load %arg9[%c14_165, %c0_166] : memref<338x128xf32, #tpu.memory_space<vmem>>, vector<5x128xf32>
    %c16 = arith.constant 16 : index
    %c0_167 = arith.constant 0 : index
    %143 = vector.load %arg10[%c16, %c0_167] : memref<80x2048xf32, #tpu.memory_space<vmem>>, vector<5x128xf32>
    tpu.vector_store %arg10[%c16, %c0_167], %142 {strides = array<i32>} : memref<80x2048xf32, #tpu.memory_space<vmem>>, vector<5x128xf32>,
    %c21 = arith.constant 21 : index
    %c0_168 = arith.constant 0 : index
    %144 = vector.load %arg9[%c21, %c0_168] : memref<338x128xf32, #tpu.memory_space<vmem>>, vector<5x128xf32>
    %c24 = arith.constant 24 : index
    %c0_169 = arith.constant 0 : index
    %145 = vector.load %arg10[%c24, %c0_169] : memref<80x2048xf32, #tpu.memory_space<vmem>>, vector<5x128xf32>
    tpu.vector_store %arg10[%c24, %c0_169], %144 {strides = array<i32>} : memref<80x2048xf32, #tpu.memory_space<vmem>>, vector<5x128xf32>,
    %c28 = arith.constant 28 : index
    %c0_170 = arith.constant 0 : index
    %146 = vector.load %arg9[%c28, %c0_170] : memref<338x128xf32, #tpu.memory_space<vmem>>, vector<5x128xf32>
    %c32 = arith.constant 32 : index
    %c0_171 = arith.constant 0 : index
    %147 = vector.load %arg10[%c32, %c0_171] : memref<80x2048xf32, #tpu.memory_space<vmem>>, vector<5x128xf32>
    tpu.vector_store %arg10[%c32, %c0_171], %146 {strides = array<i32>} : memref<80x2048xf32, #tpu.memory_space<vmem>>, vector<5x128xf32>,
    %c49 = arith.constant 49 : index
    %c0_172 = arith.constant 0 : index
    %148 = vector.load %arg9[%c49, %c0_172] : memref<338x128xf32, #tpu.memory_space<vmem>>, vector<5x128xf32>
    %c40 = arith.constant 40 : index
    %c0_173 = arith.constant 0 : index
    %149 = vector.load %arg10[%c40, %c0_173] : memref<80x2048xf32, #tpu.memory_space<vmem>>, vector<5x128xf32>
    tpu.vector_store %arg10[%c40, %c0_173], %148 {strides = array<i32>} : memref<80x2048xf32, #tpu.memory_space<vmem>>, vector<5x128xf32>,
    %c56 = arith.constant 56 : index
    %c0_174 = arith.constant 0 : index
    %150 = vector.load %arg9[%c56, %c0_174] : memref<338x128xf32, #tpu.memory_space<vmem>>, vector<5x128xf32>
    %c48 = arith.constant 48 : index
    %c0_175 = arith.constant 0 : index
    %151 = vector.load %arg10[%c48, %c0_175] : memref<80x2048xf32, #tpu.memory_space<vmem>>, vector<5x128xf32>
    tpu.vector_store %arg10[%c48, %c0_175], %150 {strides = array<i32>} : memref<80x2048xf32, #tpu.memory_space<vmem>>, vector<5x128xf32>,
    %c63 = arith.constant 63 : index
    %c0_176 = arith.constant 0 : index
    %152 = vector.load %arg9[%c63, %c0_176] : memref<338x128xf32, #tpu.memory_space<vmem>>, vector<5x128xf32>
    %c56_177 = arith.constant 56 : index
    %c0_178 = arith.constant 0 : index
    %153 = vector.load %arg10[%c56_177, %c0_178] : memref<80x2048xf32, #tpu.memory_space<vmem>>, vector<5x128xf32>
    tpu.vector_store %arg10[%c56_177, %c0_178], %152 {strides = array<i32>} : memref<80x2048xf32, #tpu.memory_space<vmem>>, vector<5x128xf32>,
    %c70 = arith.constant 70 : index
    %c0_179 = arith.constant 0 : index
    %154 = vector.load %arg9[%c70, %c0_179] : memref<338x128xf32, #tpu.memory_space<vmem>>, vector<5x128xf32>
    %c64 = arith.constant 64 : index
    %c0_180 = arith.constant 0 : index
    %155 = vector.load %arg10[%c64, %c0_180] : memref<80x2048xf32, #tpu.memory_space<vmem>>, vector<5x128xf32>
    tpu.vector_store %arg10[%c64, %c0_180], %154 {strides = array<i32>} : memref<80x2048xf32, #tpu.memory_space<vmem>>, vector<5x128xf32>,
    %c77 = arith.constant 77 : index
    %c0_181 = arith.constant 0 : index
    %156 = vector.load %arg9[%c77, %c0_181] : memref<338x128xf32, #tpu.memory_space<vmem>>, vector<5x128xf32>
    %c72 = arith.constant 72 : index
    %c0_182 = arith.constant 0 : index
    %157 = vector.load %arg10[%c72, %c0_182] : memref<80x2048xf32, #tpu.memory_space<vmem>>, vector<5x128xf32>
    tpu.vector_store %arg10[%c72, %c0_182], %156 {strides = array<i32>} : memref<80x2048xf32, #tpu.memory_space<vmem>>, vector<5x128xf32>,
    %c98 = arith.constant 98 : index
    %c0_183 = arith.constant 0 : index
    %158 = vector.load %arg9[%c98, %c0_183] : memref<338x128xf32, #tpu.memory_space<vmem>>, vector<5x128xf32>
    %c0_184 = arith.constant 0 : index
    %c128_185 = arith.constant 128 : index
    %159 = vector.load %arg10[%c0_184, %c128_185] : memref<80x2048xf32, #tpu.memory_space<vmem>>, vector<5x128xf32>
    tpu.vector_store %arg10[%c0_184, %c128_185], %158 {strides = array<i32>} : memref<80x2048xf32, #tpu.memory_space<vmem>>, vector<5x128xf32>,
    %c104 = arith.constant 104 : index
    %c0_186 = arith.constant 0 : index
    %160 = vector.load %arg9[%c104, %c0_186] : memref<338x128xf32, #tpu.memory_space<vmem>>, vector<5x128xf32>
    %c8_187 = arith.constant 8 : index
    %c128_188 = arith.constant 128 : index
    %161 = vector.load %arg10[%c8_187, %c128_188] : memref<80x2048xf32, #tpu.memory_space<vmem>>, vector<5x128xf32>
    tpu.vector_store %arg10[%c8_187, %c128_188], %160 {strides = array<i32>} : memref<80x2048xf32, #tpu.memory_space<vmem>>, vector<5x128xf32>,
    %c110 = arith.constant 110 : index
    %c0_189 = arith.constant 0 : index
    %162 = vector.load %arg9[%c110, %c0_189] : memref<338x128xf32, #tpu.memory_space<vmem>>, vector<5x128xf32>
    %c16_190 = arith.constant 16 : index
    %c128_191 = arith.constant 128 : index
    %163 = vector.load %arg10[%c16_190, %c128_191] : memref<80x2048xf32, #tpu.memory_space<vmem>>, vector<5x128xf32>
    tpu.vector_store %arg10[%c16_190, %c128_191], %162 {strides = array<i32>} : memref<80x2048xf32, #tpu.memory_space<vmem>>, vector<5x128xf32>,
    %c116 = arith.constant 116 : index
    %c0_192 = arith.constant 0 : index
    %164 = vector.load %arg9[%c116, %c0_192] : memref<338x128xf32, #tpu.memory_space<vmem>>, vector<5x128xf32>
    %c24_193 = arith.constant 24 : index
    %c128_194 = arith.constant 128 : index
    %165 = vector.load %arg10[%c24_193, %c128_194] : memref<80x2048xf32, #tpu.memory_space<vmem>>, vector<5x128xf32>
    tpu.vector_store %arg10[%c24_193, %c128_194], %164 {strides = array<i32>} : memref<80x2048xf32, #tpu.memory_space<vmem>>, vector<5x128xf32>,
    %c122 = arith.constant 122 : index
    %c0_195 = arith.constant 0 : index
    %166 = vector.load %arg9[%c122, %c0_195] : memref<338x128xf32, #tpu.memory_space<vmem>>, vector<5x128xf32>
    %c32_196 = arith.constant 32 : index
    %c128_197 = arith.constant 128 : index
    %167 = vector.load %arg10[%c32_196, %c128_197] : memref<80x2048xf32, #tpu.memory_space<vmem>>, vector<5x128xf32>
    tpu.vector_store %arg10[%c32_196, %c128_197], %166 {strides = array<i32>} : memref<80x2048xf32, #tpu.memory_space<vmem>>, vector<5x128xf32>,
    %c140 = arith.constant 140 : index
    %c0_198 = arith.constant 0 : index
    %168 = vector.load %arg9[%c140, %c0_198] : memref<338x128xf32, #tpu.memory_space<vmem>>, vector<5x128xf32>
    %c40_199 = arith.constant 40 : index
    %c128_200 = arith.constant 128 : index
    %169 = vector.load %arg10[%c40_199, %c128_200] : memref<80x2048xf32, #tpu.memory_space<vmem>>, vector<5x128xf32>
    tpu.vector_store %arg10[%c40_199, %c128_200], %168 {strides = array<i32>} : memref<80x2048xf32, #tpu.memory_space<vmem>>, vector<5x128xf32>,
    %c146 = arith.constant 146 : index
    %c0_201 = arith.constant 0 : index
    %170 = vector.load %arg9[%c146, %c0_201] : memref<338x128xf32, #tpu.memory_space<vmem>>, vector<5x128xf32>
    %c48_202 = arith.constant 48 : index
    %c128_203 = arith.constant 128 : index
    %171 = vector.load %arg10[%c48_202, %c128_203] : memref<80x2048xf32, #tpu.memory_space<vmem>>, vector<5x128xf32>
    tpu.vector_store %arg10[%c48_202, %c128_203], %170 {strides = array<i32>} : memref<80x2048xf32, #tpu.memory_space<vmem>>, vector<5x128xf32>,
    %c152 = arith.constant 152 : index
    %c0_204 = arith.constant 0 : index
    %172 = vector.load %arg9[%c152, %c0_204] : memref<338x128xf32, #tpu.memory_space<vmem>>, vector<5x128xf32>
    %c56_205 = arith.constant 56 : index
    %c128_206 = arith.constant 128 : index
    %173 = vector.load %arg10[%c56_205, %c128_206] : memref<80x2048xf32, #tpu.memory_space<vmem>>, vector<5x128xf32>
    tpu.vector_store %arg10[%c56_205, %c128_206], %172 {strides = array<i32>} : memref<80x2048xf32, #tpu.memory_space<vmem>>, vector<5x128xf32>,
    %c158 = arith.constant 158 : index
    %c0_207 = arith.constant 0 : index
    %174 = vector.load %arg9[%c158, %c0_207] : memref<338x128xf32, #tpu.memory_space<vmem>>, vector<5x128xf32>
    %c64_208 = arith.constant 64 : index
    %c128_209 = arith.constant 128 : index
    %175 = vector.load %arg10[%c64_208, %c128_209] : memref<80x2048xf32, #tpu.memory_space<vmem>>, vector<5x128xf32>
    tpu.vector_store %arg10[%c64_208, %c128_209], %174 {strides = array<i32>} : memref<80x2048xf32, #tpu.memory_space<vmem>>, vector<5x128xf32>,
    %c164 = arith.constant 164 : index
    %c0_210 = arith.constant 0 : index
    %176 = vector.load %arg9[%c164, %c0_210] : memref<338x128xf32, #tpu.memory_space<vmem>>, vector<5x128xf32>
    %c72_211 = arith.constant 72 : index
    %c128_212 = arith.constant 128 : index
    %177 = vector.load %arg10[%c72_211, %c128_212] : memref<80x2048xf32, #tpu.memory_space<vmem>>, vector<5x128xf32>
    tpu.vector_store %arg10[%c72_211, %c128_212], %176 {strides = array<i32>} : memref<80x2048xf32, #tpu.memory_space<vmem>>, vector<5x128xf32>,
    %c1_213 = arith.constant 1 : index
    %c0_214 = arith.constant 0 : index
    %178 = vector.load %arg9[%c1_213, %c0_214] : memref<338x128xf32, #tpu.memory_space<vmem>>, vector<5x128xf32>
    %c0_215 = arith.constant 0 : index
    %c256_216 = arith.constant 256 : index
    %179 = vector.load %arg10[%c0_215, %c256_216] : memref<80x2048xf32, #tpu.memory_space<vmem>>, vector<5x128xf32>
    tpu.vector_store %arg10[%c0_215, %c256_216], %178 {strides = array<i32>} : memref<80x2048xf32, #tpu.memory_space<vmem>>, vector<5x128xf32>,
    %c8_217 = arith.constant 8 : index
    %c0_218 = arith.constant 0 : index
    %180 = vector.load %arg9[%c8_217, %c0_218] : memref<338x128xf32, #tpu.memory_space<vmem>>, vector<5x128xf32>
    %c8_219 = arith.constant 8 : index
    %c256_220 = arith.constant 256 : index
    %181 = vector.load %arg10[%c8_219, %c256_220] : memref<80x2048xf32, #tpu.memory_space<vmem>>, vector<5x128xf32>
    tpu.vector_store %arg10[%c8_219, %c256_220], %180 {strides = array<i32>} : memref<80x2048xf32, #tpu.memory_space<vmem>>, vector<5x128xf32>,
    %c15_221 = arith.constant 15 : index
    %c0_222 = arith.constant 0 : index
    %182 = vector.load %arg9[%c15_221, %c0_222] : memref<338x128xf32, #tpu.memory_space<vmem>>, vector<5x128xf32>
    %c16_223 = arith.constant 16 : index
    %c256_224 = arith.constant 256 : index
    %183 = vector.load %arg10[%c16_223, %c256_224] : memref<80x2048xf32, #tpu.memory_space<vmem>>, vector<5x128xf32>
    tpu.vector_store %arg10[%c16_223, %c256_224], %182 {strides = array<i32>} : memref<80x2048xf32, #tpu.memory_space<vmem>>, vector<5x128xf32>,
    %c22 = arith.constant 22 : index
    %c0_225 = arith.constant 0 : index
    %184 = vector.load %arg9[%c22, %c0_225] : memref<338x128xf32, #tpu.memory_space<vmem>>, vector<5x128xf32>
    %c24_226 = arith.constant 24 : index
    %c256_227 = arith.constant 256 : index
    %185 = vector.load %arg10[%c24_226, %c256_227] : memref<80x2048xf32, #tpu.memory_space<vmem>>, vector<5x128xf32>
    tpu.vector_store %arg10[%c24_226, %c256_227], %184 {strides = array<i32>} : memref<80x2048xf32, #tpu.memory_space<vmem>>, vector<5x128xf32>,
    %c29 = arith.constant 29 : index
    %c0_228 = arith.constant 0 : index
    %186 = vector.load %arg9[%c29, %c0_228] : memref<338x128xf32, #tpu.memory_space<vmem>>, vector<5x128xf32>
    %c32_229 = arith.constant 32 : index
    %c256_230 = arith.constant 256 : index
    %187 = vector.load %arg10[%c32_229, %c256_230] : memref<80x2048xf32, #tpu.memory_space<vmem>>, vector<5x128xf32>
    tpu.vector_store %arg10[%c32_229, %c256_230], %186 {strides = array<i32>} : memref<80x2048xf32, #tpu.memory_space<vmem>>, vector<5x128xf32>,
    %c50 = arith.constant 50 : index
    %c0_231 = arith.constant 0 : index
    %188 = vector.load %arg9[%c50, %c0_231] : memref<338x128xf32, #tpu.memory_space<vmem>>, vector<5x128xf32>
    %c40_232 = arith.constant 40 : index
    %c256_233 = arith.constant 256 : index
    %189 = vector.load %arg10[%c40_232, %c256_233] : memref<80x2048xf32, #tpu.memory_space<vmem>>, vector<5x128xf32>
    tpu.vector_store %arg10[%c40_232, %c256_233], %188 {strides = array<i32>} : memref<80x2048xf32, #tpu.memory_space<vmem>>, vector<5x128xf32>,
    %c57 = arith.constant 57 : index
    %c0_234 = arith.constant 0 : index
    %190 = vector.load %arg9[%c57, %c0_234] : memref<338x128xf32, #tpu.memory_space<vmem>>, vector<5x128xf32>
    %c48_235 = arith.constant 48 : index
    %c256_236 = arith.constant 256 : index
    %191 = vector.load %arg10[%c48_235, %c256_236] : memref<80x2048xf32, #tpu.memory_space<vmem>>, vector<5x128xf32>
    tpu.vector_store %arg10[%c48_235, %c256_236], %190 {strides = array<i32>} : memref<80x2048xf32, #tpu.memory_space<vmem>>, vector<5x128xf32>,
    %c64_237 = arith.constant 64 : index
    %c0_238 = arith.constant 0 : index
    %192 = vector.load %arg9[%c64_237, %c0_238] : memref<338x128xf32, #tpu.memory_space<vmem>>, vector<5x128xf32>
    %c56_239 = arith.constant 56 : index
    %c256_240 = arith.constant 256 : index
    %193 = vector.load %arg10[%c56_239, %c256_240] : memref<80x2048xf32, #tpu.memory_space<vmem>>, vector<5x128xf32>
    tpu.vector_store %arg10[%c56_239, %c256_240], %192 {strides = array<i32>} : memref<80x2048xf32, #tpu.memory_space<vmem>>, vector<5x128xf32>,
    %c71 = arith.constant 71 : index
    %c0_241 = arith.constant 0 : index
    %194 = vector.load %arg9[%c71, %c0_241] : memref<338x128xf32, #tpu.memory_space<vmem>>, vector<5x128xf32>
    %c64_242 = arith.constant 64 : index
    %c256_243 = arith.constant 256 : index
    %195 = vector.load %arg10[%c64_242, %c256_243] : memref<80x2048xf32, #tpu.memory_space<vmem>>, vector<5x128xf32>
    tpu.vector_store %arg10[%c64_242, %c256_243], %194 {strides = array<i32>} : memref<80x2048xf32, #tpu.memory_space<vmem>>, vector<5x128xf32>,
    %c78 = arith.constant 78 : index
    %c0_244 = arith.constant 0 : index
    %196 = vector.load %arg9[%c78, %c0_244] : memref<338x128xf32, #tpu.memory_space<vmem>>, vector<5x128xf32>
    %c72_245 = arith.constant 72 : index
    %c256_246 = arith.constant 256 : index
    %197 = vector.load %arg10[%c72_245, %c256_246] : memref<80x2048xf32, #tpu.memory_space<vmem>>, vector<5x128xf32>
    tpu.vector_store %arg10[%c72_245, %c256_246], %196 {strides = array<i32>} : memref<80x2048xf32, #tpu.memory_space<vmem>>, vector<5x128xf32>,
    %c99 = arith.constant 99 : index
    %c0_247 = arith.constant 0 : index
    %198 = vector.load %arg9[%c99, %c0_247] : memref<338x128xf32, #tpu.memory_space<vmem>>, vector<5x128xf32>
    %c0_248 = arith.constant 0 : index
    %c384_249 = arith.constant 384 : index
    %199 = vector.load %arg10[%c0_248, %c384_249] : memref<80x2048xf32, #tpu.memory_space<vmem>>, vector<5x128xf32>
    tpu.vector_store %arg10[%c0_248, %c384_249], %198 {strides = array<i32>} : memref<80x2048xf32, #tpu.memory_space<vmem>>, vector<5x128xf32>,
    %c105 = arith.constant 105 : index
    %c0_250 = arith.constant 0 : index
    %200 = vector.load %arg9[%c105, %c0_250] : memref<338x128xf32, #tpu.memory_space<vmem>>, vector<5x128xf32>
    %c8_251 = arith.constant 8 : index
    %c384_252 = arith.constant 384 : index
    %201 = vector.load %arg10[%c8_251, %c384_252] : memref<80x2048xf32, #tpu.memory_space<vmem>>, vector<5x128xf32>
    tpu.vector_store %arg10[%c8_251, %c384_252], %200 {strides = array<i32>} : memref<80x2048xf32, #tpu.memory_space<vmem>>, vector<5x128xf32>,
    %c111 = arith.constant 111 : index
    %c0_253 = arith.constant 0 : index
    %202 = vector.load %arg9[%c111, %c0_253] : memref<338x128xf32, #tpu.memory_space<vmem>>, vector<5x128xf32>
    %c16_254 = arith.constant 16 : index
    %c384_255 = arith.constant 384 : index
    %203 = vector.load %arg10[%c16_254, %c384_255] : memref<80x2048xf32, #tpu.memory_space<vmem>>, vector<5x128xf32>
    tpu.vector_store %arg10[%c16_254, %c384_255], %202 {strides = array<i32>} : memref<80x2048xf32, #tpu.memory_space<vmem>>, vector<5x128xf32>,
    %c117 = arith.constant 117 : index
    %c0_256 = arith.constant 0 : index
    %204 = vector.load %arg9[%c117, %c0_256] : memref<338x128xf32, #tpu.memory_space<vmem>>, vector<5x128xf32>
    %c24_257 = arith.constant 24 : index
    %c384_258 = arith.constant 384 : index
    %205 = vector.load %arg10[%c24_257, %c384_258] : memref<80x2048xf32, #tpu.memory_space<vmem>>, vector<5x128xf32>
    tpu.vector_store %arg10[%c24_257, %c384_258], %204 {strides = array<i32>} : memref<80x2048xf32, #tpu.memory_space<vmem>>, vector<5x128xf32>,
    %c123 = arith.constant 123 : index
    %c0_259 = arith.constant 0 : index
    %206 = vector.load %arg9[%c123, %c0_259] : memref<338x128xf32, #tpu.memory_space<vmem>>, vector<5x128xf32>
    %c32_260 = arith.constant 32 : index
    %c384_261 = arith.constant 384 : index
    %207 = vector.load %arg10[%c32_260, %c384_261] : memref<80x2048xf32, #tpu.memory_space<vmem>>, vector<5x128xf32>
    tpu.vector_store %arg10[%c32_260, %c384_261], %206 {strides = array<i32>} : memref<80x2048xf32, #tpu.memory_space<vmem>>, vector<5x128xf32>,
    %c141 = arith.constant 141 : index
    %c0_262 = arith.constant 0 : index
    %208 = vector.load %arg9[%c141, %c0_262] : memref<338x128xf32, #tpu.memory_space<vmem>>, vector<5x128xf32>
    %c40_263 = arith.constant 40 : index
    %c384_264 = arith.constant 384 : index
    %209 = vector.load %arg10[%c40_263, %c384_264] : memref<80x2048xf32, #tpu.memory_space<vmem>>, vector<5x128xf32>
    tpu.vector_store %arg10[%c40_263, %c384_264], %208 {strides = array<i32>} : memref<80x2048xf32, #tpu.memory_space<vmem>>, vector<5x128xf32>,
    %c147 = arith.constant 147 : index
    %c0_265 = arith.constant 0 : index
    %210 = vector.load %arg9[%c147, %c0_265] : memref<338x128xf32, #tpu.memory_space<vmem>>, vector<5x128xf32>
    %c48_266 = arith.constant 48 : index
    %c384_267 = arith.constant 384 : index
    %211 = vector.load %arg10[%c48_266, %c384_267] : memref<80x2048xf32, #tpu.memory_space<vmem>>, vector<5x128xf32>
    tpu.vector_store %arg10[%c48_266, %c384_267], %210 {strides = array<i32>} : memref<80x2048xf32, #tpu.memory_space<vmem>>, vector<5x128xf32>,
    %c153 = arith.constant 153 : index
    %c0_268 = arith.constant 0 : index
    %212 = vector.load %arg9[%c153, %c0_268] : memref<338x128xf32, #tpu.memory_space<vmem>>, vector<5x128xf32>
    %c56_269 = arith.constant 56 : index
    %c384_270 = arith.constant 384 : index
    %213 = vector.load %arg10[%c56_269, %c384_270] : memref<80x2048xf32, #tpu.memory_space<vmem>>, vector<5x128xf32>
    tpu.vector_store %arg10[%c56_269, %c384_270], %212 {strides = array<i32>} : memref<80x2048xf32, #tpu.memory_space<vmem>>, vector<5x128xf32>,
    %c159 = arith.constant 159 : index
    %c0_271 = arith.constant 0 : index
    %214 = vector.load %arg9[%c159, %c0_271] : memref<338x128xf32, #tpu.memory_space<vmem>>, vector<5x128xf32>
    %c64_272 = arith.constant 64 : index
    %c384_273 = arith.constant 384 : index
    %215 = vector.load %arg10[%c64_272, %c384_273] : memref<80x2048xf32, #tpu.memory_space<vmem>>, vector<5x128xf32>
    tpu.vector_store %arg10[%c64_272, %c384_273], %214 {strides = array<i32>} : memref<80x2048xf32, #tpu.memory_space<vmem>>, vector<5x128xf32>,
    %c165 = arith.constant 165 : index
    %c0_274 = arith.constant 0 : index
    %216 = vector.load %arg9[%c165, %c0_274] : memref<338x128xf32, #tpu.memory_space<vmem>>, vector<5x128xf32>
    %c72_275 = arith.constant 72 : index
    %c384_276 = arith.constant 384 : index
    %217 = vector.load %arg10[%c72_275, %c384_276] : memref<80x2048xf32, #tpu.memory_space<vmem>>, vector<5x128xf32>
    tpu.vector_store %arg10[%c72_275, %c384_276], %216 {strides = array<i32>} : memref<80x2048xf32, #tpu.memory_space<vmem>>, vector<5x128xf32>,
    %c182 = arith.constant 182 : index
    %c0_277 = arith.constant 0 : index
    %218 = vector.load %arg9[%c182, %c0_277] : memref<338x128xf32, #tpu.memory_space<vmem>>, vector<5x128xf32>
    %c0_278 = arith.constant 0 : index
    %c512_279 = arith.constant 512 : index
    %219 = vector.load %arg10[%c0_278, %c512_279] : memref<80x2048xf32, #tpu.memory_space<vmem>>, vector<5x128xf32>
    tpu.vector_store %arg10[%c0_278, %c512_279], %218 {strides = array<i32>} : memref<80x2048xf32, #tpu.memory_space<vmem>>, vector<5x128xf32>,
    %c189 = arith.constant 189 : index
    %c0_280 = arith.constant 0 : index
    %220 = vector.load %arg9[%c189, %c0_280] : memref<338x128xf32, #tpu.memory_space<vmem>>, vector<5x128xf32>
    %c8_281 = arith.constant 8 : index
    %c512_282 = arith.constant 512 : index
    %221 = vector.load %arg10[%c8_281, %c512_282] : memref<80x2048xf32, #tpu.memory_space<vmem>>, vector<5x128xf32>
    tpu.vector_store %arg10[%c8_281, %c512_282], %220 {strides = array<i32>} : memref<80x2048xf32, #tpu.memory_space<vmem>>, vector<5x128xf32>,
    %c196 = arith.constant 196 : index
    %c0_283 = arith.constant 0 : index
    %222 = vector.load %arg9[%c196, %c0_283] : memref<338x128xf32, #tpu.memory_space<vmem>>, vector<5x128xf32>
    %c16_284 = arith.constant 16 : index
    %c512_285 = arith.constant 512 : index
    %223 = vector.load %arg10[%c16_284, %c512_285] : memref<80x2048xf32, #tpu.memory_space<vmem>>, vector<5x128xf32>
    tpu.vector_store %arg10[%c16_284, %c512_285], %222 {strides = array<i32>} : memref<80x2048xf32, #tpu.memory_space<vmem>>, vector<5x128xf32>,
    %c203 = arith.constant 203 : index
    %c0_286 = arith.constant 0 : index
    %224 = vector.load %arg9[%c203, %c0_286] : memref<338x128xf32, #tpu.memory_space<vmem>>, vector<5x128xf32>
    %c24_287 = arith.constant 24 : index
    %c512_288 = arith.constant 512 : index
    %225 = vector.load %arg10[%c24_287, %c512_288] : memref<80x2048xf32, #tpu.memory_space<vmem>>, vector<5x128xf32>
    tpu.vector_store %arg10[%c24_287, %c512_288], %224 {strides = array<i32>} : memref<80x2048xf32, #tpu.memory_space<vmem>>, vector<5x128xf32>,
    %c210 = arith.constant 210 : index
    %c0_289 = arith.constant 0 : index
    %226 = vector.load %arg9[%c210, %c0_289] : memref<338x128xf32, #tpu.memory_space<vmem>>, vector<5x128xf32>
    %c32_290 = arith.constant 32 : index
    %c512_291 = arith.constant 512 : index
    %227 = vector.load %arg10[%c32_290, %c512_291] : memref<80x2048xf32, #tpu.memory_space<vmem>>, vector<5x128xf32>
    tpu.vector_store %arg10[%c32_290, %c512_291], %226 {strides = array<i32>} : memref<80x2048xf32, #tpu.memory_space<vmem>>, vector<5x128xf32>,
    %c224 = arith.constant 224 : index
    %c0_292 = arith.constant 0 : index
    %228 = vector.load %arg9[%c224, %c0_292] : memref<338x128xf32, #tpu.memory_space<vmem>>, vector<5x128xf32>
    %c40_293 = arith.constant 40 : index
    %c512_294 = arith.constant 512 : index
    %229 = vector.load %arg10[%c40_293, %c512_294] : memref<80x2048xf32, #tpu.memory_space<vmem>>, vector<5x128xf32>
    tpu.vector_store %arg10[%c40_293, %c512_294], %228 {strides = array<i32>} : memref<80x2048xf32, #tpu.memory_space<vmem>>, vector<5x128xf32>,
    %c231 = arith.constant 231 : index
    %c0_295 = arith.constant 0 : index
    %230 = vector.load %arg9[%c231, %c0_295] : memref<338x128xf32, #tpu.memory_space<vmem>>, vector<5x128xf32>
    %c48_296 = arith.constant 48 : index
    %c512_297 = arith.constant 512 : index
    %231 = vector.load %arg10[%c48_296, %c512_297] : memref<80x2048xf32, #tpu.memory_space<vmem>>, vector<5x128xf32>
    tpu.vector_store %arg10[%c48_296, %c512_297], %230 {strides = array<i32>} : memref<80x2048xf32, #tpu.memory_space<vmem>>, vector<5x128xf32>,
    %c238 = arith.constant 238 : index
    %c0_298 = arith.constant 0 : index
    %232 = vector.load %arg9[%c238, %c0_298] : memref<338x128xf32, #tpu.memory_space<vmem>>, vector<5x128xf32>
    %c56_299 = arith.constant 56 : index
    %c512_300 = arith.constant 512 : index
    %233 = vector.load %arg10[%c56_299, %c512_300] : memref<80x2048xf32, #tpu.memory_space<vmem>>, vector<5x128xf32>
    tpu.vector_store %arg10[%c56_299, %c512_300], %232 {strides = array<i32>} : memref<80x2048xf32, #tpu.memory_space<vmem>>, vector<5x128xf32>,
    %c245 = arith.constant 245 : index
    %c0_301 = arith.constant 0 : index
    %234 = vector.load %arg9[%c245, %c0_301] : memref<338x128xf32, #tpu.memory_space<vmem>>, vector<5x128xf32>
    %c64_302 = arith.constant 64 : index
    %c512_303 = arith.constant 512 : index
    %235 = vector.load %arg10[%c64_302, %c512_303] : memref<80x2048xf32, #tpu.memory_space<vmem>>, vector<5x128xf32>
    tpu.vector_store %arg10[%c64_302, %c512_303], %234 {strides = array<i32>} : memref<80x2048xf32, #tpu.memory_space<vmem>>, vector<5x128xf32>,
    %c252 = arith.constant 252 : index
    %c0_304 = arith.constant 0 : index
    %236 = vector.load %arg9[%c252, %c0_304] : memref<338x128xf32, #tpu.memory_space<vmem>>, vector<5x128xf32>
    %c72_305 = arith.constant 72 : index
    %c512_306 = arith.constant 512 : index
    %237 = vector.load %arg10[%c72_305, %c512_306] : memref<80x2048xf32, #tpu.memory_space<vmem>>, vector<5x128xf32>
    tpu.vector_store %arg10[%c72_305, %c512_306], %236 {strides = array<i32>} : memref<80x2048xf32, #tpu.memory_space<vmem>>, vector<5x128xf32>,
    %c266 = arith.constant 266 : index
    %c0_307 = arith.constant 0 : index
    %238 = vector.load %arg9[%c266, %c0_307] : memref<338x128xf32, #tpu.memory_space<vmem>>, vector<5x128xf32>
    %c0_308 = arith.constant 0 : index
    %c640_309 = arith.constant 640 : index
    %239 = vector.load %arg10[%c0_308, %c640_309] : memref<80x2048xf32, #tpu.memory_space<vmem>>, vector<5x128xf32>
    tpu.vector_store %arg10[%c0_308, %c640_309], %238 {strides = array<i32>} : memref<80x2048xf32, #tpu.memory_space<vmem>>, vector<5x128xf32>,
    %c272 = arith.constant 272 : index
    %c0_310 = arith.constant 0 : index
    %240 = vector.load %arg9[%c272, %c0_310] : memref<338x128xf32, #tpu.memory_space<vmem>>, vector<5x128xf32>
    %c8_311 = arith.constant 8 : index
    %c640_312 = arith.constant 640 : index
    %241 = vector.load %arg10[%c8_311, %c640_312] : memref<80x2048xf32, #tpu.memory_space<vmem>>, vector<5x128xf32>
    tpu.vector_store %arg10[%c8_311, %c640_312], %240 {strides = array<i32>} : memref<80x2048xf32, #tpu.memory_space<vmem>>, vector<5x128xf32>,
    %c278 = arith.constant 278 : index
    %c0_313 = arith.constant 0 : index
    %242 = vector.load %arg9[%c278, %c0_313] : memref<338x128xf32, #tpu.memory_space<vmem>>, vector<5x128xf32>
    %c16_314 = arith.constant 16 : index
    %c640_315 = arith.constant 640 : index
    %243 = vector.load %arg10[%c16_314, %c640_315] : memref<80x2048xf32, #tpu.memory_space<vmem>>, vector<5x128xf32>
    tpu.vector_store %arg10[%c16_314, %c640_315], %242 {strides = array<i32>} : memref<80x2048xf32, #tpu.memory_space<vmem>>, vector<5x128xf32>,
    %c284 = arith.constant 284 : index
    %c0_316 = arith.constant 0 : index
    %244 = vector.load %arg9[%c284, %c0_316] : memref<338x128xf32, #tpu.memory_space<vmem>>, vector<5x128xf32>
    %c24_317 = arith.constant 24 : index
    %c640_318 = arith.constant 640 : index
    %245 = vector.load %arg10[%c24_317, %c640_318] : memref<80x2048xf32, #tpu.memory_space<vmem>>, vector<5x128xf32>
    tpu.vector_store %arg10[%c24_317, %c640_318], %244 {strides = array<i32>} : memref<80x2048xf32, #tpu.memory_space<vmem>>, vector<5x128xf32>,
    %c290 = arith.constant 290 : index
    %c0_319 = arith.constant 0 : index
    %246 = vector.load %arg9[%c290, %c0_319] : memref<338x128xf32, #tpu.memory_space<vmem>>, vector<5x128xf32>
    %c32_320 = arith.constant 32 : index
    %c640_321 = arith.constant 640 : index
    %247 = vector.load %arg10[%c32_320, %c640_321] : memref<80x2048xf32, #tpu.memory_space<vmem>>, vector<5x128xf32>
    tpu.vector_store %arg10[%c32_320, %c640_321], %246 {strides = array<i32>} : memref<80x2048xf32, #tpu.memory_space<vmem>>, vector<5x128xf32>,
    %c302 = arith.constant 302 : index
    %c0_322 = arith.constant 0 : index
    %248 = vector.load %arg9[%c302, %c0_322] : memref<338x128xf32, #tpu.memory_space<vmem>>, vector<5x128xf32>
    %c40_323 = arith.constant 40 : index
    %c640_324 = arith.constant 640 : index
    %249 = vector.load %arg10[%c40_323, %c640_324] : memref<80x2048xf32, #tpu.memory_space<vmem>>, vector<5x128xf32>
    tpu.vector_store %arg10[%c40_323, %c640_324], %248 {strides = array<i32>} : memref<80x2048xf32, #tpu.memory_space<vmem>>, vector<5x128xf32>,
    %c308 = arith.constant 308 : index
    %c0_325 = arith.constant 0 : index
    %250 = vector.load %arg9[%c308, %c0_325] : memref<338x128xf32, #tpu.memory_space<vmem>>, vector<5x128xf32>
    %c48_326 = arith.constant 48 : index
    %c640_327 = arith.constant 640 : index
    %251 = vector.load %arg10[%c48_326, %c640_327] : memref<80x2048xf32, #tpu.memory_space<vmem>>, vector<5x128xf32>
    tpu.vector_store %arg10[%c48_326, %c640_327], %250 {strides = array<i32>} : memref<80x2048xf32, #tpu.memory_space<vmem>>, vector<5x128xf32>,
    %c314 = arith.constant 314 : index
    %c0_328 = arith.constant 0 : index
    %252 = vector.load %arg9[%c314, %c0_328] : memref<338x128xf32, #tpu.memory_space<vmem>>, vector<5x128xf32>
    %c56_329 = arith.constant 56 : index
    %c640_330 = arith.constant 640 : index
    %253 = vector.load %arg10[%c56_329, %c640_330] : memref<80x2048xf32, #tpu.memory_space<vmem>>, vector<5x128xf32>
    tpu.vector_store %arg10[%c56_329, %c640_330], %252 {strides = array<i32>} : memref<80x2048xf32, #tpu.memory_space<vmem>>, vector<5x128xf32>,
    %c320 = arith.constant 320 : index
    %c0_331 = arith.constant 0 : index
    %254 = vector.load %arg9[%c320, %c0_331] : memref<338x128xf32, #tpu.memory_space<vmem>>, vector<5x128xf32>
    %c64_332 = arith.constant 64 : index
    %c640_333 = arith.constant 640 : index
    %255 = vector.load %arg10[%c64_332, %c640_333] : memref<80x2048xf32, #tpu.memory_space<vmem>>, vector<5x128xf32>
    tpu.vector_store %arg10[%c64_332, %c640_333], %254 {strides = array<i32>} : memref<80x2048xf32, #tpu.memory_space<vmem>>, vector<5x128xf32>,
    %c326 = arith.constant 326 : index
    %c0_334 = arith.constant 0 : index
    %256 = vector.load %arg9[%c326, %c0_334] : memref<338x128xf32, #tpu.memory_space<vmem>>, vector<5x128xf32>
    %c72_335 = arith.constant 72 : index
    %c640_336 = arith.constant 640 : index
    %257 = vector.load %arg10[%c72_335, %c640_336] : memref<80x2048xf32, #tpu.memory_space<vmem>>, vector<5x128xf32>
    tpu.vector_store %arg10[%c72_335, %c640_336], %256 {strides = array<i32>} : memref<80x2048xf32, #tpu.memory_space<vmem>>, vector<5x128xf32>,
    %c183 = arith.constant 183 : index
    %c0_337 = arith.constant 0 : index
    %258 = vector.load %arg9[%c183, %c0_337] : memref<338x128xf32, #tpu.memory_space<vmem>>, vector<5x128xf32>
    %c0_338 = arith.constant 0 : index
    %c768_339 = arith.constant 768 : index
    %259 = vector.load %arg10[%c0_338, %c768_339] : memref<80x2048xf32, #tpu.memory_space<vmem>>, vector<5x128xf32>
    tpu.vector_store %arg10[%c0_338, %c768_339], %258 {strides = array<i32>} : memref<80x2048xf32, #tpu.memory_space<vmem>>, vector<5x128xf32>,
    %c190 = arith.constant 190 : index
    %c0_340 = arith.constant 0 : index
    %260 = vector.load %arg9[%c190, %c0_340] : memref<338x128xf32, #tpu.memory_space<vmem>>, vector<5x128xf32>
    %c8_341 = arith.constant 8 : index
    %c768_342 = arith.constant 768 : index
    %261 = vector.load %arg10[%c8_341, %c768_342] : memref<80x2048xf32, #tpu.memory_space<vmem>>, vector<5x128xf32>
    tpu.vector_store %arg10[%c8_341, %c768_342], %260 {strides = array<i32>} : memref<80x2048xf32, #tpu.memory_space<vmem>>, vector<5x128xf32>,
    %c197 = arith.constant 197 : index
    %c0_343 = arith.constant 0 : index
    %262 = vector.load %arg9[%c197, %c0_343] : memref<338x128xf32, #tpu.memory_space<vmem>>, vector<5x128xf32>
    %c16_344 = arith.constant 16 : index
    %c768_345 = arith.constant 768 : index
    %263 = vector.load %arg10[%c16_344, %c768_345] : memref<80x2048xf32, #tpu.memory_space<vmem>>, vector<5x128xf32>
    tpu.vector_store %arg10[%c16_344, %c768_345], %262 {strides = array<i32>} : memref<80x2048xf32, #tpu.memory_space<vmem>>, vector<5x128xf32>,
    %c204 = arith.constant 204 : index
    %c0_346 = arith.constant 0 : index
    %264 = vector.load %arg9[%c204, %c0_346] : memref<338x128xf32, #tpu.memory_space<vmem>>, vector<5x128xf32>
    %c24_347 = arith.constant 24 : index
    %c768_348 = arith.constant 768 : index
    %265 = vector.load %arg10[%c24_347, %c768_348] : memref<80x2048xf32, #tpu.memory_space<vmem>>, vector<5x128xf32>
    tpu.vector_store %arg10[%c24_347, %c768_348], %264 {strides = array<i32>} : memref<80x2048xf32, #tpu.memory_space<vmem>>, vector<5x128xf32>,
    %c211 = arith.constant 211 : index
    %c0_349 = arith.constant 0 : index
    %266 = vector.load %arg9[%c211, %c0_349] : memref<338x128xf32, #tpu.memory_space<vmem>>, vector<5x128xf32>
    %c32_350 = arith.constant 32 : index
    %c768_351 = arith.constant 768 : index
    %267 = vector.load %arg10[%c32_350, %c768_351] : memref<80x2048xf32, #tpu.memory_space<vmem>>, vector<5x128xf32>
    tpu.vector_store %arg10[%c32_350, %c768_351], %266 {strides = array<i32>} : memref<80x2048xf32, #tpu.memory_space<vmem>>, vector<5x128xf32>,
    %c225 = arith.constant 225 : index
    %c0_352 = arith.constant 0 : index
    %268 = vector.load %arg9[%c225, %c0_352] : memref<338x128xf32, #tpu.memory_space<vmem>>, vector<5x128xf32>
    %c40_353 = arith.constant 40 : index
    %c768_354 = arith.constant 768 : index
    %269 = vector.load %arg10[%c40_353, %c768_354] : memref<80x2048xf32, #tpu.memory_space<vmem>>, vector<5x128xf32>
    tpu.vector_store %arg10[%c40_353, %c768_354], %268 {strides = array<i32>} : memref<80x2048xf32, #tpu.memory_space<vmem>>, vector<5x128xf32>,
    %c232 = arith.constant 232 : index
    %c0_355 = arith.constant 0 : index
    %270 = vector.load %arg9[%c232, %c0_355] : memref<338x128xf32, #tpu.memory_space<vmem>>, vector<5x128xf32>
    %c48_356 = arith.constant 48 : index
    %c768_357 = arith.constant 768 : index
    %271 = vector.load %arg10[%c48_356, %c768_357] : memref<80x2048xf32, #tpu.memory_space<vmem>>, vector<5x128xf32>
    tpu.vector_store %arg10[%c48_356, %c768_357], %270 {strides = array<i32>} : memref<80x2048xf32, #tpu.memory_space<vmem>>, vector<5x128xf32>,
    %c239 = arith.constant 239 : index
    %c0_358 = arith.constant 0 : index
    %272 = vector.load %arg9[%c239, %c0_358] : memref<338x128xf32, #tpu.memory_space<vmem>>, vector<5x128xf32>
    %c56_359 = arith.constant 56 : index
    %c768_360 = arith.constant 768 : index
    %273 = vector.load %arg10[%c56_359, %c768_360] : memref<80x2048xf32, #tpu.memory_space<vmem>>, vector<5x128xf32>
    tpu.vector_store %arg10[%c56_359, %c768_360], %272 {strides = array<i32>} : memref<80x2048xf32, #tpu.memory_space<vmem>>, vector<5x128xf32>,
    %c246 = arith.constant 246 : index
    %c0_361 = arith.constant 0 : index
    %274 = vector.load %arg9[%c246, %c0_361] : memref<338x128xf32, #tpu.memory_space<vmem>>, vector<5x128xf32>
    %c64_362 = arith.constant 64 : index
    %c768_363 = arith.constant 768 : index
    %275 = vector.load %arg10[%c64_362, %c768_363] : memref<80x2048xf32, #tpu.memory_space<vmem>>, vector<5x128xf32>
    tpu.vector_store %arg10[%c64_362, %c768_363], %274 {strides = array<i32>} : memref<80x2048xf32, #tpu.memory_space<vmem>>, vector<5x128xf32>,
    %c253 = arith.constant 253 : index
    %c0_364 = arith.constant 0 : index
    %276 = vector.load %arg9[%c253, %c0_364] : memref<338x128xf32, #tpu.memory_space<vmem>>, vector<5x128xf32>
    %c72_365 = arith.constant 72 : index
    %c768_366 = arith.constant 768 : index
    %277 = vector.load %arg10[%c72_365, %c768_366] : memref<80x2048xf32, #tpu.memory_space<vmem>>, vector<5x128xf32>
    tpu.vector_store %arg10[%c72_365, %c768_366], %276 {strides = array<i32>} : memref<80x2048xf32, #tpu.memory_space<vmem>>, vector<5x128xf32>,
    %c267 = arith.constant 267 : index
    %c0_367 = arith.constant 0 : index
    %278 = vector.load %arg9[%c267, %c0_367] : memref<338x128xf32, #tpu.memory_space<vmem>>, vector<5x128xf32>
    %c0_368 = arith.constant 0 : index
    %c896_369 = arith.constant 896 : index
    %279 = vector.load %arg10[%c0_368, %c896_369] : memref<80x2048xf32, #tpu.memory_space<vmem>>, vector<5x128xf32>
    tpu.vector_store %arg10[%c0_368, %c896_369], %278 {strides = array<i32>} : memref<80x2048xf32, #tpu.memory_space<vmem>>, vector<5x128xf32>,
    %c273 = arith.constant 273 : index
    %c0_370 = arith.constant 0 : index
    %280 = vector.load %arg9[%c273, %c0_370] : memref<338x128xf32, #tpu.memory_space<vmem>>, vector<5x128xf32>
    %c8_371 = arith.constant 8 : index
    %c896_372 = arith.constant 896 : index
    %281 = vector.load %arg10[%c8_371, %c896_372] : memref<80x2048xf32, #tpu.memory_space<vmem>>, vector<5x128xf32>
    tpu.vector_store %arg10[%c8_371, %c896_372], %280 {strides = array<i32>} : memref<80x2048xf32, #tpu.memory_space<vmem>>, vector<5x128xf32>,
    %c279 = arith.constant 279 : index
    %c0_373 = arith.constant 0 : index
    %282 = vector.load %arg9[%c279, %c0_373] : memref<338x128xf32, #tpu.memory_space<vmem>>, vector<5x128xf32>
    %c16_374 = arith.constant 16 : index
    %c896_375 = arith.constant 896 : index
    %283 = vector.load %arg10[%c16_374, %c896_375] : memref<80x2048xf32, #tpu.memory_space<vmem>>, vector<5x128xf32>
    tpu.vector_store %arg10[%c16_374, %c896_375], %282 {strides = array<i32>} : memref<80x2048xf32, #tpu.memory_space<vmem>>, vector<5x128xf32>,
    %c285 = arith.constant 285 : index
    %c0_376 = arith.constant 0 : index
    %284 = vector.load %arg9[%c285, %c0_376] : memref<338x128xf32, #tpu.memory_space<vmem>>, vector<5x128xf32>
    %c24_377 = arith.constant 24 : index
    %c896_378 = arith.constant 896 : index
    %285 = vector.load %arg10[%c24_377, %c896_378] : memref<80x2048xf32, #tpu.memory_space<vmem>>, vector<5x128xf32>
    tpu.vector_store %arg10[%c24_377, %c896_378], %284 {strides = array<i32>} : memref<80x2048xf32, #tpu.memory_space<vmem>>, vector<5x128xf32>,
    %c291 = arith.constant 291 : index
    %c0_379 = arith.constant 0 : index
    %286 = vector.load %arg9[%c291, %c0_379] : memref<338x128xf32, #tpu.memory_space<vmem>>, vector<5x128xf32>
    %c32_380 = arith.constant 32 : index
    %c896_381 = arith.constant 896 : index
    %287 = vector.load %arg10[%c32_380, %c896_381] : memref<80x2048xf32, #tpu.memory_space<vmem>>, vector<5x128xf32>
    tpu.vector_store %arg10[%c32_380, %c896_381], %286 {strides = array<i32>} : memref<80x2048xf32, #tpu.memory_space<vmem>>, vector<5x128xf32>,
    %c303 = arith.constant 303 : index
    %c0_382 = arith.constant 0 : index
    %288 = vector.load %arg9[%c303, %c0_382] : memref<338x128xf32, #tpu.memory_space<vmem>>, vector<5x128xf32>
    %c40_383 = arith.constant 40 : index
    %c896_384 = arith.constant 896 : index
    %289 = vector.load %arg10[%c40_383, %c896_384] : memref<80x2048xf32, #tpu.memory_space<vmem>>, vector<5x128xf32>
    tpu.vector_store %arg10[%c40_383, %c896_384], %288 {strides = array<i32>} : memref<80x2048xf32, #tpu.memory_space<vmem>>, vector<5x128xf32>,
    %c309 = arith.constant 309 : index
    %c0_385 = arith.constant 0 : index
    %290 = vector.load %arg9[%c309, %c0_385] : memref<338x128xf32, #tpu.memory_space<vmem>>, vector<5x128xf32>
    %c48_386 = arith.constant 48 : index
    %c896_387 = arith.constant 896 : index
    %291 = vector.load %arg10[%c48_386, %c896_387] : memref<80x2048xf32, #tpu.memory_space<vmem>>, vector<5x128xf32>
    tpu.vector_store %arg10[%c48_386, %c896_387], %290 {strides = array<i32>} : memref<80x2048xf32, #tpu.memory_space<vmem>>, vector<5x128xf32>,
    %c315 = arith.constant 315 : index
    %c0_388 = arith.constant 0 : index
    %292 = vector.load %arg9[%c315, %c0_388] : memref<338x128xf32, #tpu.memory_space<vmem>>, vector<5x128xf32>
    %c56_389 = arith.constant 56 : index
    %c896_390 = arith.constant 896 : index
    %293 = vector.load %arg10[%c56_389, %c896_390] : memref<80x2048xf32, #tpu.memory_space<vmem>>, vector<5x128xf32>
    tpu.vector_store %arg10[%c56_389, %c896_390], %292 {strides = array<i32>} : memref<80x2048xf32, #tpu.memory_space<vmem>>, vector<5x128xf32>,
    %c321 = arith.constant 321 : index
    %c0_391 = arith.constant 0 : index
    %294 = vector.load %arg9[%c321, %c0_391] : memref<338x128xf32, #tpu.memory_space<vmem>>, vector<5x128xf32>
    %c64_392 = arith.constant 64 : index
    %c896_393 = arith.constant 896 : index
    %295 = vector.load %arg10[%c64_392, %c896_393] : memref<80x2048xf32, #tpu.memory_space<vmem>>, vector<5x128xf32>
    tpu.vector_store %arg10[%c64_392, %c896_393], %294 {strides = array<i32>} : memref<80x2048xf32, #tpu.memory_space<vmem>>, vector<5x128xf32>,
    %c327 = arith.constant 327 : index
    %c0_394 = arith.constant 0 : index
    %296 = vector.load %arg9[%c327, %c0_394] : memref<338x128xf32, #tpu.memory_space<vmem>>, vector<5x128xf32>
    %c72_395 = arith.constant 72 : index
    %c896_396 = arith.constant 896 : index
    %297 = vector.load %arg10[%c72_395, %c896_396] : memref<80x2048xf32, #tpu.memory_space<vmem>>, vector<5x128xf32>
    tpu.vector_store %arg10[%c72_395, %c896_396], %296 {strides = array<i32>} : memref<80x2048xf32, #tpu.memory_space<vmem>>, vector<5x128xf32>,
    %c7_397 = arith.constant 7 : index
    %c0_398 = arith.constant 0 : index
    %298 = vector.load %arg9[%c7_397, %c0_398] : memref<338x128xf32, #tpu.memory_space<vmem>>, vector<5x128xf32>
    %c0_399 = arith.constant 0 : index
    %c1024_400 = arith.constant 1024 : index
    %299 = vector.load %arg10[%c0_399, %c1024_400] : memref<80x2048xf32, #tpu.memory_space<vmem>>, vector<5x128xf32>
    tpu.vector_store %arg10[%c0_399, %c1024_400], %298 {strides = array<i32>} : memref<80x2048xf32, #tpu.memory_space<vmem>>, vector<5x128xf32>,
    %c14_401 = arith.constant 14 : index
    %c0_402 = arith.constant 0 : index
    %300 = vector.load %arg9[%c14_401, %c0_402] : memref<338x128xf32, #tpu.memory_space<vmem>>, vector<5x128xf32>
    %c8_403 = arith.constant 8 : index
    %c1024_404 = arith.constant 1024 : index
    %301 = vector.load %arg10[%c8_403, %c1024_404] : memref<80x2048xf32, #tpu.memory_space<vmem>>, vector<5x128xf32>
    tpu.vector_store %arg10[%c8_403, %c1024_404], %300 {strides = array<i32>} : memref<80x2048xf32, #tpu.memory_space<vmem>>, vector<5x128xf32>,
    %c21_405 = arith.constant 21 : index
    %c0_406 = arith.constant 0 : index
    %302 = vector.load %arg9[%c21_405, %c0_406] : memref<338x128xf32, #tpu.memory_space<vmem>>, vector<5x128xf32>
    %c16_407 = arith.constant 16 : index
    %c1024_408 = arith.constant 1024 : index
    %303 = vector.load %arg10[%c16_407, %c1024_408] : memref<80x2048xf32, #tpu.memory_space<vmem>>, vector<5x128xf32>
    tpu.vector_store %arg10[%c16_407, %c1024_408], %302 {strides = array<i32>} : memref<80x2048xf32, #tpu.memory_space<vmem>>, vector<5x128xf32>,
    %c28_409 = arith.constant 28 : index
    %c0_410 = arith.constant 0 : index
    %304 = vector.load %arg9[%c28_409, %c0_410] : memref<338x128xf32, #tpu.memory_space<vmem>>, vector<5x128xf32>
    %c24_411 = arith.constant 24 : index
    %c1024_412 = arith.constant 1024 : index
    %305 = vector.load %arg10[%c24_411, %c1024_412] : memref<80x2048xf32, #tpu.memory_space<vmem>>, vector<5x128xf32>
    tpu.vector_store %arg10[%c24_411, %c1024_412], %304 {strides = array<i32>} : memref<80x2048xf32, #tpu.memory_space<vmem>>, vector<5x128xf32>,
    %c35 = arith.constant 35 : index
    %c0_413 = arith.constant 0 : index
    %306 = vector.load %arg9[%c35, %c0_413] : memref<338x128xf32, #tpu.memory_space<vmem>>, vector<5x128xf32>
    %c32_414 = arith.constant 32 : index
    %c1024_415 = arith.constant 1024 : index
    %307 = vector.load %arg10[%c32_414, %c1024_415] : memref<80x2048xf32, #tpu.memory_space<vmem>>, vector<5x128xf32>
    tpu.vector_store %arg10[%c32_414, %c1024_415], %306 {strides = array<i32>} : memref<80x2048xf32, #tpu.memory_space<vmem>>, vector<5x128xf32>,
    %c56_416 = arith.constant 56 : index
    %c0_417 = arith.constant 0 : index
    %308 = vector.load %arg9[%c56_416, %c0_417] : memref<338x128xf32, #tpu.memory_space<vmem>>, vector<5x128xf32>
    %c40_418 = arith.constant 40 : index
    %c1024_419 = arith.constant 1024 : index
    %309 = vector.load %arg10[%c40_418, %c1024_419] : memref<80x2048xf32, #tpu.memory_space<vmem>>, vector<5x128xf32>
    tpu.vector_store %arg10[%c40_418, %c1024_419], %308 {strides = array<i32>} : memref<80x2048xf32, #tpu.memory_space<vmem>>, vector<5x128xf32>,
    %c63_420 = arith.constant 63 : index
    %c0_421 = arith.constant 0 : index
    %310 = vector.load %arg9[%c63_420, %c0_421] : memref<338x128xf32, #tpu.memory_space<vmem>>, vector<5x128xf32>
    %c48_422 = arith.constant 48 : index
    %c1024_423 = arith.constant 1024 : index
    %311 = vector.load %arg10[%c48_422, %c1024_423] : memref<80x2048xf32, #tpu.memory_space<vmem>>, vector<5x128xf32>
    tpu.vector_store %arg10[%c48_422, %c1024_423], %310 {strides = array<i32>} : memref<80x2048xf32, #tpu.memory_space<vmem>>, vector<5x128xf32>,
    %c70_424 = arith.constant 70 : index
    %c0_425 = arith.constant 0 : index
    %312 = vector.load %arg9[%c70_424, %c0_425] : memref<338x128xf32, #tpu.memory_space<vmem>>, vector<5x128xf32>
    %c56_426 = arith.constant 56 : index
    %c1024_427 = arith.constant 1024 : index
    %313 = vector.load %arg10[%c56_426, %c1024_427] : memref<80x2048xf32, #tpu.memory_space<vmem>>, vector<5x128xf32>
    tpu.vector_store %arg10[%c56_426, %c1024_427], %312 {strides = array<i32>} : memref<80x2048xf32, #tpu.memory_space<vmem>>, vector<5x128xf32>,
    %c77_428 = arith.constant 77 : index
    %c0_429 = arith.constant 0 : index
    %314 = vector.load %arg9[%c77_428, %c0_429] : memref<338x128xf32, #tpu.memory_space<vmem>>, vector<5x128xf32>
    %c64_430 = arith.constant 64 : index
    %c1024_431 = arith.constant 1024 : index
    %315 = vector.load %arg10[%c64_430, %c1024_431] : memref<80x2048xf32, #tpu.memory_space<vmem>>, vector<5x128xf32>
    tpu.vector_store %arg10[%c64_430, %c1024_431], %314 {strides = array<i32>} : memref<80x2048xf32, #tpu.memory_space<vmem>>, vector<5x128xf32>,
    %c84 = arith.constant 84 : index
    %c0_432 = arith.constant 0 : index
    %316 = vector.load %arg9[%c84, %c0_432] : memref<338x128xf32, #tpu.memory_space<vmem>>, vector<5x128xf32>
    %c72_433 = arith.constant 72 : index
    %c1024_434 = arith.constant 1024 : index
    %317 = vector.load %arg10[%c72_433, %c1024_434] : memref<80x2048xf32, #tpu.memory_space<vmem>>, vector<5x128xf32>
    tpu.vector_store %arg10[%c72_433, %c1024_434], %316 {strides = array<i32>} : memref<80x2048xf32, #tpu.memory_space<vmem>>, vector<5x128xf32>,
    %c104_435 = arith.constant 104 : index
    %c0_436 = arith.constant 0 : index
    %318 = vector.load %arg9[%c104_435, %c0_436] : memref<338x128xf32, #tpu.memory_space<vmem>>, vector<5x128xf32>
    %c0_437 = arith.constant 0 : index
    %c1152_438 = arith.constant 1152 : index
    %319 = vector.load %arg10[%c0_437, %c1152_438] : memref<80x2048xf32, #tpu.memory_space<vmem>>, vector<5x128xf32>
    tpu.vector_store %arg10[%c0_437, %c1152_438], %318 {strides = array<i32>} : memref<80x2048xf32, #tpu.memory_space<vmem>>, vector<5x128xf32>,
    %c110_439 = arith.constant 110 : index
    %c0_440 = arith.constant 0 : index
    %320 = vector.load %arg9[%c110_439, %c0_440] : memref<338x128xf32, #tpu.memory_space<vmem>>, vector<5x128xf32>
    %c8_441 = arith.constant 8 : index
    %c1152_442 = arith.constant 1152 : index
    %321 = vector.load %arg10[%c8_441, %c1152_442] : memref<80x2048xf32, #tpu.memory_space<vmem>>, vector<5x128xf32>
    tpu.vector_store %arg10[%c8_441, %c1152_442], %320 {strides = array<i32>} : memref<80x2048xf32, #tpu.memory_space<vmem>>, vector<5x128xf32>,
    %c116_443 = arith.constant 116 : index
    %c0_444 = arith.constant 0 : index
    %322 = vector.load %arg9[%c116_443, %c0_444] : memref<338x128xf32, #tpu.memory_space<vmem>>, vector<5x128xf32>
    %c16_445 = arith.constant 16 : index
    %c1152_446 = arith.constant 1152 : index
    %323 = vector.load %arg10[%c16_445, %c1152_446] : memref<80x2048xf32, #tpu.memory_space<vmem>>, vector<5x128xf32>
    tpu.vector_store %arg10[%c16_445, %c1152_446], %322 {strides = array<i32>} : memref<80x2048xf32, #tpu.memory_space<vmem>>, vector<5x128xf32>,
    %c122_447 = arith.constant 122 : index
    %c0_448 = arith.constant 0 : index
    %324 = vector.load %arg9[%c122_447, %c0_448] : memref<338x128xf32, #tpu.memory_space<vmem>>, vector<5x128xf32>
    %c24_449 = arith.constant 24 : index
    %c1152_450 = arith.constant 1152 : index
    %325 = vector.load %arg10[%c24_449, %c1152_450] : memref<80x2048xf32, #tpu.memory_space<vmem>>, vector<5x128xf32>
    tpu.vector_store %arg10[%c24_449, %c1152_450], %324 {strides = array<i32>} : memref<80x2048xf32, #tpu.memory_space<vmem>>, vector<5x128xf32>,
    %c128_451 = arith.constant 128 : index
    %c0_452 = arith.constant 0 : index
    %326 = vector.load %arg9[%c128_451, %c0_452] : memref<338x128xf32, #tpu.memory_space<vmem>>, vector<5x128xf32>
    %c32_453 = arith.constant 32 : index
    %c1152_454 = arith.constant 1152 : index
    %327 = vector.load %arg10[%c32_453, %c1152_454] : memref<80x2048xf32, #tpu.memory_space<vmem>>, vector<5x128xf32>
    tpu.vector_store %arg10[%c32_453, %c1152_454], %326 {strides = array<i32>} : memref<80x2048xf32, #tpu.memory_space<vmem>>, vector<5x128xf32>,
    %c146_455 = arith.constant 146 : index
    %c0_456 = arith.constant 0 : index
    %328 = vector.load %arg9[%c146_455, %c0_456] : memref<338x128xf32, #tpu.memory_space<vmem>>, vector<5x128xf32>
    %c40_457 = arith.constant 40 : index
    %c1152_458 = arith.constant 1152 : index
    %329 = vector.load %arg10[%c40_457, %c1152_458] : memref<80x2048xf32, #tpu.memory_space<vmem>>, vector<5x128xf32>
    tpu.vector_store %arg10[%c40_457, %c1152_458], %328 {strides = array<i32>} : memref<80x2048xf32, #tpu.memory_space<vmem>>, vector<5x128xf32>,
    %c152_459 = arith.constant 152 : index
    %c0_460 = arith.constant 0 : index
    %330 = vector.load %arg9[%c152_459, %c0_460] : memref<338x128xf32, #tpu.memory_space<vmem>>, vector<5x128xf32>
    %c48_461 = arith.constant 48 : index
    %c1152_462 = arith.constant 1152 : index
    %331 = vector.load %arg10[%c48_461, %c1152_462] : memref<80x2048xf32, #tpu.memory_space<vmem>>, vector<5x128xf32>
    tpu.vector_store %arg10[%c48_461, %c1152_462], %330 {strides = array<i32>} : memref<80x2048xf32, #tpu.memory_space<vmem>>, vector<5x128xf32>,
    %c158_463 = arith.constant 158 : index
    %c0_464 = arith.constant 0 : index
    %332 = vector.load %arg9[%c158_463, %c0_464] : memref<338x128xf32, #tpu.memory_space<vmem>>, vector<5x128xf32>
    %c56_465 = arith.constant 56 : index
    %c1152_466 = arith.constant 1152 : index
    %333 = vector.load %arg10[%c56_465, %c1152_466] : memref<80x2048xf32, #tpu.memory_space<vmem>>, vector<5x128xf32>
    tpu.vector_store %arg10[%c56_465, %c1152_466], %332 {strides = array<i32>} : memref<80x2048xf32, #tpu.memory_space<vmem>>, vector<5x128xf32>,
    %c164_467 = arith.constant 164 : index
    %c0_468 = arith.constant 0 : index
    %334 = vector.load %arg9[%c164_467, %c0_468] : memref<338x128xf32, #tpu.memory_space<vmem>>, vector<5x128xf32>
    %c64_469 = arith.constant 64 : index
    %c1152_470 = arith.constant 1152 : index
    %335 = vector.load %arg10[%c64_469, %c1152_470] : memref<80x2048xf32, #tpu.memory_space<vmem>>, vector<5x128xf32>
    tpu.vector_store %arg10[%c64_469, %c1152_470], %334 {strides = array<i32>} : memref<80x2048xf32, #tpu.memory_space<vmem>>, vector<5x128xf32>,
    %c170 = arith.constant 170 : index
    %c0_471 = arith.constant 0 : index
    %336 = vector.load %arg9[%c170, %c0_471] : memref<338x128xf32, #tpu.memory_space<vmem>>, vector<5x128xf32>
    %c72_472 = arith.constant 72 : index
    %c1152_473 = arith.constant 1152 : index
    %337 = vector.load %arg10[%c72_472, %c1152_473] : memref<80x2048xf32, #tpu.memory_space<vmem>>, vector<5x128xf32>
    tpu.vector_store %arg10[%c72_472, %c1152_473], %336 {strides = array<i32>} : memref<80x2048xf32, #tpu.memory_space<vmem>>, vector<5x128xf32>,
    %c8_474 = arith.constant 8 : index
    %c0_475 = arith.constant 0 : index
    %338 = vector.load %arg9[%c8_474, %c0_475] : memref<338x128xf32, #tpu.memory_space<vmem>>, vector<5x128xf32>
    %c0_476 = arith.constant 0 : index
    %c1280_477 = arith.constant 1280 : index
    %339 = vector.load %arg10[%c0_476, %c1280_477] : memref<80x2048xf32, #tpu.memory_space<vmem>>, vector<5x128xf32>
    tpu.vector_store %arg10[%c0_476, %c1280_477], %338 {strides = array<i32>} : memref<80x2048xf32, #tpu.memory_space<vmem>>, vector<5x128xf32>,
    %c15_478 = arith.constant 15 : index
    %c0_479 = arith.constant 0 : index
    %340 = vector.load %arg9[%c15_478, %c0_479] : memref<338x128xf32, #tpu.memory_space<vmem>>, vector<5x128xf32>
    %c8_480 = arith.constant 8 : index
    %c1280_481 = arith.constant 1280 : index
    %341 = vector.load %arg10[%c8_480, %c1280_481] : memref<80x2048xf32, #tpu.memory_space<vmem>>, vector<5x128xf32>
    tpu.vector_store %arg10[%c8_480, %c1280_481], %340 {strides = array<i32>} : memref<80x2048xf32, #tpu.memory_space<vmem>>, vector<5x128xf32>,
    %c22_482 = arith.constant 22 : index
    %c0_483 = arith.constant 0 : index
    %342 = vector.load %arg9[%c22_482, %c0_483] : memref<338x128xf32, #tpu.memory_space<vmem>>, vector<5x128xf32>
    %c16_484 = arith.constant 16 : index
    %c1280_485 = arith.constant 1280 : index
    %343 = vector.load %arg10[%c16_484, %c1280_485] : memref<80x2048xf32, #tpu.memory_space<vmem>>, vector<5x128xf32>
    tpu.vector_store %arg10[%c16_484, %c1280_485], %342 {strides = array<i32>} : memref<80x2048xf32, #tpu.memory_space<vmem>>, vector<5x128xf32>,
    %c29_486 = arith.constant 29 : index
    %c0_487 = arith.constant 0 : index
    %344 = vector.load %arg9[%c29_486, %c0_487] : memref<338x128xf32, #tpu.memory_space<vmem>>, vector<5x128xf32>
    %c24_488 = arith.constant 24 : index
    %c1280_489 = arith.constant 1280 : index
    %345 = vector.load %arg10[%c24_488, %c1280_489] : memref<80x2048xf32, #tpu.memory_space<vmem>>, vector<5x128xf32>
    tpu.vector_store %arg10[%c24_488, %c1280_489], %344 {strides = array<i32>} : memref<80x2048xf32, #tpu.memory_space<vmem>>, vector<5x128xf32>,
    %c36 = arith.constant 36 : index
    %c0_490 = arith.constant 0 : index
    %346 = vector.load %arg9[%c36, %c0_490] : memref<338x128xf32, #tpu.memory_space<vmem>>, vector<5x128xf32>
    %c32_491 = arith.constant 32 : index
    %c1280_492 = arith.constant 1280 : index
    %347 = vector.load %arg10[%c32_491, %c1280_492] : memref<80x2048xf32, #tpu.memory_space<vmem>>, vector<5x128xf32>
    tpu.vector_store %arg10[%c32_491, %c1280_492], %346 {strides = array<i32>} : memref<80x2048xf32, #tpu.memory_space<vmem>>, vector<5x128xf32>,
    %c57_493 = arith.constant 57 : index
    %c0_494 = arith.constant 0 : index
    %348 = vector.load %arg9[%c57_493, %c0_494] : memref<338x128xf32, #tpu.memory_space<vmem>>, vector<5x128xf32>
    %c40_495 = arith.constant 40 : index
    %c1280_496 = arith.constant 1280 : index
    %349 = vector.load %arg10[%c40_495, %c1280_496] : memref<80x2048xf32, #tpu.memory_space<vmem>>, vector<5x128xf32>
    tpu.vector_store %arg10[%c40_495, %c1280_496], %348 {strides = array<i32>} : memref<80x2048xf32, #tpu.memory_space<vmem>>, vector<5x128xf32>,
    %c64_497 = arith.constant 64 : index
    %c0_498 = arith.constant 0 : index
    %350 = vector.load %arg9[%c64_497, %c0_498] : memref<338x128xf32, #tpu.memory_space<vmem>>, vector<5x128xf32>
    %c48_499 = arith.constant 48 : index
    %c1280_500 = arith.constant 1280 : index
    %351 = vector.load %arg10[%c48_499, %c1280_500] : memref<80x2048xf32, #tpu.memory_space<vmem>>, vector<5x128xf32>
    tpu.vector_store %arg10[%c48_499, %c1280_500], %350 {strides = array<i32>} : memref<80x2048xf32, #tpu.memory_space<vmem>>, vector<5x128xf32>,
    %c71_501 = arith.constant 71 : index
    %c0_502 = arith.constant 0 : index
    %352 = vector.load %arg9[%c71_501, %c0_502] : memref<338x128xf32, #tpu.memory_space<vmem>>, vector<5x128xf32>
    %c56_503 = arith.constant 56 : index
    %c1280_504 = arith.constant 1280 : index
    %353 = vector.load %arg10[%c56_503, %c1280_504] : memref<80x2048xf32, #tpu.memory_space<vmem>>, vector<5x128xf32>
    tpu.vector_store %arg10[%c56_503, %c1280_504], %352 {strides = array<i32>} : memref<80x2048xf32, #tpu.memory_space<vmem>>, vector<5x128xf32>,
    %c78_505 = arith.constant 78 : index
    %c0_506 = arith.constant 0 : index
    %354 = vector.load %arg9[%c78_505, %c0_506] : memref<338x128xf32, #tpu.memory_space<vmem>>, vector<5x128xf32>
    %c64_507 = arith.constant 64 : index
    %c1280_508 = arith.constant 1280 : index
    %355 = vector.load %arg10[%c64_507, %c1280_508] : memref<80x2048xf32, #tpu.memory_space<vmem>>, vector<5x128xf32>
    tpu.vector_store %arg10[%c64_507, %c1280_508], %354 {strides = array<i32>} : memref<80x2048xf32, #tpu.memory_space<vmem>>, vector<5x128xf32>,
    %c85 = arith.constant 85 : index
    %c0_509 = arith.constant 0 : index
    %356 = vector.load %arg9[%c85, %c0_509] : memref<338x128xf32, #tpu.memory_space<vmem>>, vector<5x128xf32>
    %c72_510 = arith.constant 72 : index
    %c1280_511 = arith.constant 1280 : index
    %357 = vector.load %arg10[%c72_510, %c1280_511] : memref<80x2048xf32, #tpu.memory_space<vmem>>, vector<5x128xf32>
    tpu.vector_store %arg10[%c72_510, %c1280_511], %356 {strides = array<i32>} : memref<80x2048xf32, #tpu.memory_space<vmem>>, vector<5x128xf32>,
    %c105_512 = arith.constant 105 : index
    %c0_513 = arith.constant 0 : index
    %358 = vector.load %arg9[%c105_512, %c0_513] : memref<338x128xf32, #tpu.memory_space<vmem>>, vector<5x128xf32>
    %c0_514 = arith.constant 0 : index
    %c1408_515 = arith.constant 1408 : index
    %359 = vector.load %arg10[%c0_514, %c1408_515] : memref<80x2048xf32, #tpu.memory_space<vmem>>, vector<5x128xf32>
    tpu.vector_store %arg10[%c0_514, %c1408_515], %358 {strides = array<i32>} : memref<80x2048xf32, #tpu.memory_space<vmem>>, vector<5x128xf32>,
    %c111_516 = arith.constant 111 : index
    %c0_517 = arith.constant 0 : index
    %360 = vector.load %arg9[%c111_516, %c0_517] : memref<338x128xf32, #tpu.memory_space<vmem>>, vector<5x128xf32>
    %c8_518 = arith.constant 8 : index
    %c1408_519 = arith.constant 1408 : index
    %361 = vector.load %arg10[%c8_518, %c1408_519] : memref<80x2048xf32, #tpu.memory_space<vmem>>, vector<5x128xf32>
    tpu.vector_store %arg10[%c8_518, %c1408_519], %360 {strides = array<i32>} : memref<80x2048xf32, #tpu.memory_space<vmem>>, vector<5x128xf32>,
    %c117_520 = arith.constant 117 : index
    %c0_521 = arith.constant 0 : index
    %362 = vector.load %arg9[%c117_520, %c0_521] : memref<338x128xf32, #tpu.memory_space<vmem>>, vector<5x128xf32>
    %c16_522 = arith.constant 16 : index
    %c1408_523 = arith.constant 1408 : index
    %363 = vector.load %arg10[%c16_522, %c1408_523] : memref<80x2048xf32, #tpu.memory_space<vmem>>, vector<5x128xf32>
    tpu.vector_store %arg10[%c16_522, %c1408_523], %362 {strides = array<i32>} : memref<80x2048xf32, #tpu.memory_space<vmem>>, vector<5x128xf32>,
    %c123_524 = arith.constant 123 : index
    %c0_525 = arith.constant 0 : index
    %364 = vector.load %arg9[%c123_524, %c0_525] : memref<338x128xf32, #tpu.memory_space<vmem>>, vector<5x128xf32>
    %c24_526 = arith.constant 24 : index
    %c1408_527 = arith.constant 1408 : index
    %365 = vector.load %arg10[%c24_526, %c1408_527] : memref<80x2048xf32, #tpu.memory_space<vmem>>, vector<5x128xf32>
    tpu.vector_store %arg10[%c24_526, %c1408_527], %364 {strides = array<i32>} : memref<80x2048xf32, #tpu.memory_space<vmem>>, vector<5x128xf32>,
    %c129 = arith.constant 129 : index
    %c0_528 = arith.constant 0 : index
    %366 = vector.load %arg9[%c129, %c0_528] : memref<338x128xf32, #tpu.memory_space<vmem>>, vector<5x128xf32>
    %c32_529 = arith.constant 32 : index
    %c1408_530 = arith.constant 1408 : index
    %367 = vector.load %arg10[%c32_529, %c1408_530] : memref<80x2048xf32, #tpu.memory_space<vmem>>, vector<5x128xf32>
    tpu.vector_store %arg10[%c32_529, %c1408_530], %366 {strides = array<i32>} : memref<80x2048xf32, #tpu.memory_space<vmem>>, vector<5x128xf32>,
    %c147_531 = arith.constant 147 : index
    %c0_532 = arith.constant 0 : index
    %368 = vector.load %arg9[%c147_531, %c0_532] : memref<338x128xf32, #tpu.memory_space<vmem>>, vector<5x128xf32>
    %c40_533 = arith.constant 40 : index
    %c1408_534 = arith.constant 1408 : index
    %369 = vector.load %arg10[%c40_533, %c1408_534] : memref<80x2048xf32, #tpu.memory_space<vmem>>, vector<5x128xf32>
    tpu.vector_store %arg10[%c40_533, %c1408_534], %368 {strides = array<i32>} : memref<80x2048xf32, #tpu.memory_space<vmem>>, vector<5x128xf32>,
    %c153_535 = arith.constant 153 : index
    %c0_536 = arith.constant 0 : index
    %370 = vector.load %arg9[%c153_535, %c0_536] : memref<338x128xf32, #tpu.memory_space<vmem>>, vector<5x128xf32>
    %c48_537 = arith.constant 48 : index
    %c1408_538 = arith.constant 1408 : index
    %371 = vector.load %arg10[%c48_537, %c1408_538] : memref<80x2048xf32, #tpu.memory_space<vmem>>, vector<5x128xf32>
    tpu.vector_store %arg10[%c48_537, %c1408_538], %370 {strides = array<i32>} : memref<80x2048xf32, #tpu.memory_space<vmem>>, vector<5x128xf32>,
    %c159_539 = arith.constant 159 : index
    %c0_540 = arith.constant 0 : index
    %372 = vector.load %arg9[%c159_539, %c0_540] : memref<338x128xf32, #tpu.memory_space<vmem>>, vector<5x128xf32>
    %c56_541 = arith.constant 56 : index
    %c1408_542 = arith.constant 1408 : index
    %373 = vector.load %arg10[%c56_541, %c1408_542] : memref<80x2048xf32, #tpu.memory_space<vmem>>, vector<5x128xf32>
    tpu.vector_store %arg10[%c56_541, %c1408_542], %372 {strides = array<i32>} : memref<80x2048xf32, #tpu.memory_space<vmem>>, vector<5x128xf32>,
    %c165_543 = arith.constant 165 : index
    %c0_544 = arith.constant 0 : index
    %374 = vector.load %arg9[%c165_543, %c0_544] : memref<338x128xf32, #tpu.memory_space<vmem>>, vector<5x128xf32>
    %c64_545 = arith.constant 64 : index
    %c1408_546 = arith.constant 1408 : index
    %375 = vector.load %arg10[%c64_545, %c1408_546] : memref<80x2048xf32, #tpu.memory_space<vmem>>, vector<5x128xf32>
    tpu.vector_store %arg10[%c64_545, %c1408_546], %374 {strides = array<i32>} : memref<80x2048xf32, #tpu.memory_space<vmem>>, vector<5x128xf32>,
    %c171 = arith.constant 171 : index
    %c0_547 = arith.constant 0 : index
    %376 = vector.load %arg9[%c171, %c0_547] : memref<338x128xf32, #tpu.memory_space<vmem>>, vector<5x128xf32>
    %c72_548 = arith.constant 72 : index
    %c1408_549 = arith.constant 1408 : index
    %377 = vector.load %arg10[%c72_548, %c1408_549] : memref<80x2048xf32, #tpu.memory_space<vmem>>, vector<5x128xf32>
    tpu.vector_store %arg10[%c72_548, %c1408_549], %376 {strides = array<i32>} : memref<80x2048xf32, #tpu.memory_space<vmem>>, vector<5x128xf32>,
    %c189_550 = arith.constant 189 : index
    %c0_551 = arith.constant 0 : index
    %378 = vector.load %arg9[%c189_550, %c0_551] : memref<338x128xf32, #tpu.memory_space<vmem>>, vector<5x128xf32>
    %c0_552 = arith.constant 0 : index
    %c1536_553 = arith.constant 1536 : index
    %379 = vector.load %arg10[%c0_552, %c1536_553] : memref<80x2048xf32, #tpu.memory_space<vmem>>, vector<5x128xf32>
    tpu.vector_store %arg10[%c0_552, %c1536_553], %378 {strides = array<i32>} : memref<80x2048xf32, #tpu.memory_space<vmem>>, vector<5x128xf32>,
    %c196_554 = arith.constant 196 : index
    %c0_555 = arith.constant 0 : index
    %380 = vector.load %arg9[%c196_554, %c0_555] : memref<338x128xf32, #tpu.memory_space<vmem>>, vector<5x128xf32>
    %c8_556 = arith.constant 8 : index
    %c1536_557 = arith.constant 1536 : index
    %381 = vector.load %arg10[%c8_556, %c1536_557] : memref<80x2048xf32, #tpu.memory_space<vmem>>, vector<5x128xf32>
    tpu.vector_store %arg10[%c8_556, %c1536_557], %380 {strides = array<i32>} : memref<80x2048xf32, #tpu.memory_space<vmem>>, vector<5x128xf32>,
    %c203_558 = arith.constant 203 : index
    %c0_559 = arith.constant 0 : index
    %382 = vector.load %arg9[%c203_558, %c0_559] : memref<338x128xf32, #tpu.memory_space<vmem>>, vector<5x128xf32>
    %c16_560 = arith.constant 16 : index
    %c1536_561 = arith.constant 1536 : index
    %383 = vector.load %arg10[%c16_560, %c1536_561] : memref<80x2048xf32, #tpu.memory_space<vmem>>, vector<5x128xf32>
    tpu.vector_store %arg10[%c16_560, %c1536_561], %382 {strides = array<i32>} : memref<80x2048xf32, #tpu.memory_space<vmem>>, vector<5x128xf32>,
    %c210_562 = arith.constant 210 : index
    %c0_563 = arith.constant 0 : index
    %384 = vector.load %arg9[%c210_562, %c0_563] : memref<338x128xf32, #tpu.memory_space<vmem>>, vector<5x128xf32>
    %c24_564 = arith.constant 24 : index
    %c1536_565 = arith.constant 1536 : index
    %385 = vector.load %arg10[%c24_564, %c1536_565] : memref<80x2048xf32, #tpu.memory_space<vmem>>, vector<5x128xf32>
    tpu.vector_store %arg10[%c24_564, %c1536_565], %384 {strides = array<i32>} : memref<80x2048xf32, #tpu.memory_space<vmem>>, vector<5x128xf32>,
    %c217 = arith.constant 217 : index
    %c0_566 = arith.constant 0 : index
    %386 = vector.load %arg9[%c217, %c0_566] : memref<338x128xf32, #tpu.memory_space<vmem>>, vector<5x128xf32>
    %c32_567 = arith.constant 32 : index
    %c1536_568 = arith.constant 1536 : index
    %387 = vector.load %arg10[%c32_567, %c1536_568] : memref<80x2048xf32, #tpu.memory_space<vmem>>, vector<5x128xf32>
    tpu.vector_store %arg10[%c32_567, %c1536_568], %386 {strides = array<i32>} : memref<80x2048xf32, #tpu.memory_space<vmem>>, vector<5x128xf32>,
    %c231_569 = arith.constant 231 : index
    %c0_570 = arith.constant 0 : index
    %388 = vector.load %arg9[%c231_569, %c0_570] : memref<338x128xf32, #tpu.memory_space<vmem>>, vector<5x128xf32>
    %c40_571 = arith.constant 40 : index
    %c1536_572 = arith.constant 1536 : index
    %389 = vector.load %arg10[%c40_571, %c1536_572] : memref<80x2048xf32, #tpu.memory_space<vmem>>, vector<5x128xf32>
    tpu.vector_store %arg10[%c40_571, %c1536_572], %388 {strides = array<i32>} : memref<80x2048xf32, #tpu.memory_space<vmem>>, vector<5x128xf32>,
    %c238_573 = arith.constant 238 : index
    %c0_574 = arith.constant 0 : index
    %390 = vector.load %arg9[%c238_573, %c0_574] : memref<338x128xf32, #tpu.memory_space<vmem>>, vector<5x128xf32>
    %c48_575 = arith.constant 48 : index
    %c1536_576 = arith.constant 1536 : index
    %391 = vector.load %arg10[%c48_575, %c1536_576] : memref<80x2048xf32, #tpu.memory_space<vmem>>, vector<5x128xf32>
    tpu.vector_store %arg10[%c48_575, %c1536_576], %390 {strides = array<i32>} : memref<80x2048xf32, #tpu.memory_space<vmem>>, vector<5x128xf32>,
    %c245_577 = arith.constant 245 : index
    %c0_578 = arith.constant 0 : index
    %392 = vector.load %arg9[%c245_577, %c0_578] : memref<338x128xf32, #tpu.memory_space<vmem>>, vector<5x128xf32>
    %c56_579 = arith.constant 56 : index
    %c1536_580 = arith.constant 1536 : index
    %393 = vector.load %arg10[%c56_579, %c1536_580] : memref<80x2048xf32, #tpu.memory_space<vmem>>, vector<5x128xf32>
    tpu.vector_store %arg10[%c56_579, %c1536_580], %392 {strides = array<i32>} : memref<80x2048xf32, #tpu.memory_space<vmem>>, vector<5x128xf32>,
    %c252_581 = arith.constant 252 : index
    %c0_582 = arith.constant 0 : index
    %394 = vector.load %arg9[%c252_581, %c0_582] : memref<338x128xf32, #tpu.memory_space<vmem>>, vector<5x128xf32>
    %c64_583 = arith.constant 64 : index
    %c1536_584 = arith.constant 1536 : index
    %395 = vector.load %arg10[%c64_583, %c1536_584] : memref<80x2048xf32, #tpu.memory_space<vmem>>, vector<5x128xf32>
    tpu.vector_store %arg10[%c64_583, %c1536_584], %394 {strides = array<i32>} : memref<80x2048xf32, #tpu.memory_space<vmem>>, vector<5x128xf32>,
    %c259 = arith.constant 259 : index
    %c0_585 = arith.constant 0 : index
    %396 = vector.load %arg9[%c259, %c0_585] : memref<338x128xf32, #tpu.memory_space<vmem>>, vector<5x128xf32>
    %c72_586 = arith.constant 72 : index
    %c1536_587 = arith.constant 1536 : index
    %397 = vector.load %arg10[%c72_586, %c1536_587] : memref<80x2048xf32, #tpu.memory_space<vmem>>, vector<5x128xf32>
    tpu.vector_store %arg10[%c72_586, %c1536_587], %396 {strides = array<i32>} : memref<80x2048xf32, #tpu.memory_space<vmem>>, vector<5x128xf32>,
    %c272_588 = arith.constant 272 : index
    %c0_589 = arith.constant 0 : index
    %398 = vector.load %arg9[%c272_588, %c0_589] : memref<338x128xf32, #tpu.memory_space<vmem>>, vector<5x128xf32>
    %c0_590 = arith.constant 0 : index
    %c1664_591 = arith.constant 1664 : index
    %399 = vector.load %arg10[%c0_590, %c1664_591] : memref<80x2048xf32, #tpu.memory_space<vmem>>, vector<5x128xf32>
    tpu.vector_store %arg10[%c0_590, %c1664_591], %398 {strides = array<i32>} : memref<80x2048xf32, #tpu.memory_space<vmem>>, vector<5x128xf32>,
    %c278_592 = arith.constant 278 : index
    %c0_593 = arith.constant 0 : index
    %400 = vector.load %arg9[%c278_592, %c0_593] : memref<338x128xf32, #tpu.memory_space<vmem>>, vector<5x128xf32>
    %c8_594 = arith.constant 8 : index
    %c1664_595 = arith.constant 1664 : index
    %401 = vector.load %arg10[%c8_594, %c1664_595] : memref<80x2048xf32, #tpu.memory_space<vmem>>, vector<5x128xf32>
    tpu.vector_store %arg10[%c8_594, %c1664_595], %400 {strides = array<i32>} : memref<80x2048xf32, #tpu.memory_space<vmem>>, vector<5x128xf32>,
    %c284_596 = arith.constant 284 : index
    %c0_597 = arith.constant 0 : index
    %402 = vector.load %arg9[%c284_596, %c0_597] : memref<338x128xf32, #tpu.memory_space<vmem>>, vector<5x128xf32>
    %c16_598 = arith.constant 16 : index
    %c1664_599 = arith.constant 1664 : index
    %403 = vector.load %arg10[%c16_598, %c1664_599] : memref<80x2048xf32, #tpu.memory_space<vmem>>, vector<5x128xf32>
    tpu.vector_store %arg10[%c16_598, %c1664_599], %402 {strides = array<i32>} : memref<80x2048xf32, #tpu.memory_space<vmem>>, vector<5x128xf32>,
    %c290_600 = arith.constant 290 : index
    %c0_601 = arith.constant 0 : index
    %404 = vector.load %arg9[%c290_600, %c0_601] : memref<338x128xf32, #tpu.memory_space<vmem>>, vector<5x128xf32>
    %c24_602 = arith.constant 24 : index
    %c1664_603 = arith.constant 1664 : index
    %405 = vector.load %arg10[%c24_602, %c1664_603] : memref<80x2048xf32, #tpu.memory_space<vmem>>, vector<5x128xf32>
    tpu.vector_store %arg10[%c24_602, %c1664_603], %404 {strides = array<i32>} : memref<80x2048xf32, #tpu.memory_space<vmem>>, vector<5x128xf32>,
    %c296 = arith.constant 296 : index
    %c0_604 = arith.constant 0 : index
    %406 = vector.load %arg9[%c296, %c0_604] : memref<338x128xf32, #tpu.memory_space<vmem>>, vector<5x128xf32>
    %c32_605 = arith.constant 32 : index
    %c1664_606 = arith.constant 1664 : index
    %407 = vector.load %arg10[%c32_605, %c1664_606] : memref<80x2048xf32, #tpu.memory_space<vmem>>, vector<5x128xf32>
    tpu.vector_store %arg10[%c32_605, %c1664_606], %406 {strides = array<i32>} : memref<80x2048xf32, #tpu.memory_space<vmem>>, vector<5x128xf32>,
    %c308_607 = arith.constant 308 : index
    %c0_608 = arith.constant 0 : index
    %408 = vector.load %arg9[%c308_607, %c0_608] : memref<338x128xf32, #tpu.memory_space<vmem>>, vector<5x128xf32>
    %c40_609 = arith.constant 40 : index
    %c1664_610 = arith.constant 1664 : index
    %409 = vector.load %arg10[%c40_609, %c1664_610] : memref<80x2048xf32, #tpu.memory_space<vmem>>, vector<5x128xf32>
    tpu.vector_store %arg10[%c40_609, %c1664_610], %408 {strides = array<i32>} : memref<80x2048xf32, #tpu.memory_space<vmem>>, vector<5x128xf32>,
    %c314_611 = arith.constant 314 : index
    %c0_612 = arith.constant 0 : index
    %410 = vector.load %arg9[%c314_611, %c0_612] : memref<338x128xf32, #tpu.memory_space<vmem>>, vector<5x128xf32>
    %c48_613 = arith.constant 48 : index
    %c1664_614 = arith.constant 1664 : index
    %411 = vector.load %arg10[%c48_613, %c1664_614] : memref<80x2048xf32, #tpu.memory_space<vmem>>, vector<5x128xf32>
    tpu.vector_store %arg10[%c48_613, %c1664_614], %410 {strides = array<i32>} : memref<80x2048xf32, #tpu.memory_space<vmem>>, vector<5x128xf32>,
    %c320_615 = arith.constant 320 : index
    %c0_616 = arith.constant 0 : index
    %412 = vector.load %arg9[%c320_615, %c0_616] : memref<338x128xf32, #tpu.memory_space<vmem>>, vector<5x128xf32>
    %c56_617 = arith.constant 56 : index
    %c1664_618 = arith.constant 1664 : index
    %413 = vector.load %arg10[%c56_617, %c1664_618] : memref<80x2048xf32, #tpu.memory_space<vmem>>, vector<5x128xf32>
    tpu.vector_store %arg10[%c56_617, %c1664_618], %412 {strides = array<i32>} : memref<80x2048xf32, #tpu.memory_space<vmem>>, vector<5x128xf32>,
    %c326_619 = arith.constant 326 : index
    %c0_620 = arith.constant 0 : index
    %414 = vector.load %arg9[%c326_619, %c0_620] : memref<338x128xf32, #tpu.memory_space<vmem>>, vector<5x128xf32>
    %c64_621 = arith.constant 64 : index
    %c1664_622 = arith.constant 1664 : index
    %415 = vector.load %arg10[%c64_621, %c1664_622] : memref<80x2048xf32, #tpu.memory_space<vmem>>, vector<5x128xf32>
    tpu.vector_store %arg10[%c64_621, %c1664_622], %414 {strides = array<i32>} : memref<80x2048xf32, #tpu.memory_space<vmem>>, vector<5x128xf32>,
    %c332 = arith.constant 332 : index
    %c0_623 = arith.constant 0 : index
    %416 = vector.load %arg9[%c332, %c0_623] : memref<338x128xf32, #tpu.memory_space<vmem>>, vector<5x128xf32>
    %c72_624 = arith.constant 72 : index
    %c1664_625 = arith.constant 1664 : index
    %417 = vector.load %arg10[%c72_624, %c1664_625] : memref<80x2048xf32, #tpu.memory_space<vmem>>, vector<5x128xf32>
    tpu.vector_store %arg10[%c72_624, %c1664_625], %416 {strides = array<i32>} : memref<80x2048xf32, #tpu.memory_space<vmem>>, vector<5x128xf32>,
    %c190_626 = arith.constant 190 : index
    %c0_627 = arith.constant 0 : index
    %418 = vector.load %arg9[%c190_626, %c0_627] : memref<338x128xf32, #tpu.memory_space<vmem>>, vector<5x128xf32>
    %c0_628 = arith.constant 0 : index
    %c1792_629 = arith.constant 1792 : index
    %419 = vector.load %arg10[%c0_628, %c1792_629] : memref<80x2048xf32, #tpu.memory_space<vmem>>, vector<5x128xf32>
    tpu.vector_store %arg10[%c0_628, %c1792_629], %418 {strides = array<i32>} : memref<80x2048xf32, #tpu.memory_space<vmem>>, vector<5x128xf32>,
    %c197_630 = arith.constant 197 : index
    %c0_631 = arith.constant 0 : index
    %420 = vector.load %arg9[%c197_630, %c0_631] : memref<338x128xf32, #tpu.memory_space<vmem>>, vector<5x128xf32>
    %c8_632 = arith.constant 8 : index
    %c1792_633 = arith.constant 1792 : index
    %421 = vector.load %arg10[%c8_632, %c1792_633] : memref<80x2048xf32, #tpu.memory_space<vmem>>, vector<5x128xf32>
    tpu.vector_store %arg10[%c8_632, %c1792_633], %420 {strides = array<i32>} : memref<80x2048xf32, #tpu.memory_space<vmem>>, vector<5x128xf32>,
    %c204_634 = arith.constant 204 : index
    %c0_635 = arith.constant 0 : index
    %422 = vector.load %arg9[%c204_634, %c0_635] : memref<338x128xf32, #tpu.memory_space<vmem>>, vector<5x128xf32>
    %c16_636 = arith.constant 16 : index
    %c1792_637 = arith.constant 1792 : index
    %423 = vector.load %arg10[%c16_636, %c1792_637] : memref<80x2048xf32, #tpu.memory_space<vmem>>, vector<5x128xf32>
    tpu.vector_store %arg10[%c16_636, %c1792_637], %422 {strides = array<i32>} : memref<80x2048xf32, #tpu.memory_space<vmem>>, vector<5x128xf32>,
    %c211_638 = arith.constant 211 : index
    %c0_639 = arith.constant 0 : index
    %424 = vector.load %arg9[%c211_638, %c0_639] : memref<338x128xf32, #tpu.memory_space<vmem>>, vector<5x128xf32>
    %c24_640 = arith.constant 24 : index
    %c1792_641 = arith.constant 1792 : index
    %425 = vector.load %arg10[%c24_640, %c1792_641] : memref<80x2048xf32, #tpu.memory_space<vmem>>, vector<5x128xf32>
    tpu.vector_store %arg10[%c24_640, %c1792_641], %424 {strides = array<i32>} : memref<80x2048xf32, #tpu.memory_space<vmem>>, vector<5x128xf32>,
    %c218 = arith.constant 218 : index
    %c0_642 = arith.constant 0 : index
    %426 = vector.load %arg9[%c218, %c0_642] : memref<338x128xf32, #tpu.memory_space<vmem>>, vector<5x128xf32>
    %c32_643 = arith.constant 32 : index
    %c1792_644 = arith.constant 1792 : index
    %427 = vector.load %arg10[%c32_643, %c1792_644] : memref<80x2048xf32, #tpu.memory_space<vmem>>, vector<5x128xf32>
    tpu.vector_store %arg10[%c32_643, %c1792_644], %426 {strides = array<i32>} : memref<80x2048xf32, #tpu.memory_space<vmem>>, vector<5x128xf32>,
    %c232_645 = arith.constant 232 : index
    %c0_646 = arith.constant 0 : index
    %428 = vector.load %arg9[%c232_645, %c0_646] : memref<338x128xf32, #tpu.memory_space<vmem>>, vector<5x128xf32>
    %c40_647 = arith.constant 40 : index
    %c1792_648 = arith.constant 1792 : index
    %429 = vector.load %arg10[%c40_647, %c1792_648] : memref<80x2048xf32, #tpu.memory_space<vmem>>, vector<5x128xf32>
    tpu.vector_store %arg10[%c40_647, %c1792_648], %428 {strides = array<i32>} : memref<80x2048xf32, #tpu.memory_space<vmem>>, vector<5x128xf32>,
    %c239_649 = arith.constant 239 : index
    %c0_650 = arith.constant 0 : index
    %430 = vector.load %arg9[%c239_649, %c0_650] : memref<338x128xf32, #tpu.memory_space<vmem>>, vector<5x128xf32>
    %c48_651 = arith.constant 48 : index
    %c1792_652 = arith.constant 1792 : index
    %431 = vector.load %arg10[%c48_651, %c1792_652] : memref<80x2048xf32, #tpu.memory_space<vmem>>, vector<5x128xf32>
    tpu.vector_store %arg10[%c48_651, %c1792_652], %430 {strides = array<i32>} : memref<80x2048xf32, #tpu.memory_space<vmem>>, vector<5x128xf32>,
    %c246_653 = arith.constant 246 : index
    %c0_654 = arith.constant 0 : index
    %432 = vector.load %arg9[%c246_653, %c0_654] : memref<338x128xf32, #tpu.memory_space<vmem>>, vector<5x128xf32>
    %c56_655 = arith.constant 56 : index
    %c1792_656 = arith.constant 1792 : index
    %433 = vector.load %arg10[%c56_655, %c1792_656] : memref<80x2048xf32, #tpu.memory_space<vmem>>, vector<5x128xf32>
    tpu.vector_store %arg10[%c56_655, %c1792_656], %432 {strides = array<i32>} : memref<80x2048xf32, #tpu.memory_space<vmem>>, vector<5x128xf32>,
    %c253_657 = arith.constant 253 : index
    %c0_658 = arith.constant 0 : index
    %434 = vector.load %arg9[%c253_657, %c0_658] : memref<338x128xf32, #tpu.memory_space<vmem>>, vector<5x128xf32>
    %c64_659 = arith.constant 64 : index
    %c1792_660 = arith.constant 1792 : index
    %435 = vector.load %arg10[%c64_659, %c1792_660] : memref<80x2048xf32, #tpu.memory_space<vmem>>, vector<5x128xf32>
    tpu.vector_store %arg10[%c64_659, %c1792_660], %434 {strides = array<i32>} : memref<80x2048xf32, #tpu.memory_space<vmem>>, vector<5x128xf32>,
    %c260 = arith.constant 260 : index
    %c0_661 = arith.constant 0 : index
    %436 = vector.load %arg9[%c260, %c0_661] : memref<338x128xf32, #tpu.memory_space<vmem>>, vector<5x128xf32>
    %c72_662 = arith.constant 72 : index
    %c1792_663 = arith.constant 1792 : index
    %437 = vector.load %arg10[%c72_662, %c1792_663] : memref<80x2048xf32, #tpu.memory_space<vmem>>, vector<5x128xf32>
    tpu.vector_store %arg10[%c72_662, %c1792_663], %436 {strides = array<i32>} : memref<80x2048xf32, #tpu.memory_space<vmem>>, vector<5x128xf32>,
    %c273_664 = arith.constant 273 : index
    %c0_665 = arith.constant 0 : index
    %438 = vector.load %arg9[%c273_664, %c0_665] : memref<338x128xf32, #tpu.memory_space<vmem>>, vector<5x128xf32>
    %c0_666 = arith.constant 0 : index
    %c1920_667 = arith.constant 1920 : index
    %439 = vector.load %arg10[%c0_666, %c1920_667] : memref<80x2048xf32, #tpu.memory_space<vmem>>, vector<5x128xf32>
    tpu.vector_store %arg10[%c0_666, %c1920_667], %438 {strides = array<i32>} : memref<80x2048xf32, #tpu.memory_space<vmem>>, vector<5x128xf32>,
    %c279_668 = arith.constant 279 : index
    %c0_669 = arith.constant 0 : index
    %440 = vector.load %arg9[%c279_668, %c0_669] : memref<338x128xf32, #tpu.memory_space<vmem>>, vector<5x128xf32>
    %c8_670 = arith.constant 8 : index
    %c1920_671 = arith.constant 1920 : index
    %441 = vector.load %arg10[%c8_670, %c1920_671] : memref<80x2048xf32, #tpu.memory_space<vmem>>, vector<5x128xf32>
    tpu.vector_store %arg10[%c8_670, %c1920_671], %440 {strides = array<i32>} : memref<80x2048xf32, #tpu.memory_space<vmem>>, vector<5x128xf32>,
    %c285_672 = arith.constant 285 : index
    %c0_673 = arith.constant 0 : index
    %442 = vector.load %arg9[%c285_672, %c0_673] : memref<338x128xf32, #tpu.memory_space<vmem>>, vector<5x128xf32>
    %c16_674 = arith.constant 16 : index
    %c1920_675 = arith.constant 1920 : index
    %443 = vector.load %arg10[%c16_674, %c1920_675] : memref<80x2048xf32, #tpu.memory_space<vmem>>, vector<5x128xf32>
    tpu.vector_store %arg10[%c16_674, %c1920_675], %442 {strides = array<i32>} : memref<80x2048xf32, #tpu.memory_space<vmem>>, vector<5x128xf32>,
    %c291_676 = arith.constant 291 : index
    %c0_677 = arith.constant 0 : index
    %444 = vector.load %arg9[%c291_676, %c0_677] : memref<338x128xf32, #tpu.memory_space<vmem>>, vector<5x128xf32>
    %c24_678 = arith.constant 24 : index
    %c1920_679 = arith.constant 1920 : index
    %445 = vector.load %arg10[%c24_678, %c1920_679] : memref<80x2048xf32, #tpu.memory_space<vmem>>, vector<5x128xf32>
    tpu.vector_store %arg10[%c24_678, %c1920_679], %444 {strides = array<i32>} : memref<80x2048xf32, #tpu.memory_space<vmem>>, vector<5x128xf32>,
    %c297 = arith.constant 297 : index
    %c0_680 = arith.constant 0 : index
    %446 = vector.load %arg9[%c297, %c0_680] : memref<338x128xf32, #tpu.memory_space<vmem>>, vector<5x128xf32>
    %c32_681 = arith.constant 32 : index
    %c1920_682 = arith.constant 1920 : index
    %447 = vector.load %arg10[%c32_681, %c1920_682] : memref<80x2048xf32, #tpu.memory_space<vmem>>, vector<5x128xf32>
    tpu.vector_store %arg10[%c32_681, %c1920_682], %446 {strides = array<i32>} : memref<80x2048xf32, #tpu.memory_space<vmem>>, vector<5x128xf32>,
    %c309_683 = arith.constant 309 : index
    %c0_684 = arith.constant 0 : index
    %448 = vector.load %arg9[%c309_683, %c0_684] : memref<338x128xf32, #tpu.memory_space<vmem>>, vector<5x128xf32>
    %c40_685 = arith.constant 40 : index
    %c1920_686 = arith.constant 1920 : index
    %449 = vector.load %arg10[%c40_685, %c1920_686] : memref<80x2048xf32, #tpu.memory_space<vmem>>, vector<5x128xf32>
    tpu.vector_store %arg10[%c40_685, %c1920_686], %448 {strides = array<i32>} : memref<80x2048xf32, #tpu.memory_space<vmem>>, vector<5x128xf32>,
    %c315_687 = arith.constant 315 : index
    %c0_688 = arith.constant 0 : index
    %450 = vector.load %arg9[%c315_687, %c0_688] : memref<338x128xf32, #tpu.memory_space<vmem>>, vector<5x128xf32>
    %c48_689 = arith.constant 48 : index
    %c1920_690 = arith.constant 1920 : index
    %451 = vector.load %arg10[%c48_689, %c1920_690] : memref<80x2048xf32, #tpu.memory_space<vmem>>, vector<5x128xf32>
    tpu.vector_store %arg10[%c48_689, %c1920_690], %450 {strides = array<i32>} : memref<80x2048xf32, #tpu.memory_space<vmem>>, vector<5x128xf32>,
    %c321_691 = arith.constant 321 : index
    %c0_692 = arith.constant 0 : index
    %452 = vector.load %arg9[%c321_691, %c0_692] : memref<338x128xf32, #tpu.memory_space<vmem>>, vector<5x128xf32>
    %c56_693 = arith.constant 56 : index
    %c1920_694 = arith.constant 1920 : index
    %453 = vector.load %arg10[%c56_693, %c1920_694] : memref<80x2048xf32, #tpu.memory_space<vmem>>, vector<5x128xf32>
    tpu.vector_store %arg10[%c56_693, %c1920_694], %452 {strides = array<i32>} : memref<80x2048xf32, #tpu.memory_space<vmem>>, vector<5x128xf32>,
    %c327_695 = arith.constant 327 : index
    %c0_696 = arith.constant 0 : index
    %454 = vector.load %arg9[%c327_695, %c0_696] : memref<338x128xf32, #tpu.memory_space<vmem>>, vector<5x128xf32>
    %c64_697 = arith.constant 64 : index
    %c1920_698 = arith.constant 1920 : index
    %455 = vector.load %arg10[%c64_697, %c1920_698] : memref<80x2048xf32, #tpu.memory_space<vmem>>, vector<5x128xf32>
    tpu.vector_store %arg10[%c64_697, %c1920_698], %454 {strides = array<i32>} : memref<80x2048xf32, #tpu.memory_space<vmem>>, vector<5x128xf32>,
    %c333 = arith.constant 333 : index
    %c0_699 = arith.constant 0 : index
    %456 = vector.load %arg9[%c333, %c0_699] : memref<338x128xf32, #tpu.memory_space<vmem>>, vector<5x128xf32>
    %c72_700 = arith.constant 72 : index
    %c1920_701 = arith.constant 1920 : index
    %457 = vector.load %arg10[%c72_700, %c1920_701] : memref<80x2048xf32, #tpu.memory_space<vmem>>, vector<5x128xf32>
    tpu.vector_store %arg10[%c72_700, %c1920_701], %456 {strides = array<i32>} : memref<80x2048xf32, #tpu.memory_space<vmem>>, vector<5x128xf32>,
    %c0_702 = arith.constant 0 : index
    %c0_703 = arith.constant 0 : index
    %458 = vector.load %arg5[%c0_702, %c0_703] : memref<3x128xf32, #tpu.memory_space<vmem>>, vector<1x128xf32>
    %c1_704 = arith.constant 1 : index
    %c0_705 = arith.constant 0 : index
    %459 = vector.load %arg5[%c1_704, %c0_705] : memref<3x128xf32, #tpu.memory_space<vmem>>, vector<1x128xf32>
    %c2_706 = arith.constant 2 : index
    %c0_707 = arith.constant 0 : index
    %460 = vector.load %arg5[%c2_706, %c0_707] : memref<3x128xf32, #tpu.memory_space<vmem>>, vector<1x128xf32>
    %c0_708 = arith.constant 0 : index
    %c0_709 = arith.constant 0 : index
    %461 = vector.load %arg10[%c0_708, %c0_709] : memref<80x2048xf32, #tpu.memory_space<vmem>>, vector<80x2048xf32>
    %462 = arith.truncf %461 : vector<80x2048xf32> to vector<80x2048xbf16>
    %c0_710 = arith.constant 0 : index
    %c0_711 = arith.constant 0 : index
    %463 = vector.load %arg11[%c0_710, %c0_711] : memref<2048x128xbf16, #tpu.memory_space<vmem>>, vector<2048x128xbf16>
    %cst_712 = arith.constant dense<0.000000e+00> : vector<80x128xf32>
    %464 = tpu.matmul %462, %463, %cst_712 {dimension_numbers = #tpu.dot_dimension_numbers<[1], [0], [0], [1], [0, 0, 1, 1], [], []>} : vector<80x2048xbf16>, vector<2048x128xbf16>, vector<80x128xf32> -> vector<80x128xf32>
    %465 = vector.broadcast %458 : vector<1x128xf32> to vector<80x128xf32>
    %466 = arith.addf %464, %465 : vector<80x128xf32>
    %467 = tpu.iota {dimensions = array<i32: 0>} : vector<80x1xi32>
    %c8_i32 = arith.constant 8 : i32
    %c0_i32 = arith.constant 0 : i32
    %468 = arith.cmpi eq, %c8_i32, %c0_i32 : i32
    %c1_i32 = arith.constant 1 : i32
    %469 = arith.select %468, %c1_i32, %c8_i32 : i32
    %470 = vector.broadcast %469 : i32 to vector<80x1xi32>
    %471 = arith.remsi %467, %470 : vector<80x1xi32>
    %c0_i32_713 = arith.constant 0 : i32
    %472 = vector.broadcast %c0_i32_713 : i32 to vector<80x1xi32>
    %473 = arith.cmpi ne, %471, %472 : vector<80x1xi32>
    %c0_i32_714 = arith.constant 0 : i32
    %474 = vector.broadcast %c0_i32_714 : i32 to vector<80x1xi32>
    %475 = arith.cmpi slt, %471, %474 : vector<80x1xi32>
    %c0_i32_715 = arith.constant 0 : i32
    %476 = arith.cmpi slt, %469, %c0_i32_715 : i32
    %477 = vector.broadcast %476 : i1 to vector<80x1xi1>
    %478 = vector.broadcast %477 : vector<80x1xi1> to vector<80x1xi1>
    %479 = arith.xori %475, %478 : vector<80x1xi1>
    %480 = arith.andi %479, %473 : vector<80x1xi1>
    %481 = vector.broadcast %469 : i32 to vector<80x1xi32>
    %482 = arith.addi %471, %481 : vector<80x1xi32>
    %483 = arith.select %480, %482, %471 : vector<80x1xi1>, vector<80x1xi32>
    %c5_i32 = arith.constant 5 : i32
    %484 = vector.broadcast %c5_i32 : i32 to vector<80x1xi32>
    %485 = arith.cmpi slt, %483, %484 : vector<80x1xi32>
    %486 = arith.extui %485 : vector<80x1xi1> to vector<80x1xi32>
    %487 = arith.sitofp %486 : vector<80x1xi32> to vector<80x1xf32>
    %488 = vector.broadcast %487 : vector<80x1xf32> to vector<80x128xf32>
    %489 = arith.mulf %466, %488 : vector<80x128xf32>
    %cst_716 = arith.constant dense<0.000000e+00> : vector<128xf32>
    %490 = vector.multi_reduction <add>, %489, %cst_716 [0] : vector<80x128xf32> to vector<128xf32>
    %491 = vector.shape_cast %490 : vector<128xf32> to vector<1x128xf32>
    %cst_717 = arith.constant 5.000000e+01 : f32
    %492 = vector.broadcast %cst_717 : f32 to vector<1x128xf32>
    %493 = arith.divf %491, %492 : vector<1x128xf32>
    %494 = vector.broadcast %493 : vector<1x128xf32> to vector<80x128xf32>
    %495 = arith.subf %466, %494 : vector<80x128xf32>
    %496 = vector.broadcast %487 : vector<80x1xf32> to vector<80x128xf32>
    %497 = arith.mulf %495, %496 : vector<80x128xf32>
    %498 = arith.mulf %497, %497 : vector<80x128xf32>
    %cst_718 = arith.constant dense<0.000000e+00> : vector<128xf32>
    %499 = vector.multi_reduction <add>, %498, %cst_718 [0] : vector<80x128xf32> to vector<128xf32>
    %500 = vector.shape_cast %499 : vector<128xf32> to vector<1x128xf32>
    %cst_719 = arith.constant 5.000000e+01 : f32
    %501 = vector.broadcast %cst_719 : f32 to vector<1x128xf32>
    %502 = arith.divf %500, %501 : vector<1x128xf32>
    %503 = vector.broadcast %493 : vector<1x128xf32> to vector<80x128xf32>
    %504 = arith.subf %466, %503 : vector<80x128xf32>
    %505 = vector.broadcast %459 : vector<1x128xf32> to vector<80x128xf32>
    %506 = arith.mulf %505, %504 : vector<80x128xf32>
    %cst_720 = arith.constant 9.99999974E-6 : f32
    %507 = vector.broadcast %cst_720 : f32 to vector<1x128xf32>
    %508 = arith.addf %502, %507 : vector<1x128xf32>
    %509 = math.rsqrt %508 : vector<1x128xf32>
    %510 = vector.broadcast %509 : vector<1x128xf32> to vector<80x128xf32>
    %511 = arith.mulf %506, %510 : vector<80x128xf32>
    %512 = vector.broadcast %460 : vector<1x128xf32> to vector<80x128xf32>
    %513 = arith.addf %511, %512 : vector<80x128xf32>
    %cst_721 = arith.constant 0.000000e+00 : f32
    %514 = vector.broadcast %cst_721 : f32 to vector<80x128xf32>
    %515 = arith.cmpf oge, %513, %514 : vector<80x128xf32>
    %cst_722 = arith.constant 2.000000e-01 : f32
    %516 = vector.broadcast %cst_722 : f32 to vector<80x128xf32>
    %517 = arith.mulf %516, %513 : vector<80x128xf32>
    %518 = arith.select %515, %513, %517 : vector<80x128xi1>, vector<80x128xf32>
    %c0_723 = arith.constant 0 : index
    %c0_724 = arith.constant 0 : index
    %519 = vector.load %arg12[%c0_723, %c0_724] : memref<80x128xf32, #tpu.memory_space<vmem>>, vector<80x128xf32>
    tpu.vector_store %arg12[%c0_723, %c0_724], %518 {strides = array<i32>} : memref<80x128xf32, #tpu.memory_space<vmem>>, vector<80x128xf32>,
    %c0_725 = arith.constant 0 : index
    %c0_726 = arith.constant 0 : index
    %520 = vector.load %arg12[%c0_725, %c0_726] : memref<80x128xf32, #tpu.memory_space<vmem>>, vector<1x128xf32>
    %c0_727 = arith.constant 0 : index
    %c0_728 = arith.constant 0 : index
    %521 = vector.load %arg13[%c0_727, %c0_728] : memref<2x2048xf32, #tpu.memory_space<vmem>>, vector<1x128xf32>
    tpu.vector_store %arg13[%c0_727, %c0_728], %520 {strides = array<i32>} : memref<2x2048xf32, #tpu.memory_space<vmem>>, vector<1x128xf32>,
    %c40_729 = arith.constant 40 : index
    %c0_730 = arith.constant 0 : index
    %522 = vector.load %arg12[%c40_729, %c0_730] : memref<80x128xf32, #tpu.memory_space<vmem>>, vector<1x128xf32>
    %c1_731 = arith.constant 1 : index
    %c0_732 = arith.constant 0 : index
    %523 = vector.load %arg13[%c1_731, %c0_732] : memref<2x2048xf32, #tpu.memory_space<vmem>>, vector<1x128xf32>
    tpu.vector_store %arg13[%c1_731, %c0_732], %522 {strides = array<i32>} : memref<2x2048xf32, #tpu.memory_space<vmem>>, vector<1x128xf32>,
    %c1_733 = arith.constant 1 : index
    %c0_734 = arith.constant 0 : index
    %524 = vector.load %arg12[%c1_733, %c0_734] : memref<80x128xf32, #tpu.memory_space<vmem>>, vector<1x128xf32>
    %c0_735 = arith.constant 0 : index
    %c128_736 = arith.constant 128 : index
    %525 = vector.load %arg13[%c0_735, %c128_736] : memref<2x2048xf32, #tpu.memory_space<vmem>>, vector<1x128xf32>
    tpu.vector_store %arg13[%c0_735, %c128_736], %524 {strides = array<i32>} : memref<2x2048xf32, #tpu.memory_space<vmem>>, vector<1x128xf32>,
    %c41 = arith.constant 41 : index
    %c0_737 = arith.constant 0 : index
    %526 = vector.load %arg12[%c41, %c0_737] : memref<80x128xf32, #tpu.memory_space<vmem>>, vector<1x128xf32>
    %c1_738 = arith.constant 1 : index
    %c128_739 = arith.constant 128 : index
    %527 = vector.load %arg13[%c1_738, %c128_739] : memref<2x2048xf32, #tpu.memory_space<vmem>>, vector<1x128xf32>
    tpu.vector_store %arg13[%c1_738, %c128_739], %526 {strides = array<i32>} : memref<2x2048xf32, #tpu.memory_space<vmem>>, vector<1x128xf32>,
    %c2_740 = arith.constant 2 : index
    %c0_741 = arith.constant 0 : index
    %528 = vector.load %arg12[%c2_740, %c0_741] : memref<80x128xf32, #tpu.memory_space<vmem>>, vector<1x128xf32>
    %c0_742 = arith.constant 0 : index
    %c256_743 = arith.constant 256 : index
    %529 = vector.load %arg13[%c0_742, %c256_743] : memref<2x2048xf32, #tpu.memory_space<vmem>>, vector<1x128xf32>
    tpu.vector_store %arg13[%c0_742, %c256_743], %528 {strides = array<i32>} : memref<2x2048xf32, #tpu.memory_space<vmem>>, vector<1x128xf32>,
    %c42 = arith.constant 42 : index
    %c0_744 = arith.constant 0 : index
    %530 = vector.load %arg12[%c42, %c0_744] : memref<80x128xf32, #tpu.memory_space<vmem>>, vector<1x128xf32>
    %c1_745 = arith.constant 1 : index
    %c256_746 = arith.constant 256 : index
    %531 = vector.load %arg13[%c1_745, %c256_746] : memref<2x2048xf32, #tpu.memory_space<vmem>>, vector<1x128xf32>
    tpu.vector_store %arg13[%c1_745, %c256_746], %530 {strides = array<i32>} : memref<2x2048xf32, #tpu.memory_space<vmem>>, vector<1x128xf32>,
    %c3_747 = arith.constant 3 : index
    %c0_748 = arith.constant 0 : index
    %532 = vector.load %arg12[%c3_747, %c0_748] : memref<80x128xf32, #tpu.memory_space<vmem>>, vector<1x128xf32>
    %c0_749 = arith.constant 0 : index
    %c384_750 = arith.constant 384 : index
    %533 = vector.load %arg13[%c0_749, %c384_750] : memref<2x2048xf32, #tpu.memory_space<vmem>>, vector<1x128xf32>
    tpu.vector_store %arg13[%c0_749, %c384_750], %532 {strides = array<i32>} : memref<2x2048xf32, #tpu.memory_space<vmem>>, vector<1x128xf32>,
    %c43 = arith.constant 43 : index
    %c0_751 = arith.constant 0 : index
    %534 = vector.load %arg12[%c43, %c0_751] : memref<80x128xf32, #tpu.memory_space<vmem>>, vector<1x128xf32>
    %c1_752 = arith.constant 1 : index
    %c384_753 = arith.constant 384 : index
    %535 = vector.load %arg13[%c1_752, %c384_753] : memref<2x2048xf32, #tpu.memory_space<vmem>>, vector<1x128xf32>
    tpu.vector_store %arg13[%c1_752, %c384_753], %534 {strides = array<i32>} : memref<2x2048xf32, #tpu.memory_space<vmem>>, vector<1x128xf32>,
    %c8_754 = arith.constant 8 : index
    %c0_755 = arith.constant 0 : index
    %536 = vector.load %arg12[%c8_754, %c0_755] : memref<80x128xf32, #tpu.memory_space<vmem>>, vector<1x128xf32>
    %c0_756 = arith.constant 0 : index
    %c512_757 = arith.constant 512 : index
    %537 = vector.load %arg13[%c0_756, %c512_757] : memref<2x2048xf32, #tpu.memory_space<vmem>>, vector<1x128xf32>
    tpu.vector_store %arg13[%c0_756, %c512_757], %536 {strides = array<i32>} : memref<2x2048xf32, #tpu.memory_space<vmem>>, vector<1x128xf32>,
    %c48_758 = arith.constant 48 : index
    %c0_759 = arith.constant 0 : index
    %538 = vector.load %arg12[%c48_758, %c0_759] : memref<80x128xf32, #tpu.memory_space<vmem>>, vector<1x128xf32>
    %c1_760 = arith.constant 1 : index
    %c512_761 = arith.constant 512 : index
    %539 = vector.load %arg13[%c1_760, %c512_761] : memref<2x2048xf32, #tpu.memory_space<vmem>>, vector<1x128xf32>
    tpu.vector_store %arg13[%c1_760, %c512_761], %538 {strides = array<i32>} : memref<2x2048xf32, #tpu.memory_space<vmem>>, vector<1x128xf32>,
    %c9_762 = arith.constant 9 : index
    %c0_763 = arith.constant 0 : index
    %540 = vector.load %arg12[%c9_762, %c0_763] : memref<80x128xf32, #tpu.memory_space<vmem>>, vector<1x128xf32>
    %c0_764 = arith.constant 0 : index
    %c640_765 = arith.constant 640 : index
    %541 = vector.load %arg13[%c0_764, %c640_765] : memref<2x2048xf32, #tpu.memory_space<vmem>>, vector<1x128xf32>
    tpu.vector_store %arg13[%c0_764, %c640_765], %540 {strides = array<i32>} : memref<2x2048xf32, #tpu.memory_space<vmem>>, vector<1x128xf32>,
    %c49_766 = arith.constant 49 : index
    %c0_767 = arith.constant 0 : index
    %542 = vector.load %arg12[%c49_766, %c0_767] : memref<80x128xf32, #tpu.memory_space<vmem>>, vector<1x128xf32>
    %c1_768 = arith.constant 1 : index
    %c640_769 = arith.constant 640 : index
    %543 = vector.load %arg13[%c1_768, %c640_769] : memref<2x2048xf32, #tpu.memory_space<vmem>>, vector<1x128xf32>
    tpu.vector_store %arg13[%c1_768, %c640_769], %542 {strides = array<i32>} : memref<2x2048xf32, #tpu.memory_space<vmem>>, vector<1x128xf32>,
    %c10_770 = arith.constant 10 : index
    %c0_771 = arith.constant 0 : index
    %544 = vector.load %arg12[%c10_770, %c0_771] : memref<80x128xf32, #tpu.memory_space<vmem>>, vector<1x128xf32>
    %c0_772 = arith.constant 0 : index
    %c768_773 = arith.constant 768 : index
    %545 = vector.load %arg13[%c0_772, %c768_773] : memref<2x2048xf32, #tpu.memory_space<vmem>>, vector<1x128xf32>
    tpu.vector_store %arg13[%c0_772, %c768_773], %544 {strides = array<i32>} : memref<2x2048xf32, #tpu.memory_space<vmem>>, vector<1x128xf32>,
    %c50_774 = arith.constant 50 : index
    %c0_775 = arith.constant 0 : index
    %546 = vector.load %arg12[%c50_774, %c0_775] : memref<80x128xf32, #tpu.memory_space<vmem>>, vector<1x128xf32>
    %c1_776 = arith.constant 1 : index
    %c768_777 = arith.constant 768 : index
    %547 = vector.load %arg13[%c1_776, %c768_777] : memref<2x2048xf32, #tpu.memory_space<vmem>>, vector<1x128xf32>
    tpu.vector_store %arg13[%c1_776, %c768_777], %546 {strides = array<i32>} : memref<2x2048xf32, #tpu.memory_space<vmem>>, vector<1x128xf32>,
    %c11_778 = arith.constant 11 : index
    %c0_779 = arith.constant 0 : index
    %548 = vector.load %arg12[%c11_778, %c0_779] : memref<80x128xf32, #tpu.memory_space<vmem>>, vector<1x128xf32>
    %c0_780 = arith.constant 0 : index
    %c896_781 = arith.constant 896 : index
    %549 = vector.load %arg13[%c0_780, %c896_781] : memref<2x2048xf32, #tpu.memory_space<vmem>>, vector<1x128xf32>
    tpu.vector_store %arg13[%c0_780, %c896_781], %548 {strides = array<i32>} : memref<2x2048xf32, #tpu.memory_space<vmem>>, vector<1x128xf32>,
    %c51 = arith.constant 51 : index
    %c0_782 = arith.constant 0 : index
    %550 = vector.load %arg12[%c51, %c0_782] : memref<80x128xf32, #tpu.memory_space<vmem>>, vector<1x128xf32>
    %c1_783 = arith.constant 1 : index
    %c896_784 = arith.constant 896 : index
    %551 = vector.load %arg13[%c1_783, %c896_784] : memref<2x2048xf32, #tpu.memory_space<vmem>>, vector<1x128xf32>
    tpu.vector_store %arg13[%c1_783, %c896_784], %550 {strides = array<i32>} : memref<2x2048xf32, #tpu.memory_space<vmem>>, vector<1x128xf32>,
    %c16_785 = arith.constant 16 : index
    %c0_786 = arith.constant 0 : index
    %552 = vector.load %arg12[%c16_785, %c0_786] : memref<80x128xf32, #tpu.memory_space<vmem>>, vector<1x128xf32>
    %c0_787 = arith.constant 0 : index
    %c1024_788 = arith.constant 1024 : index
    %553 = vector.load %arg13[%c0_787, %c1024_788] : memref<2x2048xf32, #tpu.memory_space<vmem>>, vector<1x128xf32>
    tpu.vector_store %arg13[%c0_787, %c1024_788], %552 {strides = array<i32>} : memref<2x2048xf32, #tpu.memory_space<vmem>>, vector<1x128xf32>,
    %c56_789 = arith.constant 56 : index
    %c0_790 = arith.constant 0 : index
    %554 = vector.load %arg12[%c56_789, %c0_790] : memref<80x128xf32, #tpu.memory_space<vmem>>, vector<1x128xf32>
    %c1_791 = arith.constant 1 : index
    %c1024_792 = arith.constant 1024 : index
    %555 = vector.load %arg13[%c1_791, %c1024_792] : memref<2x2048xf32, #tpu.memory_space<vmem>>, vector<1x128xf32>
    tpu.vector_store %arg13[%c1_791, %c1024_792], %554 {strides = array<i32>} : memref<2x2048xf32, #tpu.memory_space<vmem>>, vector<1x128xf32>,
    %c17 = arith.constant 17 : index
    %c0_793 = arith.constant 0 : index
    %556 = vector.load %arg12[%c17, %c0_793] : memref<80x128xf32, #tpu.memory_space<vmem>>, vector<1x128xf32>
    %c0_794 = arith.constant 0 : index
    %c1152_795 = arith.constant 1152 : index
    %557 = vector.load %arg13[%c0_794, %c1152_795] : memref<2x2048xf32, #tpu.memory_space<vmem>>, vector<1x128xf32>
    tpu.vector_store %arg13[%c0_794, %c1152_795], %556 {strides = array<i32>} : memref<2x2048xf32, #tpu.memory_space<vmem>>, vector<1x128xf32>,
    %c57_796 = arith.constant 57 : index
    %c0_797 = arith.constant 0 : index
    %558 = vector.load %arg12[%c57_796, %c0_797] : memref<80x128xf32, #tpu.memory_space<vmem>>, vector<1x128xf32>
    %c1_798 = arith.constant 1 : index
    %c1152_799 = arith.constant 1152 : index
    %559 = vector.load %arg13[%c1_798, %c1152_799] : memref<2x2048xf32, #tpu.memory_space<vmem>>, vector<1x128xf32>
    tpu.vector_store %arg13[%c1_798, %c1152_799], %558 {strides = array<i32>} : memref<2x2048xf32, #tpu.memory_space<vmem>>, vector<1x128xf32>,
    %c18 = arith.constant 18 : index
    %c0_800 = arith.constant 0 : index
    %560 = vector.load %arg12[%c18, %c0_800] : memref<80x128xf32, #tpu.memory_space<vmem>>, vector<1x128xf32>
    %c0_801 = arith.constant 0 : index
    %c1280_802 = arith.constant 1280 : index
    %561 = vector.load %arg13[%c0_801, %c1280_802] : memref<2x2048xf32, #tpu.memory_space<vmem>>, vector<1x128xf32>
    tpu.vector_store %arg13[%c0_801, %c1280_802], %560 {strides = array<i32>} : memref<2x2048xf32, #tpu.memory_space<vmem>>, vector<1x128xf32>,
    %c58 = arith.constant 58 : index
    %c0_803 = arith.constant 0 : index
    %562 = vector.load %arg12[%c58, %c0_803] : memref<80x128xf32, #tpu.memory_space<vmem>>, vector<1x128xf32>
    %c1_804 = arith.constant 1 : index
    %c1280_805 = arith.constant 1280 : index
    %563 = vector.load %arg13[%c1_804, %c1280_805] : memref<2x2048xf32, #tpu.memory_space<vmem>>, vector<1x128xf32>
    tpu.vector_store %arg13[%c1_804, %c1280_805], %562 {strides = array<i32>} : memref<2x2048xf32, #tpu.memory_space<vmem>>, vector<1x128xf32>,
    %c19 = arith.constant 19 : index
    %c0_806 = arith.constant 0 : index
    %564 = vector.load %arg12[%c19, %c0_806] : memref<80x128xf32, #tpu.memory_space<vmem>>, vector<1x128xf32>
    %c0_807 = arith.constant 0 : index
    %c1408_808 = arith.constant 1408 : index
    %565 = vector.load %arg13[%c0_807, %c1408_808] : memref<2x2048xf32, #tpu.memory_space<vmem>>, vector<1x128xf32>
    tpu.vector_store %arg13[%c0_807, %c1408_808], %564 {strides = array<i32>} : memref<2x2048xf32, #tpu.memory_space<vmem>>, vector<1x128xf32>,
    %c59 = arith.constant 59 : index
    %c0_809 = arith.constant 0 : index
    %566 = vector.load %arg12[%c59, %c0_809] : memref<80x128xf32, #tpu.memory_space<vmem>>, vector<1x128xf32>
    %c1_810 = arith.constant 1 : index
    %c1408_811 = arith.constant 1408 : index
    %567 = vector.load %arg13[%c1_810, %c1408_811] : memref<2x2048xf32, #tpu.memory_space<vmem>>, vector<1x128xf32>
    tpu.vector_store %arg13[%c1_810, %c1408_811], %566 {strides = array<i32>} : memref<2x2048xf32, #tpu.memory_space<vmem>>, vector<1x128xf32>,
    %c24_812 = arith.constant 24 : index
    %c0_813 = arith.constant 0 : index
    %568 = vector.load %arg12[%c24_812, %c0_813] : memref<80x128xf32, #tpu.memory_space<vmem>>, vector<1x128xf32>
    %c0_814 = arith.constant 0 : index
    %c1536_815 = arith.constant 1536 : index
    %569 = vector.load %arg13[%c0_814, %c1536_815] : memref<2x2048xf32, #tpu.memory_space<vmem>>, vector<1x128xf32>
    tpu.vector_store %arg13[%c0_814, %c1536_815], %568 {strides = array<i32>} : memref<2x2048xf32, #tpu.memory_space<vmem>>, vector<1x128xf32>,
    %c64_816 = arith.constant 64 : index
    %c0_817 = arith.constant 0 : index
    %570 = vector.load %arg12[%c64_816, %c0_817] : memref<80x128xf32, #tpu.memory_space<vmem>>, vector<1x128xf32>
    %c1_818 = arith.constant 1 : index
    %c1536_819 = arith.constant 1536 : index
    %571 = vector.load %arg13[%c1_818, %c1536_819] : memref<2x2048xf32, #tpu.memory_space<vmem>>, vector<1x128xf32>
    tpu.vector_store %arg13[%c1_818, %c1536_819], %570 {strides = array<i32>} : memref<2x2048xf32, #tpu.memory_space<vmem>>, vector<1x128xf32>,
    %c25 = arith.constant 25 : index
    %c0_820 = arith.constant 0 : index
    %572 = vector.load %arg12[%c25, %c0_820] : memref<80x128xf32, #tpu.memory_space<vmem>>, vector<1x128xf32>
    %c0_821 = arith.constant 0 : index
    %c1664_822 = arith.constant 1664 : index
    %573 = vector.load %arg13[%c0_821, %c1664_822] : memref<2x2048xf32, #tpu.memory_space<vmem>>, vector<1x128xf32>
    tpu.vector_store %arg13[%c0_821, %c1664_822], %572 {strides = array<i32>} : memref<2x2048xf32, #tpu.memory_space<vmem>>, vector<1x128xf32>,
    %c65 = arith.constant 65 : index
    %c0_823 = arith.constant 0 : index
    %574 = vector.load %arg12[%c65, %c0_823] : memref<80x128xf32, #tpu.memory_space<vmem>>, vector<1x128xf32>
    %c1_824 = arith.constant 1 : index
    %c1664_825 = arith.constant 1664 : index
    %575 = vector.load %arg13[%c1_824, %c1664_825] : memref<2x2048xf32, #tpu.memory_space<vmem>>, vector<1x128xf32>
    tpu.vector_store %arg13[%c1_824, %c1664_825], %574 {strides = array<i32>} : memref<2x2048xf32, #tpu.memory_space<vmem>>, vector<1x128xf32>,
    %c26 = arith.constant 26 : index
    %c0_826 = arith.constant 0 : index
    %576 = vector.load %arg12[%c26, %c0_826] : memref<80x128xf32, #tpu.memory_space<vmem>>, vector<1x128xf32>
    %c0_827 = arith.constant 0 : index
    %c1792_828 = arith.constant 1792 : index
    %577 = vector.load %arg13[%c0_827, %c1792_828] : memref<2x2048xf32, #tpu.memory_space<vmem>>, vector<1x128xf32>
    tpu.vector_store %arg13[%c0_827, %c1792_828], %576 {strides = array<i32>} : memref<2x2048xf32, #tpu.memory_space<vmem>>, vector<1x128xf32>,
    %c66 = arith.constant 66 : index
    %c0_829 = arith.constant 0 : index
    %578 = vector.load %arg12[%c66, %c0_829] : memref<80x128xf32, #tpu.memory_space<vmem>>, vector<1x128xf32>
    %c1_830 = arith.constant 1 : index
    %c1792_831 = arith.constant 1792 : index
    %579 = vector.load %arg13[%c1_830, %c1792_831] : memref<2x2048xf32, #tpu.memory_space<vmem>>, vector<1x128xf32>
    tpu.vector_store %arg13[%c1_830, %c1792_831], %578 {strides = array<i32>} : memref<2x2048xf32, #tpu.memory_space<vmem>>, vector<1x128xf32>,
    %c27 = arith.constant 27 : index
    %c0_832 = arith.constant 0 : index
    %580 = vector.load %arg12[%c27, %c0_832] : memref<80x128xf32, #tpu.memory_space<vmem>>, vector<1x128xf32>
    %c0_833 = arith.constant 0 : index
    %c1920_834 = arith.constant 1920 : index
    %581 = vector.load %arg13[%c0_833, %c1920_834] : memref<2x2048xf32, #tpu.memory_space<vmem>>, vector<1x128xf32>
    tpu.vector_store %arg13[%c0_833, %c1920_834], %580 {strides = array<i32>} : memref<2x2048xf32, #tpu.memory_space<vmem>>, vector<1x128xf32>,
    %c67 = arith.constant 67 : index
    %c0_835 = arith.constant 0 : index
    %582 = vector.load %arg12[%c67, %c0_835] : memref<80x128xf32, #tpu.memory_space<vmem>>, vector<1x128xf32>
    %c1_836 = arith.constant 1 : index
    %c1920_837 = arith.constant 1920 : index
    %583 = vector.load %arg13[%c1_836, %c1920_837] : memref<2x2048xf32, #tpu.memory_space<vmem>>, vector<1x128xf32>
    tpu.vector_store %arg13[%c1_836, %c1920_837], %582 {strides = array<i32>} : memref<2x2048xf32, #tpu.memory_space<vmem>>, vector<1x128xf32>,
    %c0_838 = arith.constant 0 : index
    %c0_839 = arith.constant 0 : index
    %584 = vector.load %arg13[%c0_838, %c0_839] : memref<2x2048xf32, #tpu.memory_space<vmem>>, vector<2x2048xf32>
    %585 = arith.truncf %584 : vector<2x2048xf32> to vector<2x2048xbf16>
    %c0_840 = arith.constant 0 : index
    %c0_841 = arith.constant 0 : index
    %586 = vector.load %arg14[%c0_840, %c0_841] : memref<2048x128xbf16, #tpu.memory_space<vmem>>, vector<2048x128xbf16>
    %cst_842 = arith.constant dense<0.000000e+00> : vector<2x128xf32>
    %587 = tpu.matmul %585, %586, %cst_842 {dimension_numbers = #tpu.dot_dimension_numbers<[1], [0], [0], [1], [0, 0, 1, 1], [], []>} : vector<2x2048xbf16>, vector<2048x128xbf16>, vector<2x128xf32> -> vector<2x128xf32>
    %c0_843 = arith.constant 0 : index
    %c0_844 = arith.constant 0 : index
    %588 = vector.load %arg7[%c0_843, %c0_844] : memref<1x128xf32, #tpu.memory_space<vmem>>, vector<1x128xf32>
    %589 = vector.broadcast %588 : vector<1x128xf32> to vector<2x128xf32>
    %590 = arith.addf %587, %589 : vector<2x128xf32>
    %c0_845 = arith.constant 0 : index
    %c0_846 = arith.constant 0 : index
    %591 = vector.load %arg8[%c0_845, %c0_846] : memref<2x128xf32, #tpu.memory_space<vmem>>, vector<2x128xf32>
    tpu.vector_store %arg8[%c0_845, %c0_846], %590 {strides = array<i32>} : memref<2x128xf32, #tpu.memory_space<vmem>>, vector<2x128xf32>,
    return
  }
  func.func @transform_0(%arg0: i32) -> (i32, i32) {
    %c0_i32 = arith.constant 0 : i32
    %c0_i32_0 = arith.constant 0 : i32
    %c0_i32_1 = arith.constant 0 : i32
    return %c0_i32, %c0_i32_0 : i32, i32
  }
  func.func @transform_1(%arg0: i32) -> (i32, i32) {
    %c0_i32 = arith.constant 0 : i32
    %c0_i32_0 = arith.constant 0 : i32
    %c0_i32_1 = arith.constant 0 : i32
    return %c0_i32, %c0_i32_0 : i32, i32
  }
  func.func @transform_2(%arg0: i32) -> (i32, i32) {
    %c0_i32 = arith.constant 0 : i32
    %c0_i32_0 = arith.constant 0 : i32
    %c0_i32_1 = arith.constant 0 : i32
    return %c0_i32, %c0_i32_0 : i32, i32
  }
  func.func @transform_3(%arg0: i32) -> (i32, i32, i32) {
    %c0_i32 = arith.constant 0 : i32
    %c0_i32_0 = arith.constant 0 : i32
    %c0_i32_1 = arith.constant 0 : i32
    %c0_i32_2 = arith.constant 0 : i32
    return %c0_i32, %c0_i32_0, %c0_i32_1 : i32, i32, i32
  }
  func.func @transform_4(%arg0: i32) -> (i32, i32) {
    %c0_i32 = arith.constant 0 : i32
    %c0_i32_0 = arith.constant 0 : i32
    %c0_i32_1 = arith.constant 0 : i32
    return %c0_i32, %c0_i32_0 : i32, i32
  }
  func.func @transform_5(%arg0: i32) -> (i32, i32, i32) {
    %c0_i32 = arith.constant 0 : i32
    %c0_i32_0 = arith.constant 0 : i32
    %c0_i32_1 = arith.constant 0 : i32
    %c0_i32_2 = arith.constant 0 : i32
    return %c0_i32, %c0_i32_0, %c0_i32_1 : i32, i32, i32
  }
  func.func @transform_6(%arg0: i32) -> (i32, i32) {
    %c0_i32 = arith.constant 0 : i32
    %c0_i32_0 = arith.constant 0 : i32
    %c0_i32_1 = arith.constant 0 : i32
    return %c0_i32, %c0_i32_0 : i32, i32
  }
  func.func @transform_7(%arg0: i32) -> (i32, i32) {
    %c0_i32 = arith.constant 0 : i32
    %c0_i32_0 = arith.constant 0 : i32
    %c0_i32_1 = arith.constant 0 : i32
    return %c0_i32, %c0_i32_0 : i32, i32
  }
}

</mosaic_0001>

<llo_original>
// kernel: encoder_forward.1
$region0: #{encoder_forward.1}
  #allocation0 [shape = 'u32[]', space=smem, size = 0x4, offset = 0x4, fixed_abs, tag = 'smem constant byte address 0x4 - core index']
  #allocation1 [shape = 'u32[144,128]{1,0:T(1,128)}', space=vmem, size = 0x12000, scoped, tag = 'internal scratch']
  #allocation2 [shape = 'f32[338,128]{1,0:T(8,128)}', space=vmem, size = 0x2b000, scoped, tag = 'scratch operand']
  #allocation3 [shape = 'f32[80,2048]{1,0:T(8,128)}', space=vmem, size = 0xa0000, scoped, tag = 'scratch operand']
  #allocation4 [shape = 'bf16[2048,128]{1,0:T(16,128)(2,1)}', space=vmem, size = 0x80000, scoped, tag = 'scratch operand']
  #allocation5 [shape = 'f32[80,128]{1,0:T(8,128)}', space=vmem, size = 0xa000, scoped, tag = 'scratch operand']
  #allocation6 [shape = 'f32[2,2048]{1,0:T(2,128)}', space=vmem, size = 0x4000, scoped, tag = 'scratch operand']
  #allocation7 [shape = 'bf16[2048,128]{1,0:T(16,128)(2,1)}', space=vmem, size = 0x80000, scoped, tag = 'scratch operand']
  %s0 = inlined_call_operand.vmem [shape: bf16[338,16], index: 0, kind: input, shape index: {}]
  %s1 = inlined_call_operand.vmem [shape: bf16[16,128], index: 1, kind: input, shape index: {}]
  %s2 = inlined_call_operand.vmem [shape: f32[3,128], index: 2, kind: input, shape index: {}]
  %s3 = inlined_call_operand.vmem [shape: bf16[16,16,128], index: 3, kind: input, shape index: {}]
  %s4 = inlined_call_operand.vmem [shape: f32[3,128], index: 4, kind: input, shape index: {}]
  %s5 = inlined_call_operand.vmem [shape: bf16[16,32,128], index: 5, kind: input, shape index: {}]
  %s6 = inlined_call_operand.vmem [shape: f32[1,128], index: 6, kind: input, shape index: {}]
  %s7 = inlined_call_operand.hbm [shape: f32[2,128], index: 7, kind: output, shape index: {}]
  %s8 = sld [smem:[#allocation0]]
  $region38: #{encoder_forward.1} parent=0
    _
  %s10 = ssub.s32 1, %s8
  %s11 = scalar_select 0, %s10, %s8
  $region1: #{encoder_forward.1} parent=0
    #allocation8 [shape = 'u8[1024]{0}', space=vmem, size = 0x400, scoped, tag = 'output window, operand 0, single buffered']
    #allocation9 [shape = 's32[1]{0}', space=sflag, size = 0x4, scoped, tag = 'scoped memory for encoder_forward.1']
    %12 = vsyncpa [#allocation9], 0
    // Predicated region
    $region2: #{encoder_forward.1} parent=1 // pred_check
      _
    $region3: #{encoder_forward.1} parent=1 // pred_check_branch
      %14 = sbr.rel (0) target = $region5
    $region4: #{encoder_forward.1} parent=1 // pred_region
      _
    $region5: #{encoder_forward.1} parent=1 // pred_fallthru
      _
    // Predicated region
    $region6: #{encoder_forward.1} parent=1 // pred_check
      _
    $region7: #{encoder_forward.1} parent=1 // pred_check_branch
      %16 = sbr.rel (0) target = $region9
    $region8: #{encoder_forward.1} parent=1 // pred_region
      _
    $region9: #{encoder_forward.1} parent=1 // pred_fallthru
      _
    // Predicated region
    $region10: #{encoder_forward.1} parent=1 // pred_check
      _
    $region11: #{encoder_forward.1} parent=1 // pred_check_branch
      %18 = sbr.rel (0) target = $region13
    $region12: #{encoder_forward.1} parent=1 // pred_region
      _
    $region13: #{encoder_forward.1} parent=1 // pred_fallthru
      _
    // Predicated region
    $region14: #{encoder_forward.1} parent=1 // pred_check
      _
    $region15: #{encoder_forward.1} parent=1 // pred_check_branch
      %20 = sbr.rel (0) target = $region17
    $region16: #{encoder_forward.1} parent=1 // pred_region
      _
    $region17: #{encoder_forward.1} parent=1 // pred_fallthru
      _
    // Predicated region
    $region18: #{encoder_forward.1} parent=1 // pred_check
      _
    $region19: #{encoder_forward.1} parent=1 // pred_check_branch
      %22 = sbr.rel (0) target = $region21
    $region20: #{encoder_forward.1} parent=1 // pred_region
      _
    $region21: #{encoder_forward.1} parent=1 // pred_fallthru
      _
    // Predicated region
    $region22: #{encoder_forward.1} parent=1 // pred_check
      _
    $region23: #{encoder_forward.1} parent=1 // pred_check_branch
      %24 = sbr.rel (0) target = $region25
    $region24: #{encoder_forward.1} parent=1 // pred_region
      _
    $region25: #{encoder_forward.1} parent=1 // pred_fallthru
      _
    // Predicated region
    $region26: #{encoder_forward.1} parent=1 // pred_check
      _
    $region27: #{encoder_forward.1} parent=1 // pred_check_branch
      %26 = sbr.rel (0) target = $region29
    $region28: #{encoder_forward.1} parent=1 // pred_region
      _
    $region29: #{encoder_forward.1} parent=1 // pred_fallthru
      _
    %28 = vst [vmem:[#allocation4] sm:$0xff] 0
    %29 = vst [vmem:[#allocation4 + $0x8] sm:$0xff] 0
    %30 = vst [vmem:[#allocation4 + $0x10] sm:$0xff] 0
    %31 = vst [vmem:[#allocation4 + $0x18] sm:$0xff] 0
    %32 = vst [vmem:[#allocation4 + $0x20] sm:$0xff] 0
    %33 = vst [vmem:[#allocation4 + $0x28] sm:$0xff] 0
    %34 = vst [vmem:[#allocation4 + $0x30] sm:$0xff] 0
    %35 = vst [vmem:[#allocation4 + $0x38] sm:$0xff] 0
    %36 = vst [vmem:[#allocation4 + $0x40] sm:$0xff] 0
    %37 = vst [vmem:[#allocation4 + $0x48] sm:$0xff] 0
    %38 = vst [vmem:[#allocation4 + $0x50] sm:$0xff] 0
    %39 = vst [vmem:[#allocation4 + $0x58] sm:$0xff] 0
    %40 = vst [vmem:[#allocation4 + $0x60] sm:$0xff] 0
    %41 = vst [vmem:[#allocation4 + $0x68] sm:$0xff] 0
    %42 = vst [vmem:[#allocation4 + $0x70] sm:$0xff] 0
    %43 = vst [vmem:[#allocation4 + $0x78] sm:$0xff] 0
    %44 = vst [vmem:[#allocation4 + $0x80] sm:$0xff] 0
    %45 = vst [vmem:[#allocation4 + $0x88] sm:$0xff] 0
    %46 = vst [vmem:[#allocation4 + $0x90] sm:$0xff] 0
    %47 = vst [vmem:[#allocation4 + $0x98] sm:$0xff] 0
    %48 = vst [vmem:[#allocation4 + $0xa0] sm:$0xff] 0
    %49 = vst [vmem:[#allocation4 + $0xa8] sm:$0xff] 0
    %50 = vst [vmem:[#allocation4 + $0xb0] sm:$0xff] 0
    %51 = vst [vmem:[#allocation4 + $0xb8] sm:$0xff] 0
    %52 = vst [vmem:[#allocation4 + $0xc0] sm:$0xff] 0
    %53 = vst [vmem:[#allocation4 + $0xc8] sm:$0xff] 0
    %54 = vst [vmem:[#allocation4 + $0xd0] sm:$0xff] 0
    %55 = vst [vmem:[#allocation4 + $0xd8] sm:$0xff] 0
    %56 = vst [vmem:[#allocation4 + $0xe0] sm:$0xff] 0
    %57 = vst [vmem:[#allocation4 + $0xe8] sm:$0xff] 0
    %58 = vst [vmem:[#allocation4 + $0xf0] sm:$0xff] 0
    %59 = vst [vmem:[#allocation4 + $0xf8] sm:$0xff] 0
    %60 = vst [vmem:[#allocation4 + $0x100] sm:$0xff] 0
    %61 = vst [vmem:[#allocation4 + $0x108] sm:$0xff] 0
    %62 = vst [vmem:[#allocation4 + $0x110] sm:$0xff] 0
    %63 = vst [vmem:[#allocation4 + $0x118] sm:$0xff] 0
    %64 = vst [vmem:[#allocation4 + $0x120] sm:$0xff] 0
    %65 = vst [vmem:[#allocation4 + $0x128] sm:$0xff] 0
    %66 = vst [vmem:[#allocation4 + $0x130] sm:$0xff] 0
    %67 = vst [vmem:[#allocation4 + $0x138] sm:$0xff] 0
    %68 = vst [vmem:[#allocation4 + $0x140] sm:$0xff] 0
    %69 = vst [vmem:[#allocation4 + $0x148] sm:$0xff] 0
    %70 = vst [vmem:[#allocation4 + $0x150] sm:$0xff] 0
    %71 = vst [vmem:[#allocation4 + $0x158] sm:$0xff] 0
    %72 = vst [vmem:[#allocation4 + $0x160] sm:$0xff] 0
    %73 = vst [vmem:[#allocation4 + $0x168] sm:$0xff] 0
    %74 = vst [vmem:[#allocation4 + $0x170] sm:$0xff] 0
    %75 = vst [vmem:[#allocation4 + $0x178] sm:$0xff] 0
    %76 = vst [vmem:[#allocation4 + $0x180] sm:$0xff] 0
    %77 = vst [vmem:[#allocation4 + $0x188] sm:$0xff] 0
    %78 = vst [vmem:[#allocation4 + $0x190] sm:$0xff] 0
    %79 = vst [vmem:[#allocation4 + $0x198] sm:$0xff] 0
    %80 = vst [vmem:[#allocation4 + $0x1a0] sm:$0xff] 0
    %81 = vst [vmem:[#allocation4 + $0x1a8] sm:$0xff] 0
    %82 = vst [vmem:[#allocation4 + $0x1b0] sm:$0xff] 0
    %83 = vst [vmem:[#allocation4 + $0x1b8] sm:$0xff] 0
    %84 = vst [vmem:[#allocation4 + $0x1c0] sm:$0xff] 0
    %85 = vst [vmem:[#allocation4 + $0x1c8] sm:$0xff] 0
    %86 = vst [vmem:[#allocation4 + $0x1d0] sm:$0xff] 0
    %87 = vst [vmem:[#allocation4 + $0x1d8] sm:$0xff] 0
    %88 = vst [vmem:[#allocation4 + $0x1e0] sm:$0xff] 0
    %89 = vst [vmem:[#allocation4 + $0x1e8] sm:$0xff] 0
    %90 = vst [vmem:[#allocation4 + $0x1f0] sm:$0xff] 0
    %91 = vst [vmem:[#allocation4 + $0x1f8] sm:$0xff] 0
    %92 = vst [vmem:[#allocation4 + $0x200] sm:$0xff] 0
    %93 = vst [vmem:[#allocation4 + $0x208] sm:$0xff] 0
    %94 = vst [vmem:[#allocation4 + $0x210] sm:$0xff] 0
    %95 = vst [vmem:[#allocation4 + $0x218] sm:$0xff] 0
    %96 = vst [vmem:[#allocation4 + $0x220] sm:$0xff] 0
    %97 = vst [vmem:[#allocation4 + $0x228] sm:$0xff] 0
    %98 = vst [vmem:[#allocation4 + $0x230] sm:$0xff] 0
    %99 = vst [vmem:[#allocation4 + $0x238] sm:$0xff] 0
    %100 = vst [vmem:[#allocation4 + $0x240] sm:$0xff] 0
    %101 = vst [vmem:[#allocation4 + $0x248] sm:$0xff] 0
    %102 = vst [vmem:[#allocation4 + $0x250] sm:$0xff] 0
    %103 = vst [vmem:[#allocation4 + $0x258] sm:$0xff] 0
    %104 = vst [vmem:[#allocation4 + $0x260] sm:$0xff] 0
    %105 = vst [vmem:[#allocation4 + $0x268] sm:$0xff] 0
    %106 = vst [vmem:[#allocation4 + $0x270] sm:$0xff] 0
    %107 = vst [vmem:[#allocation4 + $0x278] sm:$0xff] 0
    %108 = vst [vmem:[#allocation4 + $0x280] sm:$0xff] 0
    %109 = vst [vmem:[#allocation4 + $0x288] sm:$0xff] 0
    %110 = vst [vmem:[#allocation4 + $0x290] sm:$0xff] 0
    %111 = vst [vmem:[#allocation4 + $0x298] sm:$0xff] 0
    %112 = vst [vmem:[#allocation4 + $0x2a0] sm:$0xff] 0
    %113 = vst [vmem:[#allocation4 + $0x2a8] sm:$0xff] 0
    %114 = vst [vmem:[#allocation4 + $0x2b0] sm:$0xff] 0
    %115 = vst [vmem:[#allocation4 + $0x2b8] sm:$0xff] 0
    %116 = vst [vmem:[#allocation4 + $0x2c0] sm:$0xff] 0
    %117 = vst [vmem:[#allocation4 + $0x2c8] sm:$0xff] 0
    %118 = vst [vmem:[#allocation4 + $0x2d0] sm:$0xff] 0
    %119 = vst [vmem:[#allocation4 + $0x2d8] sm:$0xff] 0
    %120 = vst [vmem:[#allocation4 + $0x2e0] sm:$0xff] 0
    %121 = vst [vmem:[#allocation4 + $0x2e8] sm:$0xff] 0
    %122 = vst [vmem:[#allocation4 + $0x2f0] sm:$0xff] 0
    %123 = vst [vmem:[#allocation4 + $0x2f8] sm:$0xff] 0
    %124 = vst [vmem:[#allocation4 + $0x300] sm:$0xff] 0
    %125 = vst [vmem:[#allocation4 + $0x308] sm:$0xff] 0
    %126 = vst [vmem:[#allocation4 + $0x310] sm:$0xff] 0
    %127 = vst [vmem:[#allocation4 + $0x318] sm:$0xff] 0
    %128 = vst [vmem:[#allocation4 + $0x320] sm:$0xff] 0
    %129 = vst [vmem:[#allocation4 + $0x328] sm:$0xff] 0
    %130 = vst [vmem:[#allocation4 + $0x330] sm:$0xff] 0
    %131 = vst [vmem:[#allocation4 + $0x338] sm:$0xff] 0
    %132 = vst [vmem:[#allocation4 + $0x340] sm:$0xff] 0
    %133 = vst [vmem:[#allocation4 + $0x348] sm:$0xff] 0
    %134 = vst [vmem:[#allocation4 + $0x350] sm:$0xff] 0
    %135 = vst [vmem:[#allocation4 + $0x358] sm:$0xff] 0
    %136 = vst [vmem:[#allocation4 + $0x360] sm:$0xff] 0
    %137 = vst [vmem:[#allocation4 + $0x368] sm:$0xff] 0
    %138 = vst [vmem:[#allocation4 + $0x370] sm:$0xff] 0
    %139 = vst [vmem:[#allocation4 + $0x378] sm:$0xff] 0
    %140 = vst [vmem:[#allocation4 + $0x380] sm:$0xff] 0
    %141 = vst [vmem:[#allocation4 + $0x388] sm:$0xff] 0
    %142 = vst [vmem:[#allocation4 + $0x390] sm:$0xff] 0
    %143 = vst [vmem:[#allocation4 + $0x398] sm:$0xff] 0
    %144 = vst [vmem:[#allocation4 + $0x3a0] sm:$0xff] 0
    %145 = vst [vmem:[#allocation4 + $0x3a8] sm:$0xff] 0
    %146 = vst [vmem:[#allocation4 + $0x3b0] sm:$0xff] 0
    %147 = vst [vmem:[#allocation4 + $0x3b8] sm:$0xff] 0
    %148 = vst [vmem:[#allocation4 + $0x3c0] sm:$0xff] 0
    %149 = vst [vmem:[#allocation4 + $0x3c8] sm:$0xff] 0
    %150 = vst [vmem:[#allocation4 + $0x3d0] sm:$0xff] 0
    %151 = vst [vmem:[#allocation4 + $0x3d8] sm:$0xff] 0
    %152 = vst [vmem:[#allocation4 + $0x3e0] sm:$0xff] 0
    %153 = vst [vmem:[#allocation4 + $0x3e8] sm:$0xff] 0
    %154 = vst [vmem:[#allocation4 + $0x3f0] sm:$0xff] 0
    %155 = vst [vmem:[#allocation4 + $0x3f8] sm:$0xff] 0
    %156 = vst [vmem:[#allocation7] sm:$0xff] 0
    %157 = vst [vmem:[#allocation7 + $0x8] sm:$0xff] 0
    %158 = vst [vmem:[#allocation7 + $0x10] sm:$0xff] 0
    %159 = vst [vmem:[#allocation7 + $0x18] sm:$0xff] 0
    %160 = vst [vmem:[#allocation7 + $0x20] sm:$0xff] 0
    %161 = vst [vmem:[#allocation7 + $0x28] sm:$0xff] 0
    %162 = vst [vmem:[#allocation7 + $0x30] sm:$0xff] 0
    %163 = vst [vmem:[#allocation7 + $0x38] sm:$0xff] 0
    %164 = vst [vmem:[#allocation7 + $0x40] sm:$0xff] 0
    %165 = vst [vmem:[#allocation7 + $0x48] sm:$0xff] 0
    %166 = vst [vmem:[#allocation7 + $0x50] sm:$0xff] 0
    %167 = vst [vmem:[#allocation7 + $0x58] sm:$0xff] 0
    %168 = vst [vmem:[#allocation7 + $0x60] sm:$0xff] 0
    %169 = vst [vmem:[#allocation7 + $0x68] sm:$0xff] 0
    %170 = vst [vmem:[#allocation7 + $0x70] sm:$0xff] 0
    %171 = vst [vmem:[#allocation7 + $0x78] sm:$0xff] 0
    %172 = vst [vmem:[#allocation7 + $0x80] sm:$0xff] 0
    %173 = vst [vmem:[#allocation7 + $0x88] sm:$0xff] 0
    %174 = vst [vmem:[#allocation7 + $0x90] sm:$0xff] 0
    %175 = vst [vmem:[#allocation7 + $0x98] sm:$0xff] 0
    %176 = vst [vmem:[#allocation7 + $0xa0] sm:$0xff] 0
    %177 = vst [vmem:[#allocation7 + $0xa8] sm:$0xff] 0
    %178 = vst [vmem:[#allocation7 + $0xb0] sm:$0xff] 0
    %179 = vst [vmem:[#allocation7 + $0xb8] sm:$0xff] 0
    %180 = vst [vmem:[#allocation7 + $0xc0] sm:$0xff] 0
    %181 = vst [vmem:[#allocation7 + $0xc8] sm:$0xff] 0
    %182 = vst [vmem:[#allocation7 + $0xd0] sm:$0xff] 0
    %183 = vst [vmem:[#allocation7 + $0xd8] sm:$0xff] 0
    %184 = vst [vmem:[#allocation7 + $0xe0] sm:$0xff] 0
    %185 = vst [vmem:[#allocation7 + $0xe8] sm:$0xff] 0
    %186 = vst [vmem:[#allocation7 + $0xf0] sm:$0xff] 0
    %187 = vst [vmem:[#allocation7 + $0xf8] sm:$0xff] 0
    %188 = vst [vmem:[#allocation7 + $0x100] sm:$0xff] 0
    %189 = vst [vmem:[#allocation7 + $0x108] sm:$0xff] 0
    %190 = vst [vmem:[#allocation7 + $0x110] sm:$0xff] 0
    %191 = vst [vmem:[#allocation7 + $0x118] sm:$0xff] 0
    %192 = vst [vmem:[#allocation7 + $0x120] sm:$0xff] 0
    %193 = vst [vmem:[#allocation7 + $0x128] sm:$0xff] 0
    %194 = vst [vmem:[#allocation7 + $0x130] sm:$0xff] 0
    %195 = vst [vmem:[#allocation7 + $0x138] sm:$0xff] 0
    %196 = vst [vmem:[#allocation7 + $0x140] sm:$0xff] 0
    %197 = vst [vmem:[#allocation7 + $0x148] sm:$0xff] 0
    %198 = vst [vmem:[#allocation7 + $0x150] sm:$0xff] 0
    %199 = vst [vmem:[#allocation7 + $0x158] sm:$0xff] 0
    %200 = vst [vmem:[#allocation7 + $0x160] sm:$0xff] 0
    %201 = vst [vmem:[#allocation7 + $0x168] sm:$0xff] 0
    %202 = vst [vmem:[#allocation7 + $0x170] sm:$0xff] 0
    %203 = vst [vmem:[#allocation7 + $0x178] sm:$0xff] 0
    %204 = vst [vmem:[#allocation7 + $0x180] sm:$0xff] 0
    %205 = vst [vmem:[#allocation7 + $0x188] sm:$0xff] 0
    %206 = vst [vmem:[#allocation7 + $0x190] sm:$0xff] 0
    %207 = vst [vmem:[#allocation7 + $0x198] sm:$0xff] 0
    %208 = vst [vmem:[#allocation7 + $0x1a0] sm:$0xff] 0
    %209 = vst [vmem:[#allocation7 + $0x1a8] sm:$0xff] 0
    %210 = vst [vmem:[#allocation7 + $0x1b0] sm:$0xff] 0
    %211 = vst [vmem:[#allocation7 + $0x1b8] sm:$0xff] 0
    %212 = vst [vmem:[#allocation7 + $0x1c0] sm:$0xff] 0
    %213 = vst [vmem:[#allocation7 + $0x1c8] sm:$0xff] 0
    %214 = vst [vmem:[#allocation7 + $0x1d0] sm:$0xff] 0
    %215 = vst [vmem:[#allocation7 + $0x1d8] sm:$0xff] 0
    %216 = vst [vmem:[#allocation7 + $0x1e0] sm:$0xff] 0
    %217 = vst [vmem:[#allocation7 + $0x1e8] sm:$0xff] 0
    %218 = vst [vmem:[#allocation7 + $0x1f0] sm:$0xff] 0
    %219 = vst [vmem:[#allocation7 + $0x1f8] sm:$0xff] 0
    %220 = vst [vmem:[#allocation7 + $0x200] sm:$0xff] 0
    %221 = vst [vmem:[#allocation7 + $0x208] sm:$0xff] 0
    %222 = vst [vmem:[#allocation7 + $0x210] sm:$0xff] 0
    %223 = vst [vmem:[#allocation7 + $0x218] sm:$0xff] 0
    %224 = vst [vmem:[#allocation7 + $0x220] sm:$0xff] 0
    %225 = vst [vmem:[#allocation7 + $0x228] sm:$0xff] 0
    %226 = vst [vmem:[#allocation7 + $0x230] sm:$0xff] 0
    %227 = vst [vmem:[#allocation7 + $0x238] sm:$0xff] 0
    %228 = vst [vmem:[#allocation7 + $0x240] sm:$0xff] 0
    %229 = vst [vmem:[#allocation7 + $0x248] sm:$0xff] 0
    %230 = vst [vmem:[#allocation7 + $0x250] sm:$0xff] 0
    %231 = vst [vmem:[#allocation7 + $0x258] sm:$0xff] 0
    %232 = vst [vmem:[#allocation7 + $0x260] sm:$0xff] 0
    %233 = vst [vmem:[#allocation7 + $0x268] sm:$0xff] 0
    %234 = vst [vmem:[#allocation7 + $0x270] sm:$0xff] 0
    %235 = vst [vmem:[#allocation7 + $0x278] sm:$0xff] 0
    %236 = vst [vmem:[#allocation7 + $0x280] sm:$0xff] 0
    %237 = vst [vmem:[#allocation7 + $0x288] sm:$0xff] 0
    %238 = vst [vmem:[#allocation7 + $0x290] sm:$0xff] 0
    %239 = vst [vmem:[#allocation7 + $0x298] sm:$0xff] 0
    %240 = vst [vmem:[#allocation7 + $0x2a0] sm:$0xff] 0
    %241 = vst [vmem:[#allocation7 + $0x2a8] sm:$0xff] 0
    %242 = vst [vmem:[#allocation7 + $0x2b0] sm:$0xff] 0
    %243 = vst [vmem:[#allocation7 + $0x2b8] sm:$0xff] 0
    %244 = vst [vmem:[#allocation7 + $0x2c0] sm:$0xff] 0
    %245 = vst [vmem:[#allocation7 + $0x2c8] sm:$0xff] 0
    %246 = vst [vmem:[#allocation7 + $0x2d0] sm:$0xff] 0
    %247 = vst [vmem:[#allocation7 + $0x2d8] sm:$0xff] 0
    %248 = vst [vmem:[#allocation7 + $0x2e0] sm:$0xff] 0
    %249 = vst [vmem:[#allocation7 + $0x2e8] sm:$0xff] 0
    %250 = vst [vmem:[#allocation7 + $0x2f0] sm:$0xff] 0
    %251 = vst [vmem:[#allocation7 + $0x2f8] sm:$0xff] 0
    %252 = vst [vmem:[#allocation7 + $0x300] sm:$0xff] 0
    %253 = vst [vmem:[#allocation7 + $0x308] sm:$0xff] 0
    %254 = vst [vmem:[#allocation7 + $0x310] sm:$0xff] 0
    %255 = vst [vmem:[#allocation7 + $0x318] sm:$0xff] 0
    %256 = vst [vmem:[#allocation7 + $0x320] sm:$0xff] 0
    %257 = vst [vmem:[#allocation7 + $0x328] sm:$0xff] 0
    %258 = vst [vmem:[#allocation7 + $0x330] sm:$0xff] 0
    %259 = vst [vmem:[#allocation7 + $0x338] sm:$0xff] 0
    %260 = vst [vmem:[#allocation7 + $0x340] sm:$0xff] 0
    %261 = vst [vmem:[#allocation7 + $0x348] sm:$0xff] 0
    %262 = vst [vmem:[#allocation7 + $0x350] sm:$0xff] 0
    %263 = vst [vmem:[#allocation7 + $0x358] sm:$0xff] 0
    %264 = vst [vmem:[#allocation7 + $0x360] sm:$0xff] 0
    %265 = vst [vmem:[#allocation7 + $0x368] sm:$0xff] 0
    %266 = vst [vmem:[#allocation7 + $0x370] sm:$0xff] 0
    %267 = vst [vmem:[#allocation7 + $0x378] sm:$0xff] 0
    %268 = vst [vmem:[#allocation7 + $0x380] sm:$0xff] 0
    %269 = vst [vmem:[#allocation7 + $0x388] sm:$0xff] 0
    %270 = vst [vmem:[#allocation7 + $0x390] sm:$0xff] 0
    %271 = vst [vmem:[#allocation7 + $0x398] sm:$0xff] 0
    %272 = vst [vmem:[#allocation7 + $0x3a0] sm:$0xff] 0
    %273 = vst [vmem:[#allocation7 + $0x3a8] sm:$0xff] 0
    %274 = vst [vmem:[#allocation7 + $0x3b0] sm:$0xff] 0
    %275 = vst [vmem:[#allocation7 + $0x3b8] sm:$0xff] 0
    %276 = vst [vmem:[#allocation7 + $0x3c0] sm:$0xff] 0
    %277 = vst [vmem:[#allocation7 + $0x3c8] sm:$0xff] 0
    %278 = vst [vmem:[#allocation7 + $0x3d0] sm:$0xff] 0
    %279 = vst [vmem:[#allocation7 + $0x3d8] sm:$0xff] 0
    %280 = vst [vmem:[#allocation7 + $0x3e0] sm:$0xff] 0
    %281 = vst [vmem:[#allocation7 + $0x3e8] sm:$0xff] 0
    %282 = vst [vmem:[#allocation7 + $0x3f0] sm:$0xff] 0
    %283 = vst [vmem:[#allocation7 + $0x3f8] sm:$0xff] 0
    %v284 = vld [vmem:[%s3] sm:$0xf]
    %v285 = vld [vmem:[%s3 + $0x4] sm:$0xf]
    %v288 = vunpack.c.l.b16 %v284
    %v289 = vunpack.c.l.b16 %v285
    %v290 = vpack.c.b16 %v289, %v288
    %292 = vst [vmem:[#allocation4] sm:$0xff] %v290
    %v293 = vld [vmem:[%s5] sm:$0xf]
    %v294 = vld [vmem:[%s5 + $0x4] sm:$0xf]
    %v295 = vld [vmem:[%s5 + $0x8] sm:$0xf]
    %v296 = vld [vmem:[%s5 + $0xc] sm:$0xf]
    %v301 = vunpack.c.l.b16 %v293
    %v302 = vunpack.c.l.b16 %v294
    %v303 = vunpack.c.l.b16 %v295
    %v304 = vunpack.c.l.b16 %v296
    %v305 = vpack.c.b16 %v302, %v301
    %v306 = vpack.c.b16 %v304, %v303
    %309 = vst [vmem:[#allocation7] sm:$0xff] %v305
    %310 = vst [vmem:[#allocation7 + $0x8] sm:$0xff] %v306
    %s311 = scalar_lea.vmem %s3, 8
    %v312 = vld [vmem:[%s311] sm:$0xf]
    %v313 = vld [vmem:[%s311 + $0x4] sm:$0xf]
    %v316 = vunpack.c.l.b16 %v312
    %v317 = vunpack.c.l.b16 %v313
    %v318 = vpack.c.b16 %v317, %v316
    %320 = vst [vmem:[#allocation4 + $0x40] sm:$0xff] %v318
    %s321 = scalar_lea.vmem %s5, 16
    %v322 = vld [vmem:[%s321] sm:$0xf]
    %v323 = vld [vmem:[%s321 + $0x4] sm:$0xf]
    %v324 = vld [vmem:[%s321 + $0x8] sm:$0xf]
    %v325 = vld [vmem:[%s321 + $0xc] sm:$0xf]
    %v330 = vunpack.c.l.b16 %v322
    %v331 = vunpack.c.l.b16 %v323
    %v332 = vunpack.c.l.b16 %v324
    %v333 = vunpack.c.l.b16 %v325
    %v334 = vpack.c.b16 %v331, %v330
    %v335 = vpack.c.b16 %v333, %v332
    %338 = vst [vmem:[#allocation7 + $0x40] sm:$0xff] %v334
    %339 = vst [vmem:[#allocation7 + $0x48] sm:$0xff] %v335
    %s340 = scalar_lea.vmem %s3, 16
    %v341 = vld [vmem:[%s340] sm:$0xf]
    %v342 = vld [vmem:[%s340 + $0x4] sm:$0xf]
    %v345 = vunpack.c.l.b16 %v341
    %v346 = vunpack.c.l.b16 %v342
    %v347 = vpack.c.b16 %v346, %v345
    %349 = vst [vmem:[#allocation4 + $0x80] sm:$0xff] %v347
    %s350 = scalar_lea.vmem %s5, 32
    %v351 = vld [vmem:[%s350] sm:$0xf]
    %v352 = vld [vmem:[%s350 + $0x4] sm:$0xf]
    %v353 = vld [vmem:[%s350 + $0x8] sm:$0xf]
    %v354 = vld [vmem:[%s350 + $0xc] sm:$0xf]
    %v359 = vunpack.c.l.b16 %v351
    %v360 = vunpack.c.l.b16 %v352
    %v361 = vunpack.c.l.b16 %v353
    %v362 = vunpack.c.l.b16 %v354
    %v363 = vpack.c.b16 %v360, %v359
    %v364 = vpack.c.b16 %v362, %v361
    %367 = vst [vmem:[#allocation7 + $0x80] sm:$0xff] %v363
    %368 = vst [vmem:[#allocation7 + $0x88] sm:$0xff] %v364
    %s369 = scalar_lea.vmem %s3, 24
    %v370 = vld [vmem:[%s369] sm:$0xf]
    %v371 = vld [vmem:[%s369 + $0x4] sm:$0xf]
    %v374 = vunpack.c.l.b16 %v370
    %v375 = vunpack.c.l.b16 %v371
    %v376 = vpack.c.b16 %v375, %v374
    %378 = vst [vmem:[#allocation4 + $0xc0] sm:$0xff] %v376
    %s379 = scalar_lea.vmem %s5, 48
    %v380 = vld [vmem:[%s379] sm:$0xf]
    %v381 = vld [vmem:[%s379 + $0x4] sm:$0xf]
    %v382 = vld [vmem:[%s379 + $0x8] sm:$0xf]
    %v383 = vld [vmem:[%s379 + $0xc] sm:$0xf]
    %v388 = vunpack.c.l.b16 %v380
    %v389 = vunpack.c.l.b16 %v381
    %v390 = vunpack.c.l.b16 %v382
    %v391 = vunpack.c.l.b16 %v383
    %v392 = vpack.c.b16 %v389, %v388
    %v393 = vpack.c.b16 %v391, %v390
    %396 = vst [vmem:[#allocation7 + $0xc0] sm:$0xff] %v392
    %397 = vst [vmem:[#allocation7 + $0xc8] sm:$0xff] %v393
    %s398 = scalar_lea.vmem %s3, 32
    %v399 = vld [vmem:[%s398] sm:$0xf]
    %v400 = vld [vmem:[%s398 + $0x4] sm:$0xf]
    %v403 = vunpack.c.l.b16 %v399
    %v404 = vunpack.c.l.b16 %v400
    %v405 = vpack.c.b16 %v404, %v403
    %407 = vst [vmem:[#allocation4 + $0x100] sm:$0xff] %v405
    %s408 = scalar_lea.vmem %s5, 64
    %v409 = vld [vmem:[%s408] sm:$0xf]
    %v410 = vld [vmem:[%s408 + $0x4] sm:$0xf]
    %v411 = vld [vmem:[%s408 + $0x8] sm:$0xf]
    %v412 = vld [vmem:[%s408 + $0xc] sm:$0xf]
    %v417 = vunpack.c.l.b16 %v409
    %v418 = vunpack.c.l.b16 %v410
    %v419 = vunpack.c.l.b16 %v411
    %v420 = vunpack.c.l.b16 %v412
    %v421 = vpack.c.b16 %v418, %v417
    %v422 = vpack.c.b16 %v420, %v419
    %425 = vst [vmem:[#allocation7 + $0x100] sm:$0xff] %v421
    %426 = vst [vmem:[#allocation7 + $0x108] sm:$0xff] %v422
    %s427 = scalar_lea.vmem %s3, 40
    %v428 = vld [vmem:[%s427] sm:$0xf]
    %v429 = vld [vmem:[%s427 + $0x4] sm:$0xf]
    %v432 = vunpack.c.l.b16 %v428
    %v433 = vunpack.c.l.b16 %v429
    %v434 = vpack.c.b16 %v433, %v432
    %436 = vst [vmem:[#allocation4 + $0x140] sm:$0xff] %v434
    %s437 = scalar_lea.vmem %s5, 80
    %v438 = vld [vmem:[%s437] sm:$0xf]
    %v439 = vld [vmem:[%s437 + $0x4] sm:$0xf]
    %v440 = vld [vmem:[%s437 + $0x8] sm:$0xf]
    %v441 = vld [vmem:[%s437 + $0xc] sm:$0xf]
    %v446 = vunpack.c.l.b16 %v438
    %v447 = vunpack.c.l.b16 %v439
    %v448 = vunpack.c.l.b16 %v440
    %v449 = vunpack.c.l.b16 %v441
    %v450 = vpack.c.b16 %v447, %v446
    %v451 = vpack.c.b16 %v449, %v448
    %454 = vst [vmem:[#allocation7 + $0x140] sm:$0xff] %v450
    %455 = vst [vmem:[#allocation7 + $0x148] sm:$0xff] %v451
    %s456 = scalar_lea.vmem %s3, 48
    %v457 = vld [vmem:[%s456] sm:$0xf]
    %v458 = vld [vmem:[%s456 + $0x4] sm:$0xf]
    %v461 = vunpack.c.l.b16 %v457
    %v462 = vunpack.c.l.b16 %v458
    %v463 = vpack.c.b16 %v462, %v461
    %465 = vst [vmem:[#allocation4 + $0x180] sm:$0xff] %v463
    %s466 = scalar_lea.vmem %s5, 96
    %v467 = vld [vmem:[%s466] sm:$0xf]
    %v468 = vld [vmem:[%s466 + $0x4] sm:$0xf]
    %v469 = vld [vmem:[%s466 + $0x8] sm:$0xf]
    %v470 = vld [vmem:[%s466 + $0xc] sm:$0xf]
    %v475 = vunpack.c.l.b16 %v467
    %v476 = vunpack.c.l.b16 %v468
    %v477 = vunpack.c.l.b16 %v469
    %v478 = vunpack.c.l.b16 %v470
    %v479 = vpack.c.b16 %v476, %v475
    %v480 = vpack.c.b16 %v478, %v477
    %483 = vst [vmem:[#allocation7 + $0x180] sm:$0xff] %v479
    %484 = vst [vmem:[#allocation7 + $0x188] sm:$0xff] %v480
    %s485 = scalar_lea.vmem %s3, 56
    %v486 = vld [vmem:[%s485] sm:$0xf]
    %v487 = vld [vmem:[%s485 + $0x4] sm:$0xf]
    %v490 = vunpack.c.l.b16 %v486
    %v491 = vunpack.c.l.b16 %v487
    %v492 = vpack.c.b16 %v491, %v490
    %494 = vst [vmem:[#allocation4 + $0x1c0] sm:$0xff] %v492
    %s495 = scalar_lea.vmem %s5, 112
    %v496 = vld [vmem:[%s495] sm:$0xf]
    %v497 = vld [vmem:[%s495 + $0x4] sm:$0xf]
    %v498 = vld [vmem:[%s495 + $0x8] sm:$0xf]
    %v499 = vld [vmem:[%s495 + $0xc] sm:$0xf]
    %v504 = vunpack.c.l.b16 %v496
    %v505 = vunpack.c.l.b16 %v497
    %v506 = vunpack.c.l.b16 %v498
    %v507 = vunpack.c.l.b16 %v499
    %v508 = vpack.c.b16 %v505, %v504
    %v509 = vpack.c.b16 %v507, %v506
    %512 = vst [vmem:[#allocation7 + $0x1c0] sm:$0xff] %v508
    %513 = vst [vmem:[#allocation7 + $0x1c8] sm:$0xff] %v509
    %s514 = scalar_lea.vmem %s3, 64
    %v515 = vld [vmem:[%s514] sm:$0xf]
    %v516 = vld [vmem:[%s514 + $0x4] sm:$0xf]
    %v519 = vunpack.c.l.b16 %v515
    %v520 = vunpack.c.l.b16 %v516
    %v521 = vpack.c.b16 %v520, %v519
    %523 = vst [vmem:[#allocation4 + $0x200] sm:$0xff] %v521
    %s524 = scalar_lea.vmem %s5, 128
    %v525 = vld [vmem:[%s524] sm:$0xf]
    %v526 = vld [vmem:[%s524 + $0x4] sm:$0xf]
    %v527 = vld [vmem:[%s524 + $0x8] sm:$0xf]
    %v528 = vld [vmem:[%s524 + $0xc] sm:$0xf]
    %v533 = vunpack.c.l.b16 %v525
    %v534 = vunpack.c.l.b16 %v526
    %v535 = vunpack.c.l.b16 %v527
    %v536 = vunpack.c.l.b16 %v528
    %v537 = vpack.c.b16 %v534, %v533
    %v538 = vpack.c.b16 %v536, %v535
    %541 = vst [vmem:[#allocation7 + $0x200] sm:$0xff] %v537
    %542 = vst [vmem:[#allocation7 + $0x208] sm:$0xff] %v538
    %s543 = scalar_lea.vmem %s3, 72
    %v544 = vld [vmem:[%s543] sm:$0xf]
    %v545 = vld [vmem:[%s543 + $0x4] sm:$0xf]
    %v548 = vunpack.c.l.b16 %v544
    %v549 = vunpack.c.l.b16 %v545
    %v550 = vpack.c.b16 %v549, %v548
    %552 = vst [vmem:[#allocation4 + $0x240] sm:$0xff] %v550
    %s553 = scalar_lea.vmem %s5, 144
    %v554 = vld [vmem:[%s553] sm:$0xf]
    %v555 = vld [vmem:[%s553 + $0x4] sm:$0xf]
    %v556 = vld [vmem:[%s553 + $0x8] sm:$0xf]
    %v557 = vld [vmem:[%s553 + $0xc] sm:$0xf]
    %v562 = vunpack.c.l.b16 %v554
    %v563 = vunpack.c.l.b16 %v555
    %v564 = vunpack.c.l.b16 %v556
    %v565 = vunpack.c.l.b16 %v557
    %v566 = vpack.c.b16 %v563, %v562
    %v567 = vpack.c.b16 %v565, %v564
    %570 = vst [vmem:[#allocation7 + $0x240] sm:$0xff] %v566
    %571 = vst [vmem:[#allocation7 + $0x248] sm:$0xff] %v567
    %s572 = scalar_lea.vmem %s3, 80
    %v573 = vld [vmem:[%s572] sm:$0xf]
    %v574 = vld [vmem:[%s572 + $0x4] sm:$0xf]
    %v577 = vunpack.c.l.b16 %v573
    %v578 = vunpack.c.l.b16 %v574
    %v579 = vpack.c.b16 %v578, %v577
    %581 = vst [vmem:[#allocation4 + $0x280] sm:$0xff] %v579
    %s582 = scalar_lea.vmem %s5, 160
    %v583 = vld [vmem:[%s582] sm:$0xf]
    %v584 = vld [vmem:[%s582 + $0x4] sm:$0xf]
    %v585 = vld [vmem:[%s582 + $0x8] sm:$0xf]
    %v586 = vld [vmem:[%s582 + $0xc] sm:$0xf]
    %v591 = vunpack.c.l.b16 %v583
    %v592 = vunpack.c.l.b16 %v584
    %v593 = vunpack.c.l.b16 %v585
    %v594 = vunpack.c.l.b16 %v586
    %v595 = vpack.c.b16 %v592, %v591
    %v596 = vpack.c.b16 %v594, %v593
    %599 = vst [vmem:[#allocation7 + $0x280] sm:$0xff] %v595
    %600 = vst [vmem:[#allocation7 + $0x288] sm:$0xff] %v596
    %s601 = scalar_lea.vmem %s3, 88
    %v602 = vld [vmem:[%s601] sm:$0xf]
    %v603 = vld [vmem:[%s601 + $0x4] sm:$0xf]
    %v606 = vunpack.c.l.b16 %v602
    %v607 = vunpack.c.l.b16 %v603
    %v608 = vpack.c.b16 %v607, %v606
    %610 = vst [vmem:[#allocation4 + $0x2c0] sm:$0xff] %v608
    %s611 = scalar_lea.vmem %s5, 176
    %v612 = vld [vmem:[%s611] sm:$0xf]
    %v613 = vld [vmem:[%s611 + $0x4] sm:$0xf]
    %v614 = vld [vmem:[%s611 + $0x8] sm:$0xf]
    %v615 = vld [vmem:[%s611 + $0xc] sm:$0xf]
    %v620 = vunpack.c.l.b16 %v612
    %v621 = vunpack.c.l.b16 %v613
    %v622 = vunpack.c.l.b16 %v614
    %v623 = vunpack.c.l.b16 %v615
    %v624 = vpack.c.b16 %v621, %v620
    %v625 = vpack.c.b16 %v623, %v622
    %628 = vst [vmem:[#allocation7 + $0x2c0] sm:$0xff] %v624
    %629 = vst [vmem:[#allocation7 + $0x2c8] sm:$0xff] %v625
    %s630 = scalar_lea.vmem %s3, 96
    %v631 = vld [vmem:[%s630] sm:$0xf]
    %v632 = vld [vmem:[%s630 + $0x4] sm:$0xf]
    %v635 = vunpack.c.l.b16 %v631
    %v636 = vunpack.c.l.b16 %v632
    %v637 = vpack.c.b16 %v636, %v635
    %639 = vst [vmem:[#allocation4 + $0x300] sm:$0xff] %v637
    %s640 = scalar_lea.vmem %s5, 192
    %v641 = vld [vmem:[%s640] sm:$0xf]
    %v642 = vld [vmem:[%s640 + $0x4] sm:$0xf]
    %v643 = vld [vmem:[%s640 + $0x8] sm:$0xf]
    %v644 = vld [vmem:[%s640 + $0xc] sm:$0xf]
    %v649 = vunpack.c.l.b16 %v641
    %v650 = vunpack.c.l.b16 %v642
    %v651 = vunpack.c.l.b16 %v643
    %v652 = vunpack.c.l.b16 %v644
    %v653 = vpack.c.b16 %v650, %v649
    %v654 = vpack.c.b16 %v652, %v651
    %657 = vst [vmem:[#allocation7 + $0x300] sm:$0xff] %v653
    %658 = vst [vmem:[#allocation7 + $0x308] sm:$0xff] %v654
    %s659 = scalar_lea.vmem %s3, 104
    %v660 = vld [vmem:[%s659] sm:$0xf]
    %v661 = vld [vmem:[%s659 + $0x4] sm:$0xf]
    %v664 = vunpack.c.l.b16 %v660
    %v665 = vunpack.c.l.b16 %v661
    %v666 = vpack.c.b16 %v665, %v664
    %668 = vst [vmem:[#allocation4 + $0x340] sm:$0xff] %v666
    %s669 = scalar_lea.vmem %s5, 208
    %v670 = vld [vmem:[%s669] sm:$0xf]
    %v671 = vld [vmem:[%s669 + $0x4] sm:$0xf]
    %v672 = vld [vmem:[%s669 + $0x8] sm:$0xf]
    %v673 = vld [vmem:[%s669 + $0xc] sm:$0xf]
    %v678 = vunpack.c.l.b16 %v670
    %v679 = vunpack.c.l.b16 %v671
    %v680 = vunpack.c.l.b16 %v672
    %v681 = vunpack.c.l.b16 %v673
    %v682 = vpack.c.b16 %v679, %v678
    %v683 = vpack.c.b16 %v681, %v680
    %686 = vst [vmem:[#allocation7 + $0x340] sm:$0xff] %v682
    %687 = vst [vmem:[#allocation7 + $0x348] sm:$0xff] %v683
    %s688 = scalar_lea.vmem %s3, 112
    %v689 = vld [vmem:[%s688] sm:$0xf]
    %v690 = vld [vmem:[%s688 + $0x4] sm:$0xf]
    %v693 = vunpack.c.l.b16 %v689
    %v694 = vunpack.c.l.b16 %v690
    %v695 = vpack.c.b16 %v694, %v693
    %697 = vst [vmem:[#allocation4 + $0x380] sm:$0xff] %v695
    %s698 = scalar_lea.vmem %s5, 224
    %v699 = vld [vmem:[%s698] sm:$0xf]
    %v700 = vld [vmem:[%s698 + $0x4] sm:$0xf]
    %v701 = vld [vmem:[%s698 + $0x8] sm:$0xf]
    %v702 = vld [vmem:[%s698 + $0xc] sm:$0xf]
    %v707 = vunpack.c.l.b16 %v699
    %v708 = vunpack.c.l.b16 %v700
    %v709 = vunpack.c.l.b16 %v701
    %v710 = vunpack.c.l.b16 %v702
    %v711 = vpack.c.b16 %v708, %v707
    %v712 = vpack.c.b16 %v710, %v709
    %715 = vst [vmem:[#allocation7 + $0x380] sm:$0xff] %v711
    %716 = vst [vmem:[#allocation7 + $0x388] sm:$0xff] %v712
    %s717 = scalar_lea.vmem %s3, 120
    %v718 = vld [vmem:[%s717] sm:$0xf]
    %v719 = vld [vmem:[%s717 + $0x4] sm:$0xf]
    %v722 = vunpack.c.l.b16 %v718
    %v723 = vunpack.c.l.b16 %v719
    %v724 = vpack.c.b16 %v723, %v722
    %726 = vst [vmem:[#allocation4 + $0x3c0] sm:$0xff] %v724
    %s727 = scalar_lea.vmem %s5, 240
    %v728 = vld [vmem:[%s727] sm:$0xf]
    %v729 = vld [vmem:[%s727 + $0x4] sm:$0xf]
    %v730 = vld [vmem:[%s727 + $0x8] sm:$0xf]
    %v731 = vld [vmem:[%s727 + $0xc] sm:$0xf]
    %v736 = vunpack.c.l.b16 %v728
    %v737 = vunpack.c.l.b16 %v729
    %v738 = vunpack.c.l.b16 %v730
    %v739 = vunpack.c.l.b16 %v731
    %v740 = vpack.c.b16 %v737, %v736
    %v741 = vpack.c.b16 %v739, %v738
    %744 = vst [vmem:[#allocation7 + $0x3c0] sm:$0xff] %v740
    %745 = vst [vmem:[#allocation7 + $0x3c8] sm:$0xff] %v741
    %v746 = vld [vmem:[%s2] sm:$0x1]
    %v747 = vld [vmem:[%s2 + $0x1] sm:$0x1]
    %v748 = vld [vmem:[%s2 + $0x2] sm:$0x1]
    %v749 = vld [vmem:[%s0] sm:$0xf]
    %v750 = vld [vmem:[%s0 + $0x4] sm:$0xf]
    %v751 = vld [vmem:[%s0 + $0x8] sm:$0xf]
    %v752 = vld [vmem:[%s0 + $0xc] sm:$0xf]
    %v753 = vld [vmem:[%s0 + $0x10] sm:$0xf]
    %v754 = vld [vmem:[%s0 + $0x14] sm:$0xf]
    %v755 = vld [vmem:[%s0 + $0x18] sm:$0xf]
    %v756 = vld [vmem:[%s0 + $0x1c] sm:$0xf]
    %v757 = vld [vmem:[%s0 + $0x20] sm:$0xf]
    %v758 = vld [vmem:[%s0 + $0x24] sm:$0xf]
    %v759 = vld [vmem:[%s0 + $0x28] sm:$0xf]
    %v760 = vld [vmem:[%s0 + $0x2c] sm:$0xf]
    %v761 = vld [vmem:[%s0 + $0x30] sm:$0xf]
    %v762 = vld [vmem:[%s0 + $0x34] sm:$0xf]
    %v763 = vld [vmem:[%s0 + $0x38] sm:$0xf]
    %v764 = vld [vmem:[%s0 + $0x3c] sm:$0xf]
    %v765 = vld [vmem:[%s0 + $0x40] sm:$0xf]
    %v766 = vld [vmem:[%s0 + $0x44] sm:$0xf]
    %v767 = vld [vmem:[%s0 + $0x48] sm:$0xf]
    %v768 = vld [vmem:[%s0 + $0x4c] sm:$0xf]
    %v769 = vld [vmem:[%s0 + $0x50] sm:$0xf]
    %v770 = vld [vmem:[%s0 + $0x54] sm:$0xf]
    %v771 = vld [vmem:[%s0 + $0x58] sm:$0xf]
    %v772 = vld [vmem:[%s0 + $0x5c] sm:$0xf]
    %v773 = vld [vmem:[%s0 + $0x60] sm:$0xf]
    %v774 = vld [vmem:[%s0 + $0x64] sm:$0xf]
    %v775 = vld [vmem:[%s0 + $0x68] sm:$0xf]
    %v776 = vld [vmem:[%s0 + $0x6c] sm:$0xf]
    %v777 = vld [vmem:[%s0 + $0x70] sm:$0xf]
    %v778 = vld [vmem:[%s0 + $0x74] sm:$0xf]
    %v779 = vld [vmem:[%s0 + $0x78] sm:$0xf]
    %v780 = vld [vmem:[%s0 + $0x7c] sm:$0xf]
    %v781 = vld [vmem:[%s0 + $0x80] sm:$0xf]
    %v782 = vld [vmem:[%s0 + $0x84] sm:$0xf]
    %v783 = vld [vmem:[%s0 + $0x88] sm:$0xf]
    %v784 = vld [vmem:[%s0 + $0x8c] sm:$0xf]
    %v785 = vld [vmem:[%s0 + $0x90] sm:$0xf]
    %v786 = vld [vmem:[%s0 + $0x94] sm:$0xf]
    %v787 = vld [vmem:[%s0 + $0x98] sm:$0xf]
    %v788 = vld [vmem:[%s0 + $0x9c] sm:$0xf]
    %v789 = vld [vmem:[%s0 + $0xa0] sm:$0xf]
    %v790 = vld [vmem:[%s0 + $0xa4] sm:$0xf]
    %v791 = vld [vmem:[%s0 + $0xa8] sm:$0x1]
    %v792 = vld [vmem:[%s1] sm:$0xf]
    %v793 = vld [vmem:[%s1 + $0x4] sm:$0xf]
    %v794 = vlaneseq
    %v795 = vshrl.u32 %v794, 7
    %v796 = vsub.s32 0, %v795
    %v797 = vrot.slane %v746, %v796
    %v841 = vunpack.c.l.b16 %v749
    %v842 = vunpack.c.l.b16 %v750
    %v843 = vunpack.c.l.b16 %v751
    %v844 = vunpack.c.l.b16 %v752
    %v845 = vunpack.c.l.b16 %v753
    %v846 = vunpack.c.l.b16 %v754
    %v847 = vunpack.c.l.b16 %v755
    %v848 = vunpack.c.l.b16 %v756
    %v849 = vunpack.c.l.b16 %v757
    %v850 = vunpack.c.l.b16 %v758
    %v851 = vunpack.c.l.b16 %v759
    %v852 = vunpack.c.l.b16 %v760
    %v853 = vunpack.c.l.b16 %v761
    %v854 = vunpack.c.l.b16 %v762
    %v855 = vunpack.c.l.b16 %v763
    %v856 = vunpack.c.l.b16 %v764
    %v857 = vunpack.c.l.b16 %v765
    %v858 = vunpack.c.l.b16 %v766
    %v859 = vunpack.c.l.b16 %v767
    %v860 = vunpack.c.l.b16 %v768
    %v861 = vunpack.c.l.b16 %v769
    %v862 = vunpack.c.l.b16 %v770
    %v863 = vunpack.c.l.b16 %v771
    %v864 = vunpack.c.l.b16 %v772
    %v865 = vunpack.c.l.b16 %v773
    %v866 = vunpack.c.l.b16 %v774
    %v867 = vunpack.c.l.b16 %v775
    %v868 = vunpack.c.l.b16 %v776
    %v869 = vunpack.c.l.b16 %v777
    %v870 = vunpack.c.l.b16 %v778
    %v871 = vunpack.c.l.b16 %v779
    %v872 = vunpack.c.l.b16 %v780
    %v873 = vunpack.c.l.b16 %v781
    %v874 = vunpack.c.l.b16 %v782
    %v875 = vunpack.c.l.b16 %v783
    %v876 = vunpack.c.l.b16 %v784
    %v877 = vunpack.c.l.b16 %v785
    %v878 = vunpack.c.l.b16 %v786
    %v879 = vunpack.c.l.b16 %v787
    %v880 = vunpack.c.l.b16 %v788
    %v881 = vunpack.c.l.b16 %v789
    %v882 = vunpack.c.l.b16 %v790
    %v883 = vunpack.c.l.b16 %v791
    %v884 = vpack.c.b16 %v842, %v841
    %v885 = vpack.c.b16 %v844, %v843
    %v886 = vpack.c.b16 %v846, %v845
    %v887 = vpack.c.b16 %v848, %v847
    %v888 = vpack.c.b16 %v850, %v849
    %v889 = vpack.c.b16 %v852, %v851
    %v890 = vpack.c.b16 %v854, %v853
    %v891 = vpack.c.b16 %v856, %v855
    %v892 = vpack.c.b16 %v858, %v857
    %v893 = vpack.c.b16 %v860, %v859
    %v894 = vpack.c.b16 %v862, %v861
    %v895 = vpack.c.b16 %v864, %v863
    %v896 = vpack.c.b16 %v866, %v865
    %v897 = vpack.c.b16 %v868, %v867
    %v898 = vpack.c.b16 %v870, %v869
    %v899 = vpack.c.b16 %v872, %v871
    %v900 = vpack.c.b16 %v874, %v873
    %v901 = vpack.c.b16 %v876, %v875
    %v902 = vpack.c.b16 %v878, %v877
    %v903 = vpack.c.b16 %v880, %v879
    %v904 = vpack.c.b16 %v882, %v881
    %v905 = vpack.c.b16 %v883, %v883
    %v908 = vunpack.c.l.b16 %v792
    %v909 = vunpack.c.l.b16 %v793
    %v910 = vpack.c.b16 %v909, %v908
    %vm912 = vcmask 130048
    %v914 = vsel %vm912, %v884, 0
    %v917 = vsel %vm912, %v885, 0
    %v920 = vsel %vm912, %v886, 0
    %v923 = vsel %vm912, %v887, 0
    %v926 = vsel %vm912, %v888, 0
    %v929 = vsel %vm912, %v889, 0
    %v932 = vsel %vm912, %v890, 0
    %v935 = vsel %vm912, %v891, 0
    %v938 = vsel %vm912, %v892, 0
    %v941 = vsel %vm912, %v893, 0
    %v944 = vsel %vm912, %v894, 0
    %v947 = vsel %vm912, %v895, 0
    %v950 = vsel %vm912, %v896, 0
    %v953 = vsel %vm912, %v897, 0
    %v956 = vsel %vm912, %v898, 0
    %v959 = vsel %vm912, %v899, 0
    %v962 = vsel %vm912, %v900, 0
    %v965 = vsel %vm912, %v901, 0
    %v968 = vsel %vm912, %v902, 0
    %v971 = vsel %vm912, %v903, 0
    %v974 = vsel %vm912, %v904, 0
    %v977 = vsel %vm912, %v905, 0
    %979 = vmatprep.subr.bf16.mxu0 0
    %980 = vmatpush1.bf16.msra.mxu0 %v910
    %981 = vmatprep.subr.bf16.mxu0 0
    %982 = vmatpush1.bf16.msra.mxu0 0
    %983 = vmatprep.subr.bf16.mxu0 0
    %984 = vmatpush1.bf16.msra.mxu0 0
    %985 = vmatprep.subr.bf16.mxu0 0
    %986 = vmatpush1.bf16.msra.mxu0 0
    %987 = vmatprep.subr.bf16.mxu0 0
    %988 = vmatpush1.bf16.msra.mxu0 0
    %989 = vmatprep.subr.bf16.mxu0 0
    %990 = vmatpush1.bf16.msra.mxu0 0
    %991 = vmatprep.subr.bf16.mxu0 0
    %992 = vmatpush1.bf16.msra.mxu0 0
    %993 = vmatprep.subr.bf16.mxu0 0
    %994 = vmatpush1.bf16.msra.mxu0 0
    %995 = vmatprep.subr.bf16.mxu0 0
    %996 = vmatpush1.bf16.msra.mxu0 0
    %997 = vmatprep.subr.bf16.mxu0 0
    %998 = vmatpush1.bf16.msra.mxu0 0
    %999 = vmatprep.subr.bf16.mxu0 0
    %1000 = vmatpush1.bf16.msra.mxu0 0
    %1001 = vmatprep.subr.bf16.mxu0 0
    %1002 = vmatpush1.bf16.msra.mxu0 0
    %1003 = vmatprep.subr.bf16.mxu0 0
    %1004 = vmatpush1.bf16.msra.mxu0 0
    %1005 = vmatprep.subr.bf16.mxu0 0
    %1006 = vmatpush1.bf16.msra.mxu0 0
    %1007 = vmatprep.subr.bf16.mxu0 0
    %1008 = vmatpush1.bf16.msra.mxu0 0
    %1009 = vmatprep.subr.bf16.mxu0 0
    %1010 = vmatpush1.bf16.msra.mxu0 0
    %1011 = vmatprep.mubr.bf16.mxu0 0
    %1012 = vmatmul.mubr.bf16.gmra.mrb[0].mxu0 %v914
    %v1013 = vpop.f32.mrb[0].mxu0
    %v1014 = vadd.f32 %v797, %v1013
    %v1015 = vpop.f32.mrb[0].mxu0
    %v1016 = vpop.f32.mrb[0].mxu0
    %v1017 = vadd.f32 %v797, %v1016
    %v1018 = vpop.f32.mrb[0].mxu0
    %1019 = vmatprep.mubr.bf16.mxu0 0
    %1020 = vmatmul.mubr.bf16.gmra.mrb[0].mxu0 %v917
    %v1021 = vpop.f32.mrb[0].mxu0
    %v1022 = vadd.f32 %v797, %v1021
    %v1023 = vpop.f32.mrb[0].mxu0
    %v1024 = vpop.f32.mrb[0].mxu0
    %v1025 = vadd.f32 %v797, %v1024
    %v1026 = vpop.f32.mrb[0].mxu0
    %1027 = vmatprep.mubr.bf16.mxu0 0
    %1028 = vmatmul.mubr.bf16.gmra.mrb[0].mxu0 %v920
    %v1029 = vpop.f32.mrb[0].mxu0
    %v1030 = vadd.f32 %v797, %v1029
    %v1031 = vpop.f32.mrb[0].mxu0
    %v1032 = vpop.f32.mrb[0].mxu0
    %v1033 = vadd.f32 %v797, %v1032
    %v1034 = vpop.f32.mrb[0].mxu0
    %1035 = vmatprep.mubr.bf16.mxu0 0
    %1036 = vmatmul.mubr.bf16.gmra.mrb[0].mxu0 %v923
    %v1037 = vpop.f32.mrb[0].mxu0
    %v1038 = vadd.f32 %v797, %v1037
    %v1039 = vpop.f32.mrb[0].mxu0
    %v1040 = vpop.f32.mrb[0].mxu0
    %v1041 = vadd.f32 %v797, %v1040
    %v1042 = vpop.f32.mrb[0].mxu0
    %1043 = vmatprep.mubr.bf16.mxu0 0
    %1044 = vmatmul.mubr.bf16.gmra.mrb[0].mxu0 %v926
    %v1045 = vpop.f32.mrb[0].mxu0
    %v1046 = vadd.f32 %v797, %v1045
    %v1047 = vpop.f32.mrb[0].mxu0
    %v1048 = vpop.f32.mrb[0].mxu0
    %v1049 = vadd.f32 %v797, %v1048
    %v1050 = vpop.f32.mrb[0].mxu0
    %1051 = vmatprep.mubr.bf16.mxu0 0
    %1052 = vmatmul.mubr.bf16.gmra.mrb[0].mxu0 %v929
    %v1053 = vpop.f32.mrb[0].mxu0
    %v1054 = vadd.f32 %v797, %v1053
    %v1055 = vpop.f32.mrb[0].mxu0
    %v1056 = vpop.f32.mrb[0].mxu0
    %v1057 = vadd.f32 %v797, %v1056
    %v1058 = vpop.f32.mrb[0].mxu0
    %1059 = vmatprep.mubr.bf16.mxu0 0
    %1060 = vmatmul.mubr.bf16.gmra.mrb[0].mxu0 %v932
    %v1061 = vpop.f32.mrb[0].mxu0
    %v1062 = vadd.f32 %v797, %v1061
    %v1063 = vpop.f32.mrb[0].mxu0
    %v1064 = vpop.f32.mrb[0].mxu0
    %v1065 = vadd.f32 %v797, %v1064
    %v1066 = vpop.f32.mrb[0].mxu0
    %1067 = vmatprep.mubr.bf16.mxu0 0
    %1068 = vmatmul.mubr.bf16.gmra.mrb[0].mxu0 %v935
    %v1069 = vpop.f32.mrb[0].mxu0
    %v1070 = vadd.f32 %v797, %v1069
    %v1071 = vpop.f32.mrb[0].mxu0
    %v1072 = vpop.f32.mrb[0].mxu0
    %v1073 = vadd.f32 %v797, %v1072
    %v1074 = vpop.f32.mrb[0].mxu0
    %1075 = vmatprep.mubr.bf16.mxu0 0
    %1076 = vmatmul.mubr.bf16.gmra.mrb[0].mxu0 %v938
    %v1077 = vpop.f32.mrb[0].mxu0
    %v1078 = vadd.f32 %v797, %v1077
    %v1079 = vpop.f32.mrb[0].mxu0
    %v1080 = vpop.f32.mrb[0].mxu0
    %v1081 = vadd.f32 %v797, %v1080
    %v1082 = vpop.f32.mrb[0].mxu0
    %1083 = vmatprep.mubr.bf16.mxu0 0
    %1084 = vmatmul.mubr.bf16.gmra.mrb[0].mxu0 %v941
    %v1085 = vpop.f32.mrb[0].mxu0
    %v1086 = vadd.f32 %v797, %v1085
    %v1087 = vpop.f32.mrb[0].mxu0
    %v1088 = vpop.f32.mrb[0].mxu0
    %v1089 = vadd.f32 %v797, %v1088
    %v1090 = vpop.f32.mrb[0].mxu0
    %1091 = vmatprep.mubr.bf16.mxu0 0
    %1092 = vmatmul.mubr.bf16.gmra.mrb[0].mxu0 %v944
    %v1093 = vpop.f32.mrb[0].mxu0
    %v1094 = vadd.f32 %v797, %v1093
    %v1095 = vpop.f32.mrb[0].mxu0
    %v1096 = vpop.f32.mrb[0].mxu0
    %v1097 = vadd.f32 %v797, %v1096
    %v1098 = vpop.f32.mrb[0].mxu0
    %1099 = vmatprep.mubr.bf16.mxu0 0
    %1100 = vmatmul.mubr.bf16.gmra.mrb[0].mxu0 %v947
    %v1101 = vpop.f32.mrb[0].mxu0
    %v1102 = vadd.f32 %v797, %v1101
    %v1103 = vpop.f32.mrb[0].mxu0
    %v1104 = vpop.f32.mrb[0].mxu0
    %v1105 = vadd.f32 %v797, %v1104
    %v1106 = vpop.f32.mrb[0].mxu0
    %1107 = vmatprep.mubr.bf16.mxu0 0
    %1108 = vmatmul.mubr.bf16.gmra.mrb[0].mxu0 %v950
    %v1109 = vpop.f32.mrb[0].mxu0
    %v1110 = vadd.f32 %v797, %v1109
    %v1111 = vpop.f32.mrb[0].mxu0
    %v1112 = vpop.f32.mrb[0].mxu0
    %v1113 = vadd.f32 %v797, %v1112
    %v1114 = vpop.f32.mrb[0].mxu0
    %1115 = vmatprep.mubr.bf16.mxu0 0
    %1116 = vmatmul.mubr.bf16.gmra.mrb[0].mxu0 %v953
    %v1117 = vpop.f32.mrb[0].mxu0
    %v1118 = vadd.f32 %v797, %v1117
    %v1119 = vpop.f32.mrb[0].mxu0
    %v1120 = vpop.f32.mrb[0].mxu0
    %v1121 = vadd.f32 %v797, %v1120
    %v1122 = vpop.f32.mrb[0].mxu0
    %1123 = vmatprep.mubr.bf16.mxu0 0
    %1124 = vmatmul.mubr.bf16.gmra.mrb[0].mxu0 %v956
    %v1125 = vpop.f32.mrb[0].mxu0
    %v1126 = vadd.f32 %v797, %v1125
    %v1127 = vpop.f32.mrb[0].mxu0
    %v1128 = vpop.f32.mrb[0].mxu0
    %v1129 = vadd.f32 %v797, %v1128
    %v1130 = vpop.f32.mrb[0].mxu0
    %1131 = vmatprep.mubr.bf16.mxu0 0
    %1132 = vmatmul.mubr.bf16.gmra.mrb[0].mxu0 %v959
    %v1133 = vpop.f32.mrb[0].mxu0
    %v1134 = vadd.f32 %v797, %v1133
    %v1135 = vpop.f32.mrb[0].mxu0
    %v1136 = vpop.f32.mrb[0].mxu0
    %v1137 = vadd.f32 %v797, %v1136
    %v1138 = vpop.f32.mrb[0].mxu0
    %1139 = vmatprep.mubr.bf16.mxu0 0
    %1140 = vmatmul.mubr.bf16.gmra.mrb[0].mxu0 %v962
    %v1141 = vpop.f32.mrb[0].mxu0
    %v1142 = vadd.f32 %v797, %v1141
    %v1143 = vpop.f32.mrb[0].mxu0
    %v1144 = vpop.f32.mrb[0].mxu0
    %v1145 = vadd.f32 %v797, %v1144
    %v1146 = vpop.f32.mrb[0].mxu0
    %1147 = vmatprep.mubr.bf16.mxu0 0
    %1148 = vmatmul.mubr.bf16.gmra.mrb[0].mxu0 %v965
    %v1149 = vpop.f32.mrb[0].mxu0
    %v1150 = vadd.f32 %v797, %v1149
    %v1151 = vpop.f32.mrb[0].mxu0
    %v1152 = vpop.f32.mrb[0].mxu0
    %v1153 = vadd.f32 %v797, %v1152
    %v1154 = vpop.f32.mrb[0].mxu0
    %1155 = vmatprep.mubr.bf16.mxu0 0
    %1156 = vmatmul.mubr.bf16.gmra.mrb[0].mxu0 %v968
    %v1157 = vpop.f32.mrb[0].mxu0
    %v1158 = vadd.f32 %v797, %v1157
    %v1159 = vpop.f32.mrb[0].mxu0
    %v1160 = vpop.f32.mrb[0].mxu0
    %v1161 = vadd.f32 %v797, %v1160
    %v1162 = vpop.f32.mrb[0].mxu0
    %1163 = vmatprep.mubr.bf16.mxu0 0
    %1164 = vmatmul.mubr.bf16.gmra.mrb[0].mxu0 %v971
    %v1165 = vpop.f32.mrb[0].mxu0
    %v1166 = vadd.f32 %v797, %v1165
    %v1167 = vpop.f32.mrb[0].mxu0
    %v1168 = vpop.f32.mrb[0].mxu0
    %v1169 = vadd.f32 %v797, %v1168
    %v1170 = vpop.f32.mrb[0].mxu0
    %1171 = vmatprep.mubr.bf16.mxu0 0
    %1172 = vmatmul.mubr.bf16.gmra.mrb[0].mxu0 %v974
    %v1173 = vpop.f32.mrb[0].mxu0
    %v1174 = vadd.f32 %v797, %v1173
    %v1175 = vpop.f32.mrb[0].mxu0
    %v1176 = vpop.f32.mrb[0].mxu0
    %v1177 = vadd.f32 %v797, %v1176
    %v1178 = vpop.f32.mrb[0].mxu0
    %1179 = vmatprep.mubr.bf16.mxu0 0
    %1180 = vmatmul.mubr.bf16.gmra.mrb[0].mxu0 %v977
    %v1181 = vpop.f32.mrb[0].mxu0
    %v1182 = vadd.f32 %v797, %v1181
    %v1183 = vpop.f32.mrb[0].mxu0
    %v1184 = vpop.f32.mrb[0].mxu0
    %v1185 = vpop.f32.mrb[0].mxu0
    %1186 = vdwg.mxu0
    %v1187 = vadd.f32 %v1014, %v1017
    %v1188 = vadd.f32 %v1187, %v1022
    %v1189 = vadd.f32 %v1188, %v1025
    %v1190 = vadd.f32 %v1189, %v1030
    %v1191 = vadd.f32 %v1190, %v1033
    %v1192 = vadd.f32 %v1191, %v1038
    %v1193 = vadd.f32 %v1192, %v1041
    %v1194 = vadd.f32 %v1193, %v1046
    %v1195 = vadd.f32 %v1194, %v1049
    %v1196 = vadd.f32 %v1195, %v1054
    %v1197 = vadd.f32 %v1196, %v1057
    %v1198 = vadd.f32 %v1197, %v1062
    %v1199 = vadd.f32 %v1198, %v1065
    %v1200 = vadd.f32 %v1199, %v1070
    %v1201 = vadd.f32 %v1200, %v1073
    %v1202 = vadd.f32 %v1201, %v1078
    %v1203 = vadd.f32 %v1202, %v1081
    %v1204 = vadd.f32 %v1203, %v1086
    %v1205 = vadd.f32 %v1204, %v1089
    %v1206 = vadd.f32 %v1205, %v1094
    %v1207 = vadd.f32 %v1206, %v1097
    %v1208 = vadd.f32 %v1207, %v1102
    %v1209 = vadd.f32 %v1208, %v1105
    %v1210 = vadd.f32 %v1209, %v1110
    %v1211 = vadd.f32 %v1210, %v1113
    %v1212 = vadd.f32 %v1211, %v1118
    %v1213 = vadd.f32 %v1212, %v1121
    %v1214 = vadd.f32 %v1213, %v1126
    %v1215 = vadd.f32 %v1214, %v1129
    %v1216 = vadd.f32 %v1215, %v1134
    %v1217 = vadd.f32 %v1216, %v1137
    %v1218 = vadd.f32 %v1217, %v1142
    %v1219 = vadd.f32 %v1218, %v1145
    %v1220 = vadd.f32 %v1219, %v1150
    %v1221 = vadd.f32 %v1220, %v1153
    %v1222 = vadd.f32 %v1221, %v1158
    %v1223 = vadd.f32 %v1222, %v1161
    %v1224 = vadd.f32 %v1223, %v1166
    %v1225 = vadd.f32 %v1224, %v1169
    %v1226 = vadd.f32 %v1225, %v1174
    %v1227 = vadd.f32 %v1226, %v1177
    %vm1228 = vcmask 1041408
    %v1229 = vsel %vm1228, %v1182, 0.0
    %v1230 = vadd.f32 %v1227, %v1229
    %v1231 = vrot.slane %v1230, 4
    %v1232 = vadd.f32 %v1230, %v1231
    %v1233 = vrot.slane %v1232, 2
    %v1234 = vadd.f32 %v1232, %v1233
    %v1235 = vrot.slane %v1234, 1
    %v1236 = vadd.f32 %v1234, %v1235
    %v1237 = vrcp.pop 338.0
    %v1238 = vmul.f32 %v1236, %v1237
    %v1239 = vsub.f32 %v1014, %v1238
    %v1240 = vsub.f32 %v1017, %v1238
    %v1241 = vsub.f32 %v1022, %v1238
    %v1242 = vsub.f32 %v1025, %v1238
    %v1243 = vsub.f32 %v1030, %v1238
    %v1244 = vsub.f32 %v1033, %v1238
    %v1245 = vsub.f32 %v1038, %v1238
    %v1246 = vsub.f32 %v1041, %v1238
    %v1247 = vsub.f32 %v1046, %v1238
    %v1248 = vsub.f32 %v1049, %v1238
    %v1249 = vsub.f32 %v1054, %v1238
    %v1250 = vsub.f32 %v1057, %v1238
    %v1251 = vsub.f32 %v1062, %v1238
    %v1252 = vsub.f32 %v1065, %v1238
    %v1253 = vsub.f32 %v1070, %v1238
    %v1254 = vsub.f32 %v1073, %v1238
    %v1255 = vsub.f32 %v1078, %v1238
    %v1256 = vsub.f32 %v1081, %v1238
    %v1257 = vsub.f32 %v1086, %v1238
    %v1258 = vsub.f32 %v1089, %v1238
    %v1259 = vsub.f32 %v1094, %v1238
    %v1260 = vsub.f32 %v1097, %v1238
    %v1261 = vsub.f32 %v1102, %v1238
    %v1262 = vsub.f32 %v1105, %v1238
    %v1263 = vsub.f32 %v1110, %v1238
    %v1264 = vsub.f32 %v1113, %v1238
    %v1265 = vsub.f32 %v1118, %v1238
    %v1266 = vsub.f32 %v1121, %v1238
    %v1267 = vsub.f32 %v1126, %v1238
    %v1268 = vsub.f32 %v1129, %v1238
    %v1269 = vsub.f32 %v1134, %v1238
    %v1270 = vsub.f32 %v1137, %v1238
    %v1271 = vsub.f32 %v1142, %v1238
    %v1272 = vsub.f32 %v1145, %v1238
    %v1273 = vsub.f32 %v1150, %v1238
    %v1274 = vsub.f32 %v1153, %v1238
    %v1275 = vsub.f32 %v1158, %v1238
    %v1276 = vsub.f32 %v1161, %v1238
    %v1277 = vsub.f32 %v1166, %v1238
    %v1278 = vsub.f32 %v1169, %v1238
    %v1279 = vsub.f32 %v1174, %v1238
    %v1280 = vsub.f32 %v1177, %v1238
    %v1281 = vsub.f32 %v1182, %v1238
    %v1282 = vmul.f32 %v1239, %v1239
    %v1283 = vmul.f32 %v1240, %v1240
    %v1284 = vmul.f32 %v1241, %v1241
    %v1285 = vmul.f32 %v1242, %v1242
    %v1286 = vmul.f32 %v1243, %v1243
    %v1287 = vmul.f32 %v1244, %v1244
    %v1288 = vmul.f32 %v1245, %v1245
    %v1289 = vmul.f32 %v1246, %v1246
    %v1290 = vmul.f32 %v1247, %v1247
    %v1291 = vmul.f32 %v1248, %v1248
    %v1292 = vmul.f32 %v1249, %v1249
    %v1293 = vmul.f32 %v1250, %v1250
    %v1294 = vmul.f32 %v1251, %v1251
    %v1295 = vmul.f32 %v1252, %v1252
    %v1296 = vmul.f32 %v1253, %v1253
    %v1297 = vmul.f32 %v1254, %v1254
    %v1298 = vmul.f32 %v1255, %v1255
    %v1299 = vmul.f32 %v1256, %v1256
    %v1300 = vmul.f32 %v1257, %v1257
    %v1301 = vmul.f32 %v1258, %v1258
    %v1302 = vmul.f32 %v1259, %v1259
    %v1303 = vmul.f32 %v1260, %v1260
    %v1304 = vmul.f32 %v1261, %v1261
    %v1305 = vmul.f32 %v1262, %v1262
    %v1306 = vmul.f32 %v1263, %v1263
    %v1307 = vmul.f32 %v1264, %v1264
    %v1308 = vmul.f32 %v1265, %v1265
    %v1309 = vmul.f32 %v1266, %v1266
    %v1310 = vmul.f32 %v1267, %v1267
    %v1311 = vmul.f32 %v1268, %v1268
    %v1312 = vmul.f32 %v1269, %v1269
    %v1313 = vmul.f32 %v1270, %v1270
    %v1314 = vmul.f32 %v1271, %v1271
    %v1315 = vmul.f32 %v1272, %v1272
    %v1316 = vmul.f32 %v1273, %v1273
    %v1317 = vmul.f32 %v1274, %v1274
    %v1318 = vmul.f32 %v1275, %v1275
    %v1319 = vmul.f32 %v1276, %v1276
    %v1320 = vmul.f32 %v1277, %v1277
    %v1321 = vmul.f32 %v1278, %v1278
    %v1322 = vmul.f32 %v1279, %v1279
    %v1323 = vmul.f32 %v1280, %v1280
    %v1324 = vmul.f32 %v1281, %v1281
    %v1325 = vadd.f32 %v1282, %v1283
    %v1326 = vadd.f32 %v1325, %v1284
    %v1327 = vadd.f32 %v1326, %v1285
    %v1328 = vadd.f32 %v1327, %v1286
    %v1329 = vadd.f32 %v1328, %v1287
    %v1330 = vadd.f32 %v1329, %v1288
    %v1331 = vadd.f32 %v1330, %v1289
    %v1332 = vadd.f32 %v1331, %v1290
    %v1333 = vadd.f32 %v1332, %v1291
    %v1334 = vadd.f32 %v1333, %v1292
    %v1335 = vadd.f32 %v1334, %v1293
    %v1336 = vadd.f32 %v1335, %v1294
    %v1337 = vadd.f32 %v1336, %v1295
    %v1338 = vadd.f32 %v1337, %v1296
    %v1339 = vadd.f32 %v1338, %v1297
    %v1340 = vadd.f32 %v1339, %v1298
    %v1341 = vadd.f32 %v1340, %v1299
    %v1342 = vadd.f32 %v1341, %v1300
    %v1343 = vadd.f32 %v1342, %v1301
    %v1344 = vadd.f32 %v1343, %v1302
    %v1345 = vadd.f32 %v1344, %v1303
    %v1346 = vadd.f32 %v1345, %v1304
    %v1347 = vadd.f32 %v1346, %v1305
    %v1348 = vadd.f32 %v1347, %v1306
    %v1349 = vadd.f32 %v1348, %v1307
    %v1350 = vadd.f32 %v1349, %v1308
    %v1351 = vadd.f32 %v1350, %v1309
    %v1352 = vadd.f32 %v1351, %v1310
    %v1353 = vadd.f32 %v1352, %v1311
    %v1354 = vadd.f32 %v1353, %v1312
    %v1355 = vadd.f32 %v1354, %v1313
    %v1356 = vadd.f32 %v1355, %v1314
    %v1357 = vadd.f32 %v1356, %v1315
    %v1358 = vadd.f32 %v1357, %v1316
    %v1359 = vadd.f32 %v1358, %v1317
    %v1360 = vadd.f32 %v1359, %v1318
    %v1361 = vadd.f32 %v1360, %v1319
    %v1362 = vadd.f32 %v1361, %v1320
    %v1363 = vadd.f32 %v1362, %v1321
    %v1364 = vadd.f32 %v1363, %v1322
    %v1365 = vadd.f32 %v1364, %v1323
    %v1366 = vsel %vm1228, %v1324, 0.0
    %v1367 = vadd.f32 %v1365, %v1366
    %v1368 = vrot.slane %v1367, 4
    %v1369 = vadd.f32 %v1367, %v1368
    %v1370 = vrot.slane %v1369, 2
    %v1371 = vadd.f32 %v1369, %v1370
    %v1372 = vrot.slane %v1371, 1
    %v1373 = vadd.f32 %v1371, %v1372
    %v1374 = vmul.f32 %v1373, %v1237
    %v1375 = vlaneseq
    %v1376 = vshrl.u32 %v1375, 7
    %v1377 = vsub.s32 0, %v1376
    %v1378 = vrot.slane %v747, %v1377
    %v1379 = vmul.f32 %v1378, %v1239
    %v1380 = vmul.f32 %v1378, %v1240
    %v1381 = vmul.f32 %v1378, %v1241
    %v1382 = vmul.f32 %v1378, %v1242
    %v1383 = vmul.f32 %v1378, %v1243
    %v1384 = vmul.f32 %v1378, %v1244
    %v1385 = vmul.f32 %v1378, %v1245
    %v1386 = vmul.f32 %v1378, %v1246
    %v1387 = vmul.f32 %v1378, %v1247
    %v1388 = vmul.f32 %v1378, %v1248
    %v1389 = vmul.f32 %v1378, %v1249
    %v1390 = vmul.f32 %v1378, %v1250
    %v1391 = vmul.f32 %v1378, %v1251
    %v1392 = vmul.f32 %v1378, %v1252
    %v1393 = vmul.f32 %v1378, %v1253
    %v1394 = vmul.f32 %v1378, %v1254
    %v1395 = vmul.f32 %v1378, %v1255
    %v1396 = vmul.f32 %v1378, %v1256
    %v1397 = vmul.f32 %v1378, %v1257
    %v1398 = vmul.f32 %v1378, %v1258
    %v1399 = vmul.f32 %v1378, %v1259
    %v1400 = vmul.f32 %v1378, %v1260
    %v1401 = vmul.f32 %v1378, %v1261
    %v1402 = vmul.f32 %v1378, %v1262
    %v1403 = vmul.f32 %v1378, %v1263
    %v1404 = vmul.f32 %v1378, %v1264
    %v1405 = vmul.f32 %v1378, %v1265
    %v1406 = vmul.f32 %v1378, %v1266
    %v1407 = vmul.f32 %v1378, %v1267
    %v1408 = vmul.f32 %v1378, %v1268
    %v1409 = vmul.f32 %v1378, %v1269
    %v1410 = vmul.f32 %v1378, %v1270
    %v1411 = vmul.f32 %v1378, %v1271
    %v1412 = vmul.f32 %v1378, %v1272
    %v1413 = vmul.f32 %v1378, %v1273
    %v1414 = vmul.f32 %v1378, %v1274
    %v1415 = vmul.f32 %v1378, %v1275
    %v1416 = vmul.f32 %v1378, %v1276
    %v1417 = vmul.f32 %v1378, %v1277
    %v1418 = vmul.f32 %v1378, %v1278
    %v1419 = vmul.f32 %v1378, %v1279
    %v1420 = vmul.f32 %v1378, %v1280
    %v1421 = vmul.f32 %v1378, %v1281
    %v1422 = vadd.f32 %v1374, 1e-05
    %v1423 = vrsqrt.pop %v1422
    %v1424 = vmul.f32 %v1379, %v1423
    %v1425 = vmul.f32 %v1380, %v1423
    %v1426 = vmul.f32 %v1381, %v1423
    %v1427 = vmul.f32 %v1382, %v1423
    %v1428 = vmul.f32 %v1383, %v1423
    %v1429 = vmul.f32 %v1384, %v1423
    %v1430 = vmul.f32 %v1385, %v1423
    %v1431 = vmul.f32 %v1386, %v1423
    %v1432 = vmul.f32 %v1387, %v1423
    %v1433 = vmul.f32 %v1388, %v1423
    %v1434 = vmul.f32 %v1389, %v1423
    %v1435 = vmul.f32 %v1390, %v1423
    %v1436 = vmul.f32 %v1391, %v1423
    %v1437 = vmul.f32 %v1392, %v1423
    %v1438 = vmul.f32 %v1393, %v1423
    %v1439 = vmul.f32 %v1394, %v1423
    %v1440 = vmul.f32 %v1395, %v1423
    %v1441 = vmul.f32 %v1396, %v1423
    %v1442 = vmul.f32 %v1397, %v1423
    %v1443 = vmul.f32 %v1398, %v1423
    %v1444 = vmul.f32 %v1399, %v1423
    %v1445 = vmul.f32 %v1400, %v1423
    %v1446 = vmul.f32 %v1401, %v1423
    %v1447 = vmul.f32 %v1402, %v1423
    %v1448 = vmul.f32 %v1403, %v1423
    %v1449 = vmul.f32 %v1404, %v1423
    %v1450 = vmul.f32 %v1405, %v1423
    %v1451 = vmul.f32 %v1406, %v1423
    %v1452 = vmul.f32 %v1407, %v1423
    %v1453 = vmul.f32 %v1408, %v1423
    %v1454 = vmul.f32 %v1409, %v1423
    %v1455 = vmul.f32 %v1410, %v1423
    %v1456 = vmul.f32 %v1411, %v1423
    %v1457 = vmul.f32 %v1412, %v1423
    %v1458 = vmul.f32 %v1413, %v1423
    %v1459 = vmul.f32 %v1414, %v1423
    %v1460 = vmul.f32 %v1415, %v1423
    %v1461 = vmul.f32 %v1416, %v1423
    %v1462 = vmul.f32 %v1417, %v1423
    %v1463 = vmul.f32 %v1418, %v1423
    %v1464 = vmul.f32 %v1419, %v1423
    %v1465 = vmul.f32 %v1420, %v1423
    %v1466 = vmul.f32 %v1421, %v1423
    %v1467 = vlaneseq
    %v1468 = vshrl.u32 %v1467, 7
    %v1469 = vsub.s32 0, %v1468
    %v1470 = vrot.slane %v748, %v1469
    %v1471 = vadd.f32 %v1424, %v1470
    %v1472 = vadd.f32 %v1425, %v1470
    %v1473 = vadd.f32 %v1426, %v1470
    %v1474 = vadd.f32 %v1427, %v1470
    %v1475 = vadd.f32 %v1428, %v1470
    %v1476 = vadd.f32 %v1429, %v1470
    %v1477 = vadd.f32 %v1430, %v1470
    %v1478 = vadd.f32 %v1431, %v1470
    %v1479 = vadd.f32 %v1432, %v1470
    %v1480 = vadd.f32 %v1433, %v1470
    %v1481 = vadd.f32 %v1434, %v1470
    %v1482 = vadd.f32 %v1435, %v1470
    %v1483 = vadd.f32 %v1436, %v1470
    %v1484 = vadd.f32 %v1437, %v1470
    %v1485 = vadd.f32 %v1438, %v1470
    %v1486 = vadd.f32 %v1439, %v1470
    %v1487 = vadd.f32 %v1440, %v1470
    %v1488 = vadd.f32 %v1441, %v1470
    %v1489 = vadd.f32 %v1442, %v1470
    %v1490 = vadd.f32 %v1443, %v1470
    %v1491 = vadd.f32 %v1444, %v1470
    %v1492 = vadd.f32 %v1445, %v1470
    %v1493 = vadd.f32 %v1446, %v1470
    %v1494 = vadd.f32 %v1447, %v1470
    %v1495 = vadd.f32 %v1448, %v1470
    %v1496 = vadd.f32 %v1449, %v1470
    %v1497 = vadd.f32 %v1450, %v1470
    %v1498 = vadd.f32 %v1451, %v1470
    %v1499 = vadd.f32 %v1452, %v1470
    %v1500 = vadd.f32 %v1453, %v1470
    %v1501 = vadd.f32 %v1454, %v1470
    %v1502 = vadd.f32 %v1455, %v1470
    %v1503 = vadd.f32 %v1456, %v1470
    %v1504 = vadd.f32 %v1457, %v1470
    %v1505 = vadd.f32 %v1458, %v1470
    %v1506 = vadd.f32 %v1459, %v1470
    %v1507 = vadd.f32 %v1460, %v1470
    %v1508 = vadd.f32 %v1461, %v1470
    %v1509 = vadd.f32 %v1462, %v1470
    %v1510 = vadd.f32 %v1463, %v1470
    %v1511 = vadd.f32 %v1464, %v1470
    %v1512 = vadd.f32 %v1465, %v1470
    %v1513 = vadd.f32 %v1466, %v1470
    %vm1514 = vcmp.ge.f32.partialorder %v1471, 0.0
    %vm1515 = vcmp.ge.f32.partialorder %v1472, 0.0
    %vm1516 = vcmp.ge.f32.partialorder %v1473, 0.0
    %vm1517 = vcmp.ge.f32.partialorder %v1474, 0.0
    %vm1518 = vcmp.ge.f32.partialorder %v1475, 0.0
    %vm1519 = vcmp.ge.f32.partialorder %v1476, 0.0
    %vm1520 = vcmp.ge.f32.partialorder %v1477, 0.0
    %vm1521 = vcmp.ge.f32.partialorder %v1478, 0.0
    %vm1522 = vcmp.ge.f32.partialorder %v1479, 0.0
    %vm1523 = vcmp.ge.f32.partialorder %v1480, 0.0
    %vm1524 = vcmp.ge.f32.partialorder %v1481, 0.0
    %vm1525 = vcmp.ge.f32.partialorder %v1482, 0.0
    %vm1526 = vcmp.ge.f32.partialorder %v1483, 0.0
    %vm1527 = vcmp.ge.f32.partialorder %v1484, 0.0
    %vm1528 = vcmp.ge.f32.partialorder %v1485, 0.0
    %vm1529 = vcmp.ge.f32.partialorder %v1486, 0.0
    %vm1530 = vcmp.ge.f32.partialorder %v1487, 0.0
    %vm1531 = vcmp.ge.f32.partialorder %v1488, 0.0
    %vm1532 = vcmp.ge.f32.partialorder %v1489, 0.0
    %vm1533 = vcmp.ge.f32.partialorder %v1490, 0.0
    %vm1534 = vcmp.ge.f32.partialorder %v1491, 0.0
    %vm1535 = vcmp.ge.f32.partialorder %v1492, 0.0
    %vm1536 = vcmp.ge.f32.partialorder %v1493, 0.0
    %vm1537 = vcmp.ge.f32.partialorder %v1494, 0.0
    %vm1538 = vcmp.ge.f32.partialorder %v1495, 0.0
    %vm1539 = vcmp.ge.f32.partialorder %v1496, 0.0
    %vm1540 = vcmp.ge.f32.partialorder %v1497, 0.0
    %vm1541 = vcmp.ge.f32.partialorder %v1498, 0.0
    %vm1542 = vcmp.ge.f32.partialorder %v1499, 0.0
    %vm1543 = vcmp.ge.f32.partialorder %v1500, 0.0
    %vm1544 = vcmp.ge.f32.partialorder %v1501, 0.0
    %vm1545 = vcmp.ge.f32.partialorder %v1502, 0.0
    %vm1546 = vcmp.ge.f32.partialorder %v1503, 0.0
    %vm1547 = vcmp.ge.f32.partialorder %v1504, 0.0
    %vm1548 = vcmp.ge.f32.partialorder %v1505, 0.0
    %vm1549 = vcmp.ge.f32.partialorder %v1506, 0.0
    %vm1550 = vcmp.ge.f32.partialorder %v1507, 0.0
    %vm1551 = vcmp.ge.f32.partialorder %v1508, 0.0
    %vm1552 = vcmp.ge.f32.partialorder %v1509, 0.0
    %vm1553 = vcmp.ge.f32.partialorder %v1510, 0.0
    %vm1554 = vcmp.ge.f32.partialorder %v1511, 0.0
    %vm1555 = vcmp.ge.f32.partialorder %v1512, 0.0
    %vm1556 = vcmp.ge.f32.partialorder %v1513, 0.0
    %v1557 = vmul.f32 %v1471, 0.2
    %v1558 = vmul.f32 %v1472, 0.2
    %v1559 = vmul.f32 %v1473, 0.2
    %v1560 = vmul.f32 %v1474, 0.2
    %v1561 = vmul.f32 %v1475, 0.2
    %v1562 = vmul.f32 %v1476, 0.2
    %v1563 = vmul.f32 %v1477, 0.2
    %v1564 = vmul.f32 %v1478, 0.2
    %v1565 = vmul.f32 %v1479, 0.2
    %v1566 = vmul.f32 %v1480, 0.2
    %v1567 = vmul.f32 %v1481, 0.2
    %v1568 = vmul.f32 %v1482, 0.2
    %v1569 = vmul.f32 %v1483, 0.2
    %v1570 = vmul.f32 %v1484, 0.2
    %v1571 = vmul.f32 %v1485, 0.2
    %v1572 = vmul.f32 %v1486, 0.2
    %v1573 = vmul.f32 %v1487, 0.2
    %v1574 = vmul.f32 %v1488, 0.2
    %v1575 = vmul.f32 %v1489, 0.2
    %v1576 = vmul.f32 %v1490, 0.2
    %v1577 = vmul.f32 %v1491, 0.2
    %v1578 = vmul.f32 %v1492, 0.2
    %v1579 = vmul.f32 %v1493, 0.2
    %v1580 = vmul.f32 %v1494, 0.2
    %v1581 = vmul.f32 %v1495, 0.2
    %v1582 = vmul.f32 %v1496, 0.2
    %v1583 = vmul.f32 %v1497, 0.2
    %v1584 = vmul.f32 %v1498, 0.2
    %v1585 = vmul.f32 %v1499, 0.2
    %v1586 = vmul.f32 %v1500, 0.2
    %v1587 = vmul.f32 %v1501, 0.2
    %v1588 = vmul.f32 %v1502, 0.2
    %v1589 = vmul.f32 %v1503, 0.2
    %v1590 = vmul.f32 %v1504, 0.2
    %v1591 = vmul.f32 %v1505, 0.2
    %v1592 = vmul.f32 %v1506, 0.2
    %v1593 = vmul.f32 %v1507, 0.2
    %v1594 = vmul.f32 %v1508, 0.2
    %v1595 = vmul.f32 %v1509, 0.2
    %v1596 = vmul.f32 %v1510, 0.2
    %v1597 = vmul.f32 %v1511, 0.2
    %v1598 = vmul.f32 %v1512, 0.2
    %v1599 = vmul.f32 %v1513, 0.2
    %v1600 = vsel %vm1514, %v1471, %v1557
    %v1601 = vsel %vm1515, %v1472, %v1558
    %v1602 = vsel %vm1516, %v1473, %v1559
    %v1603 = vsel %vm1517, %v1474, %v1560
    %v1604 = vsel %vm1518, %v1475, %v1561
    %v1605 = vsel %vm1519, %v1476, %v1562
    %v1606 = vsel %vm1520, %v1477, %v1563
    %v1607 = vsel %vm1521, %v1478, %v1564
    %v1608 = vsel %vm1522, %v1479, %v1565
    %v1609 = vsel %vm1523, %v1480, %v1566
    %v1610 = vsel %vm1524, %v1481, %v1567
    %v1611 = vsel %vm1525, %v1482, %v1568
    %v1612 = vsel %vm1526, %v1483, %v1569
    %v1613 = vsel %vm1527, %v1484, %v1570
    %v1614 = vsel %vm1528, %v1485, %v1571
    %v1615 = vsel %vm1529, %v1486, %v1572
    %v1616 = vsel %vm1530, %v1487, %v1573
    %v1617 = vsel %vm1531, %v1488, %v1574
    %v1618 = vsel %vm1532, %v1489, %v1575
    %v1619 = vsel %vm1533, %v1490, %v1576
    %v1620 = vsel %vm1534, %v1491, %v1577
    %v1621 = vsel %vm1535, %v1492, %v1578
    %v1622 = vsel %vm1536, %v1493, %v1579
    %v1623 = vsel %vm1537, %v1494, %v1580
    %v1624 = vsel %vm1538, %v1495, %v1581
    %v1625 = vsel %vm1539, %v1496, %v1582
    %v1626 = vsel %vm1540, %v1497, %v1583
    %v1627 = vsel %vm1541, %v1498, %v1584
    %v1628 = vsel %vm1542, %v1499, %v1585
    %v1629 = vsel %vm1543, %v1500, %v1586
    %v1630 = vsel %vm1544, %v1501, %v1587
    %v1631 = vsel %vm1545, %v1502, %v1588
    %v1632 = vsel %vm1546, %v1503, %v1589
    %v1633 = vsel %vm1547, %v1504, %v1590
    %v1634 = vsel %vm1548, %v1505, %v1591
    %v1635 = vsel %vm1549, %v1506, %v1592
    %v1636 = vsel %vm1550, %v1507, %v1593
    %v1637 = vsel %vm1551, %v1508, %v1594
    %v1638 = vsel %vm1552, %v1509, %v1595
    %v1639 = vsel %vm1553, %v1510, %v1596
    %v1640 = vsel %vm1554, %v1511, %v1597
    %v1641 = vsel %vm1555, %v1512, %v1598
    %v1642 = vsel %vm1556, %v1513, %v1599
    %1643 = vst [vmem:[#allocation2] sm:$0xff] %v1600
    %1644 = vst [vmem:[#allocation2 + $0x8] sm:$0xff] %v1601
    %1645 = vst [vmem:[#allocation2 + $0x10] sm:$0xff] %v1602
    %1646 = vst [vmem:[#allocation2 + $0x18] sm:$0xff] %v1603
    %1647 = vst [vmem:[#allocation2 + $0x20] sm:$0xff] %v1604
    %1648 = vst [vmem:[#allocation2 + $0x28] sm:$0xff] %v1605
    %1649 = vst [vmem:[#allocation2 + $0x30] sm:$0xff] %v1606
    %1650 = vst [vmem:[#allocation2 + $0x38] sm:$0xff] %v1607
    %1651 = vst [vmem:[#allocation2 + $0x40] sm:$0xff] %v1608
    %1652 = vst [vmem:[#allocation2 + $0x48] sm:$0xff] %v1609
    %1653 = vst [vmem:[#allocation2 + $0x50] sm:$0xff] %v1610
    %1654 = vst [vmem:[#allocation2 + $0x58] sm:$0xff] %v1611
    %1655 = vst [vmem:[#allocation2 + $0x60] sm:$0xff] %v1612
    %1656 = vst [vmem:[#allocation2 + $0x68] sm:$0xff] %v1613
    %1657 = vst [vmem:[#allocation2 + $0x70] sm:$0xff] %v1614
    %1658 = vst [vmem:[#allocation2 + $0x78] sm:$0xff] %v1615
    %1659 = vst [vmem:[#allocation2 + $0x80] sm:$0xff] %v1616
    %1660 = vst [vmem:[#allocation2 + $0x88] sm:$0xff] %v1617
    %1661 = vst [vmem:[#allocation2 + $0x90] sm:$0xff] %v1618
    %1662 = vst [vmem:[#allocation2 + $0x98] sm:$0xff] %v1619
    %1663 = vst [vmem:[#allocation2 + $0xa0] sm:$0xff] %v1620
    %1664 = vst [vmem:[#allocation2 + $0xa8] sm:$0xff] %v1621
    %1665 = vst [vmem:[#allocation2 + $0xb0] sm:$0xff] %v1622
    %1666 = vst [vmem:[#allocation2 + $0xb8] sm:$0xff] %v1623
    %1667 = vst [vmem:[#allocation2 + $0xc0] sm:$0xff] %v1624
    %1668 = vst [vmem:[#allocation2 + $0xc8] sm:$0xff] %v1625
    %1669 = vst [vmem:[#allocation2 + $0xd0] sm:$0xff] %v1626
    %1670 = vst [vmem:[#allocation2 + $0xd8] sm:$0xff] %v1627
    %1671 = vst [vmem:[#allocation2 + $0xe0] sm:$0xff] %v1628
    %1672 = vst [vmem:[#allocation2 + $0xe8] sm:$0xff] %v1629
    %1673 = vst [vmem:[#allocation2 + $0xf0] sm:$0xff] %v1630
    %1674 = vst [vmem:[#allocation2 + $0xf8] sm:$0xff] %v1631
    %1675 = vst [vmem:[#allocation2 + $0x100] sm:$0xff] %v1632
    %1676 = vst [vmem:[#allocation2 + $0x108] sm:$0xff] %v1633
    %1677 = vst [vmem:[#allocation2 + $0x110] sm:$0xff] %v1634
    %1678 = vst [vmem:[#allocation2 + $0x118] sm:$0xff] %v1635
    %1679 = vst [vmem:[#allocation2 + $0x120] sm:$0xff] %v1636
    %1680 = vst [vmem:[#allocation2 + $0x128] sm:$0xff] %v1637
    %1681 = vst [vmem:[#allocation2 + $0x130] sm:$0xff] %v1638
    %1682 = vst [vmem:[#allocation2 + $0x138] sm:$0xff] %v1639
    %1683 = vst [vmem:[#allocation2 + $0x140] sm:$0xff] %v1640
    %1684 = vst [vmem:[#allocation2 + $0x148] sm:$0xff] %v1641
    %1685 = vst [vmem:[#allocation2 + $0x150] sm:$0x3] %v1642
    %1686 = vst [vmem:[#allocation3] sm:$0xff] 0.0
    %1687 = vst [vmem:[#allocation3 + $0x8] sm:$0xff] 0.0
    %1688 = vst [vmem:[#allocation3 + $0x10] sm:$0xff] 0.0
    %1689 = vst [vmem:[#allocation3 + $0x18] sm:$0xff] 0.0
    %1690 = vst [vmem:[#allocation3 + $0x20] sm:$0xff] 0.0
    %1691 = vst [vmem:[#allocation3 + $0x28] sm:$0xff] 0.0
    %1692 = vst [vmem:[#allocation3 + $0x30] sm:$0xff] 0.0
    %1693 = vst [vmem:[#allocation3 + $0x38] sm:$0xff] 0.0
    %1694 = vst [vmem:[#allocation3 + $0x40] sm:$0xff] 0.0
    %1695 = vst [vmem:[#allocation3 + $0x48] sm:$0xff] 0.0
    %1696 = vst [vmem:[#allocation3 + $0x50] sm:$0xff] 0.0
    %1697 = vst [vmem:[#allocation3 + $0x58] sm:$0xff] 0.0
    %1698 = vst [vmem:[#allocation3 + $0x60] sm:$0xff] 0.0
    %1699 = vst [vmem:[#allocation3 + $0x68] sm:$0xff] 0.0
    %1700 = vst [vmem:[#allocation3 + $0x70] sm:$0xff] 0.0
    %1701 = vst [vmem:[#allocation3 + $0x78] sm:$0xff] 0.0
    %1702 = vst [vmem:[#allocation3 + $0x80] sm:$0xff] 0.0
    %1703 = vst [vmem:[#allocation3 + $0x88] sm:$0xff] 0.0
    %1704 = vst [vmem:[#allocation3 + $0x90] sm:$0xff] 0.0
    %1705 = vst [vmem:[#allocation3 + $0x98] sm:$0xff] 0.0
    %1706 = vst [vmem:[#allocation3 + $0xa0] sm:$0xff] 0.0
    %1707 = vst [vmem:[#allocation3 + $0xa8] sm:$0xff] 0.0
    %1708 = vst [vmem:[#allocation3 + $0xb0] sm:$0xff] 0.0
    %1709 = vst [vmem:[#allocation3 + $0xb8] sm:$0xff] 0.0
    %1710 = vst [vmem:[#allocation3 + $0xc0] sm:$0xff] 0.0
    %1711 = vst [vmem:[#allocation3 + $0xc8] sm:$0xff] 0.0
    %1712 = vst [vmem:[#allocation3 + $0xd0] sm:$0xff] 0.0
    %1713 = vst [vmem:[#allocation3 + $0xd8] sm:$0xff] 0.0
    %1714 = vst [vmem:[#allocation3 + $0xe0] sm:$0xff] 0.0
    %1715 = vst [vmem:[#allocation3 + $0xe8] sm:$0xff] 0.0
    %1716 = vst [vmem:[#allocation3 + $0xf0] sm:$0xff] 0.0
    %1717 = vst [vmem:[#allocation3 + $0xf8] sm:$0xff] 0.0
    %1718 = vst [vmem:[#allocation3 + $0x100] sm:$0xff] 0.0
    %1719 = vst [vmem:[#allocation3 + $0x108] sm:$0xff] 0.0
    %1720 = vst [vmem:[#allocation3 + $0x110] sm:$0xff] 0.0
    %1721 = vst [vmem:[#allocation3 + $0x118] sm:$0xff] 0.0
    %1722 = vst [vmem:[#allocation3 + $0x120] sm:$0xff] 0.0
    %1723 = vst [vmem:[#allocation3 + $0x128] sm:$0xff] 0.0
    %1724 = vst [vmem:[#allocation3 + $0x130] sm:$0xff] 0.0
    %1725 = vst [vmem:[#allocation3 + $0x138] sm:$0xff] 0.0
    %1726 = vst [vmem:[#allocation3 + $0x140] sm:$0xff] 0.0
    %1727 = vst [vmem:[#allocation3 + $0x148] sm:$0xff] 0.0
    %1728 = vst [vmem:[#allocation3 + $0x150] sm:$0xff] 0.0
    %1729 = vst [vmem:[#allocation3 + $0x158] sm:$0xff] 0.0
    %1730 = vst [vmem:[#allocation3 + $0x160] sm:$0xff] 0.0
    %1731 = vst [vmem:[#allocation3 + $0x168] sm:$0xff] 0.0
    %1732 = vst [vmem:[#allocation3 + $0x170] sm:$0xff] 0.0
    %1733 = vst [vmem:[#allocation3 + $0x178] sm:$0xff] 0.0
    %1734 = vst [vmem:[#allocation3 + $0x180] sm:$0xff] 0.0
    %1735 = vst [vmem:[#allocation3 + $0x188] sm:$0xff] 0.0
    %1736 = vst [vmem:[#allocation3 + $0x190] sm:$0xff] 0.0
    %1737 = vst [vmem:[#allocation3 + $0x198] sm:$0xff] 0.0
    %1738 = vst [vmem:[#allocation3 + $0x1a0] sm:$0xff] 0.0
    %1739 = vst [vmem:[#allocation3 + $0x1a8] sm:$0xff] 0.0
    %1740 = vst [vmem:[#allocation3 + $0x1b0] sm:$0xff] 0.0
    %1741 = vst [vmem:[#allocation3 + $0x1b8] sm:$0xff] 0.0
    %1742 = vst [vmem:[#allocation3 + $0x1c0] sm:$0xff] 0.0
    %1743 = vst [vmem:[#allocation3 + $0x1c8] sm:$0xff] 0.0
    %1744 = vst [vmem:[#allocation3 + $0x1d0] sm:$0xff] 0.0
    %1745 = vst [vmem:[#allocation3 + $0x1d8] sm:$0xff] 0.0
    %1746 = vst [vmem:[#allocation3 + $0x1e0] sm:$0xff] 0.0
    %1747 = vst [vmem:[#allocation3 + $0x1e8] sm:$0xff] 0.0
    %1748 = vst [vmem:[#allocation3 + $0x1f0] sm:$0xff] 0.0
    %1749 = vst [vmem:[#allocation3 + $0x1f8] sm:$0xff] 0.0
    %1750 = vst [vmem:[#allocation3 + $0x200] sm:$0xff] 0.0
    %1751 = vst [vmem:[#allocation3 + $0x208] sm:$0xff] 0.0
    %1752 = vst [vmem:[#allocation3 + $0x210] sm:$0xff] 0.0
    %1753 = vst [vmem:[#allocation3 + $0x218] sm:$0xff] 0.0
    %1754 = vst [vmem:[#allocation3 + $0x220] sm:$0xff] 0.0
    %1755 = vst [vmem:[#allocation3 + $0x228] sm:$0xff] 0.0
    %1756 = vst [vmem:[#allocation3 + $0x230] sm:$0xff] 0.0
    %1757 = vst [vmem:[#allocation3 + $0x238] sm:$0xff] 0.0
    %1758 = vst [vmem:[#allocation3 + $0x240] sm:$0xff] 0.0
    %1759 = vst [vmem:[#allocation3 + $0x248] sm:$0xff] 0.0
    %1760 = vst [vmem:[#allocation3 + $0x250] sm:$0xff] 0.0
    %1761 = vst [vmem:[#allocation3 + $0x258] sm:$0xff] 0.0
    %1762 = vst [vmem:[#allocation3 + $0x260] sm:$0xff] 0.0
    %1763 = vst [vmem:[#allocation3 + $0x268] sm:$0xff] 0.0
    %1764 = vst [vmem:[#allocation3 + $0x270] sm:$0xff] 0.0
    %1765 = vst [vmem:[#allocation3 + $0x278] sm:$0xff] 0.0
    %1766 = vst [vmem:[#allocation3 + $0x280] sm:$0xff] 0.0
    %1767 = vst [vmem:[#allocation3 + $0x288] sm:$0xff] 0.0
    %1768 = vst [vmem:[#allocation3 + $0x290] sm:$0xff] 0.0
    %1769 = vst [vmem:[#allocation3 + $0x298] sm:$0xff] 0.0
    %1770 = vst [vmem:[#allocation3 + $0x2a0] sm:$0xff] 0.0
    %1771 = vst [vmem:[#allocation3 + $0x2a8] sm:$0xff] 0.0
    %1772 = vst [vmem:[#allocation3 + $0x2b0] sm:$0xff] 0.0
    %1773 = vst [vmem:[#allocation3 + $0x2b8] sm:$0xff] 0.0
    %1774 = vst [vmem:[#allocation3 + $0x2c0] sm:$0xff] 0.0
    %1775 = vst [vmem:[#allocation3 + $0x2c8] sm:$0xff] 0.0
    %1776 = vst [vmem:[#allocation3 + $0x2d0] sm:$0xff] 0.0
    %1777 = vst [vmem:[#allocation3 + $0x2d8] sm:$0xff] 0.0
    %1778 = vst [vmem:[#allocation3 + $0x2e0] sm:$0xff] 0.0
    %1779 = vst [vmem:[#allocation3 + $0x2e8] sm:$0xff] 0.0
    %1780 = vst [vmem:[#allocation3 + $0x2f0] sm:$0xff] 0.0
    %1781 = vst [vmem:[#allocation3 + $0x2f8] sm:$0xff] 0.0
    %1782 = vst [vmem:[#allocation3 + $0x300] sm:$0xff] 0.0
    %1783 = vst [vmem:[#allocation3 + $0x308] sm:$0xff] 0.0
    %1784 = vst [vmem:[#allocation3 + $0x310] sm:$0xff] 0.0
    %1785 = vst [vmem:[#allocation3 + $0x318] sm:$0xff] 0.0
    %1786 = vst [vmem:[#allocation3 + $0x320] sm:$0xff] 0.0
    %1787 = vst [vmem:[#allocation3 + $0x328] sm:$0xff] 0.0
    %1788 = vst [vmem:[#allocation3 + $0x330] sm:$0xff] 0.0
    %1789 = vst [vmem:[#allocation3 + $0x338] sm:$0xff] 0.0
    %1790 = vst [vmem:[#allocation3 + $0x340] sm:$0xff] 0.0
    %1791 = vst [vmem:[#allocation3 + $0x348] sm:$0xff] 0.0
    %1792 = vst [vmem:[#allocation3 + $0x350] sm:$0xff] 0.0
    %1793 = vst [vmem:[#allocation3 + $0x358] sm:$0xff] 0.0
    %1794 = vst [vmem:[#allocation3 + $0x360] sm:$0xff] 0.0
    %1795 = vst [vmem:[#allocation3 + $0x368] sm:$0xff] 0.0
    %1796 = vst [vmem:[#allocation3 + $0x370] sm:$0xff] 0.0
    %1797 = vst [vmem:[#allocation3 + $0x378] sm:$0xff] 0.0
    %1798 = vst [vmem:[#allocation3 + $0x380] sm:$0xff] 0.0
    %1799 = vst [vmem:[#allocation3 + $0x388] sm:$0xff] 0.0
    %1800 = vst [vmem:[#allocation3 + $0x390] sm:$0xff] 0.0
    %1801 = vst [vmem:[#allocation3 + $0x398] sm:$0xff] 0.0
    %1802 = vst [vmem:[#allocation3 + $0x3a0] sm:$0xff] 0.0
    %1803 = vst [vmem:[#allocation3 + $0x3a8] sm:$0xff] 0.0
    %1804 = vst [vmem:[#allocation3 + $0x3b0] sm:$0xff] 0.0
    %1805 = vst [vmem:[#allocation3 + $0x3b8] sm:$0xff] 0.0
    %1806 = vst [vmem:[#allocation3 + $0x3c0] sm:$0xff] 0.0
    %1807 = vst [vmem:[#allocation3 + $0x3c8] sm:$0xff] 0.0
    %1808 = vst [vmem:[#allocation3 + $0x3d0] sm:$0xff] 0.0
    %1809 = vst [vmem:[#allocation3 + $0x3d8] sm:$0xff] 0.0
    %1810 = vst [vmem:[#allocation3 + $0x3e0] sm:$0xff] 0.0
    %1811 = vst [vmem:[#allocation3 + $0x3e8] sm:$0xff] 0.0
    %1812 = vst [vmem:[#allocation3 + $0x3f0] sm:$0xff] 0.0
    %1813 = vst [vmem:[#allocation3 + $0x3f8] sm:$0xff] 0.0
    %1814 = vst [vmem:[#allocation3 + $0x400] sm:$0xff] 0.0
    %1815 = vst [vmem:[#allocation3 + $0x408] sm:$0xff] 0.0
    %1816 = vst [vmem:[#allocation3 + $0x410] sm:$0xff] 0.0
    %1817 = vst [vmem:[#allocation3 + $0x418] sm:$0xff] 0.0
    %1818 = vst [vmem:[#allocation3 + $0x420] sm:$0xff] 0.0
    %1819 = vst [vmem:[#allocation3 + $0x428] sm:$0xff] 0.0
    %1820 = vst [vmem:[#allocation3 + $0x430] sm:$0xff] 0.0
    %1821 = vst [vmem:[#allocation3 + $0x438] sm:$0xff] 0.0
    %1822 = vst [vmem:[#allocation3 + $0x440] sm:$0xff] 0.0
    %1823 = vst [vmem:[#allocation3 + $0x448] sm:$0xff] 0.0
    %1824 = vst [vmem:[#allocation3 + $0x450] sm:$0xff] 0.0
    %1825 = vst [vmem:[#allocation3 + $0x458] sm:$0xff] 0.0
    %1826 = vst [vmem:[#allocation3 + $0x460] sm:$0xff] 0.0
    %1827 = vst [vmem:[#allocation3 + $0x468] sm:$0xff] 0.0
    %1828 = vst [vmem:[#allocation3 + $0x470] sm:$0xff] 0.0
    %1829 = vst [vmem:[#allocation3 + $0x478] sm:$0xff] 0.0
    %1830 = vst [vmem:[#allocation3 + $0x480] sm:$0xff] 0.0
    %1831 = vst [vmem:[#allocation3 + $0x488] sm:$0xff] 0.0
    %1832 = vst [vmem:[#allocation3 + $0x490] sm:$0xff] 0.0
    %1833 = vst [vmem:[#allocation3 + $0x498] sm:$0xff] 0.0
    %1834 = vst [vmem:[#allocation3 + $0x4a0] sm:$0xff] 0.0
    %1835 = vst [vmem:[#allocation3 + $0x4a8] sm:$0xff] 0.0
    %1836 = vst [vmem:[#allocation3 + $0x4b0] sm:$0xff] 0.0
    %1837 = vst [vmem:[#allocation3 + $0x4b8] sm:$0xff] 0.0
    %1838 = vst [vmem:[#allocation3 + $0x4c0] sm:$0xff] 0.0
    %1839 = vst [vmem:[#allocation3 + $0x4c8] sm:$0xff] 0.0
    %1840 = vst [vmem:[#allocation3 + $0x4d0] sm:$0xff] 0.0
    %1841 = vst [vmem:[#allocation3 + $0x4d8] sm:$0xff] 0.0
    %1842 = vst [vmem:[#allocation3 + $0x4e0] sm:$0xff] 0.0
    %1843 = vst [vmem:[#allocation3 + $0x4e8] sm:$0xff] 0.0
    %1844 = vst [vmem:[#allocation3 + $0x4f0] sm:$0xff] 0.0
    %1845 = vst [vmem:[#allocation3 + $0x4f8] sm:$0xff] 0.0
    %v1846 = vld [vmem:[#allocation2] sm:$0x1f]
    %1847 = vst [vmem:[#allocation3] sm:$0x1f] %v1846
    %v1848 = vld [vmem:[#allocation2 + $0x7] sm:$0x1f]
    %1849 = vst [vmem:[#allocation3 + $0x80] sm:$0x1f] %v1848
    %v1850 = vld [vmem:[#allocation2 + $0xe] sm:$0x1f]
    %1851 = vst [vmem:[#allocation3 + $0x100] sm:$0x1f] %v1850
    %v1852 = vld [vmem:[#allocation2 + $0x15] sm:$0x1f]
    %1853 = vst [vmem:[#allocation3 + $0x180] sm:$0x1f] %v1852
    %v1854 = vld [vmem:[#allocation2 + $0x1c] sm:$0x1f]
    %1855 = vst [vmem:[#allocation3 + $0x200] sm:$0x1f] %v1854
    %v1856 = vld [vmem:[#allocation2 + $0x31] sm:$0x1f]
    %1857 = vst [vmem:[#allocation3 + $0x280] sm:$0x1f] %v1856
    %v1858 = vld [vmem:[#allocation2 + $0x38] sm:$0x1f]
    %1859 = vst [vmem:[#allocation3 + $0x300] sm:$0x1f] %v1858
    %v1860 = vld [vmem:[#allocation2 + $0x3f] sm:$0x1f]
    %1861 = vst [vmem:[#allocation3 + $0x380] sm:$0x1f] %v1860
    %v1862 = vld [vmem:[#allocation2 + $0x46] sm:$0x1f]
    %1863 = vst [vmem:[#allocation3 + $0x400] sm:$0x1f] %v1862
    %v1864 = vld [vmem:[#allocation2 + $0x4d] sm:$0x1f]
    %1865 = vst [vmem:[#allocation3 + $0x480] sm:$0x1f] %v1864
    %v1866 = vld [vmem:[#allocation2 + $0x62] sm:$0x1f]
    %1867 = vst [vmem:[#allocation3 + $0x8] sm:$0x1f] %v1866
    %v1868 = vld [vmem:[#allocation2 + $0x68] sm:$0x1f]
    %1869 = vst [vmem:[#allocation3 + $0x88] sm:$0x1f] %v1868
    %v1870 = vld [vmem:[#allocation2 + $0x6e] sm:$0x1f]
    %1871 = vst [vmem:[#allocation3 + $0x108] sm:$0x1f] %v1870
    %v1872 = vld [vmem:[#allocation2 + $0x74] sm:$0x1f]
    %1873 = vst [vmem:[#allocation3 + $0x188] sm:$0x1f] %v1872
    %v1874 = vld [vmem:[#allocation2 + $0x7a] sm:$0x1f]
    %1875 = vst [vmem:[#allocation3 + $0x208] sm:$0x1f] %v1874
    %v1876 = vld [vmem:[#allocation2 + $0x8c] sm:$0x1f]
    %1877 = vst [vmem:[#allocation3 + $0x288] sm:$0x1f] %v1876
    %v1878 = vld [vmem:[#allocation2 + $0x92] sm:$0x1f]
    %1879 = vst [vmem:[#allocation3 + $0x308] sm:$0x1f] %v1878
    %v1880 = vld [vmem:[#allocation2 + $0x98] sm:$0x1f]
    %1881 = vst [vmem:[#allocation3 + $0x388] sm:$0x1f] %v1880
    %v1882 = vld [vmem:[#allocation2 + $0x9e] sm:$0x1f]
    %1883 = vst [vmem:[#allocation3 + $0x408] sm:$0x1f] %v1882
    %v1884 = vld [vmem:[#allocation2 + $0xa4] sm:$0x1f]
    %1885 = vst [vmem:[#allocation3 + $0x488] sm:$0x1f] %v1884
    %v1886 = vld [vmem:[#allocation2 + $0x1] sm:$0x1f]
    %1887 = vst [vmem:[#allocation3 + $0x10] sm:$0x1f] %v1886
    %v1888 = vld [vmem:[#allocation2 + $0x8] sm:$0x1f]
    %1889 = vst [vmem:[#allocation3 + $0x90] sm:$0x1f] %v1888
    %v1890 = vld [vmem:[#allocation2 + $0xf] sm:$0x1f]
    %1891 = vst [vmem:[#allocation3 + $0x110] sm:$0x1f] %v1890
    %v1892 = vld [vmem:[#allocation2 + $0x16] sm:$0x1f]
    %1893 = vst [vmem:[#allocation3 + $0x190] sm:$0x1f] %v1892
    %v1894 = vld [vmem:[#allocation2 + $0x1d] sm:$0x1f]
    %1895 = vst [vmem:[#allocation3 + $0x210] sm:$0x1f] %v1894
    %v1896 = vld [vmem:[#allocation2 + $0x32] sm:$0x1f]
    %1897 = vst [vmem:[#allocation3 + $0x290] sm:$0x1f] %v1896
    %v1898 = vld [vmem:[#allocation2 + $0x39] sm:$0x1f]
    %1899 = vst [vmem:[#allocation3 + $0x310] sm:$0x1f] %v1898
    %v1900 = vld [vmem:[#allocation2 + $0x40] sm:$0x1f]
    %1901 = vst [vmem:[#allocation3 + $0x390] sm:$0x1f] %v1900
    %v1902 = vld [vmem:[#allocation2 + $0x47] sm:$0x1f]
    %1903 = vst [vmem:[#allocation3 + $0x410] sm:$0x1f] %v1902
    %v1904 = vld [vmem:[#allocation2 + $0x4e] sm:$0x1f]
    %1905 = vst [vmem:[#allocation3 + $0x490] sm:$0x1f] %v1904
    %v1906 = vld [vmem:[#allocation2 + $0x63] sm:$0x1f]
    %1907 = vst [vmem:[#allocation3 + $0x18] sm:$0x1f] %v1906
    %v1908 = vld [vmem:[#allocation2 + $0x69] sm:$0x1f]
    %1909 = vst [vmem:[#allocation3 + $0x98] sm:$0x1f] %v1908
    %v1910 = vld [vmem:[#allocation2 + $0x6f] sm:$0x1f]
    %1911 = vst [vmem:[#allocation3 + $0x118] sm:$0x1f] %v1910
    %v1912 = vld [vmem:[#allocation2 + $0x75] sm:$0x1f]
    %1913 = vst [vmem:[#allocation3 + $0x198] sm:$0x1f] %v1912
    %v1914 = vld [vmem:[#allocation2 + $0x7b] sm:$0x1f]
    %1915 = vst [vmem:[#allocation3 + $0x218] sm:$0x1f] %v1914
    %v1916 = vld [vmem:[#allocation2 + $0x8d] sm:$0x1f]
    %1917 = vst [vmem:[#allocation3 + $0x298] sm:$0x1f] %v1916
    %v1918 = vld [vmem:[#allocation2 + $0x93] sm:$0x1f]
    %1919 = vst [vmem:[#allocation3 + $0x318] sm:$0x1f] %v1918
    %v1920 = vld [vmem:[#allocation2 + $0x99] sm:$0x1f]
    %1921 = vst [vmem:[#allocation3 + $0x398] sm:$0x1f] %v1920
    %v1922 = vld [vmem:[#allocation2 + $0x9f] sm:$0x1f]
    %1923 = vst [vmem:[#allocation3 + $0x418] sm:$0x1f] %v1922
    %v1924 = vld [vmem:[#allocation2 + $0xa5] sm:$0x1f]
    %1925 = vst [vmem:[#allocation3 + $0x498] sm:$0x1f] %v1924
    %v1926 = vld [vmem:[#allocation2 + $0xb6] sm:$0x1f]
    %1927 = vst [vmem:[#allocation3 + $0x20] sm:$0x1f] %v1926
    %v1928 = vld [vmem:[#allocation2 + $0xbd] sm:$0x1f]
    %1929 = vst [vmem:[#allocation3 + $0xa0] sm:$0x1f] %v1928
    %v1930 = vld [vmem:[#allocation2 + $0xc4] sm:$0x1f]
    %1931 = vst [vmem:[#allocation3 + $0x120] sm:$0x1f] %v1930
    %v1932 = vld [vmem:[#allocation2 + $0xcb] sm:$0x1f]
    %1933 = vst [vmem:[#allocation3 + $0x1a0] sm:$0x1f] %v1932
    %v1934 = vld [vmem:[#allocation2 + $0xd2] sm:$0x1f]
    %1935 = vst [vmem:[#allocation3 + $0x220] sm:$0x1f] %v1934
    %v1936 = vld [vmem:[#allocation2 + $0xe0] sm:$0x1f]
    %1937 = vst [vmem:[#allocation3 + $0x2a0] sm:$0x1f] %v1936
    %v1938 = vld [vmem:[#allocation2 + $0xe7] sm:$0x1f]
    %1939 = vst [vmem:[#allocation3 + $0x320] sm:$0x1f] %v1938
    %v1940 = vld [vmem:[#allocation2 + $0xee] sm:$0x1f]
    %1941 = vst [vmem:[#allocation3 + $0x3a0] sm:$0x1f] %v1940
    %v1942 = vld [vmem:[#allocation2 + $0xf5] sm:$0x1f]
    %1943 = vst [vmem:[#allocation3 + $0x420] sm:$0x1f] %v1942
    %v1944 = vld [vmem:[#allocation2 + $0xfc] sm:$0x1f]
    %1945 = vst [vmem:[#allocation3 + $0x4a0] sm:$0x1f] %v1944
    %v1946 = vld [vmem:[#allocation2 + $0x10a] sm:$0x1f]
    %1947 = vst [vmem:[#allocation3 + $0x28] sm:$0x1f] %v1946
    %v1948 = vld [vmem:[#allocation2 + $0x110] sm:$0x1f]
    %1949 = vst [vmem:[#allocation3 + $0xa8] sm:$0x1f] %v1948
    %v1950 = vld [vmem:[#allocation2 + $0x116] sm:$0x1f]
    %1951 = vst [vmem:[#allocation3 + $0x128] sm:$0x1f] %v1950
    %v1952 = vld [vmem:[#allocation2 + $0x11c] sm:$0x1f]
    %1953 = vst [vmem:[#allocation3 + $0x1a8] sm:$0x1f] %v1952
    %v1954 = vld [vmem:[#allocation2 + $0x122] sm:$0x1f]
    %1955 = vst [vmem:[#allocation3 + $0x228] sm:$0x1f] %v1954
    %v1956 = vld [vmem:[#allocation2 + $0x12e] sm:$0x1f]
    %1957 = vst [vmem:[#allocation3 + $0x2a8] sm:$0x1f] %v1956
    %v1958 = vld [vmem:[#allocation2 + $0x134] sm:$0x1f]
    %1959 = vst [vmem:[#allocation3 + $0x328] sm:$0x1f] %v1958
    %v1960 = vld [vmem:[#allocation2 + $0x13a] sm:$0x1f]
    %1961 = vst [vmem:[#allocation3 + $0x3a8] sm:$0x1f] %v1960
    %v1962 = vld [vmem:[#allocation2 + $0x140] sm:$0x1f]
    %1963 = vst [vmem:[#allocation3 + $0x428] sm:$0x1f] %v1962
    %v1964 = vld [vmem:[#allocation2 + $0x146] sm:$0x1f]
    %1965 = vst [vmem:[#allocation3 + $0x4a8] sm:$0x1f] %v1964
    %v1966 = vld [vmem:[#allocation2 + $0xb7] sm:$0x1f]
    %1967 = vst [vmem:[#allocation3 + $0x30] sm:$0x1f] %v1966
    %v1968 = vld [vmem:[#allocation2 + $0xbe] sm:$0x1f]
    %1969 = vst [vmem:[#allocation3 + $0xb0] sm:$0x1f] %v1968
    %v1970 = vld [vmem:[#allocation2 + $0xc5] sm:$0x1f]
    %1971 = vst [vmem:[#allocation3 + $0x130] sm:$0x1f] %v1970
    %v1972 = vld [vmem:[#allocation2 + $0xcc] sm:$0x1f]
    %1973 = vst [vmem:[#allocation3 + $0x1b0] sm:$0x1f] %v1972
    %v1974 = vld [vmem:[#allocation2 + $0xd3] sm:$0x1f]
    %1975 = vst [vmem:[#allocation3 + $0x230] sm:$0x1f] %v1974
    %v1976 = vld [vmem:[#allocation2 + $0xe1] sm:$0x1f]
    %1977 = vst [vmem:[#allocation3 + $0x2b0] sm:$0x1f] %v1976
    %v1978 = vld [vmem:[#allocation2 + $0xe8] sm:$0x1f]
    %1979 = vst [vmem:[#allocation3 + $0x330] sm:$0x1f] %v1978
    %v1980 = vld [vmem:[#allocation2 + $0xef] sm:$0x1f]
    %1981 = vst [vmem:[#allocation3 + $0x3b0] sm:$0x1f] %v1980
    %v1982 = vld [vmem:[#allocation2 + $0xf6] sm:$0x1f]
    %1983 = vst [vmem:[#allocation3 + $0x430] sm:$0x1f] %v1982
    %v1984 = vld [vmem:[#allocation2 + $0xfd] sm:$0x1f]
    %1985 = vst [vmem:[#allocation3 + $0x4b0] sm:$0x1f] %v1984
    %v1986 = vld [vmem:[#allocation2 + $0x10b] sm:$0x1f]
    %1987 = vst [vmem:[#allocation3 + $0x38] sm:$0x1f] %v1986
    %v1988 = vld [vmem:[#allocation2 + $0x111] sm:$0x1f]
    %1989 = vst [vmem:[#allocation3 + $0xb8] sm:$0x1f] %v1988
    %v1990 = vld [vmem:[#allocation2 + $0x117] sm:$0x1f]
    %1991 = vst [vmem:[#allocation3 + $0x138] sm:$0x1f] %v1990
    %v1992 = vld [vmem:[#allocation2 + $0x11d] sm:$0x1f]
    %1993 = vst [vmem:[#allocation3 + $0x1b8] sm:$0x1f] %v1992
    %v1994 = vld [vmem:[#allocation2 + $0x123] sm:$0x1f]
    %1995 = vst [vmem:[#allocation3 + $0x238] sm:$0x1f] %v1994
    %v1996 = vld [vmem:[#allocation2 + $0x12f] sm:$0x1f]
    %1997 = vst [vmem:[#allocation3 + $0x2b8] sm:$0x1f] %v1996
    %v1998 = vld [vmem:[#allocation2 + $0x135] sm:$0x1f]
    %1999 = vst [vmem:[#allocation3 + $0x338] sm:$0x1f] %v1998
    %v2000 = vld [vmem:[#allocation2 + $0x13b] sm:$0x1f]
    %2001 = vst [vmem:[#allocation3 + $0x3b8] sm:$0x1f] %v2000
    %v2002 = vld [vmem:[#allocation2 + $0x141] sm:$0x1f]
    %2003 = vst [vmem:[#allocation3 + $0x438] sm:$0x1f] %v2002
    %v2004 = vld [vmem:[#allocation2 + $0x147] sm:$0x1f]
    %2005 = vst [vmem:[#allocation3 + $0x4b8] sm:$0x1f] %v2004
    %v2006 = vld [vmem:[#allocation2 + $0x7] sm:$0x1f]
    %2007 = vst [vmem:[#allocation3 + $0x40] sm:$0x1f] %v2006
    %v2008 = vld [vmem:[#allocation2 + $0xe] sm:$0x1f]
    %2009 = vst [vmem:[#allocation3 + $0xc0] sm:$0x1f] %v2008
    %v2010 = vld [vmem:[#allocation2 + $0x15] sm:$0x1f]
    %2011 = vst [vmem:[#allocation3 + $0x140] sm:$0x1f] %v2010
    %v2012 = vld [vmem:[#allocation2 + $0x1c] sm:$0x1f]
    %2013 = vst [vmem:[#allocation3 + $0x1c0] sm:$0x1f] %v2012
    %v2014 = vld [vmem:[#allocation2 + $0x23] sm:$0x1f]
    %2015 = vst [vmem:[#allocation3 + $0x240] sm:$0x1f] %v2014
    %v2016 = vld [vmem:[#allocation2 + $0x38] sm:$0x1f]
    %2017 = vst [vmem:[#allocation3 + $0x2c0] sm:$0x1f] %v2016
    %v2018 = vld [vmem:[#allocation2 + $0x3f] sm:$0x1f]
    %2019 = vst [vmem:[#allocation3 + $0x340] sm:$0x1f] %v2018
    %v2020 = vld [vmem:[#allocation2 + $0x46] sm:$0x1f]
    %2021 = vst [vmem:[#allocation3 + $0x3c0] sm:$0x1f] %v2020
    %v2022 = vld [vmem:[#allocation2 + $0x4d] sm:$0x1f]
    %2023 = vst [vmem:[#allocation3 + $0x440] sm:$0x1f] %v2022
    %v2024 = vld [vmem:[#allocation2 + $0x54] sm:$0x1f]
    %2025 = vst [vmem:[#allocation3 + $0x4c0] sm:$0x1f] %v2024
    %v2026 = vld [vmem:[#allocation2 + $0x68] sm:$0x1f]
    %2027 = vst [vmem:[#allocation3 + $0x48] sm:$0x1f] %v2026
    %v2028 = vld [vmem:[#allocation2 + $0x6e] sm:$0x1f]
    %2029 = vst [vmem:[#allocation3 + $0xc8] sm:$0x1f] %v2028
    %v2030 = vld [vmem:[#allocation2 + $0x74] sm:$0x1f]
    %2031 = vst [vmem:[#allocation3 + $0x148] sm:$0x1f] %v2030
    %v2032 = vld [vmem:[#allocation2 + $0x7a] sm:$0x1f]
    %2033 = vst [vmem:[#allocation3 + $0x1c8] sm:$0x1f] %v2032
    %v2034 = vld [vmem:[#allocation2 + $0x80] sm:$0x1f]
    %2035 = vst [vmem:[#allocation3 + $0x248] sm:$0x1f] %v2034
    %v2036 = vld [vmem:[#allocation2 + $0x92] sm:$0x1f]
    %2037 = vst [vmem:[#allocation3 + $0x2c8] sm:$0x1f] %v2036
    %v2038 = vld [vmem:[#allocation2 + $0x98] sm:$0x1f]
    %2039 = vst [vmem:[#allocation3 + $0x348] sm:$0x1f] %v2038
    %v2040 = vld [vmem:[#allocation2 + $0x9e] sm:$0x1f]
    %2041 = vst [vmem:[#allocation3 + $0x3c8] sm:$0x1f] %v2040
    %v2042 = vld [vmem:[#allocation2 + $0xa4] sm:$0x1f]
    %2043 = vst [vmem:[#allocation3 + $0x448] sm:$0x1f] %v2042
    %v2044 = vld [vmem:[#allocation2 + $0xaa] sm:$0x1f]
    %2045 = vst [vmem:[#allocation3 + $0x4c8] sm:$0x1f] %v2044
    %v2046 = vld [vmem:[#allocation2 + $0x8] sm:$0x1f]
    %2047 = vst [vmem:[#allocation3 + $0x50] sm:$0x1f] %v2046
    %v2048 = vld [vmem:[#allocation2 + $0xf] sm:$0x1f]
    %2049 = vst [vmem:[#allocation3 + $0xd0] sm:$0x1f] %v2048
    %v2050 = vld [vmem:[#allocation2 + $0x16] sm:$0x1f]
    %2051 = vst [vmem:[#allocation3 + $0x150] sm:$0x1f] %v2050
    %v2052 = vld [vmem:[#allocation2 + $0x1d] sm:$0x1f]
    %2053 = vst [vmem:[#allocation3 + $0x1d0] sm:$0x1f] %v2052
    %v2054 = vld [vmem:[#allocation2 + $0x24] sm:$0x1f]
    %2055 = vst [vmem:[#allocation3 + $0x250] sm:$0x1f] %v2054
    %v2056 = vld [vmem:[#allocation2 + $0x39] sm:$0x1f]
    %2057 = vst [vmem:[#allocation3 + $0x2d0] sm:$0x1f] %v2056
    %v2058 = vld [vmem:[#allocation2 + $0x40] sm:$0x1f]
    %2059 = vst [vmem:[#allocation3 + $0x350] sm:$0x1f] %v2058
    %v2060 = vld [vmem:[#allocation2 + $0x47] sm:$0x1f]
    %2061 = vst [vmem:[#allocation3 + $0x3d0] sm:$0x1f] %v2060
    %v2062 = vld [vmem:[#allocation2 + $0x4e] sm:$0x1f]
    %2063 = vst [vmem:[#allocation3 + $0x450] sm:$0x1f] %v2062
    %v2064 = vld [vmem:[#allocation2 + $0x55] sm:$0x1f]
    %2065 = vst [vmem:[#allocation3 + $0x4d0] sm:$0x1f] %v2064
    %v2066 = vld [vmem:[#allocation2 + $0x69] sm:$0x1f]
    %2067 = vst [vmem:[#allocation3 + $0x58] sm:$0x1f] %v2066
    %v2068 = vld [vmem:[#allocation2 + $0x6f] sm:$0x1f]
    %2069 = vst [vmem:[#allocation3 + $0xd8] sm:$0x1f] %v2068
    %v2070 = vld [vmem:[#allocation2 + $0x75] sm:$0x1f]
    %2071 = vst [vmem:[#allocation3 + $0x158] sm:$0x1f] %v2070
    %v2072 = vld [vmem:[#allocation2 + $0x7b] sm:$0x1f]
    %2073 = vst [vmem:[#allocation3 + $0x1d8] sm:$0x1f] %v2072
    %v2074 = vld [vmem:[#allocation2 + $0x81] sm:$0x1f]
    %2075 = vst [vmem:[#allocation3 + $0x258] sm:$0x1f] %v2074
    %v2076 = vld [vmem:[#allocation2 + $0x93] sm:$0x1f]
    %2077 = vst [vmem:[#allocation3 + $0x2d8] sm:$0x1f] %v2076
    %v2078 = vld [vmem:[#allocation2 + $0x99] sm:$0x1f]
    %2079 = vst [vmem:[#allocation3 + $0x358] sm:$0x1f] %v2078
    %v2080 = vld [vmem:[#allocation2 + $0x9f] sm:$0x1f]
    %2081 = vst [vmem:[#allocation3 + $0x3d8] sm:$0x1f] %v2080
    %v2082 = vld [vmem:[#allocation2 + $0xa5] sm:$0x1f]
    %2083 = vst [vmem:[#allocation3 + $0x458] sm:$0x1f] %v2082
    %v2084 = vld [vmem:[#allocation2 + $0xab] sm:$0x1f]
    %2085 = vst [vmem:[#allocation3 + $0x4d8] sm:$0x1f] %v2084
    %v2086 = vld [vmem:[#allocation2 + $0xbd] sm:$0x1f]
    %2087 = vst [vmem:[#allocation3 + $0x60] sm:$0x1f] %v2086
    %v2088 = vld [vmem:[#allocation2 + $0xc4] sm:$0x1f]
    %2089 = vst [vmem:[#allocation3 + $0xe0] sm:$0x1f] %v2088
    %v2090 = vld [vmem:[#allocation2 + $0xcb] sm:$0x1f]
    %2091 = vst [vmem:[#allocation3 + $0x160] sm:$0x1f] %v2090
    %v2092 = vld [vmem:[#allocation2 + $0xd2] sm:$0x1f]
    %2093 = vst [vmem:[#allocation3 + $0x1e0] sm:$0x1f] %v2092
    %v2094 = vld [vmem:[#allocation2 + $0xd9] sm:$0x1f]
    %2095 = vst [vmem:[#allocation3 + $0x260] sm:$0x1f] %v2094
    %v2096 = vld [vmem:[#allocation2 + $0xe7] sm:$0x1f]
    %2097 = vst [vmem:[#allocation3 + $0x2e0] sm:$0x1f] %v2096
    %v2098 = vld [vmem:[#allocation2 + $0xee] sm:$0x1f]
    %2099 = vst [vmem:[#allocation3 + $0x360] sm:$0x1f] %v2098
    %v2100 = vld [vmem:[#allocation2 + $0xf5] sm:$0x1f]
    %2101 = vst [vmem:[#allocation3 + $0x3e0] sm:$0x1f] %v2100
    %v2102 = vld [vmem:[#allocation2 + $0xfc] sm:$0x1f]
    %2103 = vst [vmem:[#allocation3 + $0x460] sm:$0x1f] %v2102
    %v2104 = vld [vmem:[#allocation2 + $0x103] sm:$0x1f]
    %2105 = vst [vmem:[#allocation3 + $0x4e0] sm:$0x1f] %v2104
    %v2106 = vld [vmem:[#allocation2 + $0x110] sm:$0x1f]
    %2107 = vst [vmem:[#allocation3 + $0x68] sm:$0x1f] %v2106
    %v2108 = vld [vmem:[#allocation2 + $0x116] sm:$0x1f]
    %2109 = vst [vmem:[#allocation3 + $0xe8] sm:$0x1f] %v2108
    %v2110 = vld [vmem:[#allocation2 + $0x11c] sm:$0x1f]
    %2111 = vst [vmem:[#allocation3 + $0x168] sm:$0x1f] %v2110
    %v2112 = vld [vmem:[#allocation2 + $0x122] sm:$0x1f]
    %2113 = vst [vmem:[#allocation3 + $0x1e8] sm:$0x1f] %v2112
    %v2114 = vld [vmem:[#allocation2 + $0x128] sm:$0x1f]
    %2115 = vst [vmem:[#allocation3 + $0x268] sm:$0x1f] %v2114
    %v2116 = vld [vmem:[#allocation2 + $0x134] sm:$0x1f]
    %2117 = vst [vmem:[#allocation3 + $0x2e8] sm:$0x1f] %v2116
    %v2118 = vld [vmem:[#allocation2 + $0x13a] sm:$0x1f]
    %2119 = vst [vmem:[#allocation3 + $0x368] sm:$0x1f] %v2118
    %v2120 = vld [vmem:[#allocation2 + $0x140] sm:$0x1f]
    %2121 = vst [vmem:[#allocation3 + $0x3e8] sm:$0x1f] %v2120
    %v2122 = vld [vmem:[#allocation2 + $0x146] sm:$0x1f]
    %2123 = vst [vmem:[#allocation3 + $0x468] sm:$0x1f] %v2122
    %v2124 = vld [vmem:[#allocation2 + $0x14c] sm:$0x1f]
    %2125 = vst [vmem:[#allocation3 + $0x4e8] sm:$0x1f] %v2124
    %v2126 = vld [vmem:[#allocation2 + $0xbe] sm:$0x1f]
    %2127 = vst [vmem:[#allocation3 + $0x70] sm:$0x1f] %v2126
    %v2128 = vld [vmem:[#allocation2 + $0xc5] sm:$0x1f]
    %2129 = vst [vmem:[#allocation3 + $0xf0] sm:$0x1f] %v2128
    %v2130 = vld [vmem:[#allocation2 + $0xcc] sm:$0x1f]
    %2131 = vst [vmem:[#allocation3 + $0x170] sm:$0x1f] %v2130
    %v2132 = vld [vmem:[#allocation2 + $0xd3] sm:$0x1f]
    %2133 = vst [vmem:[#allocation3 + $0x1f0] sm:$0x1f] %v2132
    %v2134 = vld [vmem:[#allocation2 + $0xda] sm:$0x1f]
    %2135 = vst [vmem:[#allocation3 + $0x270] sm:$0x1f] %v2134
    %v2136 = vld [vmem:[#allocation2 + $0xe8] sm:$0x1f]
    %2137 = vst [vmem:[#allocation3 + $0x2f0] sm:$0x1f] %v2136
    %v2138 = vld [vmem:[#allocation2 + $0xef] sm:$0x1f]
    %2139 = vst [vmem:[#allocation3 + $0x370] sm:$0x1f] %v2138
    %v2140 = vld [vmem:[#allocation2 + $0xf6] sm:$0x1f]
    %2141 = vst [vmem:[#allocation3 + $0x3f0] sm:$0x1f] %v2140
    %v2142 = vld [vmem:[#allocation2 + $0xfd] sm:$0x1f]
    %2143 = vst [vmem:[#allocation3 + $0x470] sm:$0x1f] %v2142
    %v2144 = vld [vmem:[#allocation2 + $0x104] sm:$0x1f]
    %2145 = vst [vmem:[#allocation3 + $0x4f0] sm:$0x1f] %v2144
    %v2146 = vld [vmem:[#allocation2 + $0x111] sm:$0x1f]
    %2147 = vst [vmem:[#allocation3 + $0x78] sm:$0x1f] %v2146
    %v2148 = vld [vmem:[#allocation2 + $0x117] sm:$0x1f]
    %2149 = vst [vmem:[#allocation3 + $0xf8] sm:$0x1f] %v2148
    %v2150 = vld [vmem:[#allocation2 + $0x11d] sm:$0x1f]
    %2151 = vst [vmem:[#allocation3 + $0x178] sm:$0x1f] %v2150
    %v2152 = vld [vmem:[#allocation2 + $0x123] sm:$0x1f]
    %2153 = vst [vmem:[#allocation3 + $0x1f8] sm:$0x1f] %v2152
    %v2154 = vld [vmem:[#allocation2 + $0x129] sm:$0x1f]
    %2155 = vst [vmem:[#allocation3 + $0x278] sm:$0x1f] %v2154
    %v2156 = vld [vmem:[#allocation2 + $0x135] sm:$0x1f]
    %2157 = vst [vmem:[#allocation3 + $0x2f8] sm:$0x1f] %v2156
    %v2158 = vld [vmem:[#allocation2 + $0x13b] sm:$0x1f]
    %2159 = vst [vmem:[#allocation3 + $0x378] sm:$0x1f] %v2158
    %v2160 = vld [vmem:[#allocation2 + $0x141] sm:$0x1f]
    %2161 = vst [vmem:[#allocation3 + $0x3f8] sm:$0x1f] %v2160
    %v2162 = vld [vmem:[#allocation2 + $0x147] sm:$0x1f]
    %2163 = vst [vmem:[#allocation3 + $0x478] sm:$0x1f] %v2162
    %v2164 = vld [vmem:[#allocation2 + $0x14d] sm:$0x1f]
    %2165 = vst [vmem:[#allocation3 + $0x4f8] sm:$0x1f] %v2164
    %v2166 = vld [vmem:[%s4] sm:$0x1]
    %v2167 = vld [vmem:[%s4 + $0x1] sm:$0x1]
    %v2168 = vld [vmem:[%s4 + $0x2] sm:$0x1]
    %v2169 = vld [vmem:[#allocation3] sm:$0xff]
    %v2170 = vld [vmem:[#allocation3 + $0x8] sm:$0xff]
    %v2171 = vld [vmem:[#allocation3 + $0x10] sm:$0xff]
    %v2172 = vld [vmem:[#allocation3 + $0x18] sm:$0xff]
    %v2173 = vld [vmem:[#allocation3 + $0x20] sm:$0xff]
    %v2174 = vld [vmem:[#allocation3 + $0x28] sm:$0xff]
    %v2175 = vld [vmem:[#allocation3 + $0x30] sm:$0xff]
    %v2176 = vld [vmem:[#allocation3 + $0x38] sm:$0xff]
    %v2177 = vld [vmem:[#allocation3 + $0x40] sm:$0xff]
    %v2178 = vld [vmem:[#allocation3 + $0x48] sm:$0xff]
    %v2179 = vld [vmem:[#allocation3 + $0x50] sm:$0xff]
    %v2180 = vld [vmem:[#allocation3 + $0x58] sm:$0xff]
    %v2181 = vld [vmem:[#allocation3 + $0x60] sm:$0xff]
    %v2182 = vld [vmem:[#allocation3 + $0x68] sm:$0xff]
    %v2183 = vld [vmem:[#allocation3 + $0x70] sm:$0xff]
    %v2184 = vld [vmem:[#allocation3 + $0x78] sm:$0xff]
    %v2185 = vld [vmem:[#allocation3 + $0x80] sm:$0xff]
    %v2186 = vld [vmem:[#allocation3 + $0x88] sm:$0xff]
    %v2187 = vld [vmem:[#allocation3 + $0x90] sm:$0xff]
    %v2188 = vld [vmem:[#allocation3 + $0x98] sm:$0xff]
    %v2189 = vld [vmem:[#allocation3 + $0xa0] sm:$0xff]
    %v2190 = vld [vmem:[#allocation3 + $0xa8] sm:$0xff]
    %v2191 = vld [vmem:[#allocation3 + $0xb0] sm:$0xff]
    %v2192 = vld [vmem:[#allocation3 + $0xb8] sm:$0xff]
    %v2193 = vld [vmem:[#allocation3 + $0xc0] sm:$0xff]
    %v2194 = vld [vmem:[#allocation3 + $0xc8] sm:$0xff]
    %v2195 = vld [vmem:[#allocation3 + $0xd0] sm:$0xff]
    %v2196 = vld [vmem:[#allocation3 + $0xd8] sm:$0xff]
    %v2197 = vld [vmem:[#allocation3 + $0xe0] sm:$0xff]
    %v2198 = vld [vmem:[#allocation3 + $0xe8] sm:$0xff]
    %v2199 = vld [vmem:[#allocation3 + $0xf0] sm:$0xff]
    %v2200 = vld [vmem:[#allocation3 + $0xf8] sm:$0xff]
    %v2201 = vld [vmem:[#allocation3 + $0x100] sm:$0xff]
    %v2202 = vld [vmem:[#allocation3 + $0x108] sm:$0xff]
    %v2203 = vld [vmem:[#allocation3 + $0x110] sm:$0xff]
    %v2204 = vld [vmem:[#allocation3 + $0x118] sm:$0xff]
    %v2205 = vld [vmem:[#allocation3 + $0x120] sm:$0xff]
    %v2206 = vld [vmem:[#allocation3 + $0x128] sm:$0xff]
    %v2207 = vld [vmem:[#allocation3 + $0x130] sm:$0xff]
    %v2208 = vld [vmem:[#allocation3 + $0x138] sm:$0xff]
    %v2209 = vld [vmem:[#allocation3 + $0x140] sm:$0xff]
    %v2210 = vld [vmem:[#allocation3 + $0x148] sm:$0xff]
    %v2211 = vld [vmem:[#allocation3 + $0x150] sm:$0xff]
    %v2212 = vld [vmem:[#allocation3 + $0x158] sm:$0xff]
    %v2213 = vld [vmem:[#allocation3 + $0x160] sm:$0xff]
    %v2214 = vld [vmem:[#allocation3 + $0x168] sm:$0xff]
    %v2215 = vld [vmem:[#allocation3 + $0x170] sm:$0xff]
    %v2216 = vld [vmem:[#allocation3 + $0x178] sm:$0xff]
    %v2217 = vld [vmem:[#allocation3 + $0x180] sm:$0xff]
    %v2218 = vld [vmem:[#allocation3 + $0x188] sm:$0xff]
    %v2219 = vld [vmem:[#allocation3 + $0x190] sm:$0xff]
    %v2220 = vld [vmem:[#allocation3 + $0x198] sm:$0xff]
    %v2221 = vld [vmem:[#allocation3 + $0x1a0] sm:$0xff]
    %v2222 = vld [vmem:[#allocation3 + $0x1a8] sm:$0xff]
    %v2223 = vld [vmem:[#allocation3 + $0x1b0] sm:$0xff]
    %v2224 = vld [vmem:[#allocation3 + $0x1b8] sm:$0xff]
    %v2225 = vld [vmem:[#allocation3 + $0x1c0] sm:$0xff]
    %v2226 = vld [vmem:[#allocation3 + $0x1c8] sm:$0xff]
    %v2227 = vld [vmem:[#allocation3 + $0x1d0] sm:$0xff]
    %v2228 = vld [vmem:[#allocation3 + $0x1d8] sm:$0xff]
    %v2229 = vld [vmem:[#allocation3 + $0x1e0] sm:$0xff]
    %v2230 = vld [vmem:[#allocation3 + $0x1e8] sm:$0xff]
    %v2231 = vld [vmem:[#allocation3 + $0x1f0] sm:$0xff]
    %v2232 = vld [vmem:[#allocation3 + $0x1f8] sm:$0xff]
    %v2233 = vld [vmem:[#allocation3 + $0x200] sm:$0xff]
    %v2234 = vld [vmem:[#allocation3 + $0x208] sm:$0xff]
    %v2235 = vld [vmem:[#allocation3 + $0x210] sm:$0xff]
    %v2236 = vld [vmem:[#allocation3 + $0x218] sm:$0xff]
    %v2237 = vld [vmem:[#allocation3 + $0x220] sm:$0xff]
    %v2238 = vld [vmem:[#allocation3 + $0x228] sm:$0xff]
    %v2239 = vld [vmem:[#allocation3 + $0x230] sm:$0xff]
    %v2240 = vld [vmem:[#allocation3 + $0x238] sm:$0xff]
    %v2241 = vld [vmem:[#allocation3 + $0x240] sm:$0xff]
    %v2242 = vld [vmem:[#allocation3 + $0x248] sm:$0xff]
    %v2243 = vld [vmem:[#allocation3 + $0x250] sm:$0xff]
    %v2244 = vld [vmem:[#allocation3 + $0x258] sm:$0xff]
    %v2245 = vld [vmem:[#allocation3 + $0x260] sm:$0xff]
    %v2246 = vld [vmem:[#allocation3 + $0x268] sm:$0xff]
    %v2247 = vld [vmem:[#allocation3 + $0x270] sm:$0xff]
    %v2248 = vld [vmem:[#allocation3 + $0x278] sm:$0xff]
    %v2249 = vld [vmem:[#allocation3 + $0x280] sm:$0xff]
    %v2250 = vld [vmem:[#allocation3 + $0x288] sm:$0xff]
    %v2251 = vld [vmem:[#allocation3 + $0x290] sm:$0xff]
    %v2252 = vld [vmem:[#allocation3 + $0x298] sm:$0xff]
    %v2253 = vld [vmem:[#allocation3 + $0x2a0] sm:$0xff]
    %v2254 = vld [vmem:[#allocation3 + $0x2a8] sm:$0xff]
    %v2255 = vld [vmem:[#allocation3 + $0x2b0] sm:$0xff]
    %v2256 = vld [vmem:[#allocation3 + $0x2b8] sm:$0xff]
    %v2257 = vld [vmem:[#allocation3 + $0x2c0] sm:$0xff]
    %v2258 = vld [vmem:[#allocation3 + $0x2c8] sm:$0xff]
    %v2259 = vld [vmem:[#allocation3 + $0x2d0] sm:$0xff]
    %v2260 = vld [vmem:[#allocation3 + $0x2d8] sm:$0xff]
    %v2261 = vld [vmem:[#allocation3 + $0x2e0] sm:$0xff]
    %v2262 = vld [vmem:[#allocation3 + $0x2e8] sm:$0xff]
    %v2263 = vld [vmem:[#allocation3 + $0x2f0] sm:$0xff]
    %v2264 = vld [vmem:[#allocation3 + $0x2f8] sm:$0xff]
    %v2265 = vld [vmem:[#allocation3 + $0x300] sm:$0xff]
    %v2266 = vld [vmem:[#allocation3 + $0x308] sm:$0xff]
    %v2267 = vld [vmem:[#allocation3 + $0x310] sm:$0xff]
    %v2268 = vld [vmem:[#allocation3 + $0x318] sm:$0xff]
    %v2269 = vld [vmem:[#allocation3 + $0x320] sm:$0xff]
    %v2270 = vld [vmem:[#allocation3 + $0x328] sm:$0xff]
    %v2271 = vld [vmem:[#allocation3 + $0x330] sm:$0xff]
    %v2272 = vld [vmem:[#allocation3 + $0x338] sm:$0xff]
    %v2273 = vld [vmem:[#allocation3 + $0x340] sm:$0xff]
    %v2274 = vld [vmem:[#allocation3 + $0x348] sm:$0xff]
    %v2275 = vld [vmem:[#allocation3 + $0x350] sm:$0xff]
    %v2276 = vld [vmem:[#allocation3 + $0x358] sm:$0xff]
    %v2277 = vld [vmem:[#allocation3 + $0x360] sm:$0xff]
    %v2278 = vld [vmem:[#allocation3 + $0x368] sm:$0xff]
    %v2279 = vld [vmem:[#allocation3 + $0x370] sm:$0xff]
    %v2280 = vld [vmem:[#allocation3 + $0x378] sm:$0xff]
    %v2281 = vld [vmem:[#allocation3 + $0x380] sm:$0xff]
    %v2282 = vld [vmem:[#allocation3 + $0x388] sm:$0xff]
    %v2283 = vld [vmem:[#allocation3 + $0x390] sm:$0xff]
    %v2284 = vld [vmem:[#allocation3 + $0x398] sm:$0xff]
    %v2285 = vld [vmem:[#allocation3 + $0x3a0] sm:$0xff]
    %v2286 = vld [vmem:[#allocation3 + $0x3a8] sm:$0xff]
    %v2287 = vld [vmem:[#allocation3 + $0x3b0] sm:$0xff]
    %v2288 = vld [vmem:[#allocation3 + $0x3b8] sm:$0xff]
    %v2289 = vld [vmem:[#allocation3 + $0x3c0] sm:$0xff]
    %v2290 = vld [vmem:[#allocation3 + $0x3c8] sm:$0xff]
    %v2291 = vld [vmem:[#allocation3 + $0x3d0] sm:$0xff]
    %v2292 = vld [vmem:[#allocation3 + $0x3d8] sm:$0xff]
    %v2293 = vld [vmem:[#allocation3 + $0x3e0] sm:$0xff]
    %v2294 = vld [vmem:[#allocation3 + $0x3e8] sm:$0xff]
    %v2295 = vld [vmem:[#allocation3 + $0x3f0] sm:$0xff]
    %v2296 = vld [vmem:[#allocation3 + $0x3f8] sm:$0xff]
    %v2297 = vld [vmem:[#allocation3 + $0x400] sm:$0xff]
    %v2298 = vld [vmem:[#allocation3 + $0x408] sm:$0xff]
    %v2299 = vld [vmem:[#allocation3 + $0x410] sm:$0xff]
    %v2300 = vld [vmem:[#allocation3 + $0x418] sm:$0xff]
    %v2301 = vld [vmem:[#allocation3 + $0x420] sm:$0xff]
    %v2302 = vld [vmem:[#allocation3 + $0x428] sm:$0xff]
    %v2303 = vld [vmem:[#allocation3 + $0x430] sm:$0xff]
    %v2304 = vld [vmem:[#allocation3 + $0x438] sm:$0xff]
    %v2305 = vld [vmem:[#allocation3 + $0x440] sm:$0xff]
    %v2306 = vld [vmem:[#allocation3 + $0x448] sm:$0xff]
    %v2307 = vld [vmem:[#allocation3 + $0x450] sm:$0xff]
    %v2308 = vld [vmem:[#allocation3 + $0x458] sm:$0xff]
    %v2309 = vld [vmem:[#allocation3 + $0x460] sm:$0xff]
    %v2310 = vld [vmem:[#allocation3 + $0x468] sm:$0xff]
    %v2311 = vld [vmem:[#allocation3 + $0x470] sm:$0xff]
    %v2312 = vld [vmem:[#allocation3 + $0x478] sm:$0xff]
    %v2313 = vld [vmem:[#allocation3 + $0x480] sm:$0xff]
    %v2314 = vld [vmem:[#allocation3 + $0x488] sm:$0xff]
    %v2315 = vld [vmem:[#allocation3 + $0x490] sm:$0xff]
    %v2316 = vld [vmem:[#allocation3 + $0x498] sm:$0xff]
    %v2317 = vld [vmem:[#allocation3 + $0x4a0] sm:$0xff]
    %v2318 = vld [vmem:[#allocation3 + $0x4a8] sm:$0xff]
    %v2319 = vld [vmem:[#allocation3 + $0x4b0] sm:$0xff]
    %v2320 = vld [vmem:[#allocation3 + $0x4b8] sm:$0xff]
    %v2321 = vld [vmem:[#allocation3 + $0x4c0] sm:$0xff]
    %v2322 = vld [vmem:[#allocation3 + $0x4c8] sm:$0xff]
    %v2323 = vld [vmem:[#allocation3 + $0x4d0] sm:$0xff]
    %v2324 = vld [vmem:[#allocation3 + $0x4d8] sm:$0xff]
    %v2325 = vld [vmem:[#allocation3 + $0x4e0] sm:$0xff]
    %v2326 = vld [vmem:[#allocation3 + $0x4e8] sm:$0xff]
    %v2327 = vld [vmem:[#allocation3 + $0x4f0] sm:$0xff]
    %v2328 = vld [vmem:[#allocation3 + $0x4f8] sm:$0xff]
    %v2329 = vpack.c.bf16 %v2185, %v2169
    %v2330 = vpack.c.bf16 %v2186, %v2170
    %v2331 = vpack.c.bf16 %v2187, %v2171
    %v2332 = vpack.c.bf16 %v2188, %v2172
    %v2333 = vpack.c.bf16 %v2189, %v2173
    %v2334 = vpack.c.bf16 %v2190, %v2174
    %v2335 = vpack.c.bf16 %v2191, %v2175
    %v2336 = vpack.c.bf16 %v2192, %v2176
    %v2337 = vpack.c.bf16 %v2193, %v2177
    %v2338 = vpack.c.bf16 %v2194, %v2178
    %v2339 = vpack.c.bf16 %v2195, %v2179
    %v2340 = vpack.c.bf16 %v2196, %v2180
    %v2341 = vpack.c.bf16 %v2197, %v2181
    %v2342 = vpack.c.bf16 %v2198, %v2182
    %v2343 = vpack.c.bf16 %v2199, %v2183
    %v2344 = vpack.c.bf16 %v2200, %v2184
    %v2345 = vpack.c.bf16 %v2217, %v2201
    %v2346 = vpack.c.bf16 %v2218, %v2202
    %v2347 = vpack.c.bf16 %v2219, %v2203
    %v2348 = vpack.c.bf16 %v2220, %v2204
    %v2349 = vpack.c.bf16 %v2221, %v2205
    %v2350 = vpack.c.bf16 %v2222, %v2206
    %v2351 = vpack.c.bf16 %v2223, %v2207
    %v2352 = vpack.c.bf16 %v2224, %v2208
    %v2353 = vpack.c.bf16 %v2225, %v2209
    %v2354 = vpack.c.bf16 %v2226, %v2210
    %v2355 = vpack.c.bf16 %v2227, %v2211
    %v2356 = vpack.c.bf16 %v2228, %v2212
    %v2357 = vpack.c.bf16 %v2229, %v2213
    %v2358 = vpack.c.bf16 %v2230, %v2214
    %v2359 = vpack.c.bf16 %v2231, %v2215
    %v2360 = vpack.c.bf16 %v2232, %v2216
    %v2361 = vpack.c.bf16 %v2249, %v2233
    %v2362 = vpack.c.bf16 %v2250, %v2234
    %v2363 = vpack.c.bf16 %v2251, %v2235
    %v2364 = vpack.c.bf16 %v2252, %v2236
    %v2365 = vpack.c.bf16 %v2253, %v2237
    %v2366 = vpack.c.bf16 %v2254, %v2238
    %v2367 = vpack.c.bf16 %v2255, %v2239
    %v2368 = vpack.c.bf16 %v2256, %v2240
    %v2369 = vpack.c.bf16 %v2257, %v2241
    %v2370 = vpack.c.bf16 %v2258, %v2242
    %v2371 = vpack.c.bf16 %v2259, %v2243
    %v2372 = vpack.c.bf16 %v2260, %v2244
    %v2373 = vpack.c.bf16 %v2261, %v2245
    %v2374 = vpack.c.bf16 %v2262, %v2246
    %v2375 = vpack.c.bf16 %v2263, %v2247
    %v2376 = vpack.c.bf16 %v2264, %v2248
    %v2377 = vpack.c.bf16 %v2281, %v2265
    %v2378 = vpack.c.bf16 %v2282, %v2266
    %v2379 = vpack.c.bf16 %v2283, %v2267
    %v2380 = vpack.c.bf16 %v2284, %v2268
    %v2381 = vpack.c.bf16 %v2285, %v2269
    %v2382 = vpack.c.bf16 %v2286, %v2270
    %v2383 = vpack.c.bf16 %v2287, %v2271
    %v2384 = vpack.c.bf16 %v2288, %v2272
    %v2385 = vpack.c.bf16 %v2289, %v2273
    %v2386 = vpack.c.bf16 %v2290, %v2274
    %v2387 = vpack.c.bf16 %v2291, %v2275
    %v2388 = vpack.c.bf16 %v2292, %v2276
    %v2389 = vpack.c.bf16 %v2293, %v2277
    %v2390 = vpack.c.bf16 %v2294, %v2278
    %v2391 = vpack.c.bf16 %v2295, %v2279
    %v2392 = vpack.c.bf16 %v2296, %v2280
    %v2393 = vpack.c.bf16 %v2313, %v2297
    %v2394 = vpack.c.bf16 %v2314, %v2298
    %v2395 = vpack.c.bf16 %v2315, %v2299
    %v2396 = vpack.c.bf16 %v2316, %v2300
    %v2397 = vpack.c.bf16 %v2317, %v2301
    %v2398 = vpack.c.bf16 %v2318, %v2302
    %v2399 = vpack.c.bf16 %v2319, %v2303
    %v2400 = vpack.c.bf16 %v2320, %v2304
    %v2401 = vpack.c.bf16 %v2321, %v2305
    %v2402 = vpack.c.bf16 %v2322, %v2306
    %v2403 = vpack.c.bf16 %v2323, %v2307
    %v2404 = vpack.c.bf16 %v2324, %v2308
    %v2405 = vpack.c.bf16 %v2325, %v2309
    %v2406 = vpack.c.bf16 %v2326, %v2310
    %v2407 = vpack.c.bf16 %v2327, %v2311
    %v2408 = vpack.c.bf16 %v2328, %v2312
    %v2409 = vld [vmem:[#allocation4] sm:$0xff]
    %v2410 = vld [vmem:[#allocation4 + $0x8] sm:$0xff]
    %v2411 = vld [vmem:[#allocation4 + $0x10] sm:$0xff]
    %v2412 = vld [vmem:[#allocation4 + $0x18] sm:$0xff]
    %v2413 = vld [vmem:[#allocation4 + $0x20] sm:$0xff]
    %v2414 = vld [vmem:[#allocation4 + $0x28] sm:$0xff]
    %v2415 = vld [vmem:[#allocation4 + $0x30] sm:$0xff]
    %v2416 = vld [vmem:[#allocation4 + $0x38] sm:$0xff]
    %v2417 = vld [vmem:[#allocation4 + $0x40] sm:$0xff]
    %v2418 = vld [vmem:[#allocation4 + $0x48] sm:$0xff]
    %v2419 = vld [vmem:[#allocation4 + $0x50] sm:$0xff]
    %v2420 = vld [vmem:[#allocation4 + $0x58] sm:$0xff]
    %v2421 = vld [vmem:[#allocation4 + $0x60] sm:$0xff]
    %v2422 = vld [vmem:[#allocation4 + $0x68] sm:$0xff]
    %v2423 = vld [vmem:[#allocation4 + $0x70] sm:$0xff]
    %v2424 = vld [vmem:[#allocation4 + $0x78] sm:$0xff]
    %v2425 = vld [vmem:[#allocation4 + $0x80] sm:$0xff]
    %v2426 = vld [vmem:[#allocation4 + $0x88] sm:$0xff]
    %v2427 = vld [vmem:[#allocation4 + $0x90] sm:$0xff]
    %v2428 = vld [vmem:[#allocation4 + $0x98] sm:$0xff]
    %v2429 = vld [vmem:[#allocation4 + $0xa0] sm:$0xff]
    %v2430 = vld [vmem:[#allocation4 + $0xa8] sm:$0xff]
    %v2431 = vld [vmem:[#allocation4 + $0xb0] sm:$0xff]
    %v2432 = vld [vmem:[#allocation4 + $0xb8] sm:$0xff]
    %v2433 = vld [vmem:[#allocation4 + $0xc0] sm:$0xff]
    %v2434 = vld [vmem:[#allocation4 + $0xc8] sm:$0xff]
    %v2435 = vld [vmem:[#allocation4 + $0xd0] sm:$0xff]
    %v2436 = vld [vmem:[#allocation4 + $0xd8] sm:$0xff]
    %v2437 = vld [vmem:[#allocation4 + $0xe0] sm:$0xff]
    %v2438 = vld [vmem:[#allocation4 + $0xe8] sm:$0xff]
    %v2439 = vld [vmem:[#allocation4 + $0xf0] sm:$0xff]
    %v2440 = vld [vmem:[#allocation4 + $0xf8] sm:$0xff]
    %v2441 = vld [vmem:[#allocation4 + $0x100] sm:$0xff]
    %v2442 = vld [vmem:[#allocation4 + $0x108] sm:$0xff]
    %v2443 = vld [vmem:[#allocation4 + $0x110] sm:$0xff]
    %v2444 = vld [vmem:[#allocation4 + $0x118] sm:$0xff]
    %v2445 = vld [vmem:[#allocation4 + $0x120] sm:$0xff]
    %v2446 = vld [vmem:[#allocation4 + $0x128] sm:$0xff]
    %v2447 = vld [vmem:[#allocation4 + $0x130] sm:$0xff]
    %v2448 = vld [vmem:[#allocation4 + $0x138] sm:$0xff]
    %v2449 = vld [vmem:[#allocation4 + $0x140] sm:$0xff]
    %v2450 = vld [vmem:[#allocation4 + $0x148] sm:$0xff]
    %v2451 = vld [vmem:[#allocation4 + $0x150] sm:$0xff]
    %v2452 = vld [vmem:[#allocation4 + $0x158] sm:$0xff]
    %v2453 = vld [vmem:[#allocation4 + $0x160] sm:$0xff]
    %v2454 = vld [vmem:[#allocation4 + $0x168] sm:$0xff]
    %v2455 = vld [vmem:[#allocation4 + $0x170] sm:$0xff]
    %v2456 = vld [vmem:[#allocation4 + $0x178] sm:$0xff]
    %v2457 = vld [vmem:[#allocation4 + $0x180] sm:$0xff]
    %v2458 = vld [vmem:[#allocation4 + $0x188] sm:$0xff]
    %v2459 = vld [vmem:[#allocation4 + $0x190] sm:$0xff]
    %v2460 = vld [vmem:[#allocation4 + $0x198] sm:$0xff]
    %v2461 = vld [vmem:[#allocation4 + $0x1a0] sm:$0xff]
    %v2462 = vld [vmem:[#allocation4 + $0x1a8] sm:$0xff]
    %v2463 = vld [vmem:[#allocation4 + $0x1b0] sm:$0xff]
    %v2464 = vld [vmem:[#allocation4 + $0x1b8] sm:$0xff]
    %v2465 = vld [vmem:[#allocation4 + $0x1c0] sm:$0xff]
    %v2466 = vld [vmem:[#allocation4 + $0x1c8] sm:$0xff]
    %v2467 = vld [vmem:[#allocation4 + $0x1d0] sm:$0xff]
    %v2468 = vld [vmem:[#allocation4 + $0x1d8] sm:$0xff]
    %v2469 = vld [vmem:[#allocation4 + $0x1e0] sm:$0xff]
    %v2470 = vld [vmem:[#allocation4 + $0x1e8] sm:$0xff]
    %v2471 = vld [vmem:[#allocation4 + $0x1f0] sm:$0xff]
    %v2472 = vld [vmem:[#allocation4 + $0x1f8] sm:$0xff]
    %v2473 = vld [vmem:[#allocation4 + $0x200] sm:$0xff]
    %v2474 = vld [vmem:[#allocation4 + $0x208] sm:$0xff]
    %v2475 = vld [vmem:[#allocation4 + $0x210] sm:$0xff]
    %v2476 = vld [vmem:[#allocation4 + $0x218] sm:$0xff]
    %v2477 = vld [vmem:[#allocation4 + $0x220] sm:$0xff]
    %v2478 = vld [vmem:[#allocation4 + $0x228] sm:$0xff]
    %v2479 = vld [vmem:[#allocation4 + $0x230] sm:$0xff]
    %v2480 = vld [vmem:[#allocation4 + $0x238] sm:$0xff]
    %v2481 = vld [vmem:[#allocation4 + $0x240] sm:$0xff]
    %v2482 = vld [vmem:[#allocation4 + $0x248] sm:$0xff]
    %v2483 = vld [vmem:[#allocation4 + $0x250] sm:$0xff]
    %v2484 = vld [vmem:[#allocation4 + $0x258] sm:$0xff]
    %v2485 = vld [vmem:[#allocation4 + $0x260] sm:$0xff]
    %v2486 = vld [vmem:[#allocation4 + $0x268] sm:$0xff]
    %v2487 = vld [vmem:[#allocation4 + $0x270] sm:$0xff]
    %v2488 = vld [vmem:[#allocation4 + $0x278] sm:$0xff]
    %v2489 = vld [vmem:[#allocation4 + $0x280] sm:$0xff]
    %v2490 = vld [vmem:[#allocation4 + $0x288] sm:$0xff]
    %v2491 = vld [vmem:[#allocation4 + $0x290] sm:$0xff]
    %v2492 = vld [vmem:[#allocation4 + $0x298] sm:$0xff]
    %v2493 = vld [vmem:[#allocation4 + $0x2a0] sm:$0xff]
    %v2494 = vld [vmem:[#allocation4 + $0x2a8] sm:$0xff]
    %v2495 = vld [vmem:[#allocation4 + $0x2b0] sm:$0xff]
    %v2496 = vld [vmem:[#allocation4 + $0x2b8] sm:$0xff]
    %v2497 = vld [vmem:[#allocation4 + $0x2c0] sm:$0xff]
    %v2498 = vld [vmem:[#allocation4 + $0x2c8] sm:$0xff]
    %v2499 = vld [vmem:[#allocation4 + $0x2d0] sm:$0xff]
    %v2500 = vld [vmem:[#allocation4 + $0x2d8] sm:$0xff]
    %v2501 = vld [vmem:[#allocation4 + $0x2e0] sm:$0xff]
    %v2502 = vld [vmem:[#allocation4 + $0x2e8] sm:$0xff]
    %v2503 = vld [vmem:[#allocation4 + $0x2f0] sm:$0xff]
    %v2504 = vld [vmem:[#allocation4 + $0x2f8] sm:$0xff]
    %v2505 = vld [vmem:[#allocation4 + $0x300] sm:$0xff]
    %v2506 = vld [vmem:[#allocation4 + $0x308] sm:$0xff]
    %v2507 = vld [vmem:[#allocation4 + $0x310] sm:$0xff]
    %v2508 = vld [vmem:[#allocation4 + $0x318] sm:$0xff]
    %v2509 = vld [vmem:[#allocation4 + $0x320] sm:$0xff]
    %v2510 = vld [vmem:[#allocation4 + $0x328] sm:$0xff]
    %v2511 = vld [vmem:[#allocation4 + $0x330] sm:$0xff]
    %v2512 = vld [vmem:[#allocation4 + $0x338] sm:$0xff]
    %v2513 = vld [vmem:[#allocation4 + $0x340] sm:$0xff]
    %v2514 = vld [vmem:[#allocation4 + $0x348] sm:$0xff]
    %v2515 = vld [vmem:[#allocation4 + $0x350] sm:$0xff]
    %v2516 = vld [vmem:[#allocation4 + $0x358] sm:$0xff]
    %v2517 = vld [vmem:[#allocation4 + $0x360] sm:$0xff]
    %v2518 = vld [vmem:[#allocation4 + $0x368] sm:$0xff]
    %v2519 = vld [vmem:[#allocation4 + $0x370] sm:$0xff]
    %v2520 = vld [vmem:[#allocation4 + $0x378] sm:$0xff]
    %v2521 = vld [vmem:[#allocation4 + $0x380] sm:$0xff]
    %v2522 = vld [vmem:[#allocation4 + $0x388] sm:$0xff]
    %v2523 = vld [vmem:[#allocation4 + $0x390] sm:$0xff]
    %v2524 = vld [vmem:[#allocation4 + $0x398] sm:$0xff]
    %v2525 = vld [vmem:[#allocation4 + $0x3a0] sm:$0xff]
    %v2526 = vld [vmem:[#allocation4 + $0x3a8] sm:$0xff]
    %v2527 = vld [vmem:[#allocation4 + $0x3b0] sm:$0xff]
    %v2528 = vld [vmem:[#allocation4 + $0x3b8] sm:$0xff]
    %v2529 = vld [vmem:[#allocation4 + $0x3c0] sm:$0xff]
    %v2530 = vld [vmem:[#allocation4 + $0x3c8] sm:$0xff]
    %v2531 = vld [vmem:[#allocation4 + $0x3d0] sm:$0xff]
    %v2532 = vld [vmem:[#allocation4 + $0x3d8] sm:$0xff]
    %v2533 = vld [vmem:[#allocation4 + $0x3e0] sm:$0xff]
    %v2534 = vld [vmem:[#allocation4 + $0x3e8] sm:$0xff]
    %v2535 = vld [vmem:[#allocation4 + $0x3f0] sm:$0xff]
    %v2536 = vld [vmem:[#allocation4 + $0x3f8] sm:$0xff]
    %v2537 = vlaneseq
    %v2538 = vshrl.u32 %v2537, 7
    %v2539 = vsub.s32 0, %v2538
    %v2540 = vrot.slane %v2166, %v2539
    %2541 = vmatprep.subr.bf16.mxu0 0
    %2542 = vmatpush1.bf16.msra.mxu0 %v2409
    %2543 = vmatprep.subr.bf16.mxu0 0
    %2544 = vmatpush1.bf16.msra.mxu0 %v2410
    %2545 = vmatprep.subr.bf16.mxu0 0
    %2546 = vmatpush1.bf16.msra.mxu0 %v2411
    %2547 = vmatprep.subr.bf16.mxu0 0
    %2548 = vmatpush1.bf16.msra.mxu0 %v2412
    %2549 = vmatprep.subr.bf16.mxu0 0
    %2550 = vmatpush1.bf16.msra.mxu0 %v2413
    %2551 = vmatprep.subr.bf16.mxu0 0
    %2552 = vmatpush1.bf16.msra.mxu0 %v2414
    %2553 = vmatprep.subr.bf16.mxu0 0
    %2554 = vmatpush1.bf16.msra.mxu0 %v2415
    %2555 = vmatprep.subr.bf16.mxu0 0
    %2556 = vmatpush1.bf16.msra.mxu0 %v2416
    %2557 = vmatprep.subr.bf16.mxu0 0
    %2558 = vmatpush1.bf16.msra.mxu0 %v2417
    %2559 = vmatprep.subr.bf16.mxu0 0
    %2560 = vmatpush1.bf16.msra.mxu0 %v2418
    %2561 = vmatprep.subr.bf16.mxu0 0
    %2562 = vmatpush1.bf16.msra.mxu0 %v2419
    %2563 = vmatprep.subr.bf16.mxu0 0
    %2564 = vmatpush1.bf16.msra.mxu0 %v2420
    %2565 = vmatprep.subr.bf16.mxu0 0
    %2566 = vmatpush1.bf16.msra.mxu0 %v2421
    %2567 = vmatprep.subr.bf16.mxu0 0
    %2568 = vmatpush1.bf16.msra.mxu0 %v2422
    %2569 = vmatprep.subr.bf16.mxu0 0
    %2570 = vmatpush1.bf16.msra.mxu0 %v2423
    %2571 = vmatprep.subr.bf16.mxu0 0
    %2572 = vmatpush1.bf16.msra.mxu0 %v2424
    %2573 = vmatprep.mubr.bf16.mxu0 %v2330
    %2574 = vmatmul.mubr.bf16.gmra.mrb[0].mxu0 %v2329
    %v2575 = vpop.f32.mrb[0].mxu0
    %v2576 = vadd.f32 %v2540, %v2575
    %v2577 = vpop.f32.mrb[0].mxu0
    %v2578 = vpop.f32.mrb[0].mxu0
    %v2579 = vadd.f32 %v2540, %v2578
    %v2580 = vpop.f32.mrb[0].mxu0
    %2581 = vmatprep.mubr.bf16.mxu0 %v2346
    %2582 = vmatmul.mubr.bf16.gmra.mrb[0].mxu0 %v2345
    %v2583 = vpop.f32.mrb[0].mxu0
    %v2584 = vadd.f32 %v2540, %v2583
    %v2585 = vpop.f32.mrb[0].mxu0
    %v2586 = vpop.f32.mrb[0].mxu0
    %v2587 = vadd.f32 %v2540, %v2586
    %v2588 = vpop.f32.mrb[0].mxu0
    %2589 = vmatprep.mubr.bf16.mxu0 %v2362
    %2590 = vmatmul.mubr.bf16.gmra.mrb[0].mxu0 %v2361
    %v2591 = vpop.f32.mrb[0].mxu0
    %v2592 = vadd.f32 %v2540, %v2591
    %v2593 = vpop.f32.mrb[0].mxu0
    %v2594 = vpop.f32.mrb[0].mxu0
    %v2595 = vadd.f32 %v2540, %v2594
    %v2596 = vpop.f32.mrb[0].mxu0
    %2597 = vmatprep.mubr.bf16.mxu0 %v2378
    %2598 = vmatmul.mubr.bf16.gmra.mrb[0].mxu0 %v2377
    %v2599 = vpop.f32.mrb[0].mxu0
    %v2600 = vadd.f32 %v2540, %v2599
    %v2601 = vpop.f32.mrb[0].mxu0
    %v2602 = vpop.f32.mrb[0].mxu0
    %v2603 = vadd.f32 %v2540, %v2602
    %v2604 = vpop.f32.mrb[0].mxu0
    %2605 = vmatprep.mubr.bf16.mxu0 %v2394
    %2606 = vmatmul.mubr.bf16.gmra.mrb[0].mxu0 %v2393
    %v2607 = vpop.f32.mrb[0].mxu0
    %v2608 = vadd.f32 %v2540, %v2607
    %v2609 = vpop.f32.mrb[0].mxu0
    %v2610 = vpop.f32.mrb[0].mxu0
    %v2611 = vadd.f32 %v2540, %v2610
    %v2612 = vpop.f32.mrb[0].mxu0
    %2613 = vdwg.mxu0
    %2614 = vmatprep.subr.bf16.mxu0 0
    %2615 = vmatpush1.bf16.msra.mxu0 %v2425
    %2616 = vmatprep.subr.bf16.mxu0 0
    %2617 = vmatpush1.bf16.msra.mxu0 %v2426
    %2618 = vmatprep.subr.bf16.mxu0 0
    %2619 = vmatpush1.bf16.msra.mxu0 %v2427
    %2620 = vmatprep.subr.bf16.mxu0 0
    %2621 = vmatpush1.bf16.msra.mxu0 %v2428
    %2622 = vmatprep.subr.bf16.mxu0 0
    %2623 = vmatpush1.bf16.msra.mxu0 %v2429
    %2624 = vmatprep.subr.bf16.mxu0 0
    %2625 = vmatpush1.bf16.msra.mxu0 %v2430
    %2626 = vmatprep.subr.bf16.mxu0 0
    %2627 = vmatpush1.bf16.msra.mxu0 %v2431
    %2628 = vmatprep.subr.bf16.mxu0 0
    %2629 = vmatpush1.bf16.msra.mxu0 %v2432
    %2630 = vmatprep.subr.bf16.mxu0 0
    %2631 = vmatpush1.bf16.msra.mxu0 %v2433
    %2632 = vmatprep.subr.bf16.mxu0 0
    %2633 = vmatpush1.bf16.msra.mxu0 %v2434
    %2634 = vmatprep.subr.bf16.mxu0 0
    %2635 = vmatpush1.bf16.msra.mxu0 %v2435
    %2636 = vmatprep.subr.bf16.mxu0 0
    %2637 = vmatpush1.bf16.msra.mxu0 %v2436
    %2638 = vmatprep.subr.bf16.mxu0 0
    %2639 = vmatpush1.bf16.msra.mxu0 %v2437
    %2640 = vmatprep.subr.bf16.mxu0 0
    %2641 = vmatpush1.bf16.msra.mxu0 %v2438
    %2642 = vmatprep.subr.bf16.mxu0 0
    %2643 = vmatpush1.bf16.msra.mxu0 %v2439
    %2644 = vmatprep.subr.bf16.mxu0 0
    %2645 = vmatpush1.bf16.msra.mxu0 %v2440
    %2646 = vmatprep.mubr.bf16.mxu0 %v2332
    %2647 = vmatmul.mubr.bf16.gmra.mrb[0].mxu0 %v2331
    %v2648 = vpop.f32.mrb[0].mxu0
    %v2649 = vadd.f32 %v2576, %v2648
    %v2650 = vpop.f32.mrb[0].mxu0
    %v2651 = vpop.f32.mrb[0].mxu0
    %v2652 = vadd.f32 %v2579, %v2651
    %v2653 = vpop.f32.mrb[0].mxu0
    %2654 = vmatprep.mubr.bf16.mxu0 %v2348
    %2655 = vmatmul.mubr.bf16.gmra.mrb[0].mxu0 %v2347
    %v2656 = vpop.f32.mrb[0].mxu0
    %v2657 = vadd.f32 %v2584, %v2656
    %v2658 = vpop.f32.mrb[0].mxu0
    %v2659 = vpop.f32.mrb[0].mxu0
    %v2660 = vadd.f32 %v2587, %v2659
    %v2661 = vpop.f32.mrb[0].mxu0
    %2662 = vmatprep.mubr.bf16.mxu0 %v2364
    %2663 = vmatmul.mubr.bf16.gmra.mrb[0].mxu0 %v2363
    %v2664 = vpop.f32.mrb[0].mxu0
    %v2665 = vadd.f32 %v2592, %v2664
    %v2666 = vpop.f32.mrb[0].mxu0
    %v2667 = vpop.f32.mrb[0].mxu0
    %v2668 = vadd.f32 %v2595, %v2667
    %v2669 = vpop.f32.mrb[0].mxu0
    %2670 = vmatprep.mubr.bf16.mxu0 %v2380
    %2671 = vmatmul.mubr.bf16.gmra.mrb[0].mxu0 %v2379
    %v2672 = vpop.f32.mrb[0].mxu0
    %v2673 = vadd.f32 %v2600, %v2672
    %v2674 = vpop.f32.mrb[0].mxu0
    %v2675 = vpop.f32.mrb[0].mxu0
    %v2676 = vadd.f32 %v2603, %v2675
    %v2677 = vpop.f32.mrb[0].mxu0
    %2678 = vmatprep.mubr.bf16.mxu0 %v2396
    %2679 = vmatmul.mubr.bf16.gmra.mrb[0].mxu0 %v2395
    %v2680 = vpop.f32.mrb[0].mxu0
    %v2681 = vadd.f32 %v2608, %v2680
    %v2682 = vpop.f32.mrb[0].mxu0
    %v2683 = vpop.f32.mrb[0].mxu0
    %v2684 = vadd.f32 %v2611, %v2683
    %v2685 = vpop.f32.mrb[0].mxu0
    %2686 = vdwg.mxu0
    %2687 = vmatprep.subr.bf16.mxu0 0
    %2688 = vmatpush1.bf16.msra.mxu0 %v2441
    %2689 = vmatprep.subr.bf16.mxu0 0
    %2690 = vmatpush1.bf16.msra.mxu0 %v2442
    %2691 = vmatprep.subr.bf16.mxu0 0
    %2692 = vmatpush1.bf16.msra.mxu0 %v2443
    %2693 = vmatprep.subr.bf16.mxu0 0
    %2694 = vmatpush1.bf16.msra.mxu0 %v2444
    %2695 = vmatprep.subr.bf16.mxu0 0
    %2696 = vmatpush1.bf16.msra.mxu0 %v2445
    %2697 = vmatprep.subr.bf16.mxu0 0
    %2698 = vmatpush1.bf16.msra.mxu0 %v2446
    %2699 = vmatprep.subr.bf16.mxu0 0
    %2700 = vmatpush1.bf16.msra.mxu0 %v2447
    %2701 = vmatprep.subr.bf16.mxu0 0
    %2702 = vmatpush1.bf16.msra.mxu0 %v2448
    %2703 = vmatprep.subr.bf16.mxu0 0
    %2704 = vmatpush1.bf16.msra.mxu0 %v2449
    %2705 = vmatprep.subr.bf16.mxu0 0
    %2706 = vmatpush1.bf16.msra.mxu0 %v2450
    %2707 = vmatprep.subr.bf16.mxu0 0
    %2708 = vmatpush1.bf16.msra.mxu0 %v2451
    %2709 = vmatprep.subr.bf16.mxu0 0
    %2710 = vmatpush1.bf16.msra.mxu0 %v2452
    %2711 = vmatprep.subr.bf16.mxu0 0
    %2712 = vmatpush1.bf16.msra.mxu0 %v2453
    %2713 = vmatprep.subr.bf16.mxu0 0
    %2714 = vmatpush1.bf16.msra.mxu0 %v2454
    %2715 = vmatprep.subr.bf16.mxu0 0
    %2716 = vmatpush1.bf16.msra.mxu0 %v2455
    %2717 = vmatprep.subr.bf16.mxu0 0
    %2718 = vmatpush1.bf16.msra.mxu0 %v2456
    %2719 = vmatprep.mubr.bf16.mxu0 %v2334
    %2720 = vmatmul.mubr.bf16.gmra.mrb[0].mxu0 %v2333
    %v2721 = vpop.f32.mrb[0].mxu0
    %v2722 = vadd.f32 %v2649, %v2721
    %v2723 = vpop.f32.mrb[0].mxu0
    %v2724 = vpop.f32.mrb[0].mxu0
    %v2725 = vadd.f32 %v2652, %v2724
    %v2726 = vpop.f32.mrb[0].mxu0
    %2727 = vmatprep.mubr.bf16.mxu0 %v2350
    %2728 = vmatmul.mubr.bf16.gmra.mrb[0].mxu0 %v2349
    %v2729 = vpop.f32.mrb[0].mxu0
    %v2730 = vadd.f32 %v2657, %v2729
    %v2731 = vpop.f32.mrb[0].mxu0
    %v2732 = vpop.f32.mrb[0].mxu0
    %v2733 = vadd.f32 %v2660, %v2732
    %v2734 = vpop.f32.mrb[0].mxu0
    %2735 = vmatprep.mubr.bf16.mxu0 %v2366
    %2736 = vmatmul.mubr.bf16.gmra.mrb[0].mxu0 %v2365
    %v2737 = vpop.f32.mrb[0].mxu0
    %v2738 = vadd.f32 %v2665, %v2737
    %v2739 = vpop.f32.mrb[0].mxu0
    %v2740 = vpop.f32.mrb[0].mxu0
    %v2741 = vadd.f32 %v2668, %v2740
    %v2742 = vpop.f32.mrb[0].mxu0
    %2743 = vmatprep.mubr.bf16.mxu0 %v2382
    %2744 = vmatmul.mubr.bf16.gmra.mrb[0].mxu0 %v2381
    %v2745 = vpop.f32.mrb[0].mxu0
    %v2746 = vadd.f32 %v2673, %v2745
    %v2747 = vpop.f32.mrb[0].mxu0
    %v2748 = vpop.f32.mrb[0].mxu0
    %v2749 = vadd.f32 %v2676, %v2748
    %v2750 = vpop.f32.mrb[0].mxu0
    %2751 = vmatprep.mubr.bf16.mxu0 %v2398
    %2752 = vmatmul.mubr.bf16.gmra.mrb[0].mxu0 %v2397
    %v2753 = vpop.f32.mrb[0].mxu0
    %v2754 = vadd.f32 %v2681, %v2753
    %v2755 = vpop.f32.mrb[0].mxu0
    %v2756 = vpop.f32.mrb[0].mxu0
    %v2757 = vadd.f32 %v2684, %v2756
    %v2758 = vpop.f32.mrb[0].mxu0
    %2759 = vdwg.mxu0
    %2760 = vmatprep.subr.bf16.mxu0 0
    %2761 = vmatpush1.bf16.msra.mxu0 %v2457
    %2762 = vmatprep.subr.bf16.mxu0 0
    %2763 = vmatpush1.bf16.msra.mxu0 %v2458
    %2764 = vmatprep.subr.bf16.mxu0 0
    %2765 = vmatpush1.bf16.msra.mxu0 %v2459
    %2766 = vmatprep.subr.bf16.mxu0 0
    %2767 = vmatpush1.bf16.msra.mxu0 %v2460
    %2768 = vmatprep.subr.bf16.mxu0 0
    %2769 = vmatpush1.bf16.msra.mxu0 %v2461
    %2770 = vmatprep.subr.bf16.mxu0 0
    %2771 = vmatpush1.bf16.msra.mxu0 %v2462
    %2772 = vmatprep.subr.bf16.mxu0 0
    %2773 = vmatpush1.bf16.msra.mxu0 %v2463
    %2774 = vmatprep.subr.bf16.mxu0 0
    %2775 = vmatpush1.bf16.msra.mxu0 %v2464
    %2776 = vmatprep.subr.bf16.mxu0 0
    %2777 = vmatpush1.bf16.msra.mxu0 %v2465
    %2778 = vmatprep.subr.bf16.mxu0 0
    %2779 = vmatpush1.bf16.msra.mxu0 %v2466
    %2780 = vmatprep.subr.bf16.mxu0 0
    %2781 = vmatpush1.bf16.msra.mxu0 %v2467
    %2782 = vmatprep.subr.bf16.mxu0 0
    %2783 = vmatpush1.bf16.msra.mxu0 %v2468
    %2784 = vmatprep.subr.bf16.mxu0 0
    %2785 = vmatpush1.bf16.msra.mxu0 %v2469
    %2786 = vmatprep.subr.bf16.mxu0 0
    %2787 = vmatpush1.bf16.msra.mxu0 %v2470
    %2788 = vmatprep.subr.bf16.mxu0 0
    %2789 = vmatpush1.bf16.msra.mxu0 %v2471
    %2790 = vmatprep.subr.bf16.mxu0 0
    %2791 = vmatpush1.bf16.msra.mxu0 %v2472
    %2792 = vmatprep.mubr.bf16.mxu0 %v2336
    %2793 = vmatmul.mubr.bf16.gmra.mrb[0].mxu0 %v2335
    %v2794 = vpop.f32.mrb[0].mxu0
    %v2795 = vadd.f32 %v2722, %v2794
    %v2796 = vpop.f32.mrb[0].mxu0
    %v2797 = vpop.f32.mrb[0].mxu0
    %v2798 = vadd.f32 %v2725, %v2797
    %v2799 = vpop.f32.mrb[0].mxu0
    %2800 = vmatprep.mubr.bf16.mxu0 %v2352
    %2801 = vmatmul.mubr.bf16.gmra.mrb[0].mxu0 %v2351
    %v2802 = vpop.f32.mrb[0].mxu0
    %v2803 = vadd.f32 %v2730, %v2802
    %v2804 = vpop.f32.mrb[0].mxu0
    %v2805 = vpop.f32.mrb[0].mxu0
    %v2806 = vadd.f32 %v2733, %v2805
    %v2807 = vpop.f32.mrb[0].mxu0
    %2808 = vmatprep.mubr.bf16.mxu0 %v2368
    %2809 = vmatmul.mubr.bf16.gmra.mrb[0].mxu0 %v2367
    %v2810 = vpop.f32.mrb[0].mxu0
    %v2811 = vadd.f32 %v2738, %v2810
    %v2812 = vpop.f32.mrb[0].mxu0
    %v2813 = vpop.f32.mrb[0].mxu0
    %v2814 = vadd.f32 %v2741, %v2813
    %v2815 = vpop.f32.mrb[0].mxu0
    %2816 = vmatprep.mubr.bf16.mxu0 %v2384
    %2817 = vmatmul.mubr.bf16.gmra.mrb[0].mxu0 %v2383
    %v2818 = vpop.f32.mrb[0].mxu0
    %v2819 = vadd.f32 %v2746, %v2818
    %v2820 = vpop.f32.mrb[0].mxu0
    %v2821 = vpop.f32.mrb[0].mxu0
    %v2822 = vadd.f32 %v2749, %v2821
    %v2823 = vpop.f32.mrb[0].mxu0
    %2824 = vmatprep.mubr.bf16.mxu0 %v2400
    %2825 = vmatmul.mubr.bf16.gmra.mrb[0].mxu0 %v2399
    %v2826 = vpop.f32.mrb[0].mxu0
    %v2827 = vadd.f32 %v2754, %v2826
    %v2828 = vpop.f32.mrb[0].mxu0
    %v2829 = vpop.f32.mrb[0].mxu0
    %v2830 = vadd.f32 %v2757, %v2829
    %v2831 = vpop.f32.mrb[0].mxu0
    %2832 = vdwg.mxu0
    %2833 = vmatprep.subr.bf16.mxu0 0
    %2834 = vmatpush1.bf16.msra.mxu0 %v2473
    %2835 = vmatprep.subr.bf16.mxu0 0
    %2836 = vmatpush1.bf16.msra.mxu0 %v2474
    %2837 = vmatprep.subr.bf16.mxu0 0
    %2838 = vmatpush1.bf16.msra.mxu0 %v2475
    %2839 = vmatprep.subr.bf16.mxu0 0
    %2840 = vmatpush1.bf16.msra.mxu0 %v2476
    %2841 = vmatprep.subr.bf16.mxu0 0
    %2842 = vmatpush1.bf16.msra.mxu0 %v2477
    %2843 = vmatprep.subr.bf16.mxu0 0
    %2844 = vmatpush1.bf16.msra.mxu0 %v2478
    %2845 = vmatprep.subr.bf16.mxu0 0
    %2846 = vmatpush1.bf16.msra.mxu0 %v2479
    %2847 = vmatprep.subr.bf16.mxu0 0
    %2848 = vmatpush1.bf16.msra.mxu0 %v2480
    %2849 = vmatprep.subr.bf16.mxu0 0
    %2850 = vmatpush1.bf16.msra.mxu0 %v2481
    %2851 = vmatprep.subr.bf16.mxu0 0
    %2852 = vmatpush1.bf16.msra.mxu0 %v2482
    %2853 = vmatprep.subr.bf16.mxu0 0
    %2854 = vmatpush1.bf16.msra.mxu0 %v2483
    %2855 = vmatprep.subr.bf16.mxu0 0
    %2856 = vmatpush1.bf16.msra.mxu0 %v2484
    %2857 = vmatprep.subr.bf16.mxu0 0
    %2858 = vmatpush1.bf16.msra.mxu0 %v2485
    %2859 = vmatprep.subr.bf16.mxu0 0
    %2860 = vmatpush1.bf16.msra.mxu0 %v2486
    %2861 = vmatprep.subr.bf16.mxu0 0
    %2862 = vmatpush1.bf16.msra.mxu0 %v2487
    %2863 = vmatprep.subr.bf16.mxu0 0
    %2864 = vmatpush1.bf16.msra.mxu0 %v2488
    %2865 = vmatprep.mubr.bf16.mxu0 %v2338
    %2866 = vmatmul.mubr.bf16.gmra.mrb[0].mxu0 %v2337
    %v2867 = vpop.f32.mrb[0].mxu0
    %v2868 = vadd.f32 %v2795, %v2867
    %v2869 = vpop.f32.mrb[0].mxu0
    %v2870 = vpop.f32.mrb[0].mxu0
    %v2871 = vadd.f32 %v2798, %v2870
    %v2872 = vpop.f32.mrb[0].mxu0
    %2873 = vmatprep.mubr.bf16.mxu0 %v2354
    %2874 = vmatmul.mubr.bf16.gmra.mrb[0].mxu0 %v2353
    %v2875 = vpop.f32.mrb[0].mxu0
    %v2876 = vadd.f32 %v2803, %v2875
    %v2877 = vpop.f32.mrb[0].mxu0
    %v2878 = vpop.f32.mrb[0].mxu0
    %v2879 = vadd.f32 %v2806, %v2878
    %v2880 = vpop.f32.mrb[0].mxu0
    %2881 = vmatprep.mubr.bf16.mxu0 %v2370
    %2882 = vmatmul.mubr.bf16.gmra.mrb[0].mxu0 %v2369
    %v2883 = vpop.f32.mrb[0].mxu0
    %v2884 = vadd.f32 %v2811, %v2883
    %v2885 = vpop.f32.mrb[0].mxu0
    %v2886 = vpop.f32.mrb[0].mxu0
    %v2887 = vadd.f32 %v2814, %v2886
    %v2888 = vpop.f32.mrb[0].mxu0
    %2889 = vmatprep.mubr.bf16.mxu0 %v2386
    %2890 = vmatmul.mubr.bf16.gmra.mrb[0].mxu0 %v2385
    %v2891 = vpop.f32.mrb[0].mxu0
    %v2892 = vadd.f32 %v2819, %v2891
    %v2893 = vpop.f32.mrb[0].mxu0
    %v2894 = vpop.f32.mrb[0].mxu0
    %v2895 = vadd.f32 %v2822, %v2894
    %v2896 = vpop.f32.mrb[0].mxu0
    %2897 = vmatprep.mubr.bf16.mxu0 %v2402
    %2898 = vmatmul.mubr.bf16.gmra.mrb[0].mxu0 %v2401
    %v2899 = vpop.f32.mrb[0].mxu0
    %v2900 = vadd.f32 %v2827, %v2899
    %v2901 = vpop.f32.mrb[0].mxu0
    %v2902 = vpop.f32.mrb[0].mxu0
    %v2903 = vadd.f32 %v2830, %v2902
    %v2904 = vpop.f32.mrb[0].mxu0
    %2905 = vdwg.mxu0
    %2906 = vmatprep.subr.bf16.mxu0 0
    %2907 = vmatpush1.bf16.msra.mxu0 %v2489
    %2908 = vmatprep.subr.bf16.mxu0 0
    %2909 = vmatpush1.bf16.msra.mxu0 %v2490
    %2910 = vmatprep.subr.bf16.mxu0 0
    %2911 = vmatpush1.bf16.msra.mxu0 %v2491
    %2912 = vmatprep.subr.bf16.mxu0 0
    %2913 = vmatpush1.bf16.msra.mxu0 %v2492
    %2914 = vmatprep.subr.bf16.mxu0 0
    %2915 = vmatpush1.bf16.msra.mxu0 %v2493
    %2916 = vmatprep.subr.bf16.mxu0 0
    %2917 = vmatpush1.bf16.msra.mxu0 %v2494
    %2918 = vmatprep.subr.bf16.mxu0 0
    %2919 = vmatpush1.bf16.msra.mxu0 %v2495
    %2920 = vmatprep.subr.bf16.mxu0 0
    %2921 = vmatpush1.bf16.msra.mxu0 %v2496
    %2922 = vmatprep.subr.bf16.mxu0 0
    %2923 = vmatpush1.bf16.msra.mxu0 %v2497
    %2924 = vmatprep.subr.bf16.mxu0 0
    %2925 = vmatpush1.bf16.msra.mxu0 %v2498
    %2926 = vmatprep.subr.bf16.mxu0 0
    %2927 = vmatpush1.bf16.msra.mxu0 %v2499
    %2928 = vmatprep.subr.bf16.mxu0 0
    %2929 = vmatpush1.bf16.msra.mxu0 %v2500
    %2930 = vmatprep.subr.bf16.mxu0 0
    %2931 = vmatpush1.bf16.msra.mxu0 %v2501
    %2932 = vmatprep.subr.bf16.mxu0 0
    %2933 = vmatpush1.bf16.msra.mxu0 %v2502
    %2934 = vmatprep.subr.bf16.mxu0 0
    %2935 = vmatpush1.bf16.msra.mxu0 %v2503
    %2936 = vmatprep.subr.bf16.mxu0 0
    %2937 = vmatpush1.bf16.msra.mxu0 %v2504
    %2938 = vmatprep.mubr.bf16.mxu0 %v2340
    %2939 = vmatmul.mubr.bf16.gmra.mrb[0].mxu0 %v2339
    %v2940 = vpop.f32.mrb[0].mxu0
    %v2941 = vadd.f32 %v2868, %v2940
    %v2942 = vpop.f32.mrb[0].mxu0
    %v2943 = vpop.f32.mrb[0].mxu0
    %v2944 = vadd.f32 %v2871, %v2943
    %v2945 = vpop.f32.mrb[0].mxu0
    %2946 = vmatprep.mubr.bf16.mxu0 %v2356
    %2947 = vmatmul.mubr.bf16.gmra.mrb[0].mxu0 %v2355
    %v2948 = vpop.f32.mrb[0].mxu0
    %v2949 = vadd.f32 %v2876, %v2948
    %v2950 = vpop.f32.mrb[0].mxu0
    %v2951 = vpop.f32.mrb[0].mxu0
    %v2952 = vadd.f32 %v2879, %v2951
    %v2953 = vpop.f32.mrb[0].mxu0
    %2954 = vmatprep.mubr.bf16.mxu0 %v2372
    %2955 = vmatmul.mubr.bf16.gmra.mrb[0].mxu0 %v2371
    %v2956 = vpop.f32.mrb[0].mxu0
    %v2957 = vadd.f32 %v2884, %v2956
    %v2958 = vpop.f32.mrb[0].mxu0
    %v2959 = vpop.f32.mrb[0].mxu0
    %v2960 = vadd.f32 %v2887, %v2959
    %v2961 = vpop.f32.mrb[0].mxu0
    %2962 = vmatprep.mubr.bf16.mxu0 %v2388
    %2963 = vmatmul.mubr.bf16.gmra.mrb[0].mxu0 %v2387
    %v2964 = vpop.f32.mrb[0].mxu0
    %v2965 = vadd.f32 %v2892, %v2964
    %v2966 = vpop.f32.mrb[0].mxu0
    %v2967 = vpop.f32.mrb[0].mxu0
    %v2968 = vadd.f32 %v2895, %v2967
    %v2969 = vpop.f32.mrb[0].mxu0
    %2970 = vmatprep.mubr.bf16.mxu0 %v2404
    %2971 = vmatmul.mubr.bf16.gmra.mrb[0].mxu0 %v2403
    %v2972 = vpop.f32.mrb[0].mxu0
    %v2973 = vadd.f32 %v2900, %v2972
    %v2974 = vpop.f32.mrb[0].mxu0
    %v2975 = vpop.f32.mrb[0].mxu0
    %v2976 = vadd.f32 %v2903, %v2975
    %v2977 = vpop.f32.mrb[0].mxu0
    %2978 = vdwg.mxu0
    %2979 = vmatprep.subr.bf16.mxu0 0
    %2980 = vmatpush1.bf16.msra.mxu0 %v2505
    %2981 = vmatprep.subr.bf16.mxu0 0
    %2982 = vmatpush1.bf16.msra.mxu0 %v2506
    %2983 = vmatprep.subr.bf16.mxu0 0
    %2984 = vmatpush1.bf16.msra.mxu0 %v2507
    %2985 = vmatprep.subr.bf16.mxu0 0
    %2986 = vmatpush1.bf16.msra.mxu0 %v2508
    %2987 = vmatprep.subr.bf16.mxu0 0
    %2988 = vmatpush1.bf16.msra.mxu0 %v2509
    %2989 = vmatprep.subr.bf16.mxu0 0
    %2990 = vmatpush1.bf16.msra.mxu0 %v2510
    %2991 = vmatprep.subr.bf16.mxu0 0
    %2992 = vmatpush1.bf16.msra.mxu0 %v2511
    %2993 = vmatprep.subr.bf16.mxu0 0
    %2994 = vmatpush1.bf16.msra.mxu0 %v2512
    %2995 = vmatprep.subr.bf16.mxu0 0
    %2996 = vmatpush1.bf16.msra.mxu0 %v2513
    %2997 = vmatprep.subr.bf16.mxu0 0
    %2998 = vmatpush1.bf16.msra.mxu0 %v2514
    %2999 = vmatprep.subr.bf16.mxu0 0
    %3000 = vmatpush1.bf16.msra.mxu0 %v2515
    %3001 = vmatprep.subr.bf16.mxu0 0
    %3002 = vmatpush1.bf16.msra.mxu0 %v2516
    %3003 = vmatprep.subr.bf16.mxu0 0
    %3004 = vmatpush1.bf16.msra.mxu0 %v2517
    %3005 = vmatprep.subr.bf16.mxu0 0
    %3006 = vmatpush1.bf16.msra.mxu0 %v2518
    %3007 = vmatprep.subr.bf16.mxu0 0
    %3008 = vmatpush1.bf16.msra.mxu0 %v2519
    %3009 = vmatprep.subr.bf16.mxu0 0
    %3010 = vmatpush1.bf16.msra.mxu0 %v2520
    %3011 = vmatprep.mubr.bf16.mxu0 %v2342
    %3012 = vmatmul.mubr.bf16.gmra.mrb[0].mxu0 %v2341
    %v3013 = vpop.f32.mrb[0].mxu0
    %v3014 = vadd.f32 %v2941, %v3013
    %v3015 = vpop.f32.mrb[0].mxu0
    %v3016 = vpop.f32.mrb[0].mxu0
    %v3017 = vadd.f32 %v2944, %v3016
    %v3018 = vpop.f32.mrb[0].mxu0
    %3019 = vmatprep.mubr.bf16.mxu0 %v2358
    %3020 = vmatmul.mubr.bf16.gmra.mrb[0].mxu0 %v2357
    %v3021 = vpop.f32.mrb[0].mxu0
    %v3022 = vadd.f32 %v2949, %v3021
    %v3023 = vpop.f32.mrb[0].mxu0
    %v3024 = vpop.f32.mrb[0].mxu0
    %v3025 = vadd.f32 %v2952, %v3024
    %v3026 = vpop.f32.mrb[0].mxu0
    %3027 = vmatprep.mubr.bf16.mxu0 %v2374
    %3028 = vmatmul.mubr.bf16.gmra.mrb[0].mxu0 %v2373
    %v3029 = vpop.f32.mrb[0].mxu0
    %v3030 = vadd.f32 %v2957, %v3029
    %v3031 = vpop.f32.mrb[0].mxu0
    %v3032 = vpop.f32.mrb[0].mxu0
    %v3033 = vadd.f32 %v2960, %v3032
    %v3034 = vpop.f32.mrb[0].mxu0
    %3035 = vmatprep.mubr.bf16.mxu0 %v2390
    %3036 = vmatmul.mubr.bf16.gmra.mrb[0].mxu0 %v2389
    %v3037 = vpop.f32.mrb[0].mxu0
    %v3038 = vadd.f32 %v2965, %v3037
    %v3039 = vpop.f32.mrb[0].mxu0
    %v3040 = vpop.f32.mrb[0].mxu0
    %v3041 = vadd.f32 %v2968, %v3040
    %v3042 = vpop.f32.mrb[0].mxu0
    %3043 = vmatprep.mubr.bf16.mxu0 %v2406
    %3044 = vmatmul.mubr.bf16.gmra.mrb[0].mxu0 %v2405
    %v3045 = vpop.f32.mrb[0].mxu0
    %v3046 = vadd.f32 %v2973, %v3045
    %v3047 = vpop.f32.mrb[0].mxu0
    %v3048 = vpop.f32.mrb[0].mxu0
    %v3049 = vadd.f32 %v2976, %v3048
    %v3050 = vpop.f32.mrb[0].mxu0
    %3051 = vdwg.mxu0
    %3052 = vmatprep.subr.bf16.mxu0 0
    %3053 = vmatpush1.bf16.msra.mxu0 %v2521
    %3054 = vmatprep.subr.bf16.mxu0 0
    %3055 = vmatpush1.bf16.msra.mxu0 %v2522
    %3056 = vmatprep.subr.bf16.mxu0 0
    %3057 = vmatpush1.bf16.msra.mxu0 %v2523
    %3058 = vmatprep.subr.bf16.mxu0 0
    %3059 = vmatpush1.bf16.msra.mxu0 %v2524
    %3060 = vmatprep.subr.bf16.mxu0 0
    %3061 = vmatpush1.bf16.msra.mxu0 %v2525
    %3062 = vmatprep.subr.bf16.mxu0 0
    %3063 = vmatpush1.bf16.msra.mxu0 %v2526
    %3064 = vmatprep.subr.bf16.mxu0 0
    %3065 = vmatpush1.bf16.msra.mxu0 %v2527
    %3066 = vmatprep.subr.bf16.mxu0 0
    %3067 = vmatpush1.bf16.msra.mxu0 %v2528
    %3068 = vmatprep.subr.bf16.mxu0 0
    %3069 = vmatpush1.bf16.msra.mxu0 %v2529
    %3070 = vmatprep.subr.bf16.mxu0 0
    %3071 = vmatpush1.bf16.msra.mxu0 %v2530
    %3072 = vmatprep.subr.bf16.mxu0 0
    %3073 = vmatpush1.bf16.msra.mxu0 %v2531
    %3074 = vmatprep.subr.bf16.mxu0 0
    %3075 = vmatpush1.bf16.msra.mxu0 %v2532
    %3076 = vmatprep.subr.bf16.mxu0 0
    %3077 = vmatpush1.bf16.msra.mxu0 %v2533
    %3078 = vmatprep.subr.bf16.mxu0 0
    %3079 = vmatpush1.bf16.msra.mxu0 %v2534
    %3080 = vmatprep.subr.bf16.mxu0 0
    %3081 = vmatpush1.bf16.msra.mxu0 %v2535
    %3082 = vmatprep.subr.bf16.mxu0 0
    %3083 = vmatpush1.bf16.msra.mxu0 %v2536
    %3084 = vmatprep.mubr.bf16.mxu0 %v2344
    %3085 = vmatmul.mubr.bf16.gmra.mrb[0].mxu0 %v2343
    %v3086 = vpop.f32.mrb[0].mxu0
    %v3087 = vadd.f32 %v3014, %v3086
    %v3088 = vpop.f32.mrb[0].mxu0
    %v3089 = vpop.f32.mrb[0].mxu0
    %v3090 = vadd.f32 %v3017, %v3089
    %v3091 = vpop.f32.mrb[0].mxu0
    %3092 = vmatprep.mubr.bf16.mxu0 %v2360
    %3093 = vmatmul.mubr.bf16.gmra.mrb[0].mxu0 %v2359
    %v3094 = vpop.f32.mrb[0].mxu0
    %v3095 = vadd.f32 %v3022, %v3094
    %v3096 = vpop.f32.mrb[0].mxu0
    %v3097 = vpop.f32.mrb[0].mxu0
    %v3098 = vadd.f32 %v3025, %v3097
    %v3099 = vpop.f32.mrb[0].mxu0
    %3100 = vmatprep.mubr.bf16.mxu0 %v2376
    %3101 = vmatmul.mubr.bf16.gmra.mrb[0].mxu0 %v2375
    %v3102 = vpop.f32.mrb[0].mxu0
    %v3103 = vadd.f32 %v3030, %v3102
    %v3104 = vpop.f32.mrb[0].mxu0
    %v3105 = vpop.f32.mrb[0].mxu0
    %v3106 = vadd.f32 %v3033, %v3105
    %v3107 = vpop.f32.mrb[0].mxu0
    %3108 = vmatprep.mubr.bf16.mxu0 %v2392
    %3109 = vmatmul.mubr.bf16.gmra.mrb[0].mxu0 %v2391
    %v3110 = vpop.f32.mrb[0].mxu0
    %v3111 = vadd.f32 %v3038, %v3110
    %v3112 = vpop.f32.mrb[0].mxu0
    %v3113 = vpop.f32.mrb[0].mxu0
    %v3114 = vadd.f32 %v3041, %v3113
    %v3115 = vpop.f32.mrb[0].mxu0
    %3116 = vmatprep.mubr.bf16.mxu0 %v2408
    %3117 = vmatmul.mubr.bf16.gmra.mrb[0].mxu0 %v2407
    %v3118 = vpop.f32.mrb[0].mxu0
    %v3119 = vadd.f32 %v3046, %v3118
    %v3120 = vpop.f32.mrb[0].mxu0
    %v3121 = vpop.f32.mrb[0].mxu0
    %v3122 = vadd.f32 %v3049, %v3121
    %v3123 = vpop.f32.mrb[0].mxu0
    %3124 = vdwg.mxu0
    %v3125 = vlaneseq
    %v3126 = vshrl.u32 %v3125, 7
    %v3127 = vadd.s32 %v3126, 8
    %v3128 = vadd.s32 %v3126, 16
    %v3129 = vadd.s32 %v3126, 24
    %v3130 = vadd.s32 %v3126, 32
    %v3131 = vadd.s32 %v3126, 40
    %v3132 = vadd.s32 %v3126, 48
    %v3133 = vadd.s32 %v3126, 56
    %v3134 = vadd.s32 %v3126, 64
    %v3135 = vadd.s32 %v3126, 72
    %vm3136 = vcmp.lt.s32.totalorder %v3126, 0
    %v3137 = vsub.s32 0, %v3126
    %v3138 = vsel %vm3136, %v3137, %v3126
    %v3139 = vshrl.u32 %v3138, 3
    %v3140 = vand.u32 %v3138, 7
    %v3141 = vsub.s32 0, %v3140
    %v3142 = vsel %vm3136, %v3141, %v3140
    %vm3143 = vcmp.lt.s32.totalorder %v3127, 0
    %v3144 = vsub.s32 0, %v3127
    %v3145 = vsel %vm3143, %v3144, %v3127
    %v3146 = vshrl.u32 %v3145, 3
    %v3147 = vand.u32 %v3145, 7
    %v3148 = vsub.s32 0, %v3147
    %v3149 = vsel %vm3143, %v3148, %v3147
    %vm3150 = vcmp.lt.s32.totalorder %v3128, 0
    %v3151 = vsub.s32 0, %v3128
    %v3152 = vsel %vm3150, %v3151, %v3128
    %v3153 = vshrl.u32 %v3152, 3
    %v3154 = vand.u32 %v3152, 7
    %v3155 = vsub.s32 0, %v3154
    %v3156 = vsel %vm3150, %v3155, %v3154
    %vm3157 = vcmp.lt.s32.totalorder %v3129, 0
    %v3158 = vsub.s32 0, %v3129
    %v3159 = vsel %vm3157, %v3158, %v3129
    %v3160 = vshrl.u32 %v3159, 3
    %v3161 = vand.u32 %v3159, 7
    %v3162 = vsub.s32 0, %v3161
    %v3163 = vsel %vm3157, %v3162, %v3161
    %vm3164 = vcmp.lt.s32.totalorder %v3130, 0
    %v3165 = vsub.s32 0, %v3130
    %v3166 = vsel %vm3164, %v3165, %v3130
    %v3167 = vshrl.u32 %v3166, 3
    %v3168 = vand.u32 %v3166, 7
    %v3169 = vsub.s32 0, %v3168
    %v3170 = vsel %vm3164, %v3169, %v3168
    %vm3171 = vcmp.lt.s32.totalorder %v3131, 0
    %v3172 = vsub.s32 0, %v3131
    %v3173 = vsel %vm3171, %v3172, %v3131
    %v3174 = vshrl.u32 %v3173, 3
    %v3175 = vand.u32 %v3173, 7
    %v3176 = vsub.s32 0, %v3175
    %v3177 = vsel %vm3171, %v3176, %v3175
    %vm3178 = vcmp.lt.s32.totalorder %v3132, 0
    %v3179 = vsub.s32 0, %v3132
    %v3180 = vsel %vm3178, %v3179, %v3132
    %v3181 = vshrl.u32 %v3180, 3
    %v3182 = vand.u32 %v3180, 7
    %v3183 = vsub.s32 0, %v3182
    %v3184 = vsel %vm3178, %v3183, %v3182
    %vm3185 = vcmp.lt.s32.totalorder %v3133, 0
    %v3186 = vsub.s32 0, %v3133
    %v3187 = vsel %vm3185, %v3186, %v3133
    %v3188 = vshrl.u32 %v3187, 3
    %v3189 = vand.u32 %v3187, 7
    %v3190 = vsub.s32 0, %v3189
    %v3191 = vsel %vm3185, %v3190, %v3189
    %vm3192 = vcmp.lt.s32.totalorder %v3134, 0
    %v3193 = vsub.s32 0, %v3134
    %v3194 = vsel %vm3192, %v3193, %v3134
    %v3195 = vshrl.u32 %v3194, 3
    %v3196 = vand.u32 %v3194, 7
    %v3197 = vsub.s32 0, %v3196
    %v3198 = vsel %vm3192, %v3197, %v3196
    %vm3199 = vcmp.lt.s32.totalorder %v3135, 0
    %v3200 = vsub.s32 0, %v3135
    %v3201 = vsel %vm3199, %v3200, %v3135
    %v3202 = vshrl.u32 %v3201, 3
    %v3203 = vand.u32 %v3201, 7
    %v3204 = vsub.s32 0, %v3203
    %v3205 = vsel %vm3199, %v3204, %v3203
    %vm3206 = vcmp.ne.s32.totalorder %v3142, 0
    %vm3207 = vcmp.ne.s32.totalorder %v3149, 0
    %vm3208 = vcmp.ne.s32.totalorder %v3156, 0
    %vm3209 = vcmp.ne.s32.totalorder %v3163, 0
    %vm3210 = vcmp.ne.s32.totalorder %v3170, 0
    %vm3211 = vcmp.ne.s32.totalorder %v3177, 0
    %vm3212 = vcmp.ne.s32.totalorder %v3184, 0
    %vm3213 = vcmp.ne.s32.totalorder %v3191, 0
    %vm3214 = vcmp.ne.s32.totalorder %v3198, 0
    %vm3215 = vcmp.ne.s32.totalorder %v3205, 0
    %vm3216 = vcmp.lt.s32.totalorder %v3142, 0
    %vm3217 = vcmp.lt.s32.totalorder %v3149, 0
    %vm3218 = vcmp.lt.s32.totalorder %v3156, 0
    %vm3219 = vcmp.lt.s32.totalorder %v3163, 0
    %vm3220 = vcmp.lt.s32.totalorder %v3170, 0
    %vm3221 = vcmp.lt.s32.totalorder %v3177, 0
    %vm3222 = vcmp.lt.s32.totalorder %v3184, 0
    %vm3223 = vcmp.lt.s32.totalorder %v3191, 0
    %vm3224 = vcmp.lt.s32.totalorder %v3198, 0
    %vm3225 = vcmp.lt.s32.totalorder %v3205, 0
    %vm3226 = vmand %vm3216, %vm3206
    %vm3227 = vmand %vm3217, %vm3207
    %vm3228 = vmand %vm3218, %vm3208
    %vm3229 = vmand %vm3219, %vm3209
    %vm3230 = vmand %vm3220, %vm3210
    %vm3231 = vmand %vm3221, %vm3211
    %vm3232 = vmand %vm3222, %vm3212
    %vm3233 = vmand %vm3223, %vm3213
    %vm3234 = vmand %vm3224, %vm3214
    %vm3235 = vmand %vm3225, %vm3215
    %v3236 = vadd.s32 %v3142, 8
    %v3237 = vadd.s32 %v3149, 8
    %v3238 = vadd.s32 %v3156, 8
    %v3239 = vadd.s32 %v3163, 8
    %v3240 = vadd.s32 %v3170, 8
    %v3241 = vadd.s32 %v3177, 8
    %v3242 = vadd.s32 %v3184, 8
    %v3243 = vadd.s32 %v3191, 8
    %v3244 = vadd.s32 %v3198, 8
    %v3245 = vadd.s32 %v3205, 8
    %v3246 = vsel %vm3226, %v3236, %v3142
    %v3247 = vsel %vm3227, %v3237, %v3149
    %v3248 = vsel %vm3228, %v3238, %v3156
    %v3249 = vsel %vm3229, %v3239, %v3163
    %v3250 = vsel %vm3230, %v3240, %v3170
    %v3251 = vsel %vm3231, %v3241, %v3177
    %v3252 = vsel %vm3232, %v3242, %v3184
    %v3253 = vsel %vm3233, %v3243, %v3191
    %v3254 = vsel %vm3234, %v3244, %v3198
    %v3255 = vsel %vm3235, %v3245, %v3205
    %vm3256 = vcmp.lt.s32.totalorder %v3246, 5
    %vm3257 = vcmp.lt.s32.totalorder %v3247, 5
    %vm3258 = vcmp.lt.s32.totalorder %v3248, 5
    %vm3259 = vcmp.lt.s32.totalorder %v3249, 5
    %vm3260 = vcmp.lt.s32.totalorder %v3250, 5
    %vm3261 = vcmp.lt.s32.totalorder %v3251, 5
    %vm3262 = vcmp.lt.s32.totalorder %v3252, 5
    %vm3263 = vcmp.lt.s32.totalorder %v3253, 5
    %vm3264 = vcmp.lt.s32.totalorder %v3254, 5
    %vm3265 = vcmp.lt.s32.totalorder %v3255, 5
    %v3266 = vsel %vm3256, 1, 0
    %v3267 = vsel %vm3257, 1, 0
    %v3268 = vsel %vm3258, 1, 0
    %v3269 = vsel %vm3259, 1, 0
    %v3270 = vsel %vm3260, 1, 0
    %v3271 = vsel %vm3261, 1, 0
    %v3272 = vsel %vm3262, 1, 0
    %v3273 = vsel %vm3263, 1, 0
    %v3274 = vsel %vm3264, 1, 0
    %v3275 = vsel %vm3265, 1, 0
    %v3276 = vcvt.s32.f32 %v3266
    %v3277 = vcvt.s32.f32 %v3267
    %v3278 = vcvt.s32.f32 %v3268
    %v3279 = vcvt.s32.f32 %v3269
    %v3280 = vcvt.s32.f32 %v3270
    %v3281 = vcvt.s32.f32 %v3271
    %v3282 = vcvt.s32.f32 %v3272
    %v3283 = vcvt.s32.f32 %v3273
    %v3284 = vcvt.s32.f32 %v3274
    %v3285 = vcvt.s32.f32 %v3275
    %v3286 = vmul.f32 %v3087, %v3276
    %v3287 = vmul.f32 %v3090, %v3277
    %v3288 = vmul.f32 %v3095, %v3278
    %v3289 = vmul.f32 %v3098, %v3279
    %v3290 = vmul.f32 %v3103, %v3280
    %v3291 = vmul.f32 %v3106, %v3281
    %v3292 = vmul.f32 %v3111, %v3282
    %v3293 = vmul.f32 %v3114, %v3283
    %v3294 = vmul.f32 %v3119, %v3284
    %v3295 = vmul.f32 %v3122, %v3285
    %v3296 = vadd.f32 %v3286, %v3287
    %v3297 = vadd.f32 %v3296, %v3288
    %v3298 = vadd.f32 %v3297, %v3289
    %v3299 = vadd.f32 %v3298, %v3290
    %v3300 = vadd.f32 %v3299, %v3291
    %v3301 = vadd.f32 %v3300, %v3292
    %v3302 = vadd.f32 %v3301, %v3293
    %v3303 = vadd.f32 %v3302, %v3294
    %v3304 = vadd.f32 %v3303, %v3295
    %v3305 = vrot.slane %v3304, 4
    %v3306 = vadd.f32 %v3304, %v3305
    %v3307 = vrot.slane %v3306, 2
    %v3308 = vadd.f32 %v3306, %v3307
    %v3309 = vrot.slane %v3308, 1
    %v3310 = vadd.f32 %v3308, %v3309
    %v3311 = vrcp.pop 50.0
    %v3312 = vmul.f32 %v3310, %v3311
    %v3313 = vsub.f32 %v3087, %v3312
    %v3314 = vsub.f32 %v3090, %v3312
    %v3315 = vsub.f32 %v3095, %v3312
    %v3316 = vsub.f32 %v3098, %v3312
    %v3317 = vsub.f32 %v3103, %v3312
    %v3318 = vsub.f32 %v3106, %v3312
    %v3319 = vsub.f32 %v3111, %v3312
    %v3320 = vsub.f32 %v3114, %v3312
    %v3321 = vsub.f32 %v3119, %v3312
    %v3322 = vsub.f32 %v3122, %v3312
    %v3323 = vmul.f32 %v3313, %v3276
    %v3324 = vmul.f32 %v3314, %v3277
    %v3325 = vmul.f32 %v3315, %v3278
    %v3326 = vmul.f32 %v3316, %v3279
    %v3327 = vmul.f32 %v3317, %v3280
    %v3328 = vmul.f32 %v3318, %v3281
    %v3329 = vmul.f32 %v3319, %v3282
    %v3330 = vmul.f32 %v3320, %v3283
    %v3331 = vmul.f32 %v3321, %v3284
    %v3332 = vmul.f32 %v3322, %v3285
    %v3333 = vmul.f32 %v3323, %v3323
    %v3334 = vmul.f32 %v3324, %v3324
    %v3335 = vmul.f32 %v3325, %v3325
    %v3336 = vmul.f32 %v3326, %v3326
    %v3337 = vmul.f32 %v3327, %v3327
    %v3338 = vmul.f32 %v3328, %v3328
    %v3339 = vmul.f32 %v3329, %v3329
    %v3340 = vmul.f32 %v3330, %v3330
    %v3341 = vmul.f32 %v3331, %v3331
    %v3342 = vmul.f32 %v3332, %v3332
    %v3343 = vadd.f32 %v3333, %v3334
    %v3344 = vadd.f32 %v3343, %v3335
    %v3345 = vadd.f32 %v3344, %v3336
    %v3346 = vadd.f32 %v3345, %v3337
    %v3347 = vadd.f32 %v3346, %v3338
    %v3348 = vadd.f32 %v3347, %v3339
    %v3349 = vadd.f32 %v3348, %v3340
    %v3350 = vadd.f32 %v3349, %v3341
    %v3351 = vadd.f32 %v3350, %v3342
    %v3352 = vrot.slane %v3351, 4
    %v3353 = vadd.f32 %v3351, %v3352
    %v3354 = vrot.slane %v3353, 2
    %v3355 = vadd.f32 %v3353, %v3354
    %v3356 = vrot.slane %v3355, 1
    %v3357 = vadd.f32 %v3355, %v3356
    %v3358 = vmul.f32 %v3357, %v3311
    %v3359 = vlaneseq
    %v3360 = vshrl.u32 %v3359, 7
    %v3361 = vsub.s32 0, %v3360
    %v3362 = vrot.slane %v2167, %v3361
    %v3363 = vmul.f32 %v3362, %v3313
    %v3364 = vmul.f32 %v3362, %v3314
    %v3365 = vmul.f32 %v3362, %v3315
    %v3366 = vmul.f32 %v3362, %v3316
    %v3367 = vmul.f32 %v3362, %v3317
    %v3368 = vmul.f32 %v3362, %v3318
    %v3369 = vmul.f32 %v3362, %v3319
    %v3370 = vmul.f32 %v3362, %v3320
    %v3371 = vmul.f32 %v3362, %v3321
    %v3372 = vmul.f32 %v3362, %v3322
    %v3373 = vadd.f32 %v3358, 1e-05
    %v3374 = vrsqrt.pop %v3373
    %v3375 = vmul.f32 %v3363, %v3374
    %v3376 = vmul.f32 %v3364, %v3374
    %v3377 = vmul.f32 %v3365, %v3374
    %v3378 = vmul.f32 %v3366, %v3374
    %v3379 = vmul.f32 %v3367, %v3374
    %v3380 = vmul.f32 %v3368, %v3374
    %v3381 = vmul.f32 %v3369, %v3374
    %v3382 = vmul.f32 %v3370, %v3374
    %v3383 = vmul.f32 %v3371, %v3374
    %v3384 = vmul.f32 %v3372, %v3374
    %v3385 = vlaneseq
    %v3386 = vshrl.u32 %v3385, 7
    %v3387 = vsub.s32 0, %v3386
    %v3388 = vrot.slane %v2168, %v3387
    %v3389 = vadd.f32 %v3375, %v3388
    %v3390 = vadd.f32 %v3376, %v3388
    %v3391 = vadd.f32 %v3377, %v3388
    %v3392 = vadd.f32 %v3378, %v3388
    %v3393 = vadd.f32 %v3379, %v3388
    %v3394 = vadd.f32 %v3380, %v3388
    %v3395 = vadd.f32 %v3381, %v3388
    %v3396 = vadd.f32 %v3382, %v3388
    %v3397 = vadd.f32 %v3383, %v3388
    %v3398 = vadd.f32 %v3384, %v3388
    %vm3399 = vcmp.ge.f32.partialorder %v3389, 0.0
    %vm3400 = vcmp.ge.f32.partialorder %v3390, 0.0
    %vm3401 = vcmp.ge.f32.partialorder %v3391, 0.0
    %vm3402 = vcmp.ge.f32.partialorder %v3392, 0.0
    %vm3403 = vcmp.ge.f32.partialorder %v3393, 0.0
    %vm3404 = vcmp.ge.f32.partialorder %v3394, 0.0
    %vm3405 = vcmp.ge.f32.partialorder %v3395, 0.0
    %vm3406 = vcmp.ge.f32.partialorder %v3396, 0.0
    %vm3407 = vcmp.ge.f32.partialorder %v3397, 0.0
    %vm3408 = vcmp.ge.f32.partialorder %v3398, 0.0
    %v3409 = vmul.f32 %v3389, 0.2
    %v3410 = vmul.f32 %v3390, 0.2
    %v3411 = vmul.f32 %v3391, 0.2
    %v3412 = vmul.f32 %v3392, 0.2
    %v3413 = vmul.f32 %v3393, 0.2
    %v3414 = vmul.f32 %v3394, 0.2
    %v3415 = vmul.f32 %v3395, 0.2
    %v3416 = vmul.f32 %v3396, 0.2
    %v3417 = vmul.f32 %v3397, 0.2
    %v3418 = vmul.f32 %v3398, 0.2
    %v3419 = vsel %vm3399, %v3389, %v3409
    %v3420 = vsel %vm3400, %v3390, %v3410
    %v3421 = vsel %vm3401, %v3391, %v3411
    %v3422 = vsel %vm3402, %v3392, %v3412
    %v3423 = vsel %vm3403, %v3393, %v3413
    %v3424 = vsel %vm3404, %v3394, %v3414
    %v3425 = vsel %vm3405, %v3395, %v3415
    %v3426 = vsel %vm3406, %v3396, %v3416
    %v3427 = vsel %vm3407, %v3397, %v3417
    %v3428 = vsel %vm3408, %v3398, %v3418
    %3429 = vst [vmem:[#allocation5] sm:$0xff] %v3419
    %3430 = vst [vmem:[#allocation5 + $0x8] sm:$0xff] %v3420
    %3431 = vst [vmem:[#allocation5 + $0x10] sm:$0xff] %v3421
    %3432 = vst [vmem:[#allocation5 + $0x18] sm:$0xff] %v3422
    %3433 = vst [vmem:[#allocation5 + $0x20] sm:$0xff] %v3423
    %3434 = vst [vmem:[#allocation5 + $0x28] sm:$0xff] %v3424
    %3435 = vst [vmem:[#allocation5 + $0x30] sm:$0xff] %v3425
    %3436 = vst [vmem:[#allocation5 + $0x38] sm:$0xff] %v3426
    %3437 = vst [vmem:[#allocation5 + $0x40] sm:$0xff] %v3427
    %3438 = vst [vmem:[#allocation5 + $0x48] sm:$0xff] %v3428
    %v3439 = vld [vmem:[#allocation5] sm:$0x1]
    %3440 = vst [vmem:[#allocation6] sm:$0x1] %v3439
    %v3441 = vld [vmem:[#allocation5 + $0x28] sm:$0x1]
    %3442 = vst [vmem:[#allocation6 + $0x1] sm:$0x1] %v3441
    %v3443 = vld [vmem:[#allocation5 + $0x1] sm:$0x1]
    %3444 = vst [vmem:[#allocation6 + $0x2] sm:$0x1] %v3443
    %v3445 = vld [vmem:[#allocation5 + $0x29] sm:$0x1]
    %3446 = vst [vmem:[#allocation6 + $0x3] sm:$0x1] %v3445
    %v3447 = vld [vmem:[#allocation5 + $0x2] sm:$0x1]
    %3448 = vst [vmem:[#allocation6 + $0x4] sm:$0x1] %v3447
    %v3449 = vld [vmem:[#allocation5 + $0x2a] sm:$0x1]
    %3450 = vst [vmem:[#allocation6 + $0x5] sm:$0x1] %v3449
    %v3451 = vld [vmem:[#allocation5 + $0x3] sm:$0x1]
    %3452 = vst [vmem:[#allocation6 + $0x6] sm:$0x1] %v3451
    %v3453 = vld [vmem:[#allocation5 + $0x2b] sm:$0x1]
    %3454 = vst [vmem:[#allocation6 + $0x7] sm:$0x1] %v3453
    %v3455 = vld [vmem:[#allocation5 + $0x8] sm:$0x1]
    %3456 = vst [vmem:[#allocation6 + $0x8] sm:$0x1] %v3455
    %v3457 = vld [vmem:[#allocation5 + $0x30] sm:$0x1]
    %3458 = vst [vmem:[#allocation6 + $0x9] sm:$0x1] %v3457
    %v3459 = vld [vmem:[#allocation5 + $0x9] sm:$0x1]
    %3460 = vst [vmem:[#allocation6 + $0xa] sm:$0x1] %v3459
    %v3461 = vld [vmem:[#allocation5 + $0x31] sm:$0x1]
    %3462 = vst [vmem:[#allocation6 + $0xb] sm:$0x1] %v3461
    %v3463 = vld [vmem:[#allocation5 + $0xa] sm:$0x1]
    %3464 = vst [vmem:[#allocation6 + $0xc] sm:$0x1] %v3463
    %v3465 = vld [vmem:[#allocation5 + $0x32] sm:$0x1]
    %3466 = vst [vmem:[#allocation6 + $0xd] sm:$0x1] %v3465
    %v3467 = vld [vmem:[#allocation5 + $0xb] sm:$0x1]
    %3468 = vst [vmem:[#allocation6 + $0xe] sm:$0x1] %v3467
    %v3469 = vld [vmem:[#allocation5 + $0x33] sm:$0x1]
    %3470 = vst [vmem:[#allocation6 + $0xf] sm:$0x1] %v3469
    %v3471 = vld [vmem:[#allocation5 + $0x10] sm:$0x1]
    %3472 = vst [vmem:[#allocation6 + $0x10] sm:$0x1] %v3471
    %v3473 = vld [vmem:[#allocation5 + $0x38] sm:$0x1]
    %3474 = vst [vmem:[#allocation6 + $0x11] sm:$0x1] %v3473
    %v3475 = vld [vmem:[#allocation5 + $0x11] sm:$0x1]
    %3476 = vst [vmem:[#allocation6 + $0x12] sm:$0x1] %v3475
    %v3477 = vld [vmem:[#allocation5 + $0x39] sm:$0x1]
    %3478 = vst [vmem:[#allocation6 + $0x13] sm:$0x1] %v3477
    %v3479 = vld [vmem:[#allocation5 + $0x12] sm:$0x1]
    %3480 = vst [vmem:[#allocation6 + $0x14] sm:$0x1] %v3479
    %v3481 = vld [vmem:[#allocation5 + $0x3a] sm:$0x1]
    %3482 = vst [vmem:[#allocation6 + $0x15] sm:$0x1] %v3481
    %v3483 = vld [vmem:[#allocation5 + $0x13] sm:$0x1]
    %3484 = vst [vmem:[#allocation6 + $0x16] sm:$0x1] %v3483
    %v3485 = vld [vmem:[#allocation5 + $0x3b] sm:$0x1]
    %3486 = vst [vmem:[#allocation6 + $0x17] sm:$0x1] %v3485
    %v3487 = vld [vmem:[#allocation5 + $0x18] sm:$0x1]
    %3488 = vst [vmem:[#allocation6 + $0x18] sm:$0x1] %v3487
    %v3489 = vld [vmem:[#allocation5 + $0x40] sm:$0x1]
    %3490 = vst [vmem:[#allocation6 + $0x19] sm:$0x1] %v3489
    %v3491 = vld [vmem:[#allocation5 + $0x19] sm:$0x1]
    %3492 = vst [vmem:[#allocation6 + $0x1a] sm:$0x1] %v3491
    %v3493 = vld [vmem:[#allocation5 + $0x41] sm:$0x1]
    %3494 = vst [vmem:[#allocation6 + $0x1b] sm:$0x1] %v3493
    %v3495 = vld [vmem:[#allocation5 + $0x1a] sm:$0x1]
    %3496 = vst [vmem:[#allocation6 + $0x1c] sm:$0x1] %v3495
    %v3497 = vld [vmem:[#allocation5 + $0x42] sm:$0x1]
    %3498 = vst [vmem:[#allocation6 + $0x1d] sm:$0x1] %v3497
    %v3499 = vld [vmem:[#allocation5 + $0x1b] sm:$0x1]
    %3500 = vst [vmem:[#allocation6 + $0x1e] sm:$0x1] %v3499
    %v3501 = vld [vmem:[#allocation5 + $0x43] sm:$0x1]
    %3502 = vst [vmem:[#allocation6 + $0x1f] sm:$0x1] %v3501
    %v3503 = vld [vmem:[#allocation6] sm:$0xff]
    %v3504 = vld [vmem:[#allocation6 + $0x8] sm:$0xff]
    %v3505 = vld [vmem:[#allocation6 + $0x10] sm:$0xff]
    %v3506 = vld [vmem:[#allocation6 + $0x18] sm:$0xff]
    %v3511 = vcombine.high %v3503, %v3503
    %v3513 = vunpack.c.l.s4 1983009808
    %v3514 = vunpack.c.0.s8 %v3513
    %v3515 = vlaneseq
    %v3516 = vshrl.u32 %v3515, 7
    %v3517 = vsub.s32 %v3514, %v3516
    %v3518 = vrot.slane %v3503, %v3517
    %v3520 = vunpack.c.l.s4 1983009808
    %v3521 = vunpack.c.0.s8 %v3520
    %v3522 = vlaneseq
    %v3523 = vshrl.u32 %v3522, 7
    %v3524 = vsub.s32 %v3521, %v3523
    %v3525 = vrot.slane %v3511, %v3524
    %v3526 = vcombine.high %v3518, %v3518
    %v3527 = vcombine.high %v3525, %v3525
    %v3528 = vcombine.high %v3504, %v3504
    %v3530 = vunpack.c.l.s4 1983009808
    %v3531 = vunpack.c.0.s8 %v3530
    %v3532 = vlaneseq
    %v3533 = vshrl.u32 %v3532, 7
    %v3534 = vsub.s32 %v3531, %v3533
    %v3535 = vrot.slane %v3504, %v3534
    %v3537 = vunpack.c.l.s4 1983009808
    %v3538 = vunpack.c.0.s8 %v3537
    %v3539 = vlaneseq
    %v3540 = vshrl.u32 %v3539, 7
    %v3541 = vsub.s32 %v3538, %v3540
    %v3542 = vrot.slane %v3528, %v3541
    %v3543 = vcombine.high %v3535, %v3535
    %v3544 = vcombine.high %v3542, %v3542
    %v3545 = vcombine.high %v3505, %v3505
    %v3547 = vunpack.c.l.s4 1983009808
    %v3548 = vunpack.c.0.s8 %v3547
    %v3549 = vlaneseq
    %v3550 = vshrl.u32 %v3549, 7
    %v3551 = vsub.s32 %v3548, %v3550
    %v3552 = vrot.slane %v3505, %v3551
    %v3554 = vunpack.c.l.s4 1983009808
    %v3555 = vunpack.c.0.s8 %v3554
    %v3556 = vlaneseq
    %v3557 = vshrl.u32 %v3556, 7
    %v3558 = vsub.s32 %v3555, %v3557
    %v3559 = vrot.slane %v3545, %v3558
    %v3560 = vcombine.high %v3552, %v3552
    %v3561 = vcombine.high %v3559, %v3559
    %v3562 = vcombine.high %v3506, %v3506
    %v3564 = vunpack.c.l.s4 1983009808
    %v3565 = vunpack.c.0.s8 %v3564
    %v3566 = vlaneseq
    %v3567 = vshrl.u32 %v3566, 7
    %v3568 = vsub.s32 %v3565, %v3567
    %v3569 = vrot.slane %v3506, %v3568
    %v3571 = vunpack.c.l.s4 1983009808
    %v3572 = vunpack.c.0.s8 %v3571
    %v3573 = vlaneseq
    %v3574 = vshrl.u32 %v3573, 7
    %v3575 = vsub.s32 %v3572, %v3574
    %v3576 = vrot.slane %v3562, %v3575
    %v3577 = vcombine.high %v3569, %v3569
    %v3578 = vcombine.high %v3576, %v3576
    %v3595 = vpack.c.bf16 %v3518, %v3518
    %v3596 = vpack.c.bf16 %v3526, %v3526
    %v3597 = vpack.c.bf16 %v3525, %v3525
    %v3598 = vpack.c.bf16 %v3527, %v3527
    %v3599 = vpack.c.bf16 %v3535, %v3535
    %v3600 = vpack.c.bf16 %v3543, %v3543
    %v3601 = vpack.c.bf16 %v3542, %v3542
    %v3602 = vpack.c.bf16 %v3544, %v3544
    %v3603 = vpack.c.bf16 %v3552, %v3552
    %v3604 = vpack.c.bf16 %v3560, %v3560
    %v3605 = vpack.c.bf16 %v3559, %v3559
    %v3606 = vpack.c.bf16 %v3561, %v3561
    %v3607 = vpack.c.bf16 %v3569, %v3569
    %v3608 = vpack.c.bf16 %v3577, %v3577
    %v3609 = vpack.c.bf16 %v3576, %v3576
    %v3610 = vpack.c.bf16 %v3578, %v3578
    %v3611 = vld [vmem:[#allocation7] sm:$0xff]
    %v3612 = vld [vmem:[#allocation7 + $0x8] sm:$0xff]
    %v3613 = vld [vmem:[#allocation7 + $0x10] sm:$0xff]
    %v3614 = vld [vmem:[#allocation7 + $0x18] sm:$0xff]
    %v3615 = vld [vmem:[#allocation7 + $0x20] sm:$0xff]
    %v3616 = vld [vmem:[#allocation7 + $0x28] sm:$0xff]
    %v3617 = vld [vmem:[#allocation7 + $0x30] sm:$0xff]
    %v3618 = vld [vmem:[#allocation7 + $0x38] sm:$0xff]
    %v3619 = vld [vmem:[#allocation7 + $0x40] sm:$0xff]
    %v3620 = vld [vmem:[#allocation7 + $0x48] sm:$0xff]
    %v3621 = vld [vmem:[#allocation7 + $0x50] sm:$0xff]
    %v3622 = vld [vmem:[#allocation7 + $0x58] sm:$0xff]
    %v3623 = vld [vmem:[#allocation7 + $0x60] sm:$0xff]
    %v3624 = vld [vmem:[#allocation7 + $0x68] sm:$0xff]
    %v3625 = vld [vmem:[#allocation7 + $0x70] sm:$0xff]
    %v3626 = vld [vmem:[#allocation7 + $0x78] sm:$0xff]
    %v3627 = vld [vmem:[#allocation7 + $0x80] sm:$0xff]
    %v3628 = vld [vmem:[#allocation7 + $0x88] sm:$0xff]
    %v3629 = vld [vmem:[#allocation7 + $0x90] sm:$0xff]
    %v3630 = vld [vmem:[#allocation7 + $0x98] sm:$0xff]
    %v3631 = vld [vmem:[#allocation7 + $0xa0] sm:$0xff]
    %v3632 = vld [vmem:[#allocation7 + $0xa8] sm:$0xff]
    %v3633 = vld [vmem:[#allocation7 + $0xb0] sm:$0xff]
    %v3634 = vld [vmem:[#allocation7 + $0xb8] sm:$0xff]
    %v3635 = vld [vmem:[#allocation7 + $0xc0] sm:$0xff]
    %v3636 = vld [vmem:[#allocation7 + $0xc8] sm:$0xff]
    %v3637 = vld [vmem:[#allocation7 + $0xd0] sm:$0xff]
    %v3638 = vld [vmem:[#allocation7 + $0xd8] sm:$0xff]
    %v3639 = vld [vmem:[#allocation7 + $0xe0] sm:$0xff]
    %v3640 = vld [vmem:[#allocation7 + $0xe8] sm:$0xff]
    %v3641 = vld [vmem:[#allocation7 + $0xf0] sm:$0xff]
    %v3642 = vld [vmem:[#allocation7 + $0xf8] sm:$0xff]
    %v3643 = vld [vmem:[#allocation7 + $0x100] sm:$0xff]
    %v3644 = vld [vmem:[#allocation7 + $0x108] sm:$0xff]
    %v3645 = vld [vmem:[#allocation7 + $0x110] sm:$0xff]
    %v3646 = vld [vmem:[#allocation7 + $0x118] sm:$0xff]
    %v3647 = vld [vmem:[#allocation7 + $0x120] sm:$0xff]
    %v3648 = vld [vmem:[#allocation7 + $0x128] sm:$0xff]
    %v3649 = vld [vmem:[#allocation7 + $0x130] sm:$0xff]
    %v3650 = vld [vmem:[#allocation7 + $0x138] sm:$0xff]
    %v3651 = vld [vmem:[#allocation7 + $0x140] sm:$0xff]
    %v3652 = vld [vmem:[#allocation7 + $0x148] sm:$0xff]
    %v3653 = vld [vmem:[#allocation7 + $0x150] sm:$0xff]
    %v3654 = vld [vmem:[#allocation7 + $0x158] sm:$0xff]
    %v3655 = vld [vmem:[#allocation7 + $0x160] sm:$0xff]
    %v3656 = vld [vmem:[#allocation7 + $0x168] sm:$0xff]
    %v3657 = vld [vmem:[#allocation7 + $0x170] sm:$0xff]
    %v3658 = vld [vmem:[#allocation7 + $0x178] sm:$0xff]
    %v3659 = vld [vmem:[#allocation7 + $0x180] sm:$0xff]
    %v3660 = vld [vmem:[#allocation7 + $0x188] sm:$0xff]
    %v3661 = vld [vmem:[#allocation7 + $0x190] sm:$0xff]
    %v3662 = vld [vmem:[#allocation7 + $0x198] sm:$0xff]
    %v3663 = vld [vmem:[#allocation7 + $0x1a0] sm:$0xff]
    %v3664 = vld [vmem:[#allocation7 + $0x1a8] sm:$0xff]
    %v3665 = vld [vmem:[#allocation7 + $0x1b0] sm:$0xff]
    %v3666 = vld [vmem:[#allocation7 + $0x1b8] sm:$0xff]
    %v3667 = vld [vmem:[#allocation7 + $0x1c0] sm:$0xff]
    %v3668 = vld [vmem:[#allocation7 + $0x1c8] sm:$0xff]
    %v3669 = vld [vmem:[#allocation7 + $0x1d0] sm:$0xff]
    %v3670 = vld [vmem:[#allocation7 + $0x1d8] sm:$0xff]
    %v3671 = vld [vmem:[#allocation7 + $0x1e0] sm:$0xff]
    %v3672 = vld [vmem:[#allocation7 + $0x1e8] sm:$0xff]
    %v3673 = vld [vmem:[#allocation7 + $0x1f0] sm:$0xff]
    %v3674 = vld [vmem:[#allocation7 + $0x1f8] sm:$0xff]
    %v3675 = vld [vmem:[#allocation7 + $0x200] sm:$0xff]
    %v3676 = vld [vmem:[#allocation7 + $0x208] sm:$0xff]
    %v3677 = vld [vmem:[#allocation7 + $0x210] sm:$0xff]
    %v3678 = vld [vmem:[#allocation7 + $0x218] sm:$0xff]
    %v3679 = vld [vmem:[#allocation7 + $0x220] sm:$0xff]
    %v3680 = vld [vmem:[#allocation7 + $0x228] sm:$0xff]
    %v3681 = vld [vmem:[#allocation7 + $0x230] sm:$0xff]
    %v3682 = vld [vmem:[#allocation7 + $0x238] sm:$0xff]
    %v3683 = vld [vmem:[#allocation7 + $0x240] sm:$0xff]
    %v3684 = vld [vmem:[#allocation7 + $0x248] sm:$0xff]
    %v3685 = vld [vmem:[#allocation7 + $0x250] sm:$0xff]
    %v3686 = vld [vmem:[#allocation7 + $0x258] sm:$0xff]
    %v3687 = vld [vmem:[#allocation7 + $0x260] sm:$0xff]
    %v3688 = vld [vmem:[#allocation7 + $0x268] sm:$0xff]
    %v3689 = vld [vmem:[#allocation7 + $0x270] sm:$0xff]
    %v3690 = vld [vmem:[#allocation7 + $0x278] sm:$0xff]
    %v3691 = vld [vmem:[#allocation7 + $0x280] sm:$0xff]
    %v3692 = vld [vmem:[#allocation7 + $0x288] sm:$0xff]
    %v3693 = vld [vmem:[#allocation7 + $0x290] sm:$0xff]
    %v3694 = vld [vmem:[#allocation7 + $0x298] sm:$0xff]
    %v3695 = vld [vmem:[#allocation7 + $0x2a0] sm:$0xff]
    %v3696 = vld [vmem:[#allocation7 + $0x2a8] sm:$0xff]
    %v3697 = vld [vmem:[#allocation7 + $0x2b0] sm:$0xff]
    %v3698 = vld [vmem:[#allocation7 + $0x2b8] sm:$0xff]
    %v3699 = vld [vmem:[#allocation7 + $0x2c0] sm:$0xff]
    %v3700 = vld [vmem:[#allocation7 + $0x2c8] sm:$0xff]
    %v3701 = vld [vmem:[#allocation7 + $0x2d0] sm:$0xff]
    %v3702 = vld [vmem:[#allocation7 + $0x2d8] sm:$0xff]
    %v3703 = vld [vmem:[#allocation7 + $0x2e0] sm:$0xff]
    %v3704 = vld [vmem:[#allocation7 + $0x2e8] sm:$0xff]
    %v3705 = vld [vmem:[#allocation7 + $0x2f0] sm:$0xff]
    %v3706 = vld [vmem:[#allocation7 + $0x2f8] sm:$0xff]
    %v3707 = vld [vmem:[#allocation7 + $0x300] sm:$0xff]
    %v3708 = vld [vmem:[#allocation7 + $0x308] sm:$0xff]
    %v3709 = vld [vmem:[#allocation7 + $0x310] sm:$0xff]
    %v3710 = vld [vmem:[#allocation7 + $0x318] sm:$0xff]
    %v3711 = vld [vmem:[#allocation7 + $0x320] sm:$0xff]
    %v3712 = vld [vmem:[#allocation7 + $0x328] sm:$0xff]
    %v3713 = vld [vmem:[#allocation7 + $0x330] sm:$0xff]
    %v3714 = vld [vmem:[#allocation7 + $0x338] sm:$0xff]
    %v3715 = vld [vmem:[#allocation7 + $0x340] sm:$0xff]
    %v3716 = vld [vmem:[#allocation7 + $0x348] sm:$0xff]
    %v3717 = vld [vmem:[#allocation7 + $0x350] sm:$0xff]
    %v3718 = vld [vmem:[#allocation7 + $0x358] sm:$0xff]
    %v3719 = vld [vmem:[#allocation7 + $0x360] sm:$0xff]
    %v3720 = vld [vmem:[#allocation7 + $0x368] sm:$0xff]
    %v3721 = vld [vmem:[#allocation7 + $0x370] sm:$0xff]
    %v3722 = vld [vmem:[#allocation7 + $0x378] sm:$0xff]
    %v3723 = vld [vmem:[#allocation7 + $0x380] sm:$0xff]
    %v3724 = vld [vmem:[#allocation7 + $0x388] sm:$0xff]
    %v3725 = vld [vmem:[#allocation7 + $0x390] sm:$0xff]
    %v3726 = vld [vmem:[#allocation7 + $0x398] sm:$0xff]
    %v3727 = vld [vmem:[#allocation7 + $0x3a0] sm:$0xff]
    %v3728 = vld [vmem:[#allocation7 + $0x3a8] sm:$0xff]
    %v3729 = vld [vmem:[#allocation7 + $0x3b0] sm:$0xff]
    %v3730 = vld [vmem:[#allocation7 + $0x3b8] sm:$0xff]
    %v3731 = vld [vmem:[#allocation7 + $0x3c0] sm:$0xff]
    %v3732 = vld [vmem:[#allocation7 + $0x3c8] sm:$0xff]
    %v3733 = vld [vmem:[#allocation7 + $0x3d0] sm:$0xff]
    %v3734 = vld [vmem:[#allocation7 + $0x3d8] sm:$0xff]
    %v3735 = vld [vmem:[#allocation7 + $0x3e0] sm:$0xff]
    %v3736 = vld [vmem:[#allocation7 + $0x3e8] sm:$0xff]
    %v3737 = vld [vmem:[#allocation7 + $0x3f0] sm:$0xff]
    %v3738 = vld [vmem:[#allocation7 + $0x3f8] sm:$0xff]
    %v3739 = vld [vmem:[%s6] sm:$0x1]
    %v3741 = vlaneseq
    %v3742 = vshrl.u32 %v3741, 7
    %v3743 = vsub.s32 0, %v3742
    %v3744 = vrot.slane %v3739, %v3743
    %3746 = vmatprep.subr.bf16.mxu0 0
    %3747 = vmatpush1.bf16.msra.mxu0 %v3611
    %3748 = vmatprep.subr.bf16.mxu0 0
    %3749 = vmatpush1.bf16.msra.mxu0 %v3612
    %3750 = vmatprep.subr.bf16.mxu0 0
    %3751 = vmatpush1.bf16.msra.mxu0 %v3613
    %3752 = vmatprep.subr.bf16.mxu0 0
    %3753 = vmatpush1.bf16.msra.mxu0 %v3614
    %3754 = vmatprep.subr.bf16.mxu0 0
    %3755 = vmatpush1.bf16.msra.mxu0 %v3615
    %3756 = vmatprep.subr.bf16.mxu0 0
    %3757 = vmatpush1.bf16.msra.mxu0 %v3616
    %3758 = vmatprep.subr.bf16.mxu0 0
    %3759 = vmatpush1.bf16.msra.mxu0 %v3617
    %3760 = vmatprep.subr.bf16.mxu0 0
    %3761 = vmatpush1.bf16.msra.mxu0 %v3618
    %3762 = vmatprep.subr.bf16.mxu0 0
    %3763 = vmatpush1.bf16.msra.mxu0 %v3619
    %3764 = vmatprep.subr.bf16.mxu0 0
    %3765 = vmatpush1.bf16.msra.mxu0 %v3620
    %3766 = vmatprep.subr.bf16.mxu0 0
    %3767 = vmatpush1.bf16.msra.mxu0 %v3621
    %3768 = vmatprep.subr.bf16.mxu0 0
    %3769 = vmatpush1.bf16.msra.mxu0 %v3622
    %3770 = vmatprep.subr.bf16.mxu0 0
    %3771 = vmatpush1.bf16.msra.mxu0 %v3623
    %3772 = vmatprep.subr.bf16.mxu0 0
    %3773 = vmatpush1.bf16.msra.mxu0 %v3624
    %3774 = vmatprep.subr.bf16.mxu0 0
    %3775 = vmatpush1.bf16.msra.mxu0 %v3625
    %3776 = vmatprep.subr.bf16.mxu0 0
    %3777 = vmatpush1.bf16.msra.mxu0 %v3626
    %3778 = vmatprep.mubr.bf16.mxu0 %v3596
    %3779 = vmatmul.mubr.bf16.gmra.mrb[0].mxu0 %v3595
    %v3780 = vpop.f32.mrb[0].mxu0
    %v3781 = vadd.f32 %v3744, %v3780
    %v3782 = vpop.f32.mrb[0].mxu0
    %v3783 = vpop.f32.mrb[0].mxu0
    %v3784 = vpop.f32.mrb[0].mxu0
    %3785 = vdwg.mxu0
    %3786 = vmatprep.subr.bf16.mxu0 0
    %3787 = vmatpush1.bf16.msra.mxu0 %v3627
    %3788 = vmatprep.subr.bf16.mxu0 0
    %3789 = vmatpush1.bf16.msra.mxu0 %v3628
    %3790 = vmatprep.subr.bf16.mxu0 0
    %3791 = vmatpush1.bf16.msra.mxu0 %v3629
    %3792 = vmatprep.subr.bf16.mxu0 0
    %3793 = vmatpush1.bf16.msra.mxu0 %v3630
    %3794 = vmatprep.subr.bf16.mxu0 0
    %3795 = vmatpush1.bf16.msra.mxu0 %v3631
    %3796 = vmatprep.subr.bf16.mxu0 0
    %3797 = vmatpush1.bf16.msra.mxu0 %v3632
    %3798 = vmatprep.subr.bf16.mxu0 0
    %3799 = vmatpush1.bf16.msra.mxu0 %v3633
    %3800 = vmatprep.subr.bf16.mxu0 0
    %3801 = vmatpush1.bf16.msra.mxu0 %v3634
    %3802 = vmatprep.subr.bf16.mxu0 0
    %3803 = vmatpush1.bf16.msra.mxu0 %v3635
    %3804 = vmatprep.subr.bf16.mxu0 0
    %3805 = vmatpush1.bf16.msra.mxu0 %v3636
    %3806 = vmatprep.subr.bf16.mxu0 0
    %3807 = vmatpush1.bf16.msra.mxu0 %v3637
    %3808 = vmatprep.subr.bf16.mxu0 0
    %3809 = vmatpush1.bf16.msra.mxu0 %v3638
    %3810 = vmatprep.subr.bf16.mxu0 0
    %3811 = vmatpush1.bf16.msra.mxu0 %v3639
    %3812 = vmatprep.subr.bf16.mxu0 0
    %3813 = vmatpush1.bf16.msra.mxu0 %v3640
    %3814 = vmatprep.subr.bf16.mxu0 0
    %3815 = vmatpush1.bf16.msra.mxu0 %v3641
    %3816 = vmatprep.subr.bf16.mxu0 0
    %3817 = vmatpush1.bf16.msra.mxu0 %v3642
    %3818 = vmatprep.mubr.bf16.mxu0 %v3598
    %3819 = vmatmul.mubr.bf16.gmra.mrb[0].mxu0 %v3597
    %v3820 = vpop.f32.mrb[0].mxu0
    %v3821 = vadd.f32 %v3781, %v3820
    %v3822 = vpop.f32.mrb[0].mxu0
    %v3823 = vpop.f32.mrb[0].mxu0
    %v3824 = vpop.f32.mrb[0].mxu0
    %3825 = vdwg.mxu0
    %3826 = vmatprep.subr.bf16.mxu0 0
    %3827 = vmatpush1.bf16.msra.mxu0 %v3643
    %3828 = vmatprep.subr.bf16.mxu0 0
    %3829 = vmatpush1.bf16.msra.mxu0 %v3644
    %3830 = vmatprep.subr.bf16.mxu0 0
    %3831 = vmatpush1.bf16.msra.mxu0 %v3645
    %3832 = vmatprep.subr.bf16.mxu0 0
    %3833 = vmatpush1.bf16.msra.mxu0 %v3646
    %3834 = vmatprep.subr.bf16.mxu0 0
    %3835 = vmatpush1.bf16.msra.mxu0 %v3647
    %3836 = vmatprep.subr.bf16.mxu0 0
    %3837 = vmatpush1.bf16.msra.mxu0 %v3648
    %3838 = vmatprep.subr.bf16.mxu0 0
    %3839 = vmatpush1.bf16.msra.mxu0 %v3649
    %3840 = vmatprep.subr.bf16.mxu0 0
    %3841 = vmatpush1.bf16.msra.mxu0 %v3650
    %3842 = vmatprep.subr.bf16.mxu0 0
    %3843 = vmatpush1.bf16.msra.mxu0 %v3651
    %3844 = vmatprep.subr.bf16.mxu0 0
    %3845 = vmatpush1.bf16.msra.mxu0 %v3652
    %3846 = vmatprep.subr.bf16.mxu0 0
    %3847 = vmatpush1.bf16.msra.mxu0 %v3653
    %3848 = vmatprep.subr.bf16.mxu0 0
    %3849 = vmatpush1.bf16.msra.mxu0 %v3654
    %3850 = vmatprep.subr.bf16.mxu0 0
    %3851 = vmatpush1.bf16.msra.mxu0 %v3655
    %3852 = vmatprep.subr.bf16.mxu0 0
    %3853 = vmatpush1.bf16.msra.mxu0 %v3656
    %3854 = vmatprep.subr.bf16.mxu0 0
    %3855 = vmatpush1.bf16.msra.mxu0 %v3657
    %3856 = vmatprep.subr.bf16.mxu0 0
    %3857 = vmatpush1.bf16.msra.mxu0 %v3658
    %3858 = vmatprep.mubr.bf16.mxu0 %v3600
    %3859 = vmatmul.mubr.bf16.gmra.mrb[0].mxu0 %v3599
    %v3860 = vpop.f32.mrb[0].mxu0
    %v3861 = vadd.f32 %v3821, %v3860
    %v3862 = vpop.f32.mrb[0].mxu0
    %v3863 = vpop.f32.mrb[0].mxu0
    %v3864 = vpop.f32.mrb[0].mxu0
    %3865 = vdwg.mxu0
    %3866 = vmatprep.subr.bf16.mxu0 0
    %3867 = vmatpush1.bf16.msra.mxu0 %v3659
    %3868 = vmatprep.subr.bf16.mxu0 0
    %3869 = vmatpush1.bf16.msra.mxu0 %v3660
    %3870 = vmatprep.subr.bf16.mxu0 0
    %3871 = vmatpush1.bf16.msra.mxu0 %v3661
    %3872 = vmatprep.subr.bf16.mxu0 0
    %3873 = vmatpush1.bf16.msra.mxu0 %v3662
    %3874 = vmatprep.subr.bf16.mxu0 0
    %3875 = vmatpush1.bf16.msra.mxu0 %v3663
    %3876 = vmatprep.subr.bf16.mxu0 0
    %3877 = vmatpush1.bf16.msra.mxu0 %v3664
    %3878 = vmatprep.subr.bf16.mxu0 0
    %3879 = vmatpush1.bf16.msra.mxu0 %v3665
    %3880 = vmatprep.subr.bf16.mxu0 0
    %3881 = vmatpush1.bf16.msra.mxu0 %v3666
    %3882 = vmatprep.subr.bf16.mxu0 0
    %3883 = vmatpush1.bf16.msra.mxu0 %v3667
    %3884 = vmatprep.subr.bf16.mxu0 0
    %3885 = vmatpush1.bf16.msra.mxu0 %v3668
    %3886 = vmatprep.subr.bf16.mxu0 0
    %3887 = vmatpush1.bf16.msra.mxu0 %v3669
    %3888 = vmatprep.subr.bf16.mxu0 0
    %3889 = vmatpush1.bf16.msra.mxu0 %v3670
    %3890 = vmatprep.subr.bf16.mxu0 0
    %3891 = vmatpush1.bf16.msra.mxu0 %v3671
    %3892 = vmatprep.subr.bf16.mxu0 0
    %3893 = vmatpush1.bf16.msra.mxu0 %v3672
    %3894 = vmatprep.subr.bf16.mxu0 0
    %3895 = vmatpush1.bf16.msra.mxu0 %v3673
    %3896 = vmatprep.subr.bf16.mxu0 0
    %3897 = vmatpush1.bf16.msra.mxu0 %v3674
    %3898 = vmatprep.mubr.bf16.mxu0 %v3602
    %3899 = vmatmul.mubr.bf16.gmra.mrb[0].mxu0 %v3601
    %v3900 = vpop.f32.mrb[0].mxu0
    %v3901 = vadd.f32 %v3861, %v3900
    %v3902 = vpop.f32.mrb[0].mxu0
    %v3903 = vpop.f32.mrb[0].mxu0
    %v3904 = vpop.f32.mrb[0].mxu0
    %3905 = vdwg.mxu0
    %3906 = vmatprep.subr.bf16.mxu0 0
    %3907 = vmatpush1.bf16.msra.mxu0 %v3675
    %3908 = vmatprep.subr.bf16.mxu0 0
    %3909 = vmatpush1.bf16.msra.mxu0 %v3676
    %3910 = vmatprep.subr.bf16.mxu0 0
    %3911 = vmatpush1.bf16.msra.mxu0 %v3677
    %3912 = vmatprep.subr.bf16.mxu0 0
    %3913 = vmatpush1.bf16.msra.mxu0 %v3678
    %3914 = vmatprep.subr.bf16.mxu0 0
    %3915 = vmatpush1.bf16.msra.mxu0 %v3679
    %3916 = vmatprep.subr.bf16.mxu0 0
    %3917 = vmatpush1.bf16.msra.mxu0 %v3680
    %3918 = vmatprep.subr.bf16.mxu0 0
    %3919 = vmatpush1.bf16.msra.mxu0 %v3681
    %3920 = vmatprep.subr.bf16.mxu0 0
    %3921 = vmatpush1.bf16.msra.mxu0 %v3682
    %3922 = vmatprep.subr.bf16.mxu0 0
    %3923 = vmatpush1.bf16.msra.mxu0 %v3683
    %3924 = vmatprep.subr.bf16.mxu0 0
    %3925 = vmatpush1.bf16.msra.mxu0 %v3684
    %3926 = vmatprep.subr.bf16.mxu0 0
    %3927 = vmatpush1.bf16.msra.mxu0 %v3685
    %3928 = vmatprep.subr.bf16.mxu0 0
    %3929 = vmatpush1.bf16.msra.mxu0 %v3686
    %3930 = vmatprep.subr.bf16.mxu0 0
    %3931 = vmatpush1.bf16.msra.mxu0 %v3687
    %3932 = vmatprep.subr.bf16.mxu0 0
    %3933 = vmatpush1.bf16.msra.mxu0 %v3688
    %3934 = vmatprep.subr.bf16.mxu0 0
    %3935 = vmatpush1.bf16.msra.mxu0 %v3689
    %3936 = vmatprep.subr.bf16.mxu0 0
    %3937 = vmatpush1.bf16.msra.mxu0 %v3690
    %3938 = vmatprep.mubr.bf16.mxu0 %v3604
    %3939 = vmatmul.mubr.bf16.gmra.mrb[0].mxu0 %v3603
    %v3940 = vpop.f32.mrb[0].mxu0
    %v3941 = vadd.f32 %v3901, %v3940
    %v3942 = vpop.f32.mrb[0].mxu0
    %v3943 = vpop.f32.mrb[0].mxu0
    %v3944 = vpop.f32.mrb[0].mxu0
    %3945 = vdwg.mxu0
    %3946 = vmatprep.subr.bf16.mxu0 0
    %3947 = vmatpush1.bf16.msra.mxu0 %v3691
    %3948 = vmatprep.subr.bf16.mxu0 0
    %3949 = vmatpush1.bf16.msra.mxu0 %v3692
    %3950 = vmatprep.subr.bf16.mxu0 0
    %3951 = vmatpush1.bf16.msra.mxu0 %v3693
    %3952 = vmatprep.subr.bf16.mxu0 0
    %3953 = vmatpush1.bf16.msra.mxu0 %v3694
    %3954 = vmatprep.subr.bf16.mxu0 0
    %3955 = vmatpush1.bf16.msra.mxu0 %v3695
    %3956 = vmatprep.subr.bf16.mxu0 0
    %3957 = vmatpush1.bf16.msra.mxu0 %v3696
    %3958 = vmatprep.subr.bf16.mxu0 0
    %3959 = vmatpush1.bf16.msra.mxu0 %v3697
    %3960 = vmatprep.subr.bf16.mxu0 0
    %3961 = vmatpush1.bf16.msra.mxu0 %v3698
    %3962 = vmatprep.subr.bf16.mxu0 0
    %3963 = vmatpush1.bf16.msra.mxu0 %v3699
    %3964 = vmatprep.subr.bf16.mxu0 0
    %3965 = vmatpush1.bf16.msra.mxu0 %v3700
    %3966 = vmatprep.subr.bf16.mxu0 0
    %3967 = vmatpush1.bf16.msra.mxu0 %v3701
    %3968 = vmatprep.subr.bf16.mxu0 0
    %3969 = vmatpush1.bf16.msra.mxu0 %v3702
    %3970 = vmatprep.subr.bf16.mxu0 0
    %3971 = vmatpush1.bf16.msra.mxu0 %v3703
    %3972 = vmatprep.subr.bf16.mxu0 0
    %3973 = vmatpush1.bf16.msra.mxu0 %v3704
    %3974 = vmatprep.subr.bf16.mxu0 0
    %3975 = vmatpush1.bf16.msra.mxu0 %v3705
    %3976 = vmatprep.subr.bf16.mxu0 0
    %3977 = vmatpush1.bf16.msra.mxu0 %v3706
    %3978 = vmatprep.mubr.bf16.mxu0 %v3606
    %3979 = vmatmul.mubr.bf16.gmra.mrb[0].mxu0 %v3605
    %v3980 = vpop.f32.mrb[0].mxu0
    %v3981 = vadd.f32 %v3941, %v3980
    %v3982 = vpop.f32.mrb[0].mxu0
    %v3983 = vpop.f32.mrb[0].mxu0
    %v3984 = vpop.f32.mrb[0].mxu0
    %3985 = vdwg.mxu0
    %3986 = vmatprep.subr.bf16.mxu0 0
    %3987 = vmatpush1.bf16.msra.mxu0 %v3707
    %3988 = vmatprep.subr.bf16.mxu0 0
    %3989 = vmatpush1.bf16.msra.mxu0 %v3708
    %3990 = vmatprep.subr.bf16.mxu0 0
    %3991 = vmatpush1.bf16.msra.mxu0 %v3709
    %3992 = vmatprep.subr.bf16.mxu0 0
    %3993 = vmatpush1.bf16.msra.mxu0 %v3710
    %3994 = vmatprep.subr.bf16.mxu0 0
    %3995 = vmatpush1.bf16.msra.mxu0 %v3711
    %3996 = vmatprep.subr.bf16.mxu0 0
    %3997 = vmatpush1.bf16.msra.mxu0 %v3712
    %3998 = vmatprep.subr.bf16.mxu0 0
    %3999 = vmatpush1.bf16.msra.mxu0 %v3713
    %4000 = vmatprep.subr.bf16.mxu0 0
    %4001 = vmatpush1.bf16.msra.mxu0 %v3714
    %4002 = vmatprep.subr.bf16.mxu0 0
    %4003 = vmatpush1.bf16.msra.mxu0 %v3715
    %4004 = vmatprep.subr.bf16.mxu0 0
    %4005 = vmatpush1.bf16.msra.mxu0 %v3716
    %4006 = vmatprep.subr.bf16.mxu0 0
    %4007 = vmatpush1.bf16.msra.mxu0 %v3717
    %4008 = vmatprep.subr.bf16.mxu0 0
    %4009 = vmatpush1.bf16.msra.mxu0 %v3718
    %4010 = vmatprep.subr.bf16.mxu0 0
    %4011 = vmatpush1.bf16.msra.mxu0 %v3719
    %4012 = vmatprep.subr.bf16.mxu0 0
    %4013 = vmatpush1.bf16.msra.mxu0 %v3720
    %4014 = vmatprep.subr.bf16.mxu0 0
    %4015 = vmatpush1.bf16.msra.mxu0 %v3721
    %4016 = vmatprep.subr.bf16.mxu0 0
    %4017 = vmatpush1.bf16.msra.mxu0 %v3722
    %4018 = vmatprep.mubr.bf16.mxu0 %v3608
    %4019 = vmatmul.mubr.bf16.gmra.mrb[0].mxu0 %v3607
    %v4020 = vpop.f32.mrb[0].mxu0
    %v4021 = vadd.f32 %v3981, %v4020
    %v4022 = vpop.f32.mrb[0].mxu0
    %v4023 = vpop.f32.mrb[0].mxu0
    %v4024 = vpop.f32.mrb[0].mxu0
    %4025 = vdwg.mxu0
    %4026 = vmatprep.subr.bf16.mxu0 0
    %4027 = vmatpush1.bf16.msra.mxu0 %v3723
    %4028 = vmatprep.subr.bf16.mxu0 0
    %4029 = vmatpush1.bf16.msra.mxu0 %v3724
    %4030 = vmatprep.subr.bf16.mxu0 0
    %4031 = vmatpush1.bf16.msra.mxu0 %v3725
    %4032 = vmatprep.subr.bf16.mxu0 0
    %4033 = vmatpush1.bf16.msra.mxu0 %v3726
    %4034 = vmatprep.subr.bf16.mxu0 0
    %4035 = vmatpush1.bf16.msra.mxu0 %v3727
    %4036 = vmatprep.subr.bf16.mxu0 0
    %4037 = vmatpush1.bf16.msra.mxu0 %v3728
    %4038 = vmatprep.subr.bf16.mxu0 0
    %4039 = vmatpush1.bf16.msra.mxu0 %v3729
    %4040 = vmatprep.subr.bf16.mxu0 0
    %4041 = vmatpush1.bf16.msra.mxu0 %v3730
    %4042 = vmatprep.subr.bf16.mxu0 0
    %4043 = vmatpush1.bf16.msra.mxu0 %v3731
    %4044 = vmatprep.subr.bf16.mxu0 0
    %4045 = vmatpush1.bf16.msra.mxu0 %v3732
    %4046 = vmatprep.subr.bf16.mxu0 0
    %4047 = vmatpush1.bf16.msra.mxu0 %v3733
    %4048 = vmatprep.subr.bf16.mxu0 0
    %4049 = vmatpush1.bf16.msra.mxu0 %v3734
    %4050 = vmatprep.subr.bf16.mxu0 0
    %4051 = vmatpush1.bf16.msra.mxu0 %v3735
    %4052 = vmatprep.subr.bf16.mxu0 0
    %4053 = vmatpush1.bf16.msra.mxu0 %v3736
    %4054 = vmatprep.subr.bf16.mxu0 0
    %4055 = vmatpush1.bf16.msra.mxu0 %v3737
    %4056 = vmatprep.subr.bf16.mxu0 0
    %4057 = vmatpush1.bf16.msra.mxu0 %v3738
    %4058 = vmatprep.mubr.bf16.mxu0 %v3610
    %4059 = vmatmul.mubr.bf16.gmra.mrb[0].mxu0 %v3609
    %v4060 = vpop.f32.mrb[0].mxu0
    %v4061 = vadd.f32 %v4021, %v4060
    %v4062 = vpop.f32.mrb[0].mxu0
    %v4063 = vpop.f32.mrb[0].mxu0
    %v4064 = vpop.f32.mrb[0].mxu0
    %4065 = vdwg.mxu0
    %4066 = vst [vmem:[#allocation8] sm:$0x3] %v4061
    // Predicated region
    $region30: #{encoder_forward.1} parent=1 // pred_check
      _
    $region31: #{encoder_forward.1} parent=1 // pred_check_branch
      %4068 = sbr.rel (0) target = $region33
    $region32: #{encoder_forward.1} parent=1 // pred_region
      %s4070 = ssub.s32 32, 32
      %4071 = vsyncadd [#allocation9], %s4070
      %s4073 = sshll.u32 [#allocation8], 4
      %s4074 = int_to_ptr.vmem [resolvable:$true] %s4073
      %4076 = dma.vmem_to_hbm [thread:$0]  %s4074, 32, %s7, [#allocation9]
    $region33: #{encoder_forward.1} parent=1 // pred_fallthru
      _
    // Predicated region
    $region34: #{encoder_forward.1} parent=1 // pred_check
      _
    $region35: #{encoder_forward.1} parent=1 // pred_check_branch
      %4078 = sbr.rel (0) target = $region37
    $region36: #{encoder_forward.1} parent=1 // pred_region
      %4079 = dma.done [#allocation9], 32
    $region37: #{encoder_forward.1} parent=1 // pred_fallthru
      _
    %4080 = vsyncpa [#allocation9], 1

</llo_original>
